<compile_context>
chip_gen: v7x
topology: tpu7x:2x2x1
jax: 0.10.0
libtpu: 0.0.40
codegen_flags: <defaults>
</compile_context>

<pallas_src>
import jax
import jax.numpy as jnp
from jax.experimental import pallas as pl
from jax.experimental.pallas import tpu as pltpu

D = 8           # number of pts_linears
W = 256         # hidden width
D_IN = 3        # input_ch
D_VIEW = 3      # input_ch_view
TN = 512        # rows per grid step
HEAD_PAD = 128  # lane padding for the alpha / rgb heads


def _nerf_kernel(pts_ref, views_ref,
                 w0_ref, b0_ref,
                 wmid_ref, bmid_ref,
                 w5p_ref, w5h_ref, b5_ref,
                 wfa_ref, bfa_ref,
                 wvf_ref, wvv_ref, bv_ref,
                 wr_ref, br_ref,
                 out_ref):
    bf16 = jnp.bfloat16
    f32 = jnp.float32

    pts_b = pts_ref[...].astype(bf16)       # (TN, 3)
    views_b = views_ref[...].astype(bf16)   # (TN, 3)

    # layer 0: (3 -> 256), relu
    h = jnp.maximum(
        jnp.dot(pts_b, w0_ref[...], preferred_element_type=f32) + b0_ref[...],
        0.0)

    # layers 1..4: (256 -> 256), relu
    for j in range(4):
        h = jnp.maximum(
            jnp.dot(h.astype(bf16), wmid_ref[j], preferred_element_type=f32)
            + bmid_ref[j], 0.0)

    # skip: cat([pts, h]) -> layer 5 (259 -> 256), relu
    # implemented as pts @ W5[:3] + h @ W5[3:]
    h = jnp.maximum(
        jnp.dot(pts_b, w5p_ref[...], preferred_element_type=f32)
        + jnp.dot(h.astype(bf16), w5h_ref[...], preferred_element_type=f32)
        + b5_ref[...], 0.0)

    # layers 6..7: (256 -> 256), relu
    for j in range(4, 6):
        h = jnp.maximum(
            jnp.dot(h.astype(bf16), wmid_ref[j], preferred_element_type=f32)
            + bmid_ref[j], 0.0)

    # fused heads: cols 0:W = feature_linear, col W = alpha_linear, rest zero pad
    fa = jnp.dot(h.astype(bf16), wfa_ref[...], preferred_element_type=f32) + bfa_ref[...]
    feature = fa[:, :W]          # (TN, 256)  -- lane-aligned slice (multiple of 128)
    alpha_blk = fa[:, W:]        # (TN, 128), col 0 = alpha, cols 1: exactly zero

    # views branch: cat([feature, views]) -> (259 -> 128), relu
    hv = jnp.maximum(
        jnp.dot(feature.astype(bf16), wvf_ref[...], preferred_element_type=f32)
        + jnp.dot(views_b, wvv_ref[...], preferred_element_type=f32)
        + bv_ref[...], 0.0)

    # rgb head, padded to 128 lanes (cols 1:4 real, col 0 and 4: exactly zero)
    rgb_blk = jnp.dot(hv.astype(bf16), wr_ref[...], preferred_element_type=f32) + br_ref[...]

    # single lane-dense (TN, 128) output: col 0 = alpha, cols 1:4 = rgb
    out_ref[...] = alpha_blk + rgb_blk


def nerf_forward(input_pts, input_views, params, *, tn=TN):
    n = input_pts.shape[0]
    n_pad = pl.cdiv(n, tn) * tn
    if n_pad != n:
        pad = n_pad - n
        input_pts = jnp.pad(input_pts, ((0, pad), (0, 0)))
        input_views = jnp.pad(input_views, ((0, pad), (0, 0)))
    grid = (n_pad // tn,)

    def full(shape):
        # weight / bias blocks: whole array, same block every grid step
        return pl.BlockSpec(shape, lambda i, _s=shape: tuple(0 for _ in _s))

    in_specs = [
        pl.BlockSpec((tn, D_IN), lambda i: (i, 0)),     # pts
        pl.BlockSpec((tn, D_VIEW), lambda i: (i, 0)),   # views
        full((D_IN, W)), full((1, W)),                  # w0, b0
        full((6, W, W)), full((6, W)),                  # wmid, bmid (layers 1-4, 6-7)
        full((D_IN, W)), full((W, W)), full((1, W)),    # w5p, w5h, b5
        full((W, W + HEAD_PAD)), full((1, W + HEAD_PAD)),  # fused feature|alpha
        full((W, W // 2)), full((D_VIEW, W // 2)), full((1, W // 2)),  # views_linear split
        full((W // 2, HEAD_PAD)), full((1, HEAD_PAD)),  # rgb_linear (lane padded)
    ]
    out_specs = pl.BlockSpec((tn, HEAD_PAD), lambda i: (i, 0))
    out_shape = jax.ShapeDtypeStruct((n_pad, HEAD_PAD), jnp.float32)

    # Advisory cost hint (per full call) for the XLA scheduler.
    flops_per_row = 2 * (D_IN * W                    # layer 0
                         + 6 * W * W                 # layers 1-4, 6-7
                         + D_IN * W + W * W          # skip layer 5
                         + W * (W + HEAD_PAD)        # fused feature|alpha head
                         + W * (W // 2) + D_VIEW * (W // 2)   # views branch
                         + (W // 2) * HEAD_PAD)      # rgb head
    weight_bytes = 2 * (D_IN * W + 6 * W * W + D_IN * W + W * W
                        + W * (W + HEAD_PAD) + W * (W // 2)
                        + D_VIEW * (W // 2) + (W // 2) * HEAD_PAD)
    bytes_accessed = (n_pad * (D_IN + D_VIEW) * 4 + n_pad * HEAD_PAD * 4
                      + weight_bytes)
    cost = pl.CostEstimate(flops=n_pad * flops_per_row, transcendentals=0,
                           bytes_accessed=bytes_accessed)

    fn = pl.pallas_call(
        _nerf_kernel,
        grid_spec=pltpu.PrefetchScalarGridSpec(
            num_scalar_prefetch=0,
            grid=grid,
            in_specs=in_specs,
            out_specs=out_specs,
        ),
        out_shape=out_shape,
        cost_estimate=cost,
        compiler_params=pltpu.CompilerParams(
            dimension_semantics=("parallel",),
            vmem_limit_bytes=40 * 1024 * 1024),
    )
    slab = fn(input_pts, input_views, *params)          # (n_pad, 128)
    alpha = slab[:n, 0:1]                               # col 0
    rgb = slab[:n, 1:4]                                 # cols 1:4
    return alpha, rgb


def init_params(key):
    """Deterministic synthetic weights.  Matrices (in, out) bf16, biases f32."""
    ks = jax.random.split(key, 16)
    s = 0.1
    f32, bf16 = jnp.float32, jnp.bfloat16

    w0 = (jax.random.normal(ks[0], (D_IN, W), f32) * s).astype(bf16)
    b0 = jax.random.normal(ks[1], (1, W), f32) * s

    # layers 1,2,3,4,6,7 (all 256->256), stacked in that order
    wmid = (jax.random.normal(ks[2], (6, W, W), f32) * s).astype(bf16)
    bmid = jax.random.normal(ks[3], (6, W), f32) * s

    # layer 5: Linear(W + input_ch, W); split into [pts-part | h-part]
    w5p = (jax.random.normal(ks[4], (D_IN, W), f32) * s).astype(bf16)
    w5h = (jax.random.normal(ks[5], (W, W), f32) * s).astype(bf16)
    b5 = jax.random.normal(ks[6], (1, W), f32) * s

    wa = jax.random.normal(ks[7], (W, 1), f32) * s      # alpha_linear
    ba = jax.random.normal(ks[8], (1, 1), f32) * s
    wf = jax.random.normal(ks[9], (W, W), f32) * s      # feature_linear
    bf = jax.random.normal(ks[10], (1, W), f32) * s

    # fused [feature | alpha | pad] head, lane width 384 (alpha block zero except col 0)
    wfa = (jnp.zeros((W, W + HEAD_PAD), f32)
           .at[:, :W].set(wf).at[:, W:W + 1].set(wa)).astype(bf16)
    bfa = (jnp.zeros((1, W + HEAD_PAD), f32)
           .at[:, :W].set(bf).at[:, W:W + 1].set(ba))

    # views_linears[0]: Linear(W + input_ch_view, W//2); split [feature | views]
    wvf = (jax.random.normal(ks[11], (W, W // 2), f32) * s).astype(bf16)
    wvv = (jax.random.normal(ks[12], (D_VIEW, W // 2), f32) * s).astype(bf16)
    bv = jax.random.normal(ks[13], (1, W // 2), f32) * s

    # rgb_linear (128 -> 3), lane-padded to 128 output columns; rgb lives in
    # cols 1:4 so it can share the alpha block (col 0) in one output slab.
    wr3 = jax.random.normal(ks[14], (W // 2, 3), f32) * s
    br3 = jax.random.normal(ks[15], (1, 3), f32) * s
    wr = (jnp.zeros((W // 2, HEAD_PAD), f32).at[:, 1:4].set(wr3)).astype(bf16)
    br = jnp.zeros((1, HEAD_PAD), f32).at[:, 1:4].set(br3)

    return (w0, b0, wmid, bmid, w5p, w5h, b5, wfa, bfa, wvf, wvv, bv, wr, br)


def nerf_reference(pts, views, params):
    """Pure-JAX reference mirroring the PyTorch forward (use_viewdirs=True),
    with explicit concats and the same bf16-matmul / f32-accumulate numerics."""
    (w0, b0, wmid, bmid, w5p, w5h, b5, wfa, bfa, wvf, wvv, bv, wr, br) = params

    def dot(a, w):
        return jnp.dot(a.astype(jnp.bfloat16), w, preferred_element_type=jnp.float32)

    h = jax.nn.relu(dot(pts, w0) + b0)
    for j in range(4):
        h = jax.nn.relu(dot(h, wmid[j]) + bmid[j])
    # skip concat after layer 4, then layer 5 (weight = [w5p; w5h])
    w5 = jnp.concatenate([w5p, w5h], axis=0)
    h = jax.nn.relu(dot(jnp.concatenate([pts, h], -1), w5) + b5)
    for j in range(4, 6):
        h = jax.nn.relu(dot(h, wmid[j]) + bmid[j])

    wf, wa = wfa[:, :W], wfa[:, W:W + 1]
    bfe, ba = bfa[:, :W], bfa[:, W:W + 1]
    alpha = dot(h, wa) + ba
    feature = dot(h, wf) + bfe

    wv = jnp.concatenate([wvf, wvv], axis=0)
    hv = jax.nn.relu(dot(jnp.concatenate([feature, views], -1), wv) + bv)
    rgb = dot(hv, wr[:, 1:4]) + br[:, 1:4]
    return alpha, rgb


if __name__ == "__main__":
    key = jax.random.PRNGKey(0)
    kp, kv, kw = jax.random.split(key, 3)

    N = 2000  # not a multiple of TN: exercises the pad-and-slice path (4 grid steps)
    input_pts = jax.random.normal(kp, (N, D_IN), jnp.float32)
    input_views = jax.random.normal(kv, (N, D_VIEW), jnp.float32)
    params = init_params(kw)

    alpha, rgb = nerf_forward(input_pts, input_views, params)
    jax.block_until_ready((alpha, rgb))

    alpha_ref, rgb_ref = nerf_reference(input_pts, input_views, params)
    assert alpha.shape == (N, 1) and rgb.shape == (N, 3)
    assert jnp.allclose(alpha, alpha_ref, atol=1e-2, rtol=1e-2)
    assert jnp.allclose(rgb, rgb_ref, atol=1e-2, rtol=1e-2)

    print("KERNEL_OK")
</pallas_src>

<mosaic_0001>
module attributes {stable_mosaic.version = 11 : i64} {
  func.func @_nerf_kernel(%arg0: i32, %arg1: memref<512x3xf32, #tpu.memory_space<vmem>>, %arg2: memref<512x3xf32, #tpu.memory_space<vmem>>, %arg3: memref<3x256xbf16, #tpu.memory_space<vmem>>, %arg4: memref<1x256xf32, #tpu.memory_space<vmem>>, %arg5: memref<6x256x256xbf16, #tpu.memory_space<vmem>>, %arg6: memref<6x256xf32, #tpu.memory_space<vmem>>, %arg7: memref<3x256xbf16, #tpu.memory_space<vmem>>, %arg8: memref<256x256xbf16, #tpu.memory_space<vmem>>, %arg9: memref<1x256xf32, #tpu.memory_space<vmem>>, %arg10: memref<256x384xbf16, #tpu.memory_space<vmem>>, %arg11: memref<1x384xf32, #tpu.memory_space<vmem>>, %arg12: memref<256x128xbf16, #tpu.memory_space<vmem>>, %arg13: memref<3x128xbf16, #tpu.memory_space<vmem>>, %arg14: memref<1x128xf32, #tpu.memory_space<vmem>>, %arg15: memref<128x128xbf16, #tpu.memory_space<vmem>>, %arg16: memref<1x128xf32, #tpu.memory_space<vmem>>, %arg17: memref<512x128xf32, #tpu.memory_space<vmem>>) attributes {dimension_semantics = [#tpu.dimension_semantics<parallel>], iteration_bounds = array<i64: 4>, scalar_prefetch = 0 : i64, scratch_operands = 0 : i64, tpu.core_type = #tpu.core_type<tc>, window_params = [{transform_indices = @transform_0, window_bounds = array<i64: 512, 3>}, {transform_indices = @transform_1, window_bounds = array<i64: 512, 3>}, {pipeline_mode = #tpu.pipeline_mode<synchronous>, transform_indices = @transform_2, window_bounds = array<i64: 3, 256>}, {pipeline_mode = #tpu.pipeline_mode<synchronous>, transform_indices = @transform_3, window_bounds = array<i64: 1, 256>}, {pipeline_mode = #tpu.pipeline_mode<synchronous>, transform_indices = @transform_4, window_bounds = array<i64: 6, 256, 256>}, {pipeline_mode = #tpu.pipeline_mode<synchronous>, transform_indices = @transform_5, window_bounds = array<i64: 6, 256>}, {pipeline_mode = #tpu.pipeline_mode<synchronous>, transform_indices = @transform_6, window_bounds = array<i64: 3, 256>}, {pipeline_mode = #tpu.pipeline_mode<synchronous>, transform_indices = @transform_7, window_bounds = array<i64: 256, 256>}, {pipeline_mode = #tpu.pipeline_mode<synchronous>, transform_indices = @transform_8, window_bounds = array<i64: 1, 256>}, {pipeline_mode = #tpu.pipeline_mode<synchronous>, transform_indices = @transform_9, window_bounds = array<i64: 256, 384>}, {pipeline_mode = #tpu.pipeline_mode<synchronous>, transform_indices = @transform_10, window_bounds = array<i64: 1, 384>}, {pipeline_mode = #tpu.pipeline_mode<synchronous>, transform_indices = @transform_11, window_bounds = array<i64: 256, 128>}, {pipeline_mode = #tpu.pipeline_mode<synchronous>, transform_indices = @transform_12, window_bounds = array<i64: 3, 128>}, {pipeline_mode = #tpu.pipeline_mode<synchronous>, transform_indices = @transform_13, window_bounds = array<i64: 1, 128>}, {pipeline_mode = #tpu.pipeline_mode<synchronous>, transform_indices = @transform_14, window_bounds = array<i64: 128, 128>}, {pipeline_mode = #tpu.pipeline_mode<synchronous>, transform_indices = @transform_15, window_bounds = array<i64: 1, 128>}, {transform_indices = @transform_16, window_bounds = array<i64: 512, 128>}]} {
    %c0 = arith.constant 0 : index
    %c0_0 = arith.constant 0 : index
    %0 = vector.load %arg1[%c0, %c0_0] : memref<512x3xf32, #tpu.memory_space<vmem>>, vector<512x3xf32>
    %1 = arith.truncf %0 : vector<512x3xf32> to vector<512x3xbf16>
    %c0_1 = arith.constant 0 : index
    %c0_2 = arith.constant 0 : index
    %2 = vector.load %arg2[%c0_1, %c0_2] : memref<512x3xf32, #tpu.memory_space<vmem>>, vector<512x3xf32>
    %3 = arith.truncf %2 : vector<512x3xf32> to vector<512x3xbf16>
    %c0_3 = arith.constant 0 : index
    %c0_4 = arith.constant 0 : index
    %4 = vector.load %arg3[%c0_3, %c0_4] : memref<3x256xbf16, #tpu.memory_space<vmem>>, vector<3x256xbf16>
    %cst = arith.constant dense<0.000000e+00> : vector<512x256xf32>
    %5 = tpu.matmul %1, %4, %cst {dimension_numbers = #tpu.dot_dimension_numbers<[1], [0], [0], [1], [0, 0, 1, 1], [], []>} : vector<512x3xbf16>, vector<3x256xbf16>, vector<512x256xf32> -> vector<512x256xf32>
    %c0_5 = arith.constant 0 : index
    %c0_6 = arith.constant 0 : index
    %6 = vector.load %arg4[%c0_5, %c0_6] : memref<1x256xf32, #tpu.memory_space<vmem>>, vector<1x256xf32>
    %7 = vector.broadcast %6 : vector<1x256xf32> to vector<512x256xf32>
    %8 = arith.addf %5, %7 : vector<512x256xf32>
    %cst_7 = arith.constant 0.000000e+00 : f32
    %9 = vector.broadcast %cst_7 : f32 to vector<512x256xf32>
    %10 = arith.maximumf %8, %9 : vector<512x256xf32>
    %11 = arith.truncf %10 : vector<512x256xf32> to vector<512x256xbf16>
    %c0_8 = arith.constant 0 : index
    %c0_9 = arith.constant 0 : index
    %c0_10 = arith.constant 0 : index
    %12 = vector.load %arg5[%c0_8, %c0_9, %c0_10] : memref<6x256x256xbf16, #tpu.memory_space<vmem>>, vector<1x256x256xbf16>
    %13 = vector.shape_cast %12 : vector<1x256x256xbf16> to vector<256x256xbf16>
    %cst_11 = arith.constant dense<0.000000e+00> : vector<512x256xf32>
    %14 = tpu.matmul %11, %13, %cst_11 {dimension_numbers = #tpu.dot_dimension_numbers<[1], [0], [0], [1], [0, 0, 1, 1], [], []>} : vector<512x256xbf16>, vector<256x256xbf16>, vector<512x256xf32> -> vector<512x256xf32>
    %c0_12 = arith.constant 0 : index
    %c0_13 = arith.constant 0 : index
    %15 = vector.load %arg6[%c0_12, %c0_13] : memref<6x256xf32, #tpu.memory_space<vmem>>, vector<1x256xf32>
    %16 = vector.shape_cast %15 : vector<1x256xf32> to vector<256xf32>
    %17 = vector.shape_cast %16 : vector<256xf32> to vector<1x256xf32>
    %18 = vector.broadcast %17 : vector<1x256xf32> to vector<512x256xf32>
    %19 = arith.addf %14, %18 : vector<512x256xf32>
    %cst_14 = arith.constant 0.000000e+00 : f32
    %20 = vector.broadcast %cst_14 : f32 to vector<512x256xf32>
    %21 = arith.maximumf %19, %20 : vector<512x256xf32>
    %22 = arith.truncf %21 : vector<512x256xf32> to vector<512x256xbf16>
    %c1 = arith.constant 1 : index
    %c0_15 = arith.constant 0 : index
    %c0_16 = arith.constant 0 : index
    %23 = vector.load %arg5[%c1, %c0_15, %c0_16] : memref<6x256x256xbf16, #tpu.memory_space<vmem>>, vector<1x256x256xbf16>
    %24 = vector.shape_cast %23 : vector<1x256x256xbf16> to vector<256x256xbf16>
    %cst_17 = arith.constant dense<0.000000e+00> : vector<512x256xf32>
    %25 = tpu.matmul %22, %24, %cst_17 {dimension_numbers = #tpu.dot_dimension_numbers<[1], [0], [0], [1], [0, 0, 1, 1], [], []>} : vector<512x256xbf16>, vector<256x256xbf16>, vector<512x256xf32> -> vector<512x256xf32>
    %c1_18 = arith.constant 1 : index
    %c0_19 = arith.constant 0 : index
    %26 = vector.load %arg6[%c1_18, %c0_19] : memref<6x256xf32, #tpu.memory_space<vmem>>, vector<1x256xf32>
    %27 = vector.shape_cast %26 : vector<1x256xf32> to vector<256xf32>
    %28 = vector.shape_cast %27 : vector<256xf32> to vector<1x256xf32>
    %29 = vector.broadcast %28 : vector<1x256xf32> to vector<512x256xf32>
    %30 = arith.addf %25, %29 : vector<512x256xf32>
    %cst_20 = arith.constant 0.000000e+00 : f32
    %31 = vector.broadcast %cst_20 : f32 to vector<512x256xf32>
    %32 = arith.maximumf %30, %31 : vector<512x256xf32>
    %33 = arith.truncf %32 : vector<512x256xf32> to vector<512x256xbf16>
    %c2 = arith.constant 2 : index
    %c0_21 = arith.constant 0 : index
    %c0_22 = arith.constant 0 : index
    %34 = vector.load %arg5[%c2, %c0_21, %c0_22] : memref<6x256x256xbf16, #tpu.memory_space<vmem>>, vector<1x256x256xbf16>
    %35 = vector.shape_cast %34 : vector<1x256x256xbf16> to vector<256x256xbf16>
    %cst_23 = arith.constant dense<0.000000e+00> : vector<512x256xf32>
    %36 = tpu.matmul %33, %35, %cst_23 {dimension_numbers = #tpu.dot_dimension_numbers<[1], [0], [0], [1], [0, 0, 1, 1], [], []>} : vector<512x256xbf16>, vector<256x256xbf16>, vector<512x256xf32> -> vector<512x256xf32>
    %c2_24 = arith.constant 2 : index
    %c0_25 = arith.constant 0 : index
    %37 = vector.load %arg6[%c2_24, %c0_25] : memref<6x256xf32, #tpu.memory_space<vmem>>, vector<1x256xf32>
    %38 = vector.shape_cast %37 : vector<1x256xf32> to vector<256xf32>
    %39 = vector.shape_cast %38 : vector<256xf32> to vector<1x256xf32>
    %40 = vector.broadcast %39 : vector<1x256xf32> to vector<512x256xf32>
    %41 = arith.addf %36, %40 : vector<512x256xf32>
    %cst_26 = arith.constant 0.000000e+00 : f32
    %42 = vector.broadcast %cst_26 : f32 to vector<512x256xf32>
    %43 = arith.maximumf %41, %42 : vector<512x256xf32>
    %44 = arith.truncf %43 : vector<512x256xf32> to vector<512x256xbf16>
    %c3 = arith.constant 3 : index
    %c0_27 = arith.constant 0 : index
    %c0_28 = arith.constant 0 : index
    %45 = vector.load %arg5[%c3, %c0_27, %c0_28] : memref<6x256x256xbf16, #tpu.memory_space<vmem>>, vector<1x256x256xbf16>
    %46 = vector.shape_cast %45 : vector<1x256x256xbf16> to vector<256x256xbf16>
    %cst_29 = arith.constant dense<0.000000e+00> : vector<512x256xf32>
    %47 = tpu.matmul %44, %46, %cst_29 {dimension_numbers = #tpu.dot_dimension_numbers<[1], [0], [0], [1], [0, 0, 1, 1], [], []>} : vector<512x256xbf16>, vector<256x256xbf16>, vector<512x256xf32> -> vector<512x256xf32>
    %c3_30 = arith.constant 3 : index
    %c0_31 = arith.constant 0 : index
    %48 = vector.load %arg6[%c3_30, %c0_31] : memref<6x256xf32, #tpu.memory_space<vmem>>, vector<1x256xf32>
    %49 = vector.shape_cast %48 : vector<1x256xf32> to vector<256xf32>
    %50 = vector.shape_cast %49 : vector<256xf32> to vector<1x256xf32>
    %51 = vector.broadcast %50 : vector<1x256xf32> to vector<512x256xf32>
    %52 = arith.addf %47, %51 : vector<512x256xf32>
    %cst_32 = arith.constant 0.000000e+00 : f32
    %53 = vector.broadcast %cst_32 : f32 to vector<512x256xf32>
    %54 = arith.maximumf %52, %53 : vector<512x256xf32>
    %c0_33 = arith.constant 0 : index
    %c0_34 = arith.constant 0 : index
    %55 = vector.load %arg7[%c0_33, %c0_34] : memref<3x256xbf16, #tpu.memory_space<vmem>>, vector<3x256xbf16>
    %cst_35 = arith.constant dense<0.000000e+00> : vector<512x256xf32>
    %56 = tpu.matmul %1, %55, %cst_35 {dimension_numbers = #tpu.dot_dimension_numbers<[1], [0], [0], [1], [0, 0, 1, 1], [], []>} : vector<512x3xbf16>, vector<3x256xbf16>, vector<512x256xf32> -> vector<512x256xf32>
    %57 = arith.truncf %54 : vector<512x256xf32> to vector<512x256xbf16>
    %c0_36 = arith.constant 0 : index
    %c0_37 = arith.constant 0 : index
    %58 = vector.load %arg8[%c0_36, %c0_37] : memref<256x256xbf16, #tpu.memory_space<vmem>>, vector<256x256xbf16>
    %cst_38 = arith.constant dense<0.000000e+00> : vector<512x256xf32>
    %59 = tpu.matmul %57, %58, %cst_38 {dimension_numbers = #tpu.dot_dimension_numbers<[1], [0], [0], [1], [0, 0, 1, 1], [], []>} : vector<512x256xbf16>, vector<256x256xbf16>, vector<512x256xf32> -> vector<512x256xf32>
    %60 = arith.addf %56, %59 : vector<512x256xf32>
    %c0_39 = arith.constant 0 : index
    %c0_40 = arith.constant 0 : index
    %61 = vector.load %arg9[%c0_39, %c0_40] : memref<1x256xf32, #tpu.memory_space<vmem>>, vector<1x256xf32>
    %62 = vector.broadcast %61 : vector<1x256xf32> to vector<512x256xf32>
    %63 = arith.addf %60, %62 : vector<512x256xf32>
    %cst_41 = arith.constant 0.000000e+00 : f32
    %64 = vector.broadcast %cst_41 : f32 to vector<512x256xf32>
    %65 = arith.maximumf %63, %64 : vector<512x256xf32>
    %66 = arith.truncf %65 : vector<512x256xf32> to vector<512x256xbf16>
    %c4 = arith.constant 4 : index
    %c0_42 = arith.constant 0 : index
    %c0_43 = arith.constant 0 : index
    %67 = vector.load %arg5[%c4, %c0_42, %c0_43] : memref<6x256x256xbf16, #tpu.memory_space<vmem>>, vector<1x256x256xbf16>
    %68 = vector.shape_cast %67 : vector<1x256x256xbf16> to vector<256x256xbf16>
    %cst_44 = arith.constant dense<0.000000e+00> : vector<512x256xf32>
    %69 = tpu.matmul %66, %68, %cst_44 {dimension_numbers = #tpu.dot_dimension_numbers<[1], [0], [0], [1], [0, 0, 1, 1], [], []>} : vector<512x256xbf16>, vector<256x256xbf16>, vector<512x256xf32> -> vector<512x256xf32>
    %c4_45 = arith.constant 4 : index
    %c0_46 = arith.constant 0 : index
    %70 = vector.load %arg6[%c4_45, %c0_46] : memref<6x256xf32, #tpu.memory_space<vmem>>, vector<1x256xf32>
    %71 = vector.shape_cast %70 : vector<1x256xf32> to vector<256xf32>
    %72 = vector.shape_cast %71 : vector<256xf32> to vector<1x256xf32>
    %73 = vector.broadcast %72 : vector<1x256xf32> to vector<512x256xf32>
    %74 = arith.addf %69, %73 : vector<512x256xf32>
    %cst_47 = arith.constant 0.000000e+00 : f32
    %75 = vector.broadcast %cst_47 : f32 to vector<512x256xf32>
    %76 = arith.maximumf %74, %75 : vector<512x256xf32>
    %77 = arith.truncf %76 : vector<512x256xf32> to vector<512x256xbf16>
    %c5 = arith.constant 5 : index
    %c0_48 = arith.constant 0 : index
    %c0_49 = arith.constant 0 : index
    %78 = vector.load %arg5[%c5, %c0_48, %c0_49] : memref<6x256x256xbf16, #tpu.memory_space<vmem>>, vector<1x256x256xbf16>
    %79 = vector.shape_cast %78 : vector<1x256x256xbf16> to vector<256x256xbf16>
    %cst_50 = arith.constant dense<0.000000e+00> : vector<512x256xf32>
    %80 = tpu.matmul %77, %79, %cst_50 {dimension_numbers = #tpu.dot_dimension_numbers<[1], [0], [0], [1], [0, 0, 1, 1], [], []>} : vector<512x256xbf16>, vector<256x256xbf16>, vector<512x256xf32> -> vector<512x256xf32>
    %c5_51 = arith.constant 5 : index
    %c0_52 = arith.constant 0 : index
    %81 = vector.load %arg6[%c5_51, %c0_52] : memref<6x256xf32, #tpu.memory_space<vmem>>, vector<1x256xf32>
    %82 = vector.shape_cast %81 : vector<1x256xf32> to vector<256xf32>
    %83 = vector.shape_cast %82 : vector<256xf32> to vector<1x256xf32>
    %84 = vector.broadcast %83 : vector<1x256xf32> to vector<512x256xf32>
    %85 = arith.addf %80, %84 : vector<512x256xf32>
    %cst_53 = arith.constant 0.000000e+00 : f32
    %86 = vector.broadcast %cst_53 : f32 to vector<512x256xf32>
    %87 = arith.maximumf %85, %86 : vector<512x256xf32>
    %88 = arith.truncf %87 : vector<512x256xf32> to vector<512x256xbf16>
    %c0_54 = arith.constant 0 : index
    %c0_55 = arith.constant 0 : index
    %89 = vector.load %arg10[%c0_54, %c0_55] : memref<256x384xbf16, #tpu.memory_space<vmem>>, vector<256x384xbf16>
    %cst_56 = arith.constant dense<0.000000e+00> : vector<512x384xf32>
    %90 = tpu.matmul %88, %89, %cst_56 {dimension_numbers = #tpu.dot_dimension_numbers<[1], [0], [0], [1], [0, 0, 1, 1], [], []>} : vector<512x256xbf16>, vector<256x384xbf16>, vector<512x384xf32> -> vector<512x384xf32>
    %c0_57 = arith.constant 0 : index
    %c0_58 = arith.constant 0 : index
    %91 = vector.load %arg11[%c0_57, %c0_58] : memref<1x384xf32, #tpu.memory_space<vmem>>, vector<1x384xf32>
    %92 = vector.broadcast %91 : vector<1x384xf32> to vector<512x384xf32>
    %93 = arith.addf %90, %92 : vector<512x384xf32>
    %94 = vector.extract_strided_slice %93 {offsets = [0, 0], sizes = [512, 256], strides = [1, 1]} : vector<512x384xf32> to vector<512x256xf32>
    %95 = vector.extract_strided_slice %93 {offsets = [0, 256], sizes = [512, 128], strides = [1, 1]} : vector<512x384xf32> to vector<512x128xf32>
    %96 = arith.truncf %94 : vector<512x256xf32> to vector<512x256xbf16>
    %c0_59 = arith.constant 0 : index
    %c0_60 = arith.constant 0 : index
    %97 = vector.load %arg12[%c0_59, %c0_60] : memref<256x128xbf16, #tpu.memory_space<vmem>>, vector<256x128xbf16>
    %cst_61 = arith.constant dense<0.000000e+00> : vector<512x128xf32>
    %98 = tpu.matmul %96, %97, %cst_61 {dimension_numbers = #tpu.dot_dimension_numbers<[1], [0], [0], [1], [0, 0, 1, 1], [], []>} : vector<512x256xbf16>, vector<256x128xbf16>, vector<512x128xf32> -> vector<512x128xf32>
    %c0_62 = arith.constant 0 : index
    %c0_63 = arith.constant 0 : index
    %99 = vector.load %arg13[%c0_62, %c0_63] : memref<3x128xbf16, #tpu.memory_space<vmem>>, vector<3x128xbf16>
    %cst_64 = arith.constant dense<0.000000e+00> : vector<512x128xf32>
    %100 = tpu.matmul %3, %99, %cst_64 {dimension_numbers = #tpu.dot_dimension_numbers<[1], [0], [0], [1], [0, 0, 1, 1], [], []>} : vector<512x3xbf16>, vector<3x128xbf16>, vector<512x128xf32> -> vector<512x128xf32>
    %101 = arith.addf %98, %100 : vector<512x128xf32>
    %c0_65 = arith.constant 0 : index
    %c0_66 = arith.constant 0 : index
    %102 = vector.load %arg14[%c0_65, %c0_66] : memref<1x128xf32, #tpu.memory_space<vmem>>, vector<1x128xf32>
    %103 = vector.broadcast %102 : vector<1x128xf32> to vector<512x128xf32>
    %104 = arith.addf %101, %103 : vector<512x128xf32>
    %cst_67 = arith.constant 0.000000e+00 : f32
    %105 = vector.broadcast %cst_67 : f32 to vector<512x128xf32>
    %106 = arith.maximumf %104, %105 : vector<512x128xf32>
    %107 = arith.truncf %106 : vector<512x128xf32> to vector<512x128xbf16>
    %c0_68 = arith.constant 0 : index
    %c0_69 = arith.constant 0 : index
    %108 = vector.load %arg15[%c0_68, %c0_69] : memref<128x128xbf16, #tpu.memory_space<vmem>>, vector<128x128xbf16>
    %cst_70 = arith.constant dense<0.000000e+00> : vector<512x128xf32>
    %109 = tpu.matmul %107, %108, %cst_70 {dimension_numbers = #tpu.dot_dimension_numbers<[1], [0], [0], [1], [0, 0, 1, 1], [], []>} : vector<512x128xbf16>, vector<128x128xbf16>, vector<512x128xf32> -> vector<512x128xf32>
    %c0_71 = arith.constant 0 : index
    %c0_72 = arith.constant 0 : index
    %110 = vector.load %arg16[%c0_71, %c0_72] : memref<1x128xf32, #tpu.memory_space<vmem>>, vector<1x128xf32>
    %111 = vector.broadcast %110 : vector<1x128xf32> to vector<512x128xf32>
    %112 = arith.addf %109, %111 : vector<512x128xf32>
    %113 = arith.addf %95, %112 : vector<512x128xf32>
    %c0_73 = arith.constant 0 : index
    %c0_74 = arith.constant 0 : index
    %114 = vector.load %arg17[%c0_73, %c0_74] : memref<512x128xf32, #tpu.memory_space<vmem>>, vector<512x128xf32>
    tpu.vector_store %arg17[%c0_73, %c0_74], %113 {strides = array<i32>} : memref<512x128xf32, #tpu.memory_space<vmem>>, vector<512x128xf32>,
    return
  }
  func.func @transform_0(%arg0: i32) -> (i32, i32) {
    %c0_i32 = arith.constant 0 : i32
    %c0_i32_0 = arith.constant 0 : i32
    return %arg0, %c0_i32 : i32, i32
  }
  func.func @transform_1(%arg0: i32) -> (i32, i32) {
    %c0_i32 = arith.constant 0 : i32
    %c0_i32_0 = arith.constant 0 : i32
    return %arg0, %c0_i32 : i32, i32
  }
  func.func @transform_2(%arg0: i32) -> (i32, i32) {
    %c0_i32 = arith.constant 0 : i32
    %c0_i32_0 = arith.constant 0 : i32
    %c0_i32_1 = arith.constant 0 : i32
    return %c0_i32, %c0_i32_0 : i32, i32
  }
  func.func @transform_3(%arg0: i32) -> (i32, i32) {
    %c0_i32 = arith.constant 0 : i32
    %c0_i32_0 = arith.constant 0 : i32
    %c0_i32_1 = arith.constant 0 : i32
    return %c0_i32, %c0_i32_0 : i32, i32
  }
  func.func @transform_4(%arg0: i32) -> (i32, i32, i32) {
    %c0_i32 = arith.constant 0 : i32
    %c0_i32_0 = arith.constant 0 : i32
    %c0_i32_1 = arith.constant 0 : i32
    %c0_i32_2 = arith.constant 0 : i32
    return %c0_i32, %c0_i32_0, %c0_i32_1 : i32, i32, i32
  }
  func.func @transform_5(%arg0: i32) -> (i32, i32) {
    %c0_i32 = arith.constant 0 : i32
    %c0_i32_0 = arith.constant 0 : i32
    %c0_i32_1 = arith.constant 0 : i32
    return %c0_i32, %c0_i32_0 : i32, i32
  }
  func.func @transform_6(%arg0: i32) -> (i32, i32) {
    %c0_i32 = arith.constant 0 : i32
    %c0_i32_0 = arith.constant 0 : i32
    %c0_i32_1 = arith.constant 0 : i32
    return %c0_i32, %c0_i32_0 : i32, i32
  }
  func.func @transform_7(%arg0: i32) -> (i32, i32) {
    %c0_i32 = arith.constant 0 : i32
    %c0_i32_0 = arith.constant 0 : i32
    %c0_i32_1 = arith.constant 0 : i32
    return %c0_i32, %c0_i32_0 : i32, i32
  }
  func.func @transform_8(%arg0: i32) -> (i32, i32) {
    %c0_i32 = arith.constant 0 : i32
    %c0_i32_0 = arith.constant 0 : i32
    %c0_i32_1 = arith.constant 0 : i32
    return %c0_i32, %c0_i32_0 : i32, i32
  }
  func.func @transform_9(%arg0: i32) -> (i32, i32) {
    %c0_i32 = arith.constant 0 : i32
    %c0_i32_0 = arith.constant 0 : i32
    %c0_i32_1 = arith.constant 0 : i32
    return %c0_i32, %c0_i32_0 : i32, i32
  }
  func.func @transform_10(%arg0: i32) -> (i32, i32) {
    %c0_i32 = arith.constant 0 : i32
    %c0_i32_0 = arith.constant 0 : i32
    %c0_i32_1 = arith.constant 0 : i32
    return %c0_i32, %c0_i32_0 : i32, i32
  }
  func.func @transform_11(%arg0: i32) -> (i32, i32) {
    %c0_i32 = arith.constant 0 : i32
    %c0_i32_0 = arith.constant 0 : i32
    %c0_i32_1 = arith.constant 0 : i32
    return %c0_i32, %c0_i32_0 : i32, i32
  }
  func.func @transform_12(%arg0: i32) -> (i32, i32) {
    %c0_i32 = arith.constant 0 : i32
    %c0_i32_0 = arith.constant 0 : i32
    %c0_i32_1 = arith.constant 0 : i32
    return %c0_i32, %c0_i32_0 : i32, i32
  }
  func.func @transform_13(%arg0: i32) -> (i32, i32) {
    %c0_i32 = arith.constant 0 : i32
    %c0_i32_0 = arith.constant 0 : i32
    %c0_i32_1 = arith.constant 0 : i32
    return %c0_i32, %c0_i32_0 : i32, i32
  }
  func.func @transform_14(%arg0: i32) -> (i32, i32) {
    %c0_i32 = arith.constant 0 : i32
    %c0_i32_0 = arith.constant 0 : i32
    %c0_i32_1 = arith.constant 0 : i32
    return %c0_i32, %c0_i32_0 : i32, i32
  }
  func.func @transform_15(%arg0: i32) -> (i32, i32) {
    %c0_i32 = arith.constant 0 : i32
    %c0_i32_0 = arith.constant 0 : i32
    %c0_i32_1 = arith.constant 0 : i32
    return %c0_i32, %c0_i32_0 : i32, i32
  }
  func.func @transform_16(%arg0: i32) -> (i32, i32) {
    %c0_i32 = arith.constant 0 : i32
    %c0_i32_0 = arith.constant 0 : i32
    return %arg0, %c0_i32 : i32, i32
  }
}

</mosaic_0001>

<llo_original>
// kernel: tpu_custom_call.1
$region0: #{tpu_custom_call.1}
  #allocation0 [shape = 'u32[]', space=smem, size = 0x4, offset = 0x4, fixed_abs, tag = 'smem constant byte address 0x4 - core index']
  #allocation1 [shape = 'u32[144,128]{1,0:T(1,128)}', space=vmem, size = 0x12000, scoped, tag = 'internal scratch']
  %s0 = inlined_call_operand.vmem [shape: f32[2048,3], index: 0, kind: input, shape index: {}]
  %s1 = inlined_call_operand.vmem [shape: f32[2048,3], index: 1, kind: input, shape index: {}]
  %s2 = inlined_call_operand.vmem [shape: bf16[3,256], index: 2, kind: input, shape index: {}]
  %s3 = inlined_call_operand.vmem [shape: f32[1,256], index: 3, kind: input, shape index: {}]
  %s4 = inlined_call_operand.vmem [shape: bf16[6,256,256], index: 4, kind: input, shape index: {}]
  %s5 = inlined_call_operand.vmem [shape: f32[6,256], index: 5, kind: input, shape index: {}]
  %s6 = inlined_call_operand.vmem [shape: bf16[3,256], index: 6, kind: input, shape index: {}]
  %s7 = inlined_call_operand.vmem [shape: bf16[256,256], index: 7, kind: input, shape index: {}]
  %s8 = inlined_call_operand.vmem [shape: f32[1,256], index: 8, kind: input, shape index: {}]
  %s9 = inlined_call_operand.vmem [shape: bf16[256,384], index: 9, kind: input, shape index: {}]
  %s10 = inlined_call_operand.vmem [shape: f32[1,384], index: 10, kind: input, shape index: {}]
  %s11 = inlined_call_operand.vmem [shape: bf16[256,128], index: 11, kind: input, shape index: {}]
  %s12 = inlined_call_operand.vmem [shape: bf16[3,128], index: 12, kind: input, shape index: {}]
  %s13 = inlined_call_operand.vmem [shape: f32[1,128], index: 13, kind: input, shape index: {}]
  %s14 = inlined_call_operand.vmem [shape: bf16[128,128], index: 14, kind: input, shape index: {}]
  %s15 = inlined_call_operand.vmem [shape: f32[1,128], index: 15, kind: input, shape index: {}]
  %s16 = inlined_call_operand.hbm [shape: f32[2048,128], index: 16, kind: output, shape index: {}]
  %s17 = sld [smem:[#allocation0]]
  $region97: #{tpu_custom_call.1} parent=0
    _
  %s19 = ssub.s32 1, %s17
  %s20 = scalar_select 0, %s19, %s17
  $region1: #{tpu_custom_call.1} parent=0
    #allocation2 [shape = 'u8[524288]{0}', space=vmem, size = 0x80000, scoped, tag = 'output window, operand 0']
    #allocation3 [shape = 's32[2]{0}', space=sflag, size = 0x8, scoped, tag = 'scoped memory for tpu_custom_call.1']
    %21 = vsyncpa [#allocation3], 0
    %s22 = scalar_lea.sflag [#allocation3], 1
    %23 = vsyncpa %s22, 0
    loop: start=0, step=1, limit=6
    $region2: #{tpu_custom_call.1} parent=1 // loop_pre_header
      _
    $region3: #{tpu_custom_call.1} parent=1 // loop_header
      %s25 = sphi 0, %s29
      %p26 = scmp.ge.s32.totalorder %s25, 6
      %s35 = sphi 0, %s37
      %s38 = sphi 0, %s35
      %s39 = sphi 0, %s38
      %s55 = sphi 0, %s39
      %s61 = sphi 0, %s63
      %s64 = sphi 0, %s61
      %s65 = sphi 0, %s64
      %s81 = sphi 0, %s65
      %s85 = sphi 0, %s85
      %s87 = sphi 0, %s85
      %s88 = sphi 0, %s87
      %s102 = sphi 0, %s88
      %s106 = sphi 0, %s106
      %s108 = sphi 0, %s106
      %s109 = sphi 0, %s108
      %s123 = sphi 0, %s109
      %s127 = sphi 0, %s127
      %s129 = sphi 0, %s127
      %s130 = sphi 0, %s129
      %s144 = sphi 0, %s130
      %s148 = sphi 0, %s148
      %s150 = sphi 0, %s148
      %s151 = sphi 0, %s150
      %s165 = sphi 0, %s151
      %s169 = sphi 0, %s169
      %s171 = sphi 0, %s169
      %s172 = sphi 0, %s171
      %s186 = sphi 0, %s172
      %s190 = sphi 0, %s190
      %s192 = sphi 0, %s190
      %s193 = sphi 0, %s192
      %s207 = sphi 0, %s193
      %s211 = sphi 0, %s211
      %s213 = sphi 0, %s211
      %s214 = sphi 0, %s213
      %s228 = sphi 0, %s214
      %s232 = sphi 0, %s232
      %s234 = sphi 0, %s232
      %s235 = sphi 0, %s234
      %s249 = sphi 0, %s235
      %s253 = sphi 0, %s253
      %s255 = sphi 0, %s253
      %s256 = sphi 0, %s255
      %s270 = sphi 0, %s256
      %s274 = sphi 0, %s274
      %s276 = sphi 0, %s274
      %s277 = sphi 0, %s276
      %s291 = sphi 0, %s277
      %s295 = sphi 0, %s295
      %s297 = sphi 0, %s295
      %s298 = sphi 0, %s297
      %s312 = sphi 0, %s298
      %s316 = sphi 0, %s316
      %s318 = sphi 0, %s316
      %s319 = sphi 0, %s318
      %s333 = sphi 0, %s319
      %s337 = sphi 0, %s337
      %s339 = sphi 0, %s337
      %s340 = sphi 0, %s339
      %s354 = sphi 0, %s340
      %s358 = sphi 0, %s358
      %s360 = sphi 0, %s358
      %s361 = sphi 0, %s360
      %s375 = sphi 0, %s361
      %s381 = sphi 0, %s383
      %s384 = sphi 0, %s381
      %s385 = sphi 0, %s384
      %s401 = sphi 0, %s385
    $region4: #{tpu_custom_call.1} parent=1 // loop_header_branch
      %28 = sbr.rel (%p26) target = $region8
    $region5: #{tpu_custom_call.1} parent=1 // loop_body
      %s30 = ssub.s32 %s25, 1
      %s31 = ssub.s32 %s25, 2
      %s32 = sadd.s32 %s25, 1
      %s33 = ssub.s32 %s25, %s32
      %p34 = scmp.eq.s32.totalorder %s33, 0
      %s36 = sadd.s32 %s35, 1
      %s37 = scalar_select %p34, %s35, %s36
      %p40 = pneg %p34
      %p41 = scmp.eq.s32.totalorder %s25, 3
      %p42 = por %p40, %p41
      %p43 = scmp.ne.s32.totalorder %s35, %s38
      %p44 = scmp.eq.s32.totalorder %s25, 0
      %p45 = por %p43, %p44
      %p46 = scmp.ne.s32.totalorder %s35, %s38
      %p47 = scmp.eq.s32.totalorder %s30, 3
      %p48 = por %p46, %p47
      %p49 = scmp.ne.s32.totalorder %s38, %s39
      %p50 = scmp.eq.s32.totalorder %s30, 0
      %p51 = por %p49, %p50
      %p52 = scmp.ne.s32.totalorder %s38, %s39
      %p53 = scmp.eq.s32.totalorder %s31, 3
      %p54 = por %p52, %p53
      %p56 = scmp.ne.s32.totalorder %s39, %s55
      %p57 = scmp.eq.s32.totalorder %s31, 0
      %p58 = por %p56, %p57
      %s59 = ssub.s32 %s25, %s32
      %p60 = scmp.eq.s32.totalorder %s59, 0
      %s62 = sadd.s32 %s61, 1
      %s63 = scalar_select %p60, %s61, %s62
      %p66 = pneg %p60
      %p67 = scmp.eq.s32.totalorder %s25, 3
      %p68 = por %p66, %p67
      %p69 = scmp.ne.s32.totalorder %s61, %s64
      %p70 = scmp.eq.s32.totalorder %s25, 0
      %p71 = por %p69, %p70
      %p72 = scmp.ne.s32.totalorder %s61, %s64
      %p73 = scmp.eq.s32.totalorder %s30, 3
      %p74 = por %p72, %p73
      %p75 = scmp.ne.s32.totalorder %s64, %s65
      %p76 = scmp.eq.s32.totalorder %s30, 0
      %p77 = por %p75, %p76
      %p78 = scmp.ne.s32.totalorder %s64, %s65
      %p79 = scmp.eq.s32.totalorder %s31, 3
      %p80 = por %p78, %p79
      %p82 = scmp.ne.s32.totalorder %s65, %s81
      %p83 = scmp.eq.s32.totalorder %s31, 0
      %p84 = por %p82, %p83
      %s86 = sadd.s32 %s85, 1
      %p89 = scmp.eq.s32.totalorder %s25, 3
      %p90 = scmp.ne.s32.totalorder %s85, %s87
      %p91 = scmp.eq.s32.totalorder %s25, 0
      %p92 = por %p90, %p91
      %p93 = scmp.ne.s32.totalorder %s85, %s87
      %p94 = scmp.eq.s32.totalorder %s30, 3
      %p95 = por %p93, %p94
      %p96 = scmp.ne.s32.totalorder %s87, %s88
      %p97 = scmp.eq.s32.totalorder %s30, 0
      %p98 = por %p96, %p97
      %p99 = scmp.ne.s32.totalorder %s87, %s88
      %p100 = scmp.eq.s32.totalorder %s31, 3
      %p101 = por %p99, %p100
      %p103 = scmp.ne.s32.totalorder %s88, %s102
      %p104 = scmp.eq.s32.totalorder %s31, 0
      %p105 = por %p103, %p104
      %s107 = sadd.s32 %s106, 1
      %p110 = scmp.eq.s32.totalorder %s25, 3
      %p111 = scmp.ne.s32.totalorder %s106, %s108
      %p112 = scmp.eq.s32.totalorder %s25, 0
      %p113 = por %p111, %p112
      %p114 = scmp.ne.s32.totalorder %s106, %s108
      %p115 = scmp.eq.s32.totalorder %s30, 3
      %p116 = por %p114, %p115
      %p117 = scmp.ne.s32.totalorder %s108, %s109
      %p118 = scmp.eq.s32.totalorder %s30, 0
      %p119 = por %p117, %p118
      %p120 = scmp.ne.s32.totalorder %s108, %s109
      %p121 = scmp.eq.s32.totalorder %s31, 3
      %p122 = por %p120, %p121
      %p124 = scmp.ne.s32.totalorder %s109, %s123
      %p125 = scmp.eq.s32.totalorder %s31, 0
      %p126 = por %p124, %p125
      %s128 = sadd.s32 %s127, 1
      %p131 = scmp.eq.s32.totalorder %s25, 3
      %p132 = scmp.ne.s32.totalorder %s127, %s129
      %p133 = scmp.eq.s32.totalorder %s25, 0
      %p134 = por %p132, %p133
      %p135 = scmp.ne.s32.totalorder %s127, %s129
      %p136 = scmp.eq.s32.totalorder %s30, 3
      %p137 = por %p135, %p136
      %p138 = scmp.ne.s32.totalorder %s129, %s130
      %p139 = scmp.eq.s32.totalorder %s30, 0
      %p140 = por %p138, %p139
      %p141 = scmp.ne.s32.totalorder %s129, %s130
      %p142 = scmp.eq.s32.totalorder %s31, 3
      %p143 = por %p141, %p142
      %p145 = scmp.ne.s32.totalorder %s130, %s144
      %p146 = scmp.eq.s32.totalorder %s31, 0
      %p147 = por %p145, %p146
      %s149 = sadd.s32 %s148, 1
      %p152 = scmp.eq.s32.totalorder %s25, 3
      %p153 = scmp.ne.s32.totalorder %s148, %s150
      %p154 = scmp.eq.s32.totalorder %s25, 0
      %p155 = por %p153, %p154
      %p156 = scmp.ne.s32.totalorder %s148, %s150
      %p157 = scmp.eq.s32.totalorder %s30, 3
      %p158 = por %p156, %p157
      %p159 = scmp.ne.s32.totalorder %s150, %s151
      %p160 = scmp.eq.s32.totalorder %s30, 0
      %p161 = por %p159, %p160
      %p162 = scmp.ne.s32.totalorder %s150, %s151
      %p163 = scmp.eq.s32.totalorder %s31, 3
      %p164 = por %p162, %p163
      %p166 = scmp.ne.s32.totalorder %s151, %s165
      %p167 = scmp.eq.s32.totalorder %s31, 0
      %p168 = por %p166, %p167
      %s170 = sadd.s32 %s169, 1
      %p173 = scmp.eq.s32.totalorder %s25, 3
      %p174 = scmp.ne.s32.totalorder %s169, %s171
      %p175 = scmp.eq.s32.totalorder %s25, 0
      %p176 = por %p174, %p175
      %p177 = scmp.ne.s32.totalorder %s169, %s171
      %p178 = scmp.eq.s32.totalorder %s30, 3
      %p179 = por %p177, %p178
      %p180 = scmp.ne.s32.totalorder %s171, %s172
      %p181 = scmp.eq.s32.totalorder %s30, 0
      %p182 = por %p180, %p181
      %p183 = scmp.ne.s32.totalorder %s171, %s172
      %p184 = scmp.eq.s32.totalorder %s31, 3
      %p185 = por %p183, %p184
      %p187 = scmp.ne.s32.totalorder %s172, %s186
      %p188 = scmp.eq.s32.totalorder %s31, 0
      %p189 = por %p187, %p188
      %s191 = sadd.s32 %s190, 1
      %p194 = scmp.eq.s32.totalorder %s25, 3
      %p195 = scmp.ne.s32.totalorder %s190, %s192
      %p196 = scmp.eq.s32.totalorder %s25, 0
      %p197 = por %p195, %p196
      %p198 = scmp.ne.s32.totalorder %s190, %s192
      %p199 = scmp.eq.s32.totalorder %s30, 3
      %p200 = por %p198, %p199
      %p201 = scmp.ne.s32.totalorder %s192, %s193
      %p202 = scmp.eq.s32.totalorder %s30, 0
      %p203 = por %p201, %p202
      %p204 = scmp.ne.s32.totalorder %s192, %s193
      %p205 = scmp.eq.s32.totalorder %s31, 3
      %p206 = por %p204, %p205
      %p208 = scmp.ne.s32.totalorder %s193, %s207
      %p209 = scmp.eq.s32.totalorder %s31, 0
      %p210 = por %p208, %p209
      %s212 = sadd.s32 %s211, 1
      %p215 = scmp.eq.s32.totalorder %s25, 3
      %p216 = scmp.ne.s32.totalorder %s211, %s213
      %p217 = scmp.eq.s32.totalorder %s25, 0
      %p218 = por %p216, %p217
      %p219 = scmp.ne.s32.totalorder %s211, %s213
      %p220 = scmp.eq.s32.totalorder %s30, 3
      %p221 = por %p219, %p220
      %p222 = scmp.ne.s32.totalorder %s213, %s214
      %p223 = scmp.eq.s32.totalorder %s30, 0
      %p224 = por %p222, %p223
      %p225 = scmp.ne.s32.totalorder %s213, %s214
      %p226 = scmp.eq.s32.totalorder %s31, 3
      %p227 = por %p225, %p226
      %p229 = scmp.ne.s32.totalorder %s214, %s228
      %p230 = scmp.eq.s32.totalorder %s31, 0
      %p231 = por %p229, %p230
      %s233 = sadd.s32 %s232, 1
      %p236 = scmp.eq.s32.totalorder %s25, 3
      %p237 = scmp.ne.s32.totalorder %s232, %s234
      %p238 = scmp.eq.s32.totalorder %s25, 0
      %p239 = por %p237, %p238
      %p240 = scmp.ne.s32.totalorder %s232, %s234
      %p241 = scmp.eq.s32.totalorder %s30, 3
      %p242 = por %p240, %p241
      %p243 = scmp.ne.s32.totalorder %s234, %s235
      %p244 = scmp.eq.s32.totalorder %s30, 0
      %p245 = por %p243, %p244
      %p246 = scmp.ne.s32.totalorder %s234, %s235
      %p247 = scmp.eq.s32.totalorder %s31, 3
      %p248 = por %p246, %p247
      %p250 = scmp.ne.s32.totalorder %s235, %s249
      %p251 = scmp.eq.s32.totalorder %s31, 0
      %p252 = por %p250, %p251
      %s254 = sadd.s32 %s253, 1
      %p257 = scmp.eq.s32.totalorder %s25, 3
      %p258 = scmp.ne.s32.totalorder %s253, %s255
      %p259 = scmp.eq.s32.totalorder %s25, 0
      %p260 = por %p258, %p259
      %p261 = scmp.ne.s32.totalorder %s253, %s255
      %p262 = scmp.eq.s32.totalorder %s30, 3
      %p263 = por %p261, %p262
      %p264 = scmp.ne.s32.totalorder %s255, %s256
      %p265 = scmp.eq.s32.totalorder %s30, 0
      %p266 = por %p264, %p265
      %p267 = scmp.ne.s32.totalorder %s255, %s256
      %p268 = scmp.eq.s32.totalorder %s31, 3
      %p269 = por %p267, %p268
      %p271 = scmp.ne.s32.totalorder %s256, %s270
      %p272 = scmp.eq.s32.totalorder %s31, 0
      %p273 = por %p271, %p272
      %s275 = sadd.s32 %s274, 1
      %p278 = scmp.eq.s32.totalorder %s25, 3
      %p279 = scmp.ne.s32.totalorder %s274, %s276
      %p280 = scmp.eq.s32.totalorder %s25, 0
      %p281 = por %p279, %p280
      %p282 = scmp.ne.s32.totalorder %s274, %s276
      %p283 = scmp.eq.s32.totalorder %s30, 3
      %p284 = por %p282, %p283
      %p285 = scmp.ne.s32.totalorder %s276, %s277
      %p286 = scmp.eq.s32.totalorder %s30, 0
      %p287 = por %p285, %p286
      %p288 = scmp.ne.s32.totalorder %s276, %s277
      %p289 = scmp.eq.s32.totalorder %s31, 3
      %p290 = por %p288, %p289
      %p292 = scmp.ne.s32.totalorder %s277, %s291
      %p293 = scmp.eq.s32.totalorder %s31, 0
      %p294 = por %p292, %p293
      %s296 = sadd.s32 %s295, 1
      %p299 = scmp.eq.s32.totalorder %s25, 3
      %p300 = scmp.ne.s32.totalorder %s295, %s297
      %p301 = scmp.eq.s32.totalorder %s25, 0
      %p302 = por %p300, %p301
      %p303 = scmp.ne.s32.totalorder %s295, %s297
      %p304 = scmp.eq.s32.totalorder %s30, 3
      %p305 = por %p303, %p304
      %p306 = scmp.ne.s32.totalorder %s297, %s298
      %p307 = scmp.eq.s32.totalorder %s30, 0
      %p308 = por %p306, %p307
      %p309 = scmp.ne.s32.totalorder %s297, %s298
      %p310 = scmp.eq.s32.totalorder %s31, 3
      %p311 = por %p309, %p310
      %p313 = scmp.ne.s32.totalorder %s298, %s312
      %p314 = scmp.eq.s32.totalorder %s31, 0
      %p315 = por %p313, %p314
      %s317 = sadd.s32 %s316, 1
      %p320 = scmp.eq.s32.totalorder %s25, 3
      %p321 = scmp.ne.s32.totalorder %s316, %s318
      %p322 = scmp.eq.s32.totalorder %s25, 0
      %p323 = por %p321, %p322
      %p324 = scmp.ne.s32.totalorder %s316, %s318
      %p325 = scmp.eq.s32.totalorder %s30, 3
      %p326 = por %p324, %p325
      %p327 = scmp.ne.s32.totalorder %s318, %s319
      %p328 = scmp.eq.s32.totalorder %s30, 0
      %p329 = por %p327, %p328
      %p330 = scmp.ne.s32.totalorder %s318, %s319
      %p331 = scmp.eq.s32.totalorder %s31, 3
      %p332 = por %p330, %p331
      %p334 = scmp.ne.s32.totalorder %s319, %s333
      %p335 = scmp.eq.s32.totalorder %s31, 0
      %p336 = por %p334, %p335
      %s338 = sadd.s32 %s337, 1
      %p341 = scmp.eq.s32.totalorder %s25, 3
      %p342 = scmp.ne.s32.totalorder %s337, %s339
      %p343 = scmp.eq.s32.totalorder %s25, 0
      %p344 = por %p342, %p343
      %p345 = scmp.ne.s32.totalorder %s337, %s339
      %p346 = scmp.eq.s32.totalorder %s30, 3
      %p347 = por %p345, %p346
      %p348 = scmp.ne.s32.totalorder %s339, %s340
      %p349 = scmp.eq.s32.totalorder %s30, 0
      %p350 = por %p348, %p349
      %p351 = scmp.ne.s32.totalorder %s339, %s340
      %p352 = scmp.eq.s32.totalorder %s31, 3
      %p353 = por %p351, %p352
      %p355 = scmp.ne.s32.totalorder %s340, %s354
      %p356 = scmp.eq.s32.totalorder %s31, 0
      %p357 = por %p355, %p356
      %s359 = sadd.s32 %s358, 1
      %p362 = scmp.eq.s32.totalorder %s25, 3
      %p363 = scmp.ne.s32.totalorder %s358, %s360
      %p364 = scmp.eq.s32.totalorder %s25, 0
      %p365 = por %p363, %p364
      %p366 = scmp.ne.s32.totalorder %s358, %s360
      %p367 = scmp.eq.s32.totalorder %s30, 3
      %p368 = por %p366, %p367
      %p369 = scmp.ne.s32.totalorder %s360, %s361
      %p370 = scmp.eq.s32.totalorder %s30, 0
      %p371 = por %p369, %p370
      %p372 = scmp.ne.s32.totalorder %s360, %s361
      %p373 = scmp.eq.s32.totalorder %s31, 3
      %p374 = por %p372, %p373
      %p376 = scmp.ne.s32.totalorder %s361, %s375
      %p377 = scmp.eq.s32.totalorder %s31, 0
      %p378 = por %p376, %p377
      %s379 = ssub.s32 %s25, %s32
      %p380 = scmp.eq.s32.totalorder %s379, 0
      %s382 = sadd.s32 %s381, 1
      %s383 = scalar_select %p380, %s381, %s382
      %p386 = pneg %p380
      %p387 = scmp.eq.s32.totalorder %s25, 3
      %p388 = por %p386, %p387
      %p389 = scmp.ne.s32.totalorder %s381, %s384
      %p390 = scmp.eq.s32.totalorder %s25, 0
      %p391 = por %p389, %p390
      %p392 = scmp.ne.s32.totalorder %s381, %s384
      %p393 = scmp.eq.s32.totalorder %s30, 3
      %p394 = por %p392, %p393
      %p395 = scmp.ne.s32.totalorder %s384, %s385
      %p396 = scmp.eq.s32.totalorder %s30, 0
      %p397 = por %p395, %p396
      %p398 = scmp.ne.s32.totalorder %s384, %s385
      %p399 = scmp.eq.s32.totalorder %s31, 3
      %p400 = por %p398, %p399
      %p402 = scmp.ne.s32.totalorder %s385, %s401
      %p403 = scmp.eq.s32.totalorder %s31, 0
      %p404 = por %p402, %p403
      %p405 = scmp.le.s32.totalorder 1, %s25
      %p406 = scmp.lt.s32.totalorder %s25, 5
      %p407 = pnand %p405, %p406
      %p408 = pneg %p407
      // Predicated region
      $region9: #{tpu_custom_call.1} parent=5 // pred_check
        _
      $region10: #{tpu_custom_call.1} parent=5 // pred_check_branch
        %410 = sbr.rel (%p407) target = $region12
      $region11: #{tpu_custom_call.1} parent=5 // pred_region
        %s411 = ssub.s32 %s25, 1
        // Predicated region
        $region13: #{tpu_custom_call.1} parent=11 // pred_check
          %p412 = pneg %p98
        $region14: #{tpu_custom_call.1} parent=11 // pred_check_branch
          %414 = sbr.rel (%p412) target = $region16
        $region15: #{tpu_custom_call.1} parent=11 // pred_region
          _
        $region16: #{tpu_custom_call.1} parent=11 // pred_fallthru
          _
        // Predicated region
        $region17: #{tpu_custom_call.1} parent=11 // pred_check
          %p415 = pneg %p119
        $region18: #{tpu_custom_call.1} parent=11 // pred_check_branch
          %417 = sbr.rel (%p415) target = $region20
        $region19: #{tpu_custom_call.1} parent=11 // pred_region
          _
        $region20: #{tpu_custom_call.1} parent=11 // pred_fallthru
          _
        // Predicated region
        $region21: #{tpu_custom_call.1} parent=11 // pred_check
          %p418 = pneg %p140
        $region22: #{tpu_custom_call.1} parent=11 // pred_check_branch
          %420 = sbr.rel (%p418) target = $region24
        $region23: #{tpu_custom_call.1} parent=11 // pred_region
          _
        $region24: #{tpu_custom_call.1} parent=11 // pred_fallthru
          _
        // Predicated region
        $region25: #{tpu_custom_call.1} parent=11 // pred_check
          %p421 = pneg %p161
        $region26: #{tpu_custom_call.1} parent=11 // pred_check_branch
          %423 = sbr.rel (%p421) target = $region28
        $region27: #{tpu_custom_call.1} parent=11 // pred_region
          _
        $region28: #{tpu_custom_call.1} parent=11 // pred_fallthru
          _
        // Predicated region
        $region29: #{tpu_custom_call.1} parent=11 // pred_check
          %p424 = pneg %p182
        $region30: #{tpu_custom_call.1} parent=11 // pred_check_branch
          %426 = sbr.rel (%p424) target = $region32
        $region31: #{tpu_custom_call.1} parent=11 // pred_region
          _
        $region32: #{tpu_custom_call.1} parent=11 // pred_fallthru
          _
        // Predicated region
        $region33: #{tpu_custom_call.1} parent=11 // pred_check
          %p427 = pneg %p203
        $region34: #{tpu_custom_call.1} parent=11 // pred_check_branch
          %429 = sbr.rel (%p427) target = $region36
        $region35: #{tpu_custom_call.1} parent=11 // pred_region
          _
        $region36: #{tpu_custom_call.1} parent=11 // pred_fallthru
          _
        // Predicated region
        $region37: #{tpu_custom_call.1} parent=11 // pred_check
          %p430 = pneg %p224
        $region38: #{tpu_custom_call.1} parent=11 // pred_check_branch
          %432 = sbr.rel (%p430) target = $region40
        $region39: #{tpu_custom_call.1} parent=11 // pred_region
          _
        $region40: #{tpu_custom_call.1} parent=11 // pred_fallthru
          _
        // Predicated region
        $region41: #{tpu_custom_call.1} parent=11 // pred_check
          %p433 = pneg %p245
        $region42: #{tpu_custom_call.1} parent=11 // pred_check_branch
          %435 = sbr.rel (%p433) target = $region44
        $region43: #{tpu_custom_call.1} parent=11 // pred_region
          _
        $region44: #{tpu_custom_call.1} parent=11 // pred_fallthru
          _
        // Predicated region
        $region45: #{tpu_custom_call.1} parent=11 // pred_check
          %p436 = pneg %p266
        $region46: #{tpu_custom_call.1} parent=11 // pred_check_branch
          %438 = sbr.rel (%p436) target = $region48
        $region47: #{tpu_custom_call.1} parent=11 // pred_region
          _
        $region48: #{tpu_custom_call.1} parent=11 // pred_fallthru
          _
        // Predicated region
        $region49: #{tpu_custom_call.1} parent=11 // pred_check
          %p439 = pneg %p287
        $region50: #{tpu_custom_call.1} parent=11 // pred_check_branch
          %441 = sbr.rel (%p439) target = $region52
        $region51: #{tpu_custom_call.1} parent=11 // pred_region
          _
        $region52: #{tpu_custom_call.1} parent=11 // pred_fallthru
          _
        // Predicated region
        $region53: #{tpu_custom_call.1} parent=11 // pred_check
          %p442 = pneg %p308
        $region54: #{tpu_custom_call.1} parent=11 // pred_check_branch
          %444 = sbr.rel (%p442) target = $region56
        $region55: #{tpu_custom_call.1} parent=11 // pred_region
          _
        $region56: #{tpu_custom_call.1} parent=11 // pred_fallthru
          _
        // Predicated region
        $region57: #{tpu_custom_call.1} parent=11 // pred_check
          %p445 = pneg %p329
        $region58: #{tpu_custom_call.1} parent=11 // pred_check_branch
          %447 = sbr.rel (%p445) target = $region60
        $region59: #{tpu_custom_call.1} parent=11 // pred_region
          _
        $region60: #{tpu_custom_call.1} parent=11 // pred_fallthru
          _
        // Predicated region
        $region61: #{tpu_custom_call.1} parent=11 // pred_check
          %p448 = pneg %p350
        $region62: #{tpu_custom_call.1} parent=11 // pred_check_branch
          %450 = sbr.rel (%p448) target = $region64
        $region63: #{tpu_custom_call.1} parent=11 // pred_region
          _
        $region64: #{tpu_custom_call.1} parent=11 // pred_fallthru
          _
        // Predicated region
        $region65: #{tpu_custom_call.1} parent=11 // pred_check
          %p451 = pneg %p371
        $region66: #{tpu_custom_call.1} parent=11 // pred_check_branch
          %453 = sbr.rel (%p451) target = $region68
        $region67: #{tpu_custom_call.1} parent=11 // pred_region
          _
        $region68: #{tpu_custom_call.1} parent=11 // pred_fallthru
          _
      $region12: #{tpu_custom_call.1} parent=5 // pred_fallthru
        _
      %p454 = scmp.lt.s32.totalorder %s25, 4
      // Predicated region
      $region69: #{tpu_custom_call.1} parent=5 // pred_check
        %p455 = pneg %p454
      $region70: #{tpu_custom_call.1} parent=5 // pred_check_branch
        %457 = sbr.rel (%p455) target = $region72
      $region71: #{tpu_custom_call.1} parent=5 // pred_region
        // Predicated region
        $region73: #{tpu_custom_call.1} parent=71 // pred_check
          %p458 = pneg %p45
        $region74: #{tpu_custom_call.1} parent=71 // pred_check_branch
          %460 = sbr.rel (%p458) target = $region76
        $region75: #{tpu_custom_call.1} parent=71 // pred_region
          %s461 = smul.u32 64, %s25
          %p462 = scmp.lt.s32.totalorder %s461, 255
          %s463 = scalar_select %p462, %s461, 255
          %s464 = smul.addr %s463, 8
          %s465 = scalar_lea.vmem %s0, %s464
          %s466 = smul.u32 64, %s25
        $region76: #{tpu_custom_call.1} parent=71 // pred_fallthru
          _
        // Predicated region
        $region77: #{tpu_custom_call.1} parent=71 // pred_check
          %p467 = pneg %p71
        $region78: #{tpu_custom_call.1} parent=71 // pred_check_branch
          %469 = sbr.rel (%p467) target = $region80
        $region79: #{tpu_custom_call.1} parent=71 // pred_region
          %s470 = smul.u32 64, %s25
          %p471 = scmp.lt.s32.totalorder %s470, 255
          %s472 = scalar_select %p471, %s470, 255
          %s473 = smul.addr %s472, 8
          %s474 = scalar_lea.vmem %s1, %s473
          %s475 = smul.u32 64, %s25
        $region80: #{tpu_custom_call.1} parent=71 // pred_fallthru
          _
      $region72: #{tpu_custom_call.1} parent=5 // pred_fallthru
        _
      %p476 = scmp.le.s32.totalorder 1, %s25
      %p477 = scmp.lt.s32.totalorder %s25, 5
      %p478 = pnand %p476, %p477
      %p479 = pneg %p478
      // Predicated region
      $region81: #{tpu_custom_call.1} parent=5 // pred_check
        _
      $region82: #{tpu_custom_call.1} parent=5 // pred_check_branch
        %481 = sbr.rel (%p478) target = $region84
      $region83: #{tpu_custom_call.1} parent=5 // pred_region
        %s482 = ssub.s32 %s25, 1
        %s483 = smul.u32 64, %s30
        %p484 = scmp.lt.s32.totalorder %s483, 255
        %s485 = scalar_select %p484, %s483, 255
        %s486 = smul.addr %s485, 8
        %s487 = scalar_lea.vmem %s0, %s486
        %p488 = pneg %p51
        %p489 = pneg %p48
        %s490 = smul.u32 64, %s30
        %p491 = scmp.lt.s32.totalorder %s490, 255
        %s492 = scalar_select %p491, %s490, 255
        %s493 = smul.addr %s492, 8
        %s494 = scalar_lea.vmem %s1, %s493
        %p495 = pneg %p77
        %p496 = pneg %p74
        %p497 = pneg %p98
        %p498 = pneg %p95
        %p499 = pneg %p119
        %p500 = pneg %p116
        %p501 = pneg %p140
        %p502 = pneg %p137
        %p503 = pneg %p161
        %p504 = pneg %p158
        %p505 = pneg %p182
        %p506 = pneg %p179
        %p507 = pneg %p203
        %p508 = pneg %p200
        %p509 = pneg %p224
        %p510 = pneg %p221
        %p511 = pneg %p245
        %p512 = pneg %p242
        %p513 = pneg %p266
        %p514 = pneg %p263
        %p515 = pneg %p287
        %p516 = pneg %p284
        %p517 = pneg %p308
        %p518 = pneg %p305
        %p519 = pneg %p329
        %p520 = pneg %p326
        %p521 = pneg %p350
        %p522 = pneg %p347
        %p523 = pneg %p371
        %p524 = pneg %p368
        %p525 = pneg %p397
        %p526 = pneg %p394
        %s527 = sand.u32 %s384, 1
        %s528 = scalar_lea.sflag [#allocation3], %s527
        %s529 = sand.u32 %s384, 1
        %s530 = smul.addr %s529, 512
        %s531 = scalar_lea.vmem [#allocation2], %s530
        %s532 = smul.u32 64, %s30
        %p533 = scmp.lt.s32.totalorder %s532, 255
        %s534 = scalar_select %p533, %s532, 255
        %s535 = smul.addr %s534, 8
        %s536 = scalar_lea.vmem %s0, %s535
        %s537 = smul.u32 64, %s30
        %s538 = smul.u32 64, %s30
        %p539 = scmp.lt.s32.totalorder %s538, 255
        %s540 = scalar_select %p539, %s538, 255
        %s541 = smul.addr %s540, 8
        %s542 = scalar_lea.vmem %s1, %s541
        %s543 = smul.u32 64, %s30
        %s544 = smul.u32 64, %s30
        %v546 = vld [vmem:[%s536] sm:$0xff]
        %v547 = vld [vmem:[%s536 + $0x8] sm:$0xff]
        %v548 = vld [vmem:[%s536 + $0x10] sm:$0xff]
        %v549 = vld [vmem:[%s536 + $0x18] sm:$0xff]
        %v550 = vld [vmem:[%s536 + $0x20] sm:$0xff]
        %v551 = vld [vmem:[%s536 + $0x28] sm:$0xff]
        %v552 = vld [vmem:[%s536 + $0x30] sm:$0xff]
        %v553 = vld [vmem:[%s536 + $0x38] sm:$0xff]
        %v554 = vld [vmem:[%s536 + $0x40] sm:$0xff]
        %v555 = vld [vmem:[%s536 + $0x48] sm:$0xff]
        %v556 = vld [vmem:[%s536 + $0x50] sm:$0xff]
        %v557 = vld [vmem:[%s536 + $0x58] sm:$0xff]
        %v558 = vld [vmem:[%s536 + $0x60] sm:$0xff]
        %v559 = vld [vmem:[%s536 + $0x68] sm:$0xff]
        %v560 = vld [vmem:[%s536 + $0x70] sm:$0xff]
        %v561 = vld [vmem:[%s536 + $0x78] sm:$0xff]
        %v562 = vld [vmem:[%s536 + $0x80] sm:$0xff]
        %v563 = vld [vmem:[%s536 + $0x88] sm:$0xff]
        %v564 = vld [vmem:[%s536 + $0x90] sm:$0xff]
        %v565 = vld [vmem:[%s536 + $0x98] sm:$0xff]
        %v566 = vld [vmem:[%s536 + $0xa0] sm:$0xff]
        %v567 = vld [vmem:[%s536 + $0xa8] sm:$0xff]
        %v568 = vld [vmem:[%s536 + $0xb0] sm:$0xff]
        %v569 = vld [vmem:[%s536 + $0xb8] sm:$0xff]
        %v570 = vld [vmem:[%s536 + $0xc0] sm:$0xff]
        %v571 = vld [vmem:[%s536 + $0xc8] sm:$0xff]
        %v572 = vld [vmem:[%s536 + $0xd0] sm:$0xff]
        %v573 = vld [vmem:[%s536 + $0xd8] sm:$0xff]
        %v574 = vld [vmem:[%s536 + $0xe0] sm:$0xff]
        %v575 = vld [vmem:[%s536 + $0xe8] sm:$0xff]
        %v576 = vld [vmem:[%s536 + $0xf0] sm:$0xff]
        %v577 = vld [vmem:[%s536 + $0xf8] sm:$0xff]
        %v578 = vld [vmem:[%s536 + $0x100] sm:$0xff]
        %v579 = vld [vmem:[%s536 + $0x108] sm:$0xff]
        %v580 = vld [vmem:[%s536 + $0x110] sm:$0xff]
        %v581 = vld [vmem:[%s536 + $0x118] sm:$0xff]
        %v582 = vld [vmem:[%s536 + $0x120] sm:$0xff]
        %v583 = vld [vmem:[%s536 + $0x128] sm:$0xff]
        %v584 = vld [vmem:[%s536 + $0x130] sm:$0xff]
        %v585 = vld [vmem:[%s536 + $0x138] sm:$0xff]
        %v586 = vld [vmem:[%s536 + $0x140] sm:$0xff]
        %v587 = vld [vmem:[%s536 + $0x148] sm:$0xff]
        %v588 = vld [vmem:[%s536 + $0x150] sm:$0xff]
        %v589 = vld [vmem:[%s536 + $0x158] sm:$0xff]
        %v590 = vld [vmem:[%s536 + $0x160] sm:$0xff]
        %v591 = vld [vmem:[%s536 + $0x168] sm:$0xff]
        %v592 = vld [vmem:[%s536 + $0x170] sm:$0xff]
        %v593 = vld [vmem:[%s536 + $0x178] sm:$0xff]
        %v594 = vld [vmem:[%s536 + $0x180] sm:$0xff]
        %v595 = vld [vmem:[%s536 + $0x188] sm:$0xff]
        %v596 = vld [vmem:[%s536 + $0x190] sm:$0xff]
        %v597 = vld [vmem:[%s536 + $0x198] sm:$0xff]
        %v598 = vld [vmem:[%s536 + $0x1a0] sm:$0xff]
        %v599 = vld [vmem:[%s536 + $0x1a8] sm:$0xff]
        %v600 = vld [vmem:[%s536 + $0x1b0] sm:$0xff]
        %v601 = vld [vmem:[%s536 + $0x1b8] sm:$0xff]
        %v602 = vld [vmem:[%s536 + $0x1c0] sm:$0xff]
        %v603 = vld [vmem:[%s536 + $0x1c8] sm:$0xff]
        %v604 = vld [vmem:[%s536 + $0x1d0] sm:$0xff]
        %v605 = vld [vmem:[%s536 + $0x1d8] sm:$0xff]
        %v606 = vld [vmem:[%s536 + $0x1e0] sm:$0xff]
        %v607 = vld [vmem:[%s536 + $0x1e8] sm:$0xff]
        %v608 = vld [vmem:[%s536 + $0x1f0] sm:$0xff]
        %v609 = vld [vmem:[%s536 + $0x1f8] sm:$0xff]
        %v610 = vpack.c.bf16 %v547, %v546
        %v611 = vpack.c.bf16 %v549, %v548
        %v612 = vpack.c.bf16 %v551, %v550
        %v613 = vpack.c.bf16 %v553, %v552
        %v614 = vpack.c.bf16 %v555, %v554
        %v615 = vpack.c.bf16 %v557, %v556
        %v616 = vpack.c.bf16 %v559, %v558
        %v617 = vpack.c.bf16 %v561, %v560
        %v618 = vpack.c.bf16 %v563, %v562
        %v619 = vpack.c.bf16 %v565, %v564
        %v620 = vpack.c.bf16 %v567, %v566
        %v621 = vpack.c.bf16 %v569, %v568
        %v622 = vpack.c.bf16 %v571, %v570
        %v623 = vpack.c.bf16 %v573, %v572
        %v624 = vpack.c.bf16 %v575, %v574
        %v625 = vpack.c.bf16 %v577, %v576
        %v626 = vpack.c.bf16 %v579, %v578
        %v627 = vpack.c.bf16 %v581, %v580
        %v628 = vpack.c.bf16 %v583, %v582
        %v629 = vpack.c.bf16 %v585, %v584
        %v630 = vpack.c.bf16 %v587, %v586
        %v631 = vpack.c.bf16 %v589, %v588
        %v632 = vpack.c.bf16 %v591, %v590
        %v633 = vpack.c.bf16 %v593, %v592
        %v634 = vpack.c.bf16 %v595, %v594
        %v635 = vpack.c.bf16 %v597, %v596
        %v636 = vpack.c.bf16 %v599, %v598
        %v637 = vpack.c.bf16 %v601, %v600
        %v638 = vpack.c.bf16 %v603, %v602
        %v639 = vpack.c.bf16 %v605, %v604
        %v640 = vpack.c.bf16 %v607, %v606
        %v641 = vpack.c.bf16 %v609, %v608
        %v642 = vld [vmem:[%s542] sm:$0xff]
        %v643 = vld [vmem:[%s542 + $0x8] sm:$0xff]
        %v644 = vld [vmem:[%s542 + $0x10] sm:$0xff]
        %v645 = vld [vmem:[%s542 + $0x18] sm:$0xff]
        %v646 = vld [vmem:[%s542 + $0x20] sm:$0xff]
        %v647 = vld [vmem:[%s542 + $0x28] sm:$0xff]
        %v648 = vld [vmem:[%s542 + $0x30] sm:$0xff]
        %v649 = vld [vmem:[%s542 + $0x38] sm:$0xff]
        %v650 = vld [vmem:[%s542 + $0x40] sm:$0xff]
        %v651 = vld [vmem:[%s542 + $0x48] sm:$0xff]
        %v652 = vld [vmem:[%s542 + $0x50] sm:$0xff]
        %v653 = vld [vmem:[%s542 + $0x58] sm:$0xff]
        %v654 = vld [vmem:[%s542 + $0x60] sm:$0xff]
        %v655 = vld [vmem:[%s542 + $0x68] sm:$0xff]
        %v656 = vld [vmem:[%s542 + $0x70] sm:$0xff]
        %v657 = vld [vmem:[%s542 + $0x78] sm:$0xff]
        %v658 = vld [vmem:[%s542 + $0x80] sm:$0xff]
        %v659 = vld [vmem:[%s542 + $0x88] sm:$0xff]
        %v660 = vld [vmem:[%s542 + $0x90] sm:$0xff]
        %v661 = vld [vmem:[%s542 + $0x98] sm:$0xff]
        %v662 = vld [vmem:[%s542 + $0xa0] sm:$0xff]
        %v663 = vld [vmem:[%s542 + $0xa8] sm:$0xff]
        %v664 = vld [vmem:[%s542 + $0xb0] sm:$0xff]
        %v665 = vld [vmem:[%s542 + $0xb8] sm:$0xff]
        %v666 = vld [vmem:[%s542 + $0xc0] sm:$0xff]
        %v667 = vld [vmem:[%s542 + $0xc8] sm:$0xff]
        %v668 = vld [vmem:[%s542 + $0xd0] sm:$0xff]
        %v669 = vld [vmem:[%s542 + $0xd8] sm:$0xff]
        %v670 = vld [vmem:[%s542 + $0xe0] sm:$0xff]
        %v671 = vld [vmem:[%s542 + $0xe8] sm:$0xff]
        %v672 = vld [vmem:[%s542 + $0xf0] sm:$0xff]
        %v673 = vld [vmem:[%s542 + $0xf8] sm:$0xff]
        %v674 = vld [vmem:[%s542 + $0x100] sm:$0xff]
        %v675 = vld [vmem:[%s542 + $0x108] sm:$0xff]
        %v676 = vld [vmem:[%s542 + $0x110] sm:$0xff]
        %v677 = vld [vmem:[%s542 + $0x118] sm:$0xff]
        %v678 = vld [vmem:[%s542 + $0x120] sm:$0xff]
        %v679 = vld [vmem:[%s542 + $0x128] sm:$0xff]
        %v680 = vld [vmem:[%s542 + $0x130] sm:$0xff]
        %v681 = vld [vmem:[%s542 + $0x138] sm:$0xff]
        %v682 = vld [vmem:[%s542 + $0x140] sm:$0xff]
        %v683 = vld [vmem:[%s542 + $0x148] sm:$0xff]
        %v684 = vld [vmem:[%s542 + $0x150] sm:$0xff]
        %v685 = vld [vmem:[%s542 + $0x158] sm:$0xff]
        %v686 = vld [vmem:[%s542 + $0x160] sm:$0xff]
        %v687 = vld [vmem:[%s542 + $0x168] sm:$0xff]
        %v688 = vld [vmem:[%s542 + $0x170] sm:$0xff]
        %v689 = vld [vmem:[%s542 + $0x178] sm:$0xff]
        %v690 = vld [vmem:[%s542 + $0x180] sm:$0xff]
        %v691 = vld [vmem:[%s542 + $0x188] sm:$0xff]
        %v692 = vld [vmem:[%s542 + $0x190] sm:$0xff]
        %v693 = vld [vmem:[%s542 + $0x198] sm:$0xff]
        %v694 = vld [vmem:[%s542 + $0x1a0] sm:$0xff]
        %v695 = vld [vmem:[%s542 + $0x1a8] sm:$0xff]
        %v696 = vld [vmem:[%s542 + $0x1b0] sm:$0xff]
        %v697 = vld [vmem:[%s542 + $0x1b8] sm:$0xff]
        %v698 = vld [vmem:[%s542 + $0x1c0] sm:$0xff]
        %v699 = vld [vmem:[%s542 + $0x1c8] sm:$0xff]
        %v700 = vld [vmem:[%s542 + $0x1d0] sm:$0xff]
        %v701 = vld [vmem:[%s542 + $0x1d8] sm:$0xff]
        %v702 = vld [vmem:[%s542 + $0x1e0] sm:$0xff]
        %v703 = vld [vmem:[%s542 + $0x1e8] sm:$0xff]
        %v704 = vld [vmem:[%s542 + $0x1f0] sm:$0xff]
        %v705 = vld [vmem:[%s542 + $0x1f8] sm:$0xff]
        %v706 = vpack.c.bf16 %v643, %v642
        %v707 = vpack.c.bf16 %v645, %v644
        %v708 = vpack.c.bf16 %v647, %v646
        %v709 = vpack.c.bf16 %v649, %v648
        %v710 = vpack.c.bf16 %v651, %v650
        %v711 = vpack.c.bf16 %v653, %v652
        %v712 = vpack.c.bf16 %v655, %v654
        %v713 = vpack.c.bf16 %v657, %v656
        %v714 = vpack.c.bf16 %v659, %v658
        %v715 = vpack.c.bf16 %v661, %v660
        %v716 = vpack.c.bf16 %v663, %v662
        %v717 = vpack.c.bf16 %v665, %v664
        %v718 = vpack.c.bf16 %v667, %v666
        %v719 = vpack.c.bf16 %v669, %v668
        %v720 = vpack.c.bf16 %v671, %v670
        %v721 = vpack.c.bf16 %v673, %v672
        %v722 = vpack.c.bf16 %v675, %v674
        %v723 = vpack.c.bf16 %v677, %v676
        %v724 = vpack.c.bf16 %v679, %v678
        %v725 = vpack.c.bf16 %v681, %v680
        %v726 = vpack.c.bf16 %v683, %v682
        %v727 = vpack.c.bf16 %v685, %v684
        %v728 = vpack.c.bf16 %v687, %v686
        %v729 = vpack.c.bf16 %v689, %v688
        %v730 = vpack.c.bf16 %v691, %v690
        %v731 = vpack.c.bf16 %v693, %v692
        %v732 = vpack.c.bf16 %v695, %v694
        %v733 = vpack.c.bf16 %v697, %v696
        %v734 = vpack.c.bf16 %v699, %v698
        %v735 = vpack.c.bf16 %v701, %v700
        %v736 = vpack.c.bf16 %v703, %v702
        %v737 = vpack.c.bf16 %v705, %v704
        %v738 = vld [vmem:[%s2] sm:$0xf]
        %v739 = vld [vmem:[%s3] sm:$0x3]
        %v741 = vlaneseq
        %v742 = vshrl.u32 %v741, 7
        %v743 = vsub.s32 0, %v742
        %v744 = vrot.slane %v739, %v743
        %v745 = vlaneseq
        %v746 = vshrl.u32 %v745, 7
        %v747 = vsub.s32 1, %v746
        %v748 = vrot.slane %v739, %v747
        %v753 = vunpack.c.l.s4 1983009808
        %v754 = vunpack.c.0.s8 %v753
        %v755 = vlaneseq
        %v756 = vshrl.u32 %v755, 7
        %v757 = vsub.s32 %v754, %v756
        %v758 = vrot.slane %v738, %v757
        %v759 = vcombine.high %v758, %v758
        %vm760 = vcmask 23552
        %v762 = vsel %vm760, %v610, 0
        %v765 = vsel %vm760, %v611, 0
        %v768 = vsel %vm760, %v612, 0
        %v771 = vsel %vm760, %v613, 0
        %v774 = vsel %vm760, %v614, 0
        %v777 = vsel %vm760, %v615, 0
        %v780 = vsel %vm760, %v616, 0
        %v783 = vsel %vm760, %v617, 0
        %v786 = vsel %vm760, %v618, 0
        %v789 = vsel %vm760, %v619, 0
        %v792 = vsel %vm760, %v620, 0
        %v795 = vsel %vm760, %v621, 0
        %v798 = vsel %vm760, %v622, 0
        %v801 = vsel %vm760, %v623, 0
        %v804 = vsel %vm760, %v624, 0
        %v807 = vsel %vm760, %v625, 0
        %v810 = vsel %vm760, %v626, 0
        %v813 = vsel %vm760, %v627, 0
        %v816 = vsel %vm760, %v628, 0
        %v819 = vsel %vm760, %v629, 0
        %v822 = vsel %vm760, %v630, 0
        %v825 = vsel %vm760, %v631, 0
        %v828 = vsel %vm760, %v632, 0
        %v831 = vsel %vm760, %v633, 0
        %v834 = vsel %vm760, %v634, 0
        %v837 = vsel %vm760, %v635, 0
        %v840 = vsel %vm760, %v636, 0
        %v843 = vsel %vm760, %v637, 0
        %v846 = vsel %vm760, %v638, 0
        %v849 = vsel %vm760, %v639, 0
        %v852 = vsel %vm760, %v640, 0
        %v855 = vsel %vm760, %v641, 0
        %vm857 = vcmask 1040384
        %vm858 = vcmask 1041408
        %v859 = vsel %vm857, 4294967295, 65535
        %v860 = vsel %vm858, %v859, 0
        %v862 = vand.u32 %v758, %v860
        %v865 = vand.u32 %v759, %v860
        %867 = vmatprep.subr.bf16.mxu0 %v865
        %868 = vmatpush1.bf16.msra.mxu0 %v862
        %869 = vmatprep.subr.bf16.mxu0 0
        %870 = vmatpush1.bf16.msra.mxu0 0
        %871 = vmatprep.subr.bf16.mxu0 0
        %872 = vmatpush1.bf16.msra.mxu0 0
        %873 = vmatprep.subr.bf16.mxu0 0
        %874 = vmatpush1.bf16.msra.mxu0 0
        %875 = vmatprep.subr.bf16.mxu0 0
        %876 = vmatpush1.bf16.msra.mxu0 0
        %877 = vmatprep.subr.bf16.mxu0 0
        %878 = vmatpush1.bf16.msra.mxu0 0
        %879 = vmatprep.subr.bf16.mxu0 0
        %880 = vmatpush1.bf16.msra.mxu0 0
        %881 = vmatprep.subr.bf16.mxu0 0
        %882 = vmatpush1.bf16.msra.mxu0 0
        %883 = vmatprep.subr.bf16.mxu0 0
        %884 = vmatpush1.bf16.msra.mxu0 0
        %885 = vmatprep.subr.bf16.mxu0 0
        %886 = vmatpush1.bf16.msra.mxu0 0
        %887 = vmatprep.subr.bf16.mxu0 0
        %888 = vmatpush1.bf16.msra.mxu0 0
        %889 = vmatprep.subr.bf16.mxu0 0
        %890 = vmatpush1.bf16.msra.mxu0 0
        %891 = vmatprep.subr.bf16.mxu0 0
        %892 = vmatpush1.bf16.msra.mxu0 0
        %893 = vmatprep.subr.bf16.mxu0 0
        %894 = vmatpush1.bf16.msra.mxu0 0
        %895 = vmatprep.subr.bf16.mxu0 0
        %896 = vmatpush1.bf16.msra.mxu0 0
        %897 = vmatprep.subr.bf16.mxu0 0
        %898 = vmatpush1.bf16.msra.mxu0 0
        %899 = vmatprep.mubr.bf16.mxu0 0
        %900 = vmatmul.mubr.bf16.gmra.mrb[0].mxu0 %v762
        %v901 = vpop.f32.mrb[0].mxu0
        %v902 = vadd.f32 %v744, %v901
        %v903 = vpop.f32.mrb[0].mxu0
        %v904 = vadd.f32 %v748, %v903
        %v905 = vpop.f32.mrb[0].mxu0
        %v906 = vadd.f32 %v744, %v905
        %v907 = vpop.f32.mrb[0].mxu0
        %v908 = vadd.f32 %v748, %v907
        %909 = vmatprep.mubr.bf16.mxu0 0
        %910 = vmatmul.mubr.bf16.gmra.mrb[0].mxu0 %v765
        %v911 = vpop.f32.mrb[0].mxu0
        %v912 = vadd.f32 %v744, %v911
        %v913 = vpop.f32.mrb[0].mxu0
        %v914 = vadd.f32 %v748, %v913
        %v915 = vpop.f32.mrb[0].mxu0
        %v916 = vadd.f32 %v744, %v915
        %v917 = vpop.f32.mrb[0].mxu0
        %v918 = vadd.f32 %v748, %v917
        %919 = vmatprep.mubr.bf16.mxu0 0
        %920 = vmatmul.mubr.bf16.gmra.mrb[0].mxu0 %v768
        %v921 = vpop.f32.mrb[0].mxu0
        %v922 = vadd.f32 %v744, %v921
        %v923 = vpop.f32.mrb[0].mxu0
        %v924 = vadd.f32 %v748, %v923
        %v925 = vpop.f32.mrb[0].mxu0
        %v926 = vadd.f32 %v744, %v925
        %v927 = vpop.f32.mrb[0].mxu0
        %v928 = vadd.f32 %v748, %v927
        %929 = vmatprep.mubr.bf16.mxu0 0
        %930 = vmatmul.mubr.bf16.gmra.mrb[0].mxu0 %v771
        %v931 = vpop.f32.mrb[0].mxu0
        %v932 = vadd.f32 %v744, %v931
        %v933 = vpop.f32.mrb[0].mxu0
        %v934 = vadd.f32 %v748, %v933
        %v935 = vpop.f32.mrb[0].mxu0
        %v936 = vadd.f32 %v744, %v935
        %v937 = vpop.f32.mrb[0].mxu0
        %v938 = vadd.f32 %v748, %v937
        %939 = vmatprep.mubr.bf16.mxu0 0
        %940 = vmatmul.mubr.bf16.gmra.mrb[0].mxu0 %v774
        %v941 = vpop.f32.mrb[0].mxu0
        %v942 = vadd.f32 %v744, %v941
        %v943 = vpop.f32.mrb[0].mxu0
        %v944 = vadd.f32 %v748, %v943
        %v945 = vpop.f32.mrb[0].mxu0
        %v946 = vadd.f32 %v744, %v945
        %v947 = vpop.f32.mrb[0].mxu0
        %v948 = vadd.f32 %v748, %v947
        %949 = vmatprep.mubr.bf16.mxu0 0
        %950 = vmatmul.mubr.bf16.gmra.mrb[0].mxu0 %v777
        %v951 = vpop.f32.mrb[0].mxu0
        %v952 = vadd.f32 %v744, %v951
        %v953 = vpop.f32.mrb[0].mxu0
        %v954 = vadd.f32 %v748, %v953
        %v955 = vpop.f32.mrb[0].mxu0
        %v956 = vadd.f32 %v744, %v955
        %v957 = vpop.f32.mrb[0].mxu0
        %v958 = vadd.f32 %v748, %v957
        %959 = vmatprep.mubr.bf16.mxu0 0
        %960 = vmatmul.mubr.bf16.gmra.mrb[0].mxu0 %v780
        %v961 = vpop.f32.mrb[0].mxu0
        %v962 = vadd.f32 %v744, %v961
        %v963 = vpop.f32.mrb[0].mxu0
        %v964 = vadd.f32 %v748, %v963
        %v965 = vpop.f32.mrb[0].mxu0
        %v966 = vadd.f32 %v744, %v965
        %v967 = vpop.f32.mrb[0].mxu0
        %v968 = vadd.f32 %v748, %v967
        %969 = vmatprep.mubr.bf16.mxu0 0
        %970 = vmatmul.mubr.bf16.gmra.mrb[0].mxu0 %v783
        %v971 = vpop.f32.mrb[0].mxu0
        %v972 = vadd.f32 %v744, %v971
        %v973 = vpop.f32.mrb[0].mxu0
        %v974 = vadd.f32 %v748, %v973
        %v975 = vpop.f32.mrb[0].mxu0
        %v976 = vadd.f32 %v744, %v975
        %v977 = vpop.f32.mrb[0].mxu0
        %v978 = vadd.f32 %v748, %v977
        %979 = vmatprep.mubr.bf16.mxu0 0
        %980 = vmatmul.mubr.bf16.gmra.mrb[0].mxu0 %v786
        %v981 = vpop.f32.mrb[0].mxu0
        %v982 = vadd.f32 %v744, %v981
        %v983 = vpop.f32.mrb[0].mxu0
        %v984 = vadd.f32 %v748, %v983
        %v985 = vpop.f32.mrb[0].mxu0
        %v986 = vadd.f32 %v744, %v985
        %v987 = vpop.f32.mrb[0].mxu0
        %v988 = vadd.f32 %v748, %v987
        %989 = vmatprep.mubr.bf16.mxu0 0
        %990 = vmatmul.mubr.bf16.gmra.mrb[0].mxu0 %v789
        %v991 = vpop.f32.mrb[0].mxu0
        %v992 = vadd.f32 %v744, %v991
        %v993 = vpop.f32.mrb[0].mxu0
        %v994 = vadd.f32 %v748, %v993
        %v995 = vpop.f32.mrb[0].mxu0
        %v996 = vadd.f32 %v744, %v995
        %v997 = vpop.f32.mrb[0].mxu0
        %v998 = vadd.f32 %v748, %v997
        %999 = vmatprep.mubr.bf16.mxu0 0
        %1000 = vmatmul.mubr.bf16.gmra.mrb[0].mxu0 %v792
        %v1001 = vpop.f32.mrb[0].mxu0
        %v1002 = vadd.f32 %v744, %v1001
        %v1003 = vpop.f32.mrb[0].mxu0
        %v1004 = vadd.f32 %v748, %v1003
        %v1005 = vpop.f32.mrb[0].mxu0
        %v1006 = vadd.f32 %v744, %v1005
        %v1007 = vpop.f32.mrb[0].mxu0
        %v1008 = vadd.f32 %v748, %v1007
        %1009 = vmatprep.mubr.bf16.mxu0 0
        %1010 = vmatmul.mubr.bf16.gmra.mrb[0].mxu0 %v795
        %v1011 = vpop.f32.mrb[0].mxu0
        %v1012 = vadd.f32 %v744, %v1011
        %v1013 = vpop.f32.mrb[0].mxu0
        %v1014 = vadd.f32 %v748, %v1013
        %v1015 = vpop.f32.mrb[0].mxu0
        %v1016 = vadd.f32 %v744, %v1015
        %v1017 = vpop.f32.mrb[0].mxu0
        %v1018 = vadd.f32 %v748, %v1017
        %1019 = vmatprep.mubr.bf16.mxu0 0
        %1020 = vmatmul.mubr.bf16.gmra.mrb[0].mxu0 %v798
        %v1021 = vpop.f32.mrb[0].mxu0
        %v1022 = vadd.f32 %v744, %v1021
        %v1023 = vpop.f32.mrb[0].mxu0
        %v1024 = vadd.f32 %v748, %v1023
        %v1025 = vpop.f32.mrb[0].mxu0
        %v1026 = vadd.f32 %v744, %v1025
        %v1027 = vpop.f32.mrb[0].mxu0
        %v1028 = vadd.f32 %v748, %v1027
        %1029 = vmatprep.mubr.bf16.mxu0 0
        %1030 = vmatmul.mubr.bf16.gmra.mrb[0].mxu0 %v801
        %v1031 = vpop.f32.mrb[0].mxu0
        %v1032 = vadd.f32 %v744, %v1031
        %v1033 = vpop.f32.mrb[0].mxu0
        %v1034 = vadd.f32 %v748, %v1033
        %v1035 = vpop.f32.mrb[0].mxu0
        %v1036 = vadd.f32 %v744, %v1035
        %v1037 = vpop.f32.mrb[0].mxu0
        %v1038 = vadd.f32 %v748, %v1037
        %1039 = vmatprep.mubr.bf16.mxu0 0
        %1040 = vmatmul.mubr.bf16.gmra.mrb[0].mxu0 %v804
        %v1041 = vpop.f32.mrb[0].mxu0
        %v1042 = vadd.f32 %v744, %v1041
        %v1043 = vpop.f32.mrb[0].mxu0
        %v1044 = vadd.f32 %v748, %v1043
        %v1045 = vpop.f32.mrb[0].mxu0
        %v1046 = vadd.f32 %v744, %v1045
        %v1047 = vpop.f32.mrb[0].mxu0
        %v1048 = vadd.f32 %v748, %v1047
        %1049 = vmatprep.mubr.bf16.mxu0 0
        %1050 = vmatmul.mubr.bf16.gmra.mrb[0].mxu0 %v807
        %v1051 = vpop.f32.mrb[0].mxu0
        %v1052 = vadd.f32 %v744, %v1051
        %v1053 = vpop.f32.mrb[0].mxu0
        %v1054 = vadd.f32 %v748, %v1053
        %v1055 = vpop.f32.mrb[0].mxu0
        %v1056 = vadd.f32 %v744, %v1055
        %v1057 = vpop.f32.mrb[0].mxu0
        %v1058 = vadd.f32 %v748, %v1057
        %1059 = vmatprep.mubr.bf16.mxu0 0
        %1060 = vmatmul.mubr.bf16.gmra.mrb[0].mxu0 %v810
        %v1061 = vpop.f32.mrb[0].mxu0
        %v1062 = vadd.f32 %v744, %v1061
        %v1063 = vpop.f32.mrb[0].mxu0
        %v1064 = vadd.f32 %v748, %v1063
        %v1065 = vpop.f32.mrb[0].mxu0
        %v1066 = vadd.f32 %v744, %v1065
        %v1067 = vpop.f32.mrb[0].mxu0
        %v1068 = vadd.f32 %v748, %v1067
        %1069 = vmatprep.mubr.bf16.mxu0 0
        %1070 = vmatmul.mubr.bf16.gmra.mrb[0].mxu0 %v813
        %v1071 = vpop.f32.mrb[0].mxu0
        %v1072 = vadd.f32 %v744, %v1071
        %v1073 = vpop.f32.mrb[0].mxu0
        %v1074 = vadd.f32 %v748, %v1073
        %v1075 = vpop.f32.mrb[0].mxu0
        %v1076 = vadd.f32 %v744, %v1075
        %v1077 = vpop.f32.mrb[0].mxu0
        %v1078 = vadd.f32 %v748, %v1077
        %1079 = vmatprep.mubr.bf16.mxu0 0
        %1080 = vmatmul.mubr.bf16.gmra.mrb[0].mxu0 %v816
        %v1081 = vpop.f32.mrb[0].mxu0
        %v1082 = vadd.f32 %v744, %v1081
        %v1083 = vpop.f32.mrb[0].mxu0
        %v1084 = vadd.f32 %v748, %v1083
        %v1085 = vpop.f32.mrb[0].mxu0
        %v1086 = vadd.f32 %v744, %v1085
        %v1087 = vpop.f32.mrb[0].mxu0
        %v1088 = vadd.f32 %v748, %v1087
        %1089 = vmatprep.mubr.bf16.mxu0 0
        %1090 = vmatmul.mubr.bf16.gmra.mrb[0].mxu0 %v819
        %v1091 = vpop.f32.mrb[0].mxu0
        %v1092 = vadd.f32 %v744, %v1091
        %v1093 = vpop.f32.mrb[0].mxu0
        %v1094 = vadd.f32 %v748, %v1093
        %v1095 = vpop.f32.mrb[0].mxu0
        %v1096 = vadd.f32 %v744, %v1095
        %v1097 = vpop.f32.mrb[0].mxu0
        %v1098 = vadd.f32 %v748, %v1097
        %1099 = vmatprep.mubr.bf16.mxu0 0
        %1100 = vmatmul.mubr.bf16.gmra.mrb[0].mxu0 %v822
        %v1101 = vpop.f32.mrb[0].mxu0
        %v1102 = vadd.f32 %v744, %v1101
        %v1103 = vpop.f32.mrb[0].mxu0
        %v1104 = vadd.f32 %v748, %v1103
        %v1105 = vpop.f32.mrb[0].mxu0
        %v1106 = vadd.f32 %v744, %v1105
        %v1107 = vpop.f32.mrb[0].mxu0
        %v1108 = vadd.f32 %v748, %v1107
        %1109 = vmatprep.mubr.bf16.mxu0 0
        %1110 = vmatmul.mubr.bf16.gmra.mrb[0].mxu0 %v825
        %v1111 = vpop.f32.mrb[0].mxu0
        %v1112 = vadd.f32 %v744, %v1111
        %v1113 = vpop.f32.mrb[0].mxu0
        %v1114 = vadd.f32 %v748, %v1113
        %v1115 = vpop.f32.mrb[0].mxu0
        %v1116 = vadd.f32 %v744, %v1115
        %v1117 = vpop.f32.mrb[0].mxu0
        %v1118 = vadd.f32 %v748, %v1117
        %1119 = vmatprep.mubr.bf16.mxu0 0
        %1120 = vmatmul.mubr.bf16.gmra.mrb[0].mxu0 %v828
        %v1121 = vpop.f32.mrb[0].mxu0
        %v1122 = vadd.f32 %v744, %v1121
        %v1123 = vpop.f32.mrb[0].mxu0
        %v1124 = vadd.f32 %v748, %v1123
        %v1125 = vpop.f32.mrb[0].mxu0
        %v1126 = vadd.f32 %v744, %v1125
        %v1127 = vpop.f32.mrb[0].mxu0
        %v1128 = vadd.f32 %v748, %v1127
        %1129 = vmatprep.mubr.bf16.mxu0 0
        %1130 = vmatmul.mubr.bf16.gmra.mrb[0].mxu0 %v831
        %v1131 = vpop.f32.mrb[0].mxu0
        %v1132 = vadd.f32 %v744, %v1131
        %v1133 = vpop.f32.mrb[0].mxu0
        %v1134 = vadd.f32 %v748, %v1133
        %v1135 = vpop.f32.mrb[0].mxu0
        %v1136 = vadd.f32 %v744, %v1135
        %v1137 = vpop.f32.mrb[0].mxu0
        %v1138 = vadd.f32 %v748, %v1137
        %1139 = vmatprep.mubr.bf16.mxu0 0
        %1140 = vmatmul.mubr.bf16.gmra.mrb[0].mxu0 %v834
        %v1141 = vpop.f32.mrb[0].mxu0
        %v1142 = vadd.f32 %v744, %v1141
        %v1143 = vpop.f32.mrb[0].mxu0
        %v1144 = vadd.f32 %v748, %v1143
        %v1145 = vpop.f32.mrb[0].mxu0
        %v1146 = vadd.f32 %v744, %v1145
        %v1147 = vpop.f32.mrb[0].mxu0
        %v1148 = vadd.f32 %v748, %v1147
        %1149 = vmatprep.mubr.bf16.mxu0 0
        %1150 = vmatmul.mubr.bf16.gmra.mrb[0].mxu0 %v837
        %v1151 = vpop.f32.mrb[0].mxu0
        %v1152 = vadd.f32 %v744, %v1151
        %v1153 = vpop.f32.mrb[0].mxu0
        %v1154 = vadd.f32 %v748, %v1153
        %v1155 = vpop.f32.mrb[0].mxu0
        %v1156 = vadd.f32 %v744, %v1155
        %v1157 = vpop.f32.mrb[0].mxu0
        %v1158 = vadd.f32 %v748, %v1157
        %1159 = vmatprep.mubr.bf16.mxu0 0
        %1160 = vmatmul.mubr.bf16.gmra.mrb[0].mxu0 %v840
        %v1161 = vpop.f32.mrb[0].mxu0
        %v1162 = vadd.f32 %v744, %v1161
        %v1163 = vpop.f32.mrb[0].mxu0
        %v1164 = vadd.f32 %v748, %v1163
        %v1165 = vpop.f32.mrb[0].mxu0
        %v1166 = vadd.f32 %v744, %v1165
        %v1167 = vpop.f32.mrb[0].mxu0
        %v1168 = vadd.f32 %v748, %v1167
        %1169 = vmatprep.mubr.bf16.mxu0 0
        %1170 = vmatmul.mubr.bf16.gmra.mrb[0].mxu0 %v843
        %v1171 = vpop.f32.mrb[0].mxu0
        %v1172 = vadd.f32 %v744, %v1171
        %v1173 = vpop.f32.mrb[0].mxu0
        %v1174 = vadd.f32 %v748, %v1173
        %v1175 = vpop.f32.mrb[0].mxu0
        %v1176 = vadd.f32 %v744, %v1175
        %v1177 = vpop.f32.mrb[0].mxu0
        %v1178 = vadd.f32 %v748, %v1177
        %1179 = vmatprep.mubr.bf16.mxu0 0
        %1180 = vmatmul.mubr.bf16.gmra.mrb[0].mxu0 %v846
        %v1181 = vpop.f32.mrb[0].mxu0
        %v1182 = vadd.f32 %v744, %v1181
        %v1183 = vpop.f32.mrb[0].mxu0
        %v1184 = vadd.f32 %v748, %v1183
        %v1185 = vpop.f32.mrb[0].mxu0
        %v1186 = vadd.f32 %v744, %v1185
        %v1187 = vpop.f32.mrb[0].mxu0
        %v1188 = vadd.f32 %v748, %v1187
        %1189 = vmatprep.mubr.bf16.mxu0 0
        %1190 = vmatmul.mubr.bf16.gmra.mrb[0].mxu0 %v849
        %v1191 = vpop.f32.mrb[0].mxu0
        %v1192 = vadd.f32 %v744, %v1191
        %v1193 = vpop.f32.mrb[0].mxu0
        %v1194 = vadd.f32 %v748, %v1193
        %v1195 = vpop.f32.mrb[0].mxu0
        %v1196 = vadd.f32 %v744, %v1195
        %v1197 = vpop.f32.mrb[0].mxu0
        %v1198 = vadd.f32 %v748, %v1197
        %1199 = vmatprep.mubr.bf16.mxu0 0
        %1200 = vmatmul.mubr.bf16.gmra.mrb[0].mxu0 %v852
        %v1201 = vpop.f32.mrb[0].mxu0
        %v1202 = vadd.f32 %v744, %v1201
        %v1203 = vpop.f32.mrb[0].mxu0
        %v1204 = vadd.f32 %v748, %v1203
        %v1205 = vpop.f32.mrb[0].mxu0
        %v1206 = vadd.f32 %v744, %v1205
        %v1207 = vpop.f32.mrb[0].mxu0
        %v1208 = vadd.f32 %v748, %v1207
        %1209 = vmatprep.mubr.bf16.mxu0 0
        %1210 = vmatmul.mubr.bf16.gmra.mrb[0].mxu0 %v855
        %v1211 = vpop.f32.mrb[0].mxu0
        %v1212 = vadd.f32 %v744, %v1211
        %v1213 = vpop.f32.mrb[0].mxu0
        %v1214 = vadd.f32 %v748, %v1213
        %v1215 = vpop.f32.mrb[0].mxu0
        %v1216 = vadd.f32 %v744, %v1215
        %v1217 = vpop.f32.mrb[0].mxu0
        %v1218 = vadd.f32 %v748, %v1217
        %1219 = vdwg.mxu0
        %v1220 = vmax.f32 %v902, 0.0
        %v1221 = vmax.f32 %v904, 0.0
        %v1222 = vmax.f32 %v906, 0.0
        %v1223 = vmax.f32 %v908, 0.0
        %v1224 = vmax.f32 %v912, 0.0
        %v1225 = vmax.f32 %v914, 0.0
        %v1226 = vmax.f32 %v916, 0.0
        %v1227 = vmax.f32 %v918, 0.0
        %v1228 = vmax.f32 %v922, 0.0
        %v1229 = vmax.f32 %v924, 0.0
        %v1230 = vmax.f32 %v926, 0.0
        %v1231 = vmax.f32 %v928, 0.0
        %v1232 = vmax.f32 %v932, 0.0
        %v1233 = vmax.f32 %v934, 0.0
        %v1234 = vmax.f32 %v936, 0.0
        %v1235 = vmax.f32 %v938, 0.0
        %v1236 = vmax.f32 %v942, 0.0
        %v1237 = vmax.f32 %v944, 0.0
        %v1238 = vmax.f32 %v946, 0.0
        %v1239 = vmax.f32 %v948, 0.0
        %v1240 = vmax.f32 %v952, 0.0
        %v1241 = vmax.f32 %v954, 0.0
        %v1242 = vmax.f32 %v956, 0.0
        %v1243 = vmax.f32 %v958, 0.0
        %v1244 = vmax.f32 %v962, 0.0
        %v1245 = vmax.f32 %v964, 0.0
        %v1246 = vmax.f32 %v966, 0.0
        %v1247 = vmax.f32 %v968, 0.0
        %v1248 = vmax.f32 %v972, 0.0
        %v1249 = vmax.f32 %v974, 0.0
        %v1250 = vmax.f32 %v976, 0.0
        %v1251 = vmax.f32 %v978, 0.0
        %v1252 = vmax.f32 %v982, 0.0
        %v1253 = vmax.f32 %v984, 0.0
        %v1254 = vmax.f32 %v986, 0.0
        %v1255 = vmax.f32 %v988, 0.0
        %v1256 = vmax.f32 %v992, 0.0
        %v1257 = vmax.f32 %v994, 0.0
        %v1258 = vmax.f32 %v996, 0.0
        %v1259 = vmax.f32 %v998, 0.0
        %v1260 = vmax.f32 %v1002, 0.0
        %v1261 = vmax.f32 %v1004, 0.0
        %v1262 = vmax.f32 %v1006, 0.0
        %v1263 = vmax.f32 %v1008, 0.0
        %v1264 = vmax.f32 %v1012, 0.0
        %v1265 = vmax.f32 %v1014, 0.0
        %v1266 = vmax.f32 %v1016, 0.0
        %v1267 = vmax.f32 %v1018, 0.0
        %v1268 = vmax.f32 %v1022, 0.0
        %v1269 = vmax.f32 %v1024, 0.0
        %v1270 = vmax.f32 %v1026, 0.0
        %v1271 = vmax.f32 %v1028, 0.0
        %v1272 = vmax.f32 %v1032, 0.0
        %v1273 = vmax.f32 %v1034, 0.0
        %v1274 = vmax.f32 %v1036, 0.0
        %v1275 = vmax.f32 %v1038, 0.0
        %v1276 = vmax.f32 %v1042, 0.0
        %v1277 = vmax.f32 %v1044, 0.0
        %v1278 = vmax.f32 %v1046, 0.0
        %v1279 = vmax.f32 %v1048, 0.0
        %v1280 = vmax.f32 %v1052, 0.0
        %v1281 = vmax.f32 %v1054, 0.0
        %v1282 = vmax.f32 %v1056, 0.0
        %v1283 = vmax.f32 %v1058, 0.0
        %v1284 = vmax.f32 %v1062, 0.0
        %v1285 = vmax.f32 %v1064, 0.0
        %v1286 = vmax.f32 %v1066, 0.0
        %v1287 = vmax.f32 %v1068, 0.0
        %v1288 = vmax.f32 %v1072, 0.0
        %v1289 = vmax.f32 %v1074, 0.0
        %v1290 = vmax.f32 %v1076, 0.0
        %v1291 = vmax.f32 %v1078, 0.0
        %v1292 = vmax.f32 %v1082, 0.0
        %v1293 = vmax.f32 %v1084, 0.0
        %v1294 = vmax.f32 %v1086, 0.0
        %v1295 = vmax.f32 %v1088, 0.0
        %v1296 = vmax.f32 %v1092, 0.0
        %v1297 = vmax.f32 %v1094, 0.0
        %v1298 = vmax.f32 %v1096, 0.0
        %v1299 = vmax.f32 %v1098, 0.0
        %v1300 = vmax.f32 %v1102, 0.0
        %v1301 = vmax.f32 %v1104, 0.0
        %v1302 = vmax.f32 %v1106, 0.0
        %v1303 = vmax.f32 %v1108, 0.0
        %v1304 = vmax.f32 %v1112, 0.0
        %v1305 = vmax.f32 %v1114, 0.0
        %v1306 = vmax.f32 %v1116, 0.0
        %v1307 = vmax.f32 %v1118, 0.0
        %v1308 = vmax.f32 %v1122, 0.0
        %v1309 = vmax.f32 %v1124, 0.0
        %v1310 = vmax.f32 %v1126, 0.0
        %v1311 = vmax.f32 %v1128, 0.0
        %v1312 = vmax.f32 %v1132, 0.0
        %v1313 = vmax.f32 %v1134, 0.0
        %v1314 = vmax.f32 %v1136, 0.0
        %v1315 = vmax.f32 %v1138, 0.0
        %v1316 = vmax.f32 %v1142, 0.0
        %v1317 = vmax.f32 %v1144, 0.0
        %v1318 = vmax.f32 %v1146, 0.0
        %v1319 = vmax.f32 %v1148, 0.0
        %v1320 = vmax.f32 %v1152, 0.0
        %v1321 = vmax.f32 %v1154, 0.0
        %v1322 = vmax.f32 %v1156, 0.0
        %v1323 = vmax.f32 %v1158, 0.0
        %v1324 = vmax.f32 %v1162, 0.0
        %v1325 = vmax.f32 %v1164, 0.0
        %v1326 = vmax.f32 %v1166, 0.0
        %v1327 = vmax.f32 %v1168, 0.0
        %v1328 = vmax.f32 %v1172, 0.0
        %v1329 = vmax.f32 %v1174, 0.0
        %v1330 = vmax.f32 %v1176, 0.0
        %v1331 = vmax.f32 %v1178, 0.0
        %v1332 = vmax.f32 %v1182, 0.0
        %v1333 = vmax.f32 %v1184, 0.0
        %v1334 = vmax.f32 %v1186, 0.0
        %v1335 = vmax.f32 %v1188, 0.0
        %v1336 = vmax.f32 %v1192, 0.0
        %v1337 = vmax.f32 %v1194, 0.0
        %v1338 = vmax.f32 %v1196, 0.0
        %v1339 = vmax.f32 %v1198, 0.0
        %v1340 = vmax.f32 %v1202, 0.0
        %v1341 = vmax.f32 %v1204, 0.0
        %v1342 = vmax.f32 %v1206, 0.0
        %v1343 = vmax.f32 %v1208, 0.0
        %v1344 = vmax.f32 %v1212, 0.0
        %v1345 = vmax.f32 %v1214, 0.0
        %v1346 = vmax.f32 %v1216, 0.0
        %v1347 = vmax.f32 %v1218, 0.0
        %v1348 = vpack.c.bf16 %v1222, %v1220
        %v1349 = vpack.c.bf16 %v1223, %v1221
        %v1350 = vpack.c.bf16 %v1226, %v1224
        %v1351 = vpack.c.bf16 %v1227, %v1225
        %v1352 = vpack.c.bf16 %v1230, %v1228
        %v1353 = vpack.c.bf16 %v1231, %v1229
        %v1354 = vpack.c.bf16 %v1234, %v1232
        %v1355 = vpack.c.bf16 %v1235, %v1233
        %v1356 = vpack.c.bf16 %v1238, %v1236
        %v1357 = vpack.c.bf16 %v1239, %v1237
        %v1358 = vpack.c.bf16 %v1242, %v1240
        %v1359 = vpack.c.bf16 %v1243, %v1241
        %v1360 = vpack.c.bf16 %v1246, %v1244
        %v1361 = vpack.c.bf16 %v1247, %v1245
        %v1362 = vpack.c.bf16 %v1250, %v1248
        %v1363 = vpack.c.bf16 %v1251, %v1249
        %v1364 = vpack.c.bf16 %v1254, %v1252
        %v1365 = vpack.c.bf16 %v1255, %v1253
        %v1366 = vpack.c.bf16 %v1258, %v1256
        %v1367 = vpack.c.bf16 %v1259, %v1257
        %v1368 = vpack.c.bf16 %v1262, %v1260
        %v1369 = vpack.c.bf16 %v1263, %v1261
        %v1370 = vpack.c.bf16 %v1266, %v1264
        %v1371 = vpack.c.bf16 %v1267, %v1265
        %v1372 = vpack.c.bf16 %v1270, %v1268
        %v1373 = vpack.c.bf16 %v1271, %v1269
        %v1374 = vpack.c.bf16 %v1274, %v1272
        %v1375 = vpack.c.bf16 %v1275, %v1273
        %v1376 = vpack.c.bf16 %v1278, %v1276
        %v1377 = vpack.c.bf16 %v1279, %v1277
        %v1378 = vpack.c.bf16 %v1282, %v1280
        %v1379 = vpack.c.bf16 %v1283, %v1281
        %v1380 = vpack.c.bf16 %v1286, %v1284
        %v1381 = vpack.c.bf16 %v1287, %v1285
        %v1382 = vpack.c.bf16 %v1290, %v1288
        %v1383 = vpack.c.bf16 %v1291, %v1289
        %v1384 = vpack.c.bf16 %v1294, %v1292
        %v1385 = vpack.c.bf16 %v1295, %v1293
        %v1386 = vpack.c.bf16 %v1298, %v1296
        %v1387 = vpack.c.bf16 %v1299, %v1297
        %v1388 = vpack.c.bf16 %v1302, %v1300
        %v1389 = vpack.c.bf16 %v1303, %v1301
        %v1390 = vpack.c.bf16 %v1306, %v1304
        %v1391 = vpack.c.bf16 %v1307, %v1305
        %v1392 = vpack.c.bf16 %v1310, %v1308
        %v1393 = vpack.c.bf16 %v1311, %v1309
        %v1394 = vpack.c.bf16 %v1314, %v1312
        %v1395 = vpack.c.bf16 %v1315, %v1313
        %v1396 = vpack.c.bf16 %v1318, %v1316
        %v1397 = vpack.c.bf16 %v1319, %v1317
        %v1398 = vpack.c.bf16 %v1322, %v1320
        %v1399 = vpack.c.bf16 %v1323, %v1321
        %v1400 = vpack.c.bf16 %v1326, %v1324
        %v1401 = vpack.c.bf16 %v1327, %v1325
        %v1402 = vpack.c.bf16 %v1330, %v1328
        %v1403 = vpack.c.bf16 %v1331, %v1329
        %v1404 = vpack.c.bf16 %v1334, %v1332
        %v1405 = vpack.c.bf16 %v1335, %v1333
        %v1406 = vpack.c.bf16 %v1338, %v1336
        %v1407 = vpack.c.bf16 %v1339, %v1337
        %v1408 = vpack.c.bf16 %v1342, %v1340
        %v1409 = vpack.c.bf16 %v1343, %v1341
        %v1410 = vpack.c.bf16 %v1346, %v1344
        %v1411 = vpack.c.bf16 %v1347, %v1345
        %v1412 = vld [vmem:[%s4] sm:$0xff]
        %v1413 = vld [vmem:[%s4 + $0x8] sm:$0xff]
        %v1414 = vld [vmem:[%s4 + $0x10] sm:$0xff]
        %v1415 = vld [vmem:[%s4 + $0x18] sm:$0xff]
        %v1416 = vld [vmem:[%s4 + $0x20] sm:$0xff]
        %v1417 = vld [vmem:[%s4 + $0x28] sm:$0xff]
        %v1418 = vld [vmem:[%s4 + $0x30] sm:$0xff]
        %v1419 = vld [vmem:[%s4 + $0x38] sm:$0xff]
        %v1420 = vld [vmem:[%s4 + $0x40] sm:$0xff]
        %v1421 = vld [vmem:[%s4 + $0x48] sm:$0xff]
        %v1422 = vld [vmem:[%s4 + $0x50] sm:$0xff]
        %v1423 = vld [vmem:[%s4 + $0x58] sm:$0xff]
        %v1424 = vld [vmem:[%s4 + $0x60] sm:$0xff]
        %v1425 = vld [vmem:[%s4 + $0x68] sm:$0xff]
        %v1426 = vld [vmem:[%s4 + $0x70] sm:$0xff]
        %v1427 = vld [vmem:[%s4 + $0x78] sm:$0xff]
        %v1428 = vld [vmem:[%s4 + $0x80] sm:$0xff]
        %v1429 = vld [vmem:[%s4 + $0x88] sm:$0xff]
        %v1430 = vld [vmem:[%s4 + $0x90] sm:$0xff]
        %v1431 = vld [vmem:[%s4 + $0x98] sm:$0xff]
        %v1432 = vld [vmem:[%s4 + $0xa0] sm:$0xff]
        %v1433 = vld [vmem:[%s4 + $0xa8] sm:$0xff]
        %v1434 = vld [vmem:[%s4 + $0xb0] sm:$0xff]
        %v1435 = vld [vmem:[%s4 + $0xb8] sm:$0xff]
        %v1436 = vld [vmem:[%s4 + $0xc0] sm:$0xff]
        %v1437 = vld [vmem:[%s4 + $0xc8] sm:$0xff]
        %v1438 = vld [vmem:[%s4 + $0xd0] sm:$0xff]
        %v1439 = vld [vmem:[%s4 + $0xd8] sm:$0xff]
        %v1440 = vld [vmem:[%s4 + $0xe0] sm:$0xff]
        %v1441 = vld [vmem:[%s4 + $0xe8] sm:$0xff]
        %v1442 = vld [vmem:[%s4 + $0xf0] sm:$0xff]
        %v1443 = vld [vmem:[%s4 + $0xf8] sm:$0xff]
        %v1444 = vld [vmem:[%s5] ss:$8 sm:$0x3]
        %v1446 = vlaneseq
        %v1447 = vshrl.u32 %v1446, 7
        %v1448 = vsub.s32 0, %v1447
        %v1449 = vrot.slane %v1444, %v1448
        %v1450 = vlaneseq
        %v1451 = vshrl.u32 %v1450, 7
        %v1452 = vsub.s32 1, %v1451
        %v1453 = vrot.slane %v1444, %v1452
        %v1488 = vunpack.c.l.b16 %v1412
        %v1489 = vunpack.c.h.b16 %v1412
        %v1490 = vunpack.c.l.b16 %v1413
        %v1491 = vunpack.c.h.b16 %v1413
        %v1492 = vunpack.c.l.b16 %v1414
        %v1493 = vunpack.c.h.b16 %v1414
        %v1494 = vunpack.c.l.b16 %v1415
        %v1495 = vunpack.c.h.b16 %v1415
        %v1496 = vunpack.c.l.b16 %v1416
        %v1497 = vunpack.c.h.b16 %v1416
        %v1498 = vunpack.c.l.b16 %v1417
        %v1499 = vunpack.c.h.b16 %v1417
        %v1500 = vunpack.c.l.b16 %v1418
        %v1501 = vunpack.c.h.b16 %v1418
        %v1502 = vunpack.c.l.b16 %v1419
        %v1503 = vunpack.c.h.b16 %v1419
        %v1504 = vunpack.c.l.b16 %v1420
        %v1505 = vunpack.c.h.b16 %v1420
        %v1506 = vunpack.c.l.b16 %v1421
        %v1507 = vunpack.c.h.b16 %v1421
        %v1508 = vunpack.c.l.b16 %v1422
        %v1509 = vunpack.c.h.b16 %v1422
        %v1510 = vunpack.c.l.b16 %v1423
        %v1511 = vunpack.c.h.b16 %v1423
        %v1512 = vunpack.c.l.b16 %v1424
        %v1513 = vunpack.c.h.b16 %v1424
        %v1514 = vunpack.c.l.b16 %v1425
        %v1515 = vunpack.c.h.b16 %v1425
        %v1516 = vunpack.c.l.b16 %v1426
        %v1517 = vunpack.c.h.b16 %v1426
        %v1518 = vunpack.c.l.b16 %v1427
        %v1519 = vunpack.c.h.b16 %v1427
        %v1520 = vunpack.c.l.b16 %v1428
        %v1521 = vunpack.c.h.b16 %v1428
        %v1522 = vunpack.c.l.b16 %v1429
        %v1523 = vunpack.c.h.b16 %v1429
        %v1524 = vunpack.c.l.b16 %v1430
        %v1525 = vunpack.c.h.b16 %v1430
        %v1526 = vunpack.c.l.b16 %v1431
        %v1527 = vunpack.c.h.b16 %v1431
        %v1528 = vunpack.c.l.b16 %v1432
        %v1529 = vunpack.c.h.b16 %v1432
        %v1530 = vunpack.c.l.b16 %v1433
        %v1531 = vunpack.c.h.b16 %v1433
        %v1532 = vunpack.c.l.b16 %v1434
        %v1533 = vunpack.c.h.b16 %v1434
        %v1534 = vunpack.c.l.b16 %v1435
        %v1535 = vunpack.c.h.b16 %v1435
        %v1536 = vunpack.c.l.b16 %v1436
        %v1537 = vunpack.c.h.b16 %v1436
        %v1538 = vunpack.c.l.b16 %v1437
        %v1539 = vunpack.c.h.b16 %v1437
        %v1540 = vunpack.c.l.b16 %v1438
        %v1541 = vunpack.c.h.b16 %v1438
        %v1542 = vunpack.c.l.b16 %v1439
        %v1543 = vunpack.c.h.b16 %v1439
        %v1544 = vunpack.c.l.b16 %v1440
        %v1545 = vunpack.c.h.b16 %v1440
        %v1546 = vunpack.c.l.b16 %v1441
        %v1547 = vunpack.c.h.b16 %v1441
        %v1548 = vunpack.c.l.b16 %v1442
        %v1549 = vunpack.c.h.b16 %v1442
        %v1550 = vunpack.c.l.b16 %v1443
        %v1551 = vunpack.c.h.b16 %v1443
        %v1552 = vpack.c.b16 %v1490, %v1488
        %v1553 = vpack.c.b16 %v1491, %v1489
        %v1554 = vpack.c.b16 %v1494, %v1492
        %v1555 = vpack.c.b16 %v1495, %v1493
        %v1556 = vpack.c.b16 %v1498, %v1496
        %v1557 = vpack.c.b16 %v1499, %v1497
        %v1558 = vpack.c.b16 %v1502, %v1500
        %v1559 = vpack.c.b16 %v1503, %v1501
        %v1560 = vpack.c.b16 %v1506, %v1504
        %v1561 = vpack.c.b16 %v1507, %v1505
        %v1562 = vpack.c.b16 %v1510, %v1508
        %v1563 = vpack.c.b16 %v1511, %v1509
        %v1564 = vpack.c.b16 %v1514, %v1512
        %v1565 = vpack.c.b16 %v1515, %v1513
        %v1566 = vpack.c.b16 %v1518, %v1516
        %v1567 = vpack.c.b16 %v1519, %v1517
        %v1568 = vpack.c.b16 %v1522, %v1520
        %v1569 = vpack.c.b16 %v1523, %v1521
        %v1570 = vpack.c.b16 %v1526, %v1524
        %v1571 = vpack.c.b16 %v1527, %v1525
        %v1572 = vpack.c.b16 %v1530, %v1528
        %v1573 = vpack.c.b16 %v1531, %v1529
        %v1574 = vpack.c.b16 %v1534, %v1532
        %v1575 = vpack.c.b16 %v1535, %v1533
        %v1576 = vpack.c.b16 %v1538, %v1536
        %v1577 = vpack.c.b16 %v1539, %v1537
        %v1578 = vpack.c.b16 %v1542, %v1540
        %v1579 = vpack.c.b16 %v1543, %v1541
        %v1580 = vpack.c.b16 %v1546, %v1544
        %v1581 = vpack.c.b16 %v1547, %v1545
        %v1582 = vpack.c.b16 %v1550, %v1548
        %v1583 = vpack.c.b16 %v1551, %v1549
        %1616 = vmatprep.subr.bf16.mxu0 %v1553
        %1617 = vmatpush1.bf16.msra.mxu0 %v1552
        %1618 = vmatprep.subr.bf16.mxu0 %v1555
        %1619 = vmatpush1.bf16.msra.mxu0 %v1554
        %1620 = vmatprep.subr.bf16.mxu0 %v1557
        %1621 = vmatpush1.bf16.msra.mxu0 %v1556
        %1622 = vmatprep.subr.bf16.mxu0 %v1559
        %1623 = vmatpush1.bf16.msra.mxu0 %v1558
        %1624 = vmatprep.subr.bf16.mxu0 %v1561
        %1625 = vmatpush1.bf16.msra.mxu0 %v1560
        %1626 = vmatprep.subr.bf16.mxu0 %v1563
        %1627 = vmatpush1.bf16.msra.mxu0 %v1562
        %1628 = vmatprep.subr.bf16.mxu0 %v1565
        %1629 = vmatpush1.bf16.msra.mxu0 %v1564
        %1630 = vmatprep.subr.bf16.mxu0 %v1567
        %1631 = vmatpush1.bf16.msra.mxu0 %v1566
        %1632 = vmatprep.subr.bf16.mxu0 %v1569
        %1633 = vmatpush1.bf16.msra.mxu0 %v1568
        %1634 = vmatprep.subr.bf16.mxu0 %v1571
        %1635 = vmatpush1.bf16.msra.mxu0 %v1570
        %1636 = vmatprep.subr.bf16.mxu0 %v1573
        %1637 = vmatpush1.bf16.msra.mxu0 %v1572
        %1638 = vmatprep.subr.bf16.mxu0 %v1575
        %1639 = vmatpush1.bf16.msra.mxu0 %v1574
        %1640 = vmatprep.subr.bf16.mxu0 %v1577
        %1641 = vmatpush1.bf16.msra.mxu0 %v1576
        %1642 = vmatprep.subr.bf16.mxu0 %v1579
        %1643 = vmatpush1.bf16.msra.mxu0 %v1578
        %1644 = vmatprep.subr.bf16.mxu0 %v1581
        %1645 = vmatpush1.bf16.msra.mxu0 %v1580
        %1646 = vmatprep.subr.bf16.mxu0 %v1583
        %1647 = vmatpush1.bf16.msra.mxu0 %v1582
        %1648 = vmatprep.mubr.bf16.mxu0 %v1349
        %1649 = vmatmul.mubr.bf16.gmra.mrb[0].mxu0 %v1348
        %v1650 = vpop.f32.mrb[0].mxu0
        %v1651 = vadd.f32 %v1449, %v1650
        %v1652 = vpop.f32.mrb[0].mxu0
        %v1653 = vadd.f32 %v1453, %v1652
        %v1654 = vpop.f32.mrb[0].mxu0
        %v1655 = vadd.f32 %v1449, %v1654
        %v1656 = vpop.f32.mrb[0].mxu0
        %v1657 = vadd.f32 %v1453, %v1656
        %1658 = vmatprep.mubr.bf16.mxu0 %v1351
        %1659 = vmatmul.mubr.bf16.gmra.mrb[0].mxu0 %v1350
        %v1660 = vpop.f32.mrb[0].mxu0
        %v1661 = vadd.f32 %v1449, %v1660
        %v1662 = vpop.f32.mrb[0].mxu0
        %v1663 = vadd.f32 %v1453, %v1662
        %v1664 = vpop.f32.mrb[0].mxu0
        %v1665 = vadd.f32 %v1449, %v1664
        %v1666 = vpop.f32.mrb[0].mxu0
        %v1667 = vadd.f32 %v1453, %v1666
        %1668 = vmatprep.mubr.bf16.mxu0 %v1353
        %1669 = vmatmul.mubr.bf16.gmra.mrb[0].mxu0 %v1352
        %v1670 = vpop.f32.mrb[0].mxu0
        %v1671 = vadd.f32 %v1449, %v1670
        %v1672 = vpop.f32.mrb[0].mxu0
        %v1673 = vadd.f32 %v1453, %v1672
        %v1674 = vpop.f32.mrb[0].mxu0
        %v1675 = vadd.f32 %v1449, %v1674
        %v1676 = vpop.f32.mrb[0].mxu0
        %v1677 = vadd.f32 %v1453, %v1676
        %1678 = vmatprep.mubr.bf16.mxu0 %v1355
        %1679 = vmatmul.mubr.bf16.gmra.mrb[0].mxu0 %v1354
        %v1680 = vpop.f32.mrb[0].mxu0
        %v1681 = vadd.f32 %v1449, %v1680
        %v1682 = vpop.f32.mrb[0].mxu0
        %v1683 = vadd.f32 %v1453, %v1682
        %v1684 = vpop.f32.mrb[0].mxu0
        %v1685 = vadd.f32 %v1449, %v1684
        %v1686 = vpop.f32.mrb[0].mxu0
        %v1687 = vadd.f32 %v1453, %v1686
        %1688 = vmatprep.mubr.bf16.mxu0 %v1357
        %1689 = vmatmul.mubr.bf16.gmra.mrb[0].mxu0 %v1356
        %v1690 = vpop.f32.mrb[0].mxu0
        %v1691 = vadd.f32 %v1449, %v1690
        %v1692 = vpop.f32.mrb[0].mxu0
        %v1693 = vadd.f32 %v1453, %v1692
        %v1694 = vpop.f32.mrb[0].mxu0
        %v1695 = vadd.f32 %v1449, %v1694
        %v1696 = vpop.f32.mrb[0].mxu0
        %v1697 = vadd.f32 %v1453, %v1696
        %1698 = vmatprep.mubr.bf16.mxu0 %v1359
        %1699 = vmatmul.mubr.bf16.gmra.mrb[0].mxu0 %v1358
        %v1700 = vpop.f32.mrb[0].mxu0
        %v1701 = vadd.f32 %v1449, %v1700
        %v1702 = vpop.f32.mrb[0].mxu0
        %v1703 = vadd.f32 %v1453, %v1702
        %v1704 = vpop.f32.mrb[0].mxu0
        %v1705 = vadd.f32 %v1449, %v1704
        %v1706 = vpop.f32.mrb[0].mxu0
        %v1707 = vadd.f32 %v1453, %v1706
        %1708 = vmatprep.mubr.bf16.mxu0 %v1361
        %1709 = vmatmul.mubr.bf16.gmra.mrb[0].mxu0 %v1360
        %v1710 = vpop.f32.mrb[0].mxu0
        %v1711 = vadd.f32 %v1449, %v1710
        %v1712 = vpop.f32.mrb[0].mxu0
        %v1713 = vadd.f32 %v1453, %v1712
        %v1714 = vpop.f32.mrb[0].mxu0
        %v1715 = vadd.f32 %v1449, %v1714
        %v1716 = vpop.f32.mrb[0].mxu0
        %v1717 = vadd.f32 %v1453, %v1716
        %1718 = vmatprep.mubr.bf16.mxu0 %v1363
        %1719 = vmatmul.mubr.bf16.gmra.mrb[0].mxu0 %v1362
        %v1720 = vpop.f32.mrb[0].mxu0
        %v1721 = vadd.f32 %v1449, %v1720
        %v1722 = vpop.f32.mrb[0].mxu0
        %v1723 = vadd.f32 %v1453, %v1722
        %v1724 = vpop.f32.mrb[0].mxu0
        %v1725 = vadd.f32 %v1449, %v1724
        %v1726 = vpop.f32.mrb[0].mxu0
        %v1727 = vadd.f32 %v1453, %v1726
        %1728 = vmatprep.mubr.bf16.mxu0 %v1365
        %1729 = vmatmul.mubr.bf16.gmra.mrb[0].mxu0 %v1364
        %v1730 = vpop.f32.mrb[0].mxu0
        %v1731 = vadd.f32 %v1449, %v1730
        %v1732 = vpop.f32.mrb[0].mxu0
        %v1733 = vadd.f32 %v1453, %v1732
        %v1734 = vpop.f32.mrb[0].mxu0
        %v1735 = vadd.f32 %v1449, %v1734
        %v1736 = vpop.f32.mrb[0].mxu0
        %v1737 = vadd.f32 %v1453, %v1736
        %1738 = vmatprep.mubr.bf16.mxu0 %v1367
        %1739 = vmatmul.mubr.bf16.gmra.mrb[0].mxu0 %v1366
        %v1740 = vpop.f32.mrb[0].mxu0
        %v1741 = vadd.f32 %v1449, %v1740
        %v1742 = vpop.f32.mrb[0].mxu0
        %v1743 = vadd.f32 %v1453, %v1742
        %v1744 = vpop.f32.mrb[0].mxu0
        %v1745 = vadd.f32 %v1449, %v1744
        %v1746 = vpop.f32.mrb[0].mxu0
        %v1747 = vadd.f32 %v1453, %v1746
        %1748 = vmatprep.mubr.bf16.mxu0 %v1369
        %1749 = vmatmul.mubr.bf16.gmra.mrb[0].mxu0 %v1368
        %v1750 = vpop.f32.mrb[0].mxu0
        %v1751 = vadd.f32 %v1449, %v1750
        %v1752 = vpop.f32.mrb[0].mxu0
        %v1753 = vadd.f32 %v1453, %v1752
        %v1754 = vpop.f32.mrb[0].mxu0
        %v1755 = vadd.f32 %v1449, %v1754
        %v1756 = vpop.f32.mrb[0].mxu0
        %v1757 = vadd.f32 %v1453, %v1756
        %1758 = vmatprep.mubr.bf16.mxu0 %v1371
        %1759 = vmatmul.mubr.bf16.gmra.mrb[0].mxu0 %v1370
        %v1760 = vpop.f32.mrb[0].mxu0
        %v1761 = vadd.f32 %v1449, %v1760
        %v1762 = vpop.f32.mrb[0].mxu0
        %v1763 = vadd.f32 %v1453, %v1762
        %v1764 = vpop.f32.mrb[0].mxu0
        %v1765 = vadd.f32 %v1449, %v1764
        %v1766 = vpop.f32.mrb[0].mxu0
        %v1767 = vadd.f32 %v1453, %v1766
        %1768 = vmatprep.mubr.bf16.mxu0 %v1373
        %1769 = vmatmul.mubr.bf16.gmra.mrb[0].mxu0 %v1372
        %v1770 = vpop.f32.mrb[0].mxu0
        %v1771 = vadd.f32 %v1449, %v1770
        %v1772 = vpop.f32.mrb[0].mxu0
        %v1773 = vadd.f32 %v1453, %v1772
        %v1774 = vpop.f32.mrb[0].mxu0
        %v1775 = vadd.f32 %v1449, %v1774
        %v1776 = vpop.f32.mrb[0].mxu0
        %v1777 = vadd.f32 %v1453, %v1776
        %1778 = vmatprep.mubr.bf16.mxu0 %v1375
        %1779 = vmatmul.mubr.bf16.gmra.mrb[0].mxu0 %v1374
        %v1780 = vpop.f32.mrb[0].mxu0
        %v1781 = vadd.f32 %v1449, %v1780
        %v1782 = vpop.f32.mrb[0].mxu0
        %v1783 = vadd.f32 %v1453, %v1782
        %v1784 = vpop.f32.mrb[0].mxu0
        %v1785 = vadd.f32 %v1449, %v1784
        %v1786 = vpop.f32.mrb[0].mxu0
        %v1787 = vadd.f32 %v1453, %v1786
        %1788 = vmatprep.mubr.bf16.mxu0 %v1377
        %1789 = vmatmul.mubr.bf16.gmra.mrb[0].mxu0 %v1376
        %v1790 = vpop.f32.mrb[0].mxu0
        %v1791 = vadd.f32 %v1449, %v1790
        %v1792 = vpop.f32.mrb[0].mxu0
        %v1793 = vadd.f32 %v1453, %v1792
        %v1794 = vpop.f32.mrb[0].mxu0
        %v1795 = vadd.f32 %v1449, %v1794
        %v1796 = vpop.f32.mrb[0].mxu0
        %v1797 = vadd.f32 %v1453, %v1796
        %1798 = vmatprep.mubr.bf16.mxu0 %v1379
        %1799 = vmatmul.mubr.bf16.gmra.mrb[0].mxu0 %v1378
        %v1800 = vpop.f32.mrb[0].mxu0
        %v1801 = vadd.f32 %v1449, %v1800
        %v1802 = vpop.f32.mrb[0].mxu0
        %v1803 = vadd.f32 %v1453, %v1802
        %v1804 = vpop.f32.mrb[0].mxu0
        %v1805 = vadd.f32 %v1449, %v1804
        %v1806 = vpop.f32.mrb[0].mxu0
        %v1807 = vadd.f32 %v1453, %v1806
        %1808 = vmatprep.mubr.bf16.mxu0 %v1381
        %1809 = vmatmul.mubr.bf16.gmra.mrb[0].mxu0 %v1380
        %v1810 = vpop.f32.mrb[0].mxu0
        %v1811 = vadd.f32 %v1449, %v1810
        %v1812 = vpop.f32.mrb[0].mxu0
        %v1813 = vadd.f32 %v1453, %v1812
        %v1814 = vpop.f32.mrb[0].mxu0
        %v1815 = vadd.f32 %v1449, %v1814
        %v1816 = vpop.f32.mrb[0].mxu0
        %v1817 = vadd.f32 %v1453, %v1816
        %1818 = vmatprep.mubr.bf16.mxu0 %v1383
        %1819 = vmatmul.mubr.bf16.gmra.mrb[0].mxu0 %v1382
        %v1820 = vpop.f32.mrb[0].mxu0
        %v1821 = vadd.f32 %v1449, %v1820
        %v1822 = vpop.f32.mrb[0].mxu0
        %v1823 = vadd.f32 %v1453, %v1822
        %v1824 = vpop.f32.mrb[0].mxu0
        %v1825 = vadd.f32 %v1449, %v1824
        %v1826 = vpop.f32.mrb[0].mxu0
        %v1827 = vadd.f32 %v1453, %v1826
        %1828 = vmatprep.mubr.bf16.mxu0 %v1385
        %1829 = vmatmul.mubr.bf16.gmra.mrb[0].mxu0 %v1384
        %v1830 = vpop.f32.mrb[0].mxu0
        %v1831 = vadd.f32 %v1449, %v1830
        %v1832 = vpop.f32.mrb[0].mxu0
        %v1833 = vadd.f32 %v1453, %v1832
        %v1834 = vpop.f32.mrb[0].mxu0
        %v1835 = vadd.f32 %v1449, %v1834
        %v1836 = vpop.f32.mrb[0].mxu0
        %v1837 = vadd.f32 %v1453, %v1836
        %1838 = vmatprep.mubr.bf16.mxu0 %v1387
        %1839 = vmatmul.mubr.bf16.gmra.mrb[0].mxu0 %v1386
        %v1840 = vpop.f32.mrb[0].mxu0
        %v1841 = vadd.f32 %v1449, %v1840
        %v1842 = vpop.f32.mrb[0].mxu0
        %v1843 = vadd.f32 %v1453, %v1842
        %v1844 = vpop.f32.mrb[0].mxu0
        %v1845 = vadd.f32 %v1449, %v1844
        %v1846 = vpop.f32.mrb[0].mxu0
        %v1847 = vadd.f32 %v1453, %v1846
        %1848 = vmatprep.mubr.bf16.mxu0 %v1389
        %1849 = vmatmul.mubr.bf16.gmra.mrb[0].mxu0 %v1388
        %v1850 = vpop.f32.mrb[0].mxu0
        %v1851 = vadd.f32 %v1449, %v1850
        %v1852 = vpop.f32.mrb[0].mxu0
        %v1853 = vadd.f32 %v1453, %v1852
        %v1854 = vpop.f32.mrb[0].mxu0
        %v1855 = vadd.f32 %v1449, %v1854
        %v1856 = vpop.f32.mrb[0].mxu0
        %v1857 = vadd.f32 %v1453, %v1856
        %1858 = vmatprep.mubr.bf16.mxu0 %v1391
        %1859 = vmatmul.mubr.bf16.gmra.mrb[0].mxu0 %v1390
        %v1860 = vpop.f32.mrb[0].mxu0
        %v1861 = vadd.f32 %v1449, %v1860
        %v1862 = vpop.f32.mrb[0].mxu0
        %v1863 = vadd.f32 %v1453, %v1862
        %v1864 = vpop.f32.mrb[0].mxu0
        %v1865 = vadd.f32 %v1449, %v1864
        %v1866 = vpop.f32.mrb[0].mxu0
        %v1867 = vadd.f32 %v1453, %v1866
        %1868 = vmatprep.mubr.bf16.mxu0 %v1393
        %1869 = vmatmul.mubr.bf16.gmra.mrb[0].mxu0 %v1392
        %v1870 = vpop.f32.mrb[0].mxu0
        %v1871 = vadd.f32 %v1449, %v1870
        %v1872 = vpop.f32.mrb[0].mxu0
        %v1873 = vadd.f32 %v1453, %v1872
        %v1874 = vpop.f32.mrb[0].mxu0
        %v1875 = vadd.f32 %v1449, %v1874
        %v1876 = vpop.f32.mrb[0].mxu0
        %v1877 = vadd.f32 %v1453, %v1876
        %1878 = vmatprep.mubr.bf16.mxu0 %v1395
        %1879 = vmatmul.mubr.bf16.gmra.mrb[0].mxu0 %v1394
        %v1880 = vpop.f32.mrb[0].mxu0
        %v1881 = vadd.f32 %v1449, %v1880
        %v1882 = vpop.f32.mrb[0].mxu0
        %v1883 = vadd.f32 %v1453, %v1882
        %v1884 = vpop.f32.mrb[0].mxu0
        %v1885 = vadd.f32 %v1449, %v1884
        %v1886 = vpop.f32.mrb[0].mxu0
        %v1887 = vadd.f32 %v1453, %v1886
        %1888 = vmatprep.mubr.bf16.mxu0 %v1397
        %1889 = vmatmul.mubr.bf16.gmra.mrb[0].mxu0 %v1396
        %v1890 = vpop.f32.mrb[0].mxu0
        %v1891 = vadd.f32 %v1449, %v1890
        %v1892 = vpop.f32.mrb[0].mxu0
        %v1893 = vadd.f32 %v1453, %v1892
        %v1894 = vpop.f32.mrb[0].mxu0
        %v1895 = vadd.f32 %v1449, %v1894
        %v1896 = vpop.f32.mrb[0].mxu0
        %v1897 = vadd.f32 %v1453, %v1896
        %1898 = vmatprep.mubr.bf16.mxu0 %v1399
        %1899 = vmatmul.mubr.bf16.gmra.mrb[0].mxu0 %v1398
        %v1900 = vpop.f32.mrb[0].mxu0
        %v1901 = vadd.f32 %v1449, %v1900
        %v1902 = vpop.f32.mrb[0].mxu0
        %v1903 = vadd.f32 %v1453, %v1902
        %v1904 = vpop.f32.mrb[0].mxu0
        %v1905 = vadd.f32 %v1449, %v1904
        %v1906 = vpop.f32.mrb[0].mxu0
        %v1907 = vadd.f32 %v1453, %v1906
        %1908 = vmatprep.mubr.bf16.mxu0 %v1401
        %1909 = vmatmul.mubr.bf16.gmra.mrb[0].mxu0 %v1400
        %v1910 = vpop.f32.mrb[0].mxu0
        %v1911 = vadd.f32 %v1449, %v1910
        %v1912 = vpop.f32.mrb[0].mxu0
        %v1913 = vadd.f32 %v1453, %v1912
        %v1914 = vpop.f32.mrb[0].mxu0
        %v1915 = vadd.f32 %v1449, %v1914
        %v1916 = vpop.f32.mrb[0].mxu0
        %v1917 = vadd.f32 %v1453, %v1916
        %1918 = vmatprep.mubr.bf16.mxu0 %v1403
        %1919 = vmatmul.mubr.bf16.gmra.mrb[0].mxu0 %v1402
        %v1920 = vpop.f32.mrb[0].mxu0
        %v1921 = vadd.f32 %v1449, %v1920
        %v1922 = vpop.f32.mrb[0].mxu0
        %v1923 = vadd.f32 %v1453, %v1922
        %v1924 = vpop.f32.mrb[0].mxu0
        %v1925 = vadd.f32 %v1449, %v1924
        %v1926 = vpop.f32.mrb[0].mxu0
        %v1927 = vadd.f32 %v1453, %v1926
        %1928 = vmatprep.mubr.bf16.mxu0 %v1405
        %1929 = vmatmul.mubr.bf16.gmra.mrb[0].mxu0 %v1404
        %v1930 = vpop.f32.mrb[0].mxu0
        %v1931 = vadd.f32 %v1449, %v1930
        %v1932 = vpop.f32.mrb[0].mxu0
        %v1933 = vadd.f32 %v1453, %v1932
        %v1934 = vpop.f32.mrb[0].mxu0
        %v1935 = vadd.f32 %v1449, %v1934
        %v1936 = vpop.f32.mrb[0].mxu0
        %v1937 = vadd.f32 %v1453, %v1936
        %1938 = vmatprep.mubr.bf16.mxu0 %v1407
        %1939 = vmatmul.mubr.bf16.gmra.mrb[0].mxu0 %v1406
        %v1940 = vpop.f32.mrb[0].mxu0
        %v1941 = vadd.f32 %v1449, %v1940
        %v1942 = vpop.f32.mrb[0].mxu0
        %v1943 = vadd.f32 %v1453, %v1942
        %v1944 = vpop.f32.mrb[0].mxu0
        %v1945 = vadd.f32 %v1449, %v1944
        %v1946 = vpop.f32.mrb[0].mxu0
        %v1947 = vadd.f32 %v1453, %v1946
        %1948 = vmatprep.mubr.bf16.mxu0 %v1409
        %1949 = vmatmul.mubr.bf16.gmra.mrb[0].mxu0 %v1408
        %v1950 = vpop.f32.mrb[0].mxu0
        %v1951 = vadd.f32 %v1449, %v1950
        %v1952 = vpop.f32.mrb[0].mxu0
        %v1953 = vadd.f32 %v1453, %v1952
        %v1954 = vpop.f32.mrb[0].mxu0
        %v1955 = vadd.f32 %v1449, %v1954
        %v1956 = vpop.f32.mrb[0].mxu0
        %v1957 = vadd.f32 %v1453, %v1956
        %1958 = vmatprep.mubr.bf16.mxu0 %v1411
        %1959 = vmatmul.mubr.bf16.gmra.mrb[0].mxu0 %v1410
        %v1960 = vpop.f32.mrb[0].mxu0
        %v1961 = vadd.f32 %v1449, %v1960
        %v1962 = vpop.f32.mrb[0].mxu0
        %v1963 = vadd.f32 %v1453, %v1962
        %v1964 = vpop.f32.mrb[0].mxu0
        %v1965 = vadd.f32 %v1449, %v1964
        %v1966 = vpop.f32.mrb[0].mxu0
        %v1967 = vadd.f32 %v1453, %v1966
        %1968 = vdwg.mxu0
        %v1969 = vmax.f32 %v1651, 0.0
        %v1970 = vmax.f32 %v1653, 0.0
        %v1971 = vmax.f32 %v1655, 0.0
        %v1972 = vmax.f32 %v1657, 0.0
        %v1973 = vmax.f32 %v1661, 0.0
        %v1974 = vmax.f32 %v1663, 0.0
        %v1975 = vmax.f32 %v1665, 0.0
        %v1976 = vmax.f32 %v1667, 0.0
        %v1977 = vmax.f32 %v1671, 0.0
        %v1978 = vmax.f32 %v1673, 0.0
        %v1979 = vmax.f32 %v1675, 0.0
        %v1980 = vmax.f32 %v1677, 0.0
        %v1981 = vmax.f32 %v1681, 0.0
        %v1982 = vmax.f32 %v1683, 0.0
        %v1983 = vmax.f32 %v1685, 0.0
        %v1984 = vmax.f32 %v1687, 0.0
        %v1985 = vmax.f32 %v1691, 0.0
        %v1986 = vmax.f32 %v1693, 0.0
        %v1987 = vmax.f32 %v1695, 0.0
        %v1988 = vmax.f32 %v1697, 0.0
        %v1989 = vmax.f32 %v1701, 0.0
        %v1990 = vmax.f32 %v1703, 0.0
        %v1991 = vmax.f32 %v1705, 0.0
        %v1992 = vmax.f32 %v1707, 0.0
        %v1993 = vmax.f32 %v1711, 0.0
        %v1994 = vmax.f32 %v1713, 0.0
        %v1995 = vmax.f32 %v1715, 0.0
        %v1996 = vmax.f32 %v1717, 0.0
        %v1997 = vmax.f32 %v1721, 0.0
        %v1998 = vmax.f32 %v1723, 0.0
        %v1999 = vmax.f32 %v1725, 0.0
        %v2000 = vmax.f32 %v1727, 0.0
        %v2001 = vmax.f32 %v1731, 0.0
        %v2002 = vmax.f32 %v1733, 0.0
        %v2003 = vmax.f32 %v1735, 0.0
        %v2004 = vmax.f32 %v1737, 0.0
        %v2005 = vmax.f32 %v1741, 0.0
        %v2006 = vmax.f32 %v1743, 0.0
        %v2007 = vmax.f32 %v1745, 0.0
        %v2008 = vmax.f32 %v1747, 0.0
        %v2009 = vmax.f32 %v1751, 0.0
        %v2010 = vmax.f32 %v1753, 0.0
        %v2011 = vmax.f32 %v1755, 0.0
        %v2012 = vmax.f32 %v1757, 0.0
        %v2013 = vmax.f32 %v1761, 0.0
        %v2014 = vmax.f32 %v1763, 0.0
        %v2015 = vmax.f32 %v1765, 0.0
        %v2016 = vmax.f32 %v1767, 0.0
        %v2017 = vmax.f32 %v1771, 0.0
        %v2018 = vmax.f32 %v1773, 0.0
        %v2019 = vmax.f32 %v1775, 0.0
        %v2020 = vmax.f32 %v1777, 0.0
        %v2021 = vmax.f32 %v1781, 0.0
        %v2022 = vmax.f32 %v1783, 0.0
        %v2023 = vmax.f32 %v1785, 0.0
        %v2024 = vmax.f32 %v1787, 0.0
        %v2025 = vmax.f32 %v1791, 0.0
        %v2026 = vmax.f32 %v1793, 0.0
        %v2027 = vmax.f32 %v1795, 0.0
        %v2028 = vmax.f32 %v1797, 0.0
        %v2029 = vmax.f32 %v1801, 0.0
        %v2030 = vmax.f32 %v1803, 0.0
        %v2031 = vmax.f32 %v1805, 0.0
        %v2032 = vmax.f32 %v1807, 0.0
        %v2033 = vmax.f32 %v1811, 0.0
        %v2034 = vmax.f32 %v1813, 0.0
        %v2035 = vmax.f32 %v1815, 0.0
        %v2036 = vmax.f32 %v1817, 0.0
        %v2037 = vmax.f32 %v1821, 0.0
        %v2038 = vmax.f32 %v1823, 0.0
        %v2039 = vmax.f32 %v1825, 0.0
        %v2040 = vmax.f32 %v1827, 0.0
        %v2041 = vmax.f32 %v1831, 0.0
        %v2042 = vmax.f32 %v1833, 0.0
        %v2043 = vmax.f32 %v1835, 0.0
        %v2044 = vmax.f32 %v1837, 0.0
        %v2045 = vmax.f32 %v1841, 0.0
        %v2046 = vmax.f32 %v1843, 0.0
        %v2047 = vmax.f32 %v1845, 0.0
        %v2048 = vmax.f32 %v1847, 0.0
        %v2049 = vmax.f32 %v1851, 0.0
        %v2050 = vmax.f32 %v1853, 0.0
        %v2051 = vmax.f32 %v1855, 0.0
        %v2052 = vmax.f32 %v1857, 0.0
        %v2053 = vmax.f32 %v1861, 0.0
        %v2054 = vmax.f32 %v1863, 0.0
        %v2055 = vmax.f32 %v1865, 0.0
        %v2056 = vmax.f32 %v1867, 0.0
        %v2057 = vmax.f32 %v1871, 0.0
        %v2058 = vmax.f32 %v1873, 0.0
        %v2059 = vmax.f32 %v1875, 0.0
        %v2060 = vmax.f32 %v1877, 0.0
        %v2061 = vmax.f32 %v1881, 0.0
        %v2062 = vmax.f32 %v1883, 0.0
        %v2063 = vmax.f32 %v1885, 0.0
        %v2064 = vmax.f32 %v1887, 0.0
        %v2065 = vmax.f32 %v1891, 0.0
        %v2066 = vmax.f32 %v1893, 0.0
        %v2067 = vmax.f32 %v1895, 0.0
        %v2068 = vmax.f32 %v1897, 0.0
        %v2069 = vmax.f32 %v1901, 0.0
        %v2070 = vmax.f32 %v1903, 0.0
        %v2071 = vmax.f32 %v1905, 0.0
        %v2072 = vmax.f32 %v1907, 0.0
        %v2073 = vmax.f32 %v1911, 0.0
        %v2074 = vmax.f32 %v1913, 0.0
        %v2075 = vmax.f32 %v1915, 0.0
        %v2076 = vmax.f32 %v1917, 0.0
        %v2077 = vmax.f32 %v1921, 0.0
        %v2078 = vmax.f32 %v1923, 0.0
        %v2079 = vmax.f32 %v1925, 0.0
        %v2080 = vmax.f32 %v1927, 0.0
        %v2081 = vmax.f32 %v1931, 0.0
        %v2082 = vmax.f32 %v1933, 0.0
        %v2083 = vmax.f32 %v1935, 0.0
        %v2084 = vmax.f32 %v1937, 0.0
        %v2085 = vmax.f32 %v1941, 0.0
        %v2086 = vmax.f32 %v1943, 0.0
        %v2087 = vmax.f32 %v1945, 0.0
        %v2088 = vmax.f32 %v1947, 0.0
        %v2089 = vmax.f32 %v1951, 0.0
        %v2090 = vmax.f32 %v1953, 0.0
        %v2091 = vmax.f32 %v1955, 0.0
        %v2092 = vmax.f32 %v1957, 0.0
        %v2093 = vmax.f32 %v1961, 0.0
        %v2094 = vmax.f32 %v1963, 0.0
        %v2095 = vmax.f32 %v1965, 0.0
        %v2096 = vmax.f32 %v1967, 0.0
        %v2097 = vpack.c.bf16 %v1971, %v1969
        %v2098 = vpack.c.bf16 %v1972, %v1970
        %v2099 = vpack.c.bf16 %v1975, %v1973
        %v2100 = vpack.c.bf16 %v1976, %v1974
        %v2101 = vpack.c.bf16 %v1979, %v1977
        %v2102 = vpack.c.bf16 %v1980, %v1978
        %v2103 = vpack.c.bf16 %v1983, %v1981
        %v2104 = vpack.c.bf16 %v1984, %v1982
        %v2105 = vpack.c.bf16 %v1987, %v1985
        %v2106 = vpack.c.bf16 %v1988, %v1986
        %v2107 = vpack.c.bf16 %v1991, %v1989
        %v2108 = vpack.c.bf16 %v1992, %v1990
        %v2109 = vpack.c.bf16 %v1995, %v1993
        %v2110 = vpack.c.bf16 %v1996, %v1994
        %v2111 = vpack.c.bf16 %v1999, %v1997
        %v2112 = vpack.c.bf16 %v2000, %v1998
        %v2113 = vpack.c.bf16 %v2003, %v2001
        %v2114 = vpack.c.bf16 %v2004, %v2002
        %v2115 = vpack.c.bf16 %v2007, %v2005
        %v2116 = vpack.c.bf16 %v2008, %v2006
        %v2117 = vpack.c.bf16 %v2011, %v2009
        %v2118 = vpack.c.bf16 %v2012, %v2010
        %v2119 = vpack.c.bf16 %v2015, %v2013
        %v2120 = vpack.c.bf16 %v2016, %v2014
        %v2121 = vpack.c.bf16 %v2019, %v2017
        %v2122 = vpack.c.bf16 %v2020, %v2018
        %v2123 = vpack.c.bf16 %v2023, %v2021
        %v2124 = vpack.c.bf16 %v2024, %v2022
        %v2125 = vpack.c.bf16 %v2027, %v2025
        %v2126 = vpack.c.bf16 %v2028, %v2026
        %v2127 = vpack.c.bf16 %v2031, %v2029
        %v2128 = vpack.c.bf16 %v2032, %v2030
        %v2129 = vpack.c.bf16 %v2035, %v2033
        %v2130 = vpack.c.bf16 %v2036, %v2034
        %v2131 = vpack.c.bf16 %v2039, %v2037
        %v2132 = vpack.c.bf16 %v2040, %v2038
        %v2133 = vpack.c.bf16 %v2043, %v2041
        %v2134 = vpack.c.bf16 %v2044, %v2042
        %v2135 = vpack.c.bf16 %v2047, %v2045
        %v2136 = vpack.c.bf16 %v2048, %v2046
        %v2137 = vpack.c.bf16 %v2051, %v2049
        %v2138 = vpack.c.bf16 %v2052, %v2050
        %v2139 = vpack.c.bf16 %v2055, %v2053
        %v2140 = vpack.c.bf16 %v2056, %v2054
        %v2141 = vpack.c.bf16 %v2059, %v2057
        %v2142 = vpack.c.bf16 %v2060, %v2058
        %v2143 = vpack.c.bf16 %v2063, %v2061
        %v2144 = vpack.c.bf16 %v2064, %v2062
        %v2145 = vpack.c.bf16 %v2067, %v2065
        %v2146 = vpack.c.bf16 %v2068, %v2066
        %v2147 = vpack.c.bf16 %v2071, %v2069
        %v2148 = vpack.c.bf16 %v2072, %v2070
        %v2149 = vpack.c.bf16 %v2075, %v2073
        %v2150 = vpack.c.bf16 %v2076, %v2074
        %v2151 = vpack.c.bf16 %v2079, %v2077
        %v2152 = vpack.c.bf16 %v2080, %v2078
        %v2153 = vpack.c.bf16 %v2083, %v2081
        %v2154 = vpack.c.bf16 %v2084, %v2082
        %v2155 = vpack.c.bf16 %v2087, %v2085
        %v2156 = vpack.c.bf16 %v2088, %v2086
        %v2157 = vpack.c.bf16 %v2091, %v2089
        %v2158 = vpack.c.bf16 %v2092, %v2090
        %v2159 = vpack.c.bf16 %v2095, %v2093
        %v2160 = vpack.c.bf16 %v2096, %v2094
        %s2161 = scalar_lea.vmem %s4, 256
        %v2162 = vld [vmem:[%s2161] sm:$0xff]
        %v2163 = vld [vmem:[%s2161 + $0x8] sm:$0xff]
        %v2164 = vld [vmem:[%s2161 + $0x10] sm:$0xff]
        %v2165 = vld [vmem:[%s2161 + $0x18] sm:$0xff]
        %v2166 = vld [vmem:[%s2161 + $0x20] sm:$0xff]
        %v2167 = vld [vmem:[%s2161 + $0x28] sm:$0xff]
        %v2168 = vld [vmem:[%s2161 + $0x30] sm:$0xff]
        %v2169 = vld [vmem:[%s2161 + $0x38] sm:$0xff]
        %v2170 = vld [vmem:[%s2161 + $0x40] sm:$0xff]
        %v2171 = vld [vmem:[%s2161 + $0x48] sm:$0xff]
        %v2172 = vld [vmem:[%s2161 + $0x50] sm:$0xff]
        %v2173 = vld [vmem:[%s2161 + $0x58] sm:$0xff]
        %v2174 = vld [vmem:[%s2161 + $0x60] sm:$0xff]
        %v2175 = vld [vmem:[%s2161 + $0x68] sm:$0xff]
        %v2176 = vld [vmem:[%s2161 + $0x70] sm:$0xff]
        %v2177 = vld [vmem:[%s2161 + $0x78] sm:$0xff]
        %v2178 = vld [vmem:[%s2161 + $0x80] sm:$0xff]
        %v2179 = vld [vmem:[%s2161 + $0x88] sm:$0xff]
        %v2180 = vld [vmem:[%s2161 + $0x90] sm:$0xff]
        %v2181 = vld [vmem:[%s2161 + $0x98] sm:$0xff]
        %v2182 = vld [vmem:[%s2161 + $0xa0] sm:$0xff]
        %v2183 = vld [vmem:[%s2161 + $0xa8] sm:$0xff]
        %v2184 = vld [vmem:[%s2161 + $0xb0] sm:$0xff]
        %v2185 = vld [vmem:[%s2161 + $0xb8] sm:$0xff]
        %v2186 = vld [vmem:[%s2161 + $0xc0] sm:$0xff]
        %v2187 = vld [vmem:[%s2161 + $0xc8] sm:$0xff]
        %v2188 = vld [vmem:[%s2161 + $0xd0] sm:$0xff]
        %v2189 = vld [vmem:[%s2161 + $0xd8] sm:$0xff]
        %v2190 = vld [vmem:[%s2161 + $0xe0] sm:$0xff]
        %v2191 = vld [vmem:[%s2161 + $0xe8] sm:$0xff]
        %v2192 = vld [vmem:[%s2161 + $0xf0] sm:$0xff]
        %v2193 = vld [vmem:[%s2161 + $0xf8] sm:$0xff]
        %s2194 = scalar_lea.vmem %s5, 1
        %v2195 = vld [vmem:[%s2194] ss:$8 sm:$0x3]
        %v2197 = vlaneseq
        %v2198 = vshrl.u32 %v2197, 7
        %v2199 = vsub.s32 0, %v2198
        %v2200 = vrot.slane %v2195, %v2199
        %v2201 = vlaneseq
        %v2202 = vshrl.u32 %v2201, 7
        %v2203 = vsub.s32 1, %v2202
        %v2204 = vrot.slane %v2195, %v2203
        %v2239 = vunpack.c.l.b16 %v2162
        %v2240 = vunpack.c.h.b16 %v2162
        %v2241 = vunpack.c.l.b16 %v2163
        %v2242 = vunpack.c.h.b16 %v2163
        %v2243 = vunpack.c.l.b16 %v2164
        %v2244 = vunpack.c.h.b16 %v2164
        %v2245 = vunpack.c.l.b16 %v2165
        %v2246 = vunpack.c.h.b16 %v2165
        %v2247 = vunpack.c.l.b16 %v2166
        %v2248 = vunpack.c.h.b16 %v2166
        %v2249 = vunpack.c.l.b16 %v2167
        %v2250 = vunpack.c.h.b16 %v2167
        %v2251 = vunpack.c.l.b16 %v2168
        %v2252 = vunpack.c.h.b16 %v2168
        %v2253 = vunpack.c.l.b16 %v2169
        %v2254 = vunpack.c.h.b16 %v2169
        %v2255 = vunpack.c.l.b16 %v2170
        %v2256 = vunpack.c.h.b16 %v2170
        %v2257 = vunpack.c.l.b16 %v2171
        %v2258 = vunpack.c.h.b16 %v2171
        %v2259 = vunpack.c.l.b16 %v2172
        %v2260 = vunpack.c.h.b16 %v2172
        %v2261 = vunpack.c.l.b16 %v2173
        %v2262 = vunpack.c.h.b16 %v2173
        %v2263 = vunpack.c.l.b16 %v2174
        %v2264 = vunpack.c.h.b16 %v2174
        %v2265 = vunpack.c.l.b16 %v2175
        %v2266 = vunpack.c.h.b16 %v2175
        %v2267 = vunpack.c.l.b16 %v2176
        %v2268 = vunpack.c.h.b16 %v2176
        %v2269 = vunpack.c.l.b16 %v2177
        %v2270 = vunpack.c.h.b16 %v2177
        %v2271 = vunpack.c.l.b16 %v2178
        %v2272 = vunpack.c.h.b16 %v2178
        %v2273 = vunpack.c.l.b16 %v2179
        %v2274 = vunpack.c.h.b16 %v2179
        %v2275 = vunpack.c.l.b16 %v2180
        %v2276 = vunpack.c.h.b16 %v2180
        %v2277 = vunpack.c.l.b16 %v2181
        %v2278 = vunpack.c.h.b16 %v2181
        %v2279 = vunpack.c.l.b16 %v2182
        %v2280 = vunpack.c.h.b16 %v2182
        %v2281 = vunpack.c.l.b16 %v2183
        %v2282 = vunpack.c.h.b16 %v2183
        %v2283 = vunpack.c.l.b16 %v2184
        %v2284 = vunpack.c.h.b16 %v2184
        %v2285 = vunpack.c.l.b16 %v2185
        %v2286 = vunpack.c.h.b16 %v2185
        %v2287 = vunpack.c.l.b16 %v2186
        %v2288 = vunpack.c.h.b16 %v2186
        %v2289 = vunpack.c.l.b16 %v2187
        %v2290 = vunpack.c.h.b16 %v2187
        %v2291 = vunpack.c.l.b16 %v2188
        %v2292 = vunpack.c.h.b16 %v2188
        %v2293 = vunpack.c.l.b16 %v2189
        %v2294 = vunpack.c.h.b16 %v2189
        %v2295 = vunpack.c.l.b16 %v2190
        %v2296 = vunpack.c.h.b16 %v2190
        %v2297 = vunpack.c.l.b16 %v2191
        %v2298 = vunpack.c.h.b16 %v2191
        %v2299 = vunpack.c.l.b16 %v2192
        %v2300 = vunpack.c.h.b16 %v2192
        %v2301 = vunpack.c.l.b16 %v2193
        %v2302 = vunpack.c.h.b16 %v2193
        %v2303 = vpack.c.b16 %v2241, %v2239
        %v2304 = vpack.c.b16 %v2242, %v2240
        %v2305 = vpack.c.b16 %v2245, %v2243
        %v2306 = vpack.c.b16 %v2246, %v2244
        %v2307 = vpack.c.b16 %v2249, %v2247
        %v2308 = vpack.c.b16 %v2250, %v2248
        %v2309 = vpack.c.b16 %v2253, %v2251
        %v2310 = vpack.c.b16 %v2254, %v2252
        %v2311 = vpack.c.b16 %v2257, %v2255
        %v2312 = vpack.c.b16 %v2258, %v2256
        %v2313 = vpack.c.b16 %v2261, %v2259
        %v2314 = vpack.c.b16 %v2262, %v2260
        %v2315 = vpack.c.b16 %v2265, %v2263
        %v2316 = vpack.c.b16 %v2266, %v2264
        %v2317 = vpack.c.b16 %v2269, %v2267
        %v2318 = vpack.c.b16 %v2270, %v2268
        %v2319 = vpack.c.b16 %v2273, %v2271
        %v2320 = vpack.c.b16 %v2274, %v2272
        %v2321 = vpack.c.b16 %v2277, %v2275
        %v2322 = vpack.c.b16 %v2278, %v2276
        %v2323 = vpack.c.b16 %v2281, %v2279
        %v2324 = vpack.c.b16 %v2282, %v2280
        %v2325 = vpack.c.b16 %v2285, %v2283
        %v2326 = vpack.c.b16 %v2286, %v2284
        %v2327 = vpack.c.b16 %v2289, %v2287
        %v2328 = vpack.c.b16 %v2290, %v2288
        %v2329 = vpack.c.b16 %v2293, %v2291
        %v2330 = vpack.c.b16 %v2294, %v2292
        %v2331 = vpack.c.b16 %v2297, %v2295
        %v2332 = vpack.c.b16 %v2298, %v2296
        %v2333 = vpack.c.b16 %v2301, %v2299
        %v2334 = vpack.c.b16 %v2302, %v2300
        %2367 = vmatprep.subr.bf16.mxu0 %v2304
        %2368 = vmatpush1.bf16.msra.mxu0 %v2303
        %2369 = vmatprep.subr.bf16.mxu0 %v2306
        %2370 = vmatpush1.bf16.msra.mxu0 %v2305
        %2371 = vmatprep.subr.bf16.mxu0 %v2308
        %2372 = vmatpush1.bf16.msra.mxu0 %v2307
        %2373 = vmatprep.subr.bf16.mxu0 %v2310
        %2374 = vmatpush1.bf16.msra.mxu0 %v2309
        %2375 = vmatprep.subr.bf16.mxu0 %v2312
        %2376 = vmatpush1.bf16.msra.mxu0 %v2311
        %2377 = vmatprep.subr.bf16.mxu0 %v2314
        %2378 = vmatpush1.bf16.msra.mxu0 %v2313
        %2379 = vmatprep.subr.bf16.mxu0 %v2316
        %2380 = vmatpush1.bf16.msra.mxu0 %v2315
        %2381 = vmatprep.subr.bf16.mxu0 %v2318
        %2382 = vmatpush1.bf16.msra.mxu0 %v2317
        %2383 = vmatprep.subr.bf16.mxu0 %v2320
        %2384 = vmatpush1.bf16.msra.mxu0 %v2319
        %2385 = vmatprep.subr.bf16.mxu0 %v2322
        %2386 = vmatpush1.bf16.msra.mxu0 %v2321
        %2387 = vmatprep.subr.bf16.mxu0 %v2324
        %2388 = vmatpush1.bf16.msra.mxu0 %v2323
        %2389 = vmatprep.subr.bf16.mxu0 %v2326
        %2390 = vmatpush1.bf16.msra.mxu0 %v2325
        %2391 = vmatprep.subr.bf16.mxu0 %v2328
        %2392 = vmatpush1.bf16.msra.mxu0 %v2327
        %2393 = vmatprep.subr.bf16.mxu0 %v2330
        %2394 = vmatpush1.bf16.msra.mxu0 %v2329
        %2395 = vmatprep.subr.bf16.mxu0 %v2332
        %2396 = vmatpush1.bf16.msra.mxu0 %v2331
        %2397 = vmatprep.subr.bf16.mxu0 %v2334
        %2398 = vmatpush1.bf16.msra.mxu0 %v2333
        %2399 = vmatprep.mubr.bf16.mxu0 %v2098
        %2400 = vmatmul.mubr.bf16.gmra.mrb[0].mxu0 %v2097
        %v2401 = vpop.f32.mrb[0].mxu0
        %v2402 = vadd.f32 %v2200, %v2401
        %v2403 = vpop.f32.mrb[0].mxu0
        %v2404 = vadd.f32 %v2204, %v2403
        %v2405 = vpop.f32.mrb[0].mxu0
        %v2406 = vadd.f32 %v2200, %v2405
        %v2407 = vpop.f32.mrb[0].mxu0
        %v2408 = vadd.f32 %v2204, %v2407
        %2409 = vmatprep.mubr.bf16.mxu0 %v2100
        %2410 = vmatmul.mubr.bf16.gmra.mrb[0].mxu0 %v2099
        %v2411 = vpop.f32.mrb[0].mxu0
        %v2412 = vadd.f32 %v2200, %v2411
        %v2413 = vpop.f32.mrb[0].mxu0
        %v2414 = vadd.f32 %v2204, %v2413
        %v2415 = vpop.f32.mrb[0].mxu0
        %v2416 = vadd.f32 %v2200, %v2415
        %v2417 = vpop.f32.mrb[0].mxu0
        %v2418 = vadd.f32 %v2204, %v2417
        %2419 = vmatprep.mubr.bf16.mxu0 %v2102
        %2420 = vmatmul.mubr.bf16.gmra.mrb[0].mxu0 %v2101
        %v2421 = vpop.f32.mrb[0].mxu0
        %v2422 = vadd.f32 %v2200, %v2421
        %v2423 = vpop.f32.mrb[0].mxu0
        %v2424 = vadd.f32 %v2204, %v2423
        %v2425 = vpop.f32.mrb[0].mxu0
        %v2426 = vadd.f32 %v2200, %v2425
        %v2427 = vpop.f32.mrb[0].mxu0
        %v2428 = vadd.f32 %v2204, %v2427
        %2429 = vmatprep.mubr.bf16.mxu0 %v2104
        %2430 = vmatmul.mubr.bf16.gmra.mrb[0].mxu0 %v2103
        %v2431 = vpop.f32.mrb[0].mxu0
        %v2432 = vadd.f32 %v2200, %v2431
        %v2433 = vpop.f32.mrb[0].mxu0
        %v2434 = vadd.f32 %v2204, %v2433
        %v2435 = vpop.f32.mrb[0].mxu0
        %v2436 = vadd.f32 %v2200, %v2435
        %v2437 = vpop.f32.mrb[0].mxu0
        %v2438 = vadd.f32 %v2204, %v2437
        %2439 = vmatprep.mubr.bf16.mxu0 %v2106
        %2440 = vmatmul.mubr.bf16.gmra.mrb[0].mxu0 %v2105
        %v2441 = vpop.f32.mrb[0].mxu0
        %v2442 = vadd.f32 %v2200, %v2441
        %v2443 = vpop.f32.mrb[0].mxu0
        %v2444 = vadd.f32 %v2204, %v2443
        %v2445 = vpop.f32.mrb[0].mxu0
        %v2446 = vadd.f32 %v2200, %v2445
        %v2447 = vpop.f32.mrb[0].mxu0
        %v2448 = vadd.f32 %v2204, %v2447
        %2449 = vmatprep.mubr.bf16.mxu0 %v2108
        %2450 = vmatmul.mubr.bf16.gmra.mrb[0].mxu0 %v2107
        %v2451 = vpop.f32.mrb[0].mxu0
        %v2452 = vadd.f32 %v2200, %v2451
        %v2453 = vpop.f32.mrb[0].mxu0
        %v2454 = vadd.f32 %v2204, %v2453
        %v2455 = vpop.f32.mrb[0].mxu0
        %v2456 = vadd.f32 %v2200, %v2455
        %v2457 = vpop.f32.mrb[0].mxu0
        %v2458 = vadd.f32 %v2204, %v2457
        %2459 = vmatprep.mubr.bf16.mxu0 %v2110
        %2460 = vmatmul.mubr.bf16.gmra.mrb[0].mxu0 %v2109
        %v2461 = vpop.f32.mrb[0].mxu0
        %v2462 = vadd.f32 %v2200, %v2461
        %v2463 = vpop.f32.mrb[0].mxu0
        %v2464 = vadd.f32 %v2204, %v2463
        %v2465 = vpop.f32.mrb[0].mxu0
        %v2466 = vadd.f32 %v2200, %v2465
        %v2467 = vpop.f32.mrb[0].mxu0
        %v2468 = vadd.f32 %v2204, %v2467
        %2469 = vmatprep.mubr.bf16.mxu0 %v2112
        %2470 = vmatmul.mubr.bf16.gmra.mrb[0].mxu0 %v2111
        %v2471 = vpop.f32.mrb[0].mxu0
        %v2472 = vadd.f32 %v2200, %v2471
        %v2473 = vpop.f32.mrb[0].mxu0
        %v2474 = vadd.f32 %v2204, %v2473
        %v2475 = vpop.f32.mrb[0].mxu0
        %v2476 = vadd.f32 %v2200, %v2475
        %v2477 = vpop.f32.mrb[0].mxu0
        %v2478 = vadd.f32 %v2204, %v2477
        %2479 = vmatprep.mubr.bf16.mxu0 %v2114
        %2480 = vmatmul.mubr.bf16.gmra.mrb[0].mxu0 %v2113
        %v2481 = vpop.f32.mrb[0].mxu0
        %v2482 = vadd.f32 %v2200, %v2481
        %v2483 = vpop.f32.mrb[0].mxu0
        %v2484 = vadd.f32 %v2204, %v2483
        %v2485 = vpop.f32.mrb[0].mxu0
        %v2486 = vadd.f32 %v2200, %v2485
        %v2487 = vpop.f32.mrb[0].mxu0
        %v2488 = vadd.f32 %v2204, %v2487
        %2489 = vmatprep.mubr.bf16.mxu0 %v2116
        %2490 = vmatmul.mubr.bf16.gmra.mrb[0].mxu0 %v2115
        %v2491 = vpop.f32.mrb[0].mxu0
        %v2492 = vadd.f32 %v2200, %v2491
        %v2493 = vpop.f32.mrb[0].mxu0
        %v2494 = vadd.f32 %v2204, %v2493
        %v2495 = vpop.f32.mrb[0].mxu0
        %v2496 = vadd.f32 %v2200, %v2495
        %v2497 = vpop.f32.mrb[0].mxu0
        %v2498 = vadd.f32 %v2204, %v2497
        %2499 = vmatprep.mubr.bf16.mxu0 %v2118
        %2500 = vmatmul.mubr.bf16.gmra.mrb[0].mxu0 %v2117
        %v2501 = vpop.f32.mrb[0].mxu0
        %v2502 = vadd.f32 %v2200, %v2501
        %v2503 = vpop.f32.mrb[0].mxu0
        %v2504 = vadd.f32 %v2204, %v2503
        %v2505 = vpop.f32.mrb[0].mxu0
        %v2506 = vadd.f32 %v2200, %v2505
        %v2507 = vpop.f32.mrb[0].mxu0
        %v2508 = vadd.f32 %v2204, %v2507
        %2509 = vmatprep.mubr.bf16.mxu0 %v2120
        %2510 = vmatmul.mubr.bf16.gmra.mrb[0].mxu0 %v2119
        %v2511 = vpop.f32.mrb[0].mxu0
        %v2512 = vadd.f32 %v2200, %v2511
        %v2513 = vpop.f32.mrb[0].mxu0
        %v2514 = vadd.f32 %v2204, %v2513
        %v2515 = vpop.f32.mrb[0].mxu0
        %v2516 = vadd.f32 %v2200, %v2515
        %v2517 = vpop.f32.mrb[0].mxu0
        %v2518 = vadd.f32 %v2204, %v2517
        %2519 = vmatprep.mubr.bf16.mxu0 %v2122
        %2520 = vmatmul.mubr.bf16.gmra.mrb[0].mxu0 %v2121
        %v2521 = vpop.f32.mrb[0].mxu0
        %v2522 = vadd.f32 %v2200, %v2521
        %v2523 = vpop.f32.mrb[0].mxu0
        %v2524 = vadd.f32 %v2204, %v2523
        %v2525 = vpop.f32.mrb[0].mxu0
        %v2526 = vadd.f32 %v2200, %v2525
        %v2527 = vpop.f32.mrb[0].mxu0
        %v2528 = vadd.f32 %v2204, %v2527
        %2529 = vmatprep.mubr.bf16.mxu0 %v2124
        %2530 = vmatmul.mubr.bf16.gmra.mrb[0].mxu0 %v2123
        %v2531 = vpop.f32.mrb[0].mxu0
        %v2532 = vadd.f32 %v2200, %v2531
        %v2533 = vpop.f32.mrb[0].mxu0
        %v2534 = vadd.f32 %v2204, %v2533
        %v2535 = vpop.f32.mrb[0].mxu0
        %v2536 = vadd.f32 %v2200, %v2535
        %v2537 = vpop.f32.mrb[0].mxu0
        %v2538 = vadd.f32 %v2204, %v2537
        %2539 = vmatprep.mubr.bf16.mxu0 %v2126
        %2540 = vmatmul.mubr.bf16.gmra.mrb[0].mxu0 %v2125
        %v2541 = vpop.f32.mrb[0].mxu0
        %v2542 = vadd.f32 %v2200, %v2541
        %v2543 = vpop.f32.mrb[0].mxu0
        %v2544 = vadd.f32 %v2204, %v2543
        %v2545 = vpop.f32.mrb[0].mxu0
        %v2546 = vadd.f32 %v2200, %v2545
        %v2547 = vpop.f32.mrb[0].mxu0
        %v2548 = vadd.f32 %v2204, %v2547
        %2549 = vmatprep.mubr.bf16.mxu0 %v2128
        %2550 = vmatmul.mubr.bf16.gmra.mrb[0].mxu0 %v2127
        %v2551 = vpop.f32.mrb[0].mxu0
        %v2552 = vadd.f32 %v2200, %v2551
        %v2553 = vpop.f32.mrb[0].mxu0
        %v2554 = vadd.f32 %v2204, %v2553
        %v2555 = vpop.f32.mrb[0].mxu0
        %v2556 = vadd.f32 %v2200, %v2555
        %v2557 = vpop.f32.mrb[0].mxu0
        %v2558 = vadd.f32 %v2204, %v2557
        %2559 = vmatprep.mubr.bf16.mxu0 %v2130
        %2560 = vmatmul.mubr.bf16.gmra.mrb[0].mxu0 %v2129
        %v2561 = vpop.f32.mrb[0].mxu0
        %v2562 = vadd.f32 %v2200, %v2561
        %v2563 = vpop.f32.mrb[0].mxu0
        %v2564 = vadd.f32 %v2204, %v2563
        %v2565 = vpop.f32.mrb[0].mxu0
        %v2566 = vadd.f32 %v2200, %v2565
        %v2567 = vpop.f32.mrb[0].mxu0
        %v2568 = vadd.f32 %v2204, %v2567
        %2569 = vmatprep.mubr.bf16.mxu0 %v2132
        %2570 = vmatmul.mubr.bf16.gmra.mrb[0].mxu0 %v2131
        %v2571 = vpop.f32.mrb[0].mxu0
        %v2572 = vadd.f32 %v2200, %v2571
        %v2573 = vpop.f32.mrb[0].mxu0
        %v2574 = vadd.f32 %v2204, %v2573
        %v2575 = vpop.f32.mrb[0].mxu0
        %v2576 = vadd.f32 %v2200, %v2575
        %v2577 = vpop.f32.mrb[0].mxu0
        %v2578 = vadd.f32 %v2204, %v2577
        %2579 = vmatprep.mubr.bf16.mxu0 %v2134
        %2580 = vmatmul.mubr.bf16.gmra.mrb[0].mxu0 %v2133
        %v2581 = vpop.f32.mrb[0].mxu0
        %v2582 = vadd.f32 %v2200, %v2581
        %v2583 = vpop.f32.mrb[0].mxu0
        %v2584 = vadd.f32 %v2204, %v2583
        %v2585 = vpop.f32.mrb[0].mxu0
        %v2586 = vadd.f32 %v2200, %v2585
        %v2587 = vpop.f32.mrb[0].mxu0
        %v2588 = vadd.f32 %v2204, %v2587
        %2589 = vmatprep.mubr.bf16.mxu0 %v2136
        %2590 = vmatmul.mubr.bf16.gmra.mrb[0].mxu0 %v2135
        %v2591 = vpop.f32.mrb[0].mxu0
        %v2592 = vadd.f32 %v2200, %v2591
        %v2593 = vpop.f32.mrb[0].mxu0
        %v2594 = vadd.f32 %v2204, %v2593
        %v2595 = vpop.f32.mrb[0].mxu0
        %v2596 = vadd.f32 %v2200, %v2595
        %v2597 = vpop.f32.mrb[0].mxu0
        %v2598 = vadd.f32 %v2204, %v2597
        %2599 = vmatprep.mubr.bf16.mxu0 %v2138
        %2600 = vmatmul.mubr.bf16.gmra.mrb[0].mxu0 %v2137
        %v2601 = vpop.f32.mrb[0].mxu0
        %v2602 = vadd.f32 %v2200, %v2601
        %v2603 = vpop.f32.mrb[0].mxu0
        %v2604 = vadd.f32 %v2204, %v2603
        %v2605 = vpop.f32.mrb[0].mxu0
        %v2606 = vadd.f32 %v2200, %v2605
        %v2607 = vpop.f32.mrb[0].mxu0
        %v2608 = vadd.f32 %v2204, %v2607
        %2609 = vmatprep.mubr.bf16.mxu0 %v2140
        %2610 = vmatmul.mubr.bf16.gmra.mrb[0].mxu0 %v2139
        %v2611 = vpop.f32.mrb[0].mxu0
        %v2612 = vadd.f32 %v2200, %v2611
        %v2613 = vpop.f32.mrb[0].mxu0
        %v2614 = vadd.f32 %v2204, %v2613
        %v2615 = vpop.f32.mrb[0].mxu0
        %v2616 = vadd.f32 %v2200, %v2615
        %v2617 = vpop.f32.mrb[0].mxu0
        %v2618 = vadd.f32 %v2204, %v2617
        %2619 = vmatprep.mubr.bf16.mxu0 %v2142
        %2620 = vmatmul.mubr.bf16.gmra.mrb[0].mxu0 %v2141
        %v2621 = vpop.f32.mrb[0].mxu0
        %v2622 = vadd.f32 %v2200, %v2621
        %v2623 = vpop.f32.mrb[0].mxu0
        %v2624 = vadd.f32 %v2204, %v2623
        %v2625 = vpop.f32.mrb[0].mxu0
        %v2626 = vadd.f32 %v2200, %v2625
        %v2627 = vpop.f32.mrb[0].mxu0
        %v2628 = vadd.f32 %v2204, %v2627
        %2629 = vmatprep.mubr.bf16.mxu0 %v2144
        %2630 = vmatmul.mubr.bf16.gmra.mrb[0].mxu0 %v2143
        %v2631 = vpop.f32.mrb[0].mxu0
        %v2632 = vadd.f32 %v2200, %v2631
        %v2633 = vpop.f32.mrb[0].mxu0
        %v2634 = vadd.f32 %v2204, %v2633
        %v2635 = vpop.f32.mrb[0].mxu0
        %v2636 = vadd.f32 %v2200, %v2635
        %v2637 = vpop.f32.mrb[0].mxu0
        %v2638 = vadd.f32 %v2204, %v2637
        %2639 = vmatprep.mubr.bf16.mxu0 %v2146
        %2640 = vmatmul.mubr.bf16.gmra.mrb[0].mxu0 %v2145
        %v2641 = vpop.f32.mrb[0].mxu0
        %v2642 = vadd.f32 %v2200, %v2641
        %v2643 = vpop.f32.mrb[0].mxu0
        %v2644 = vadd.f32 %v2204, %v2643
        %v2645 = vpop.f32.mrb[0].mxu0
        %v2646 = vadd.f32 %v2200, %v2645
        %v2647 = vpop.f32.mrb[0].mxu0
        %v2648 = vadd.f32 %v2204, %v2647
        %2649 = vmatprep.mubr.bf16.mxu0 %v2148
        %2650 = vmatmul.mubr.bf16.gmra.mrb[0].mxu0 %v2147
        %v2651 = vpop.f32.mrb[0].mxu0
        %v2652 = vadd.f32 %v2200, %v2651
        %v2653 = vpop.f32.mrb[0].mxu0
        %v2654 = vadd.f32 %v2204, %v2653
        %v2655 = vpop.f32.mrb[0].mxu0
        %v2656 = vadd.f32 %v2200, %v2655
        %v2657 = vpop.f32.mrb[0].mxu0
        %v2658 = vadd.f32 %v2204, %v2657
        %2659 = vmatprep.mubr.bf16.mxu0 %v2150
        %2660 = vmatmul.mubr.bf16.gmra.mrb[0].mxu0 %v2149
        %v2661 = vpop.f32.mrb[0].mxu0
        %v2662 = vadd.f32 %v2200, %v2661
        %v2663 = vpop.f32.mrb[0].mxu0
        %v2664 = vadd.f32 %v2204, %v2663
        %v2665 = vpop.f32.mrb[0].mxu0
        %v2666 = vadd.f32 %v2200, %v2665
        %v2667 = vpop.f32.mrb[0].mxu0
        %v2668 = vadd.f32 %v2204, %v2667
        %2669 = vmatprep.mubr.bf16.mxu0 %v2152
        %2670 = vmatmul.mubr.bf16.gmra.mrb[0].mxu0 %v2151
        %v2671 = vpop.f32.mrb[0].mxu0
        %v2672 = vadd.f32 %v2200, %v2671
        %v2673 = vpop.f32.mrb[0].mxu0
        %v2674 = vadd.f32 %v2204, %v2673
        %v2675 = vpop.f32.mrb[0].mxu0
        %v2676 = vadd.f32 %v2200, %v2675
        %v2677 = vpop.f32.mrb[0].mxu0
        %v2678 = vadd.f32 %v2204, %v2677
        %2679 = vmatprep.mubr.bf16.mxu0 %v2154
        %2680 = vmatmul.mubr.bf16.gmra.mrb[0].mxu0 %v2153
        %v2681 = vpop.f32.mrb[0].mxu0
        %v2682 = vadd.f32 %v2200, %v2681
        %v2683 = vpop.f32.mrb[0].mxu0
        %v2684 = vadd.f32 %v2204, %v2683
        %v2685 = vpop.f32.mrb[0].mxu0
        %v2686 = vadd.f32 %v2200, %v2685
        %v2687 = vpop.f32.mrb[0].mxu0
        %v2688 = vadd.f32 %v2204, %v2687
        %2689 = vmatprep.mubr.bf16.mxu0 %v2156
        %2690 = vmatmul.mubr.bf16.gmra.mrb[0].mxu0 %v2155
        %v2691 = vpop.f32.mrb[0].mxu0
        %v2692 = vadd.f32 %v2200, %v2691
        %v2693 = vpop.f32.mrb[0].mxu0
        %v2694 = vadd.f32 %v2204, %v2693
        %v2695 = vpop.f32.mrb[0].mxu0
        %v2696 = vadd.f32 %v2200, %v2695
        %v2697 = vpop.f32.mrb[0].mxu0
        %v2698 = vadd.f32 %v2204, %v2697
        %2699 = vmatprep.mubr.bf16.mxu0 %v2158
        %2700 = vmatmul.mubr.bf16.gmra.mrb[0].mxu0 %v2157
        %v2701 = vpop.f32.mrb[0].mxu0
        %v2702 = vadd.f32 %v2200, %v2701
        %v2703 = vpop.f32.mrb[0].mxu0
        %v2704 = vadd.f32 %v2204, %v2703
        %v2705 = vpop.f32.mrb[0].mxu0
        %v2706 = vadd.f32 %v2200, %v2705
        %v2707 = vpop.f32.mrb[0].mxu0
        %v2708 = vadd.f32 %v2204, %v2707
        %2709 = vmatprep.mubr.bf16.mxu0 %v2160
        %2710 = vmatmul.mubr.bf16.gmra.mrb[0].mxu0 %v2159
        %v2711 = vpop.f32.mrb[0].mxu0
        %v2712 = vadd.f32 %v2200, %v2711
        %v2713 = vpop.f32.mrb[0].mxu0
        %v2714 = vadd.f32 %v2204, %v2713
        %v2715 = vpop.f32.mrb[0].mxu0
        %v2716 = vadd.f32 %v2200, %v2715
        %v2717 = vpop.f32.mrb[0].mxu0
        %v2718 = vadd.f32 %v2204, %v2717
        %2719 = vdwg.mxu0
        %v2720 = vmax.f32 %v2402, 0.0
        %v2721 = vmax.f32 %v2404, 0.0
        %v2722 = vmax.f32 %v2406, 0.0
        %v2723 = vmax.f32 %v2408, 0.0
        %v2724 = vmax.f32 %v2412, 0.0
        %v2725 = vmax.f32 %v2414, 0.0
        %v2726 = vmax.f32 %v2416, 0.0
        %v2727 = vmax.f32 %v2418, 0.0
        %v2728 = vmax.f32 %v2422, 0.0
        %v2729 = vmax.f32 %v2424, 0.0
        %v2730 = vmax.f32 %v2426, 0.0
        %v2731 = vmax.f32 %v2428, 0.0
        %v2732 = vmax.f32 %v2432, 0.0
        %v2733 = vmax.f32 %v2434, 0.0
        %v2734 = vmax.f32 %v2436, 0.0
        %v2735 = vmax.f32 %v2438, 0.0
        %v2736 = vmax.f32 %v2442, 0.0
        %v2737 = vmax.f32 %v2444, 0.0
        %v2738 = vmax.f32 %v2446, 0.0
        %v2739 = vmax.f32 %v2448, 0.0
        %v2740 = vmax.f32 %v2452, 0.0
        %v2741 = vmax.f32 %v2454, 0.0
        %v2742 = vmax.f32 %v2456, 0.0
        %v2743 = vmax.f32 %v2458, 0.0
        %v2744 = vmax.f32 %v2462, 0.0
        %v2745 = vmax.f32 %v2464, 0.0
        %v2746 = vmax.f32 %v2466, 0.0
        %v2747 = vmax.f32 %v2468, 0.0
        %v2748 = vmax.f32 %v2472, 0.0
        %v2749 = vmax.f32 %v2474, 0.0
        %v2750 = vmax.f32 %v2476, 0.0
        %v2751 = vmax.f32 %v2478, 0.0
        %v2752 = vmax.f32 %v2482, 0.0
        %v2753 = vmax.f32 %v2484, 0.0
        %v2754 = vmax.f32 %v2486, 0.0
        %v2755 = vmax.f32 %v2488, 0.0
        %v2756 = vmax.f32 %v2492, 0.0
        %v2757 = vmax.f32 %v2494, 0.0
        %v2758 = vmax.f32 %v2496, 0.0
        %v2759 = vmax.f32 %v2498, 0.0
        %v2760 = vmax.f32 %v2502, 0.0
        %v2761 = vmax.f32 %v2504, 0.0
        %v2762 = vmax.f32 %v2506, 0.0
        %v2763 = vmax.f32 %v2508, 0.0
        %v2764 = vmax.f32 %v2512, 0.0
        %v2765 = vmax.f32 %v2514, 0.0
        %v2766 = vmax.f32 %v2516, 0.0
        %v2767 = vmax.f32 %v2518, 0.0
        %v2768 = vmax.f32 %v2522, 0.0
        %v2769 = vmax.f32 %v2524, 0.0
        %v2770 = vmax.f32 %v2526, 0.0
        %v2771 = vmax.f32 %v2528, 0.0
        %v2772 = vmax.f32 %v2532, 0.0
        %v2773 = vmax.f32 %v2534, 0.0
        %v2774 = vmax.f32 %v2536, 0.0
        %v2775 = vmax.f32 %v2538, 0.0
        %v2776 = vmax.f32 %v2542, 0.0
        %v2777 = vmax.f32 %v2544, 0.0
        %v2778 = vmax.f32 %v2546, 0.0
        %v2779 = vmax.f32 %v2548, 0.0
        %v2780 = vmax.f32 %v2552, 0.0
        %v2781 = vmax.f32 %v2554, 0.0
        %v2782 = vmax.f32 %v2556, 0.0
        %v2783 = vmax.f32 %v2558, 0.0
        %v2784 = vmax.f32 %v2562, 0.0
        %v2785 = vmax.f32 %v2564, 0.0
        %v2786 = vmax.f32 %v2566, 0.0
        %v2787 = vmax.f32 %v2568, 0.0
        %v2788 = vmax.f32 %v2572, 0.0
        %v2789 = vmax.f32 %v2574, 0.0
        %v2790 = vmax.f32 %v2576, 0.0
        %v2791 = vmax.f32 %v2578, 0.0
        %v2792 = vmax.f32 %v2582, 0.0
        %v2793 = vmax.f32 %v2584, 0.0
        %v2794 = vmax.f32 %v2586, 0.0
        %v2795 = vmax.f32 %v2588, 0.0
        %v2796 = vmax.f32 %v2592, 0.0
        %v2797 = vmax.f32 %v2594, 0.0
        %v2798 = vmax.f32 %v2596, 0.0
        %v2799 = vmax.f32 %v2598, 0.0
        %v2800 = vmax.f32 %v2602, 0.0
        %v2801 = vmax.f32 %v2604, 0.0
        %v2802 = vmax.f32 %v2606, 0.0
        %v2803 = vmax.f32 %v2608, 0.0
        %v2804 = vmax.f32 %v2612, 0.0
        %v2805 = vmax.f32 %v2614, 0.0
        %v2806 = vmax.f32 %v2616, 0.0
        %v2807 = vmax.f32 %v2618, 0.0
        %v2808 = vmax.f32 %v2622, 0.0
        %v2809 = vmax.f32 %v2624, 0.0
        %v2810 = vmax.f32 %v2626, 0.0
        %v2811 = vmax.f32 %v2628, 0.0
        %v2812 = vmax.f32 %v2632, 0.0
        %v2813 = vmax.f32 %v2634, 0.0
        %v2814 = vmax.f32 %v2636, 0.0
        %v2815 = vmax.f32 %v2638, 0.0
        %v2816 = vmax.f32 %v2642, 0.0
        %v2817 = vmax.f32 %v2644, 0.0
        %v2818 = vmax.f32 %v2646, 0.0
        %v2819 = vmax.f32 %v2648, 0.0
        %v2820 = vmax.f32 %v2652, 0.0
        %v2821 = vmax.f32 %v2654, 0.0
        %v2822 = vmax.f32 %v2656, 0.0
        %v2823 = vmax.f32 %v2658, 0.0
        %v2824 = vmax.f32 %v2662, 0.0
        %v2825 = vmax.f32 %v2664, 0.0
        %v2826 = vmax.f32 %v2666, 0.0
        %v2827 = vmax.f32 %v2668, 0.0
        %v2828 = vmax.f32 %v2672, 0.0
        %v2829 = vmax.f32 %v2674, 0.0
        %v2830 = vmax.f32 %v2676, 0.0
        %v2831 = vmax.f32 %v2678, 0.0
        %v2832 = vmax.f32 %v2682, 0.0
        %v2833 = vmax.f32 %v2684, 0.0
        %v2834 = vmax.f32 %v2686, 0.0
        %v2835 = vmax.f32 %v2688, 0.0
        %v2836 = vmax.f32 %v2692, 0.0
        %v2837 = vmax.f32 %v2694, 0.0
        %v2838 = vmax.f32 %v2696, 0.0
        %v2839 = vmax.f32 %v2698, 0.0
        %v2840 = vmax.f32 %v2702, 0.0
        %v2841 = vmax.f32 %v2704, 0.0
        %v2842 = vmax.f32 %v2706, 0.0
        %v2843 = vmax.f32 %v2708, 0.0
        %v2844 = vmax.f32 %v2712, 0.0
        %v2845 = vmax.f32 %v2714, 0.0
        %v2846 = vmax.f32 %v2716, 0.0
        %v2847 = vmax.f32 %v2718, 0.0
        %v2848 = vpack.c.bf16 %v2722, %v2720
        %v2849 = vpack.c.bf16 %v2723, %v2721
        %v2850 = vpack.c.bf16 %v2726, %v2724
        %v2851 = vpack.c.bf16 %v2727, %v2725
        %v2852 = vpack.c.bf16 %v2730, %v2728
        %v2853 = vpack.c.bf16 %v2731, %v2729
        %v2854 = vpack.c.bf16 %v2734, %v2732
        %v2855 = vpack.c.bf16 %v2735, %v2733
        %v2856 = vpack.c.bf16 %v2738, %v2736
        %v2857 = vpack.c.bf16 %v2739, %v2737
        %v2858 = vpack.c.bf16 %v2742, %v2740
        %v2859 = vpack.c.bf16 %v2743, %v2741
        %v2860 = vpack.c.bf16 %v2746, %v2744
        %v2861 = vpack.c.bf16 %v2747, %v2745
        %v2862 = vpack.c.bf16 %v2750, %v2748
        %v2863 = vpack.c.bf16 %v2751, %v2749
        %v2864 = vpack.c.bf16 %v2754, %v2752
        %v2865 = vpack.c.bf16 %v2755, %v2753
        %v2866 = vpack.c.bf16 %v2758, %v2756
        %v2867 = vpack.c.bf16 %v2759, %v2757
        %v2868 = vpack.c.bf16 %v2762, %v2760
        %v2869 = vpack.c.bf16 %v2763, %v2761
        %v2870 = vpack.c.bf16 %v2766, %v2764
        %v2871 = vpack.c.bf16 %v2767, %v2765
        %v2872 = vpack.c.bf16 %v2770, %v2768
        %v2873 = vpack.c.bf16 %v2771, %v2769
        %v2874 = vpack.c.bf16 %v2774, %v2772
        %v2875 = vpack.c.bf16 %v2775, %v2773
        %v2876 = vpack.c.bf16 %v2778, %v2776
        %v2877 = vpack.c.bf16 %v2779, %v2777
        %v2878 = vpack.c.bf16 %v2782, %v2780
        %v2879 = vpack.c.bf16 %v2783, %v2781
        %v2880 = vpack.c.bf16 %v2786, %v2784
        %v2881 = vpack.c.bf16 %v2787, %v2785
        %v2882 = vpack.c.bf16 %v2790, %v2788
        %v2883 = vpack.c.bf16 %v2791, %v2789
        %v2884 = vpack.c.bf16 %v2794, %v2792
        %v2885 = vpack.c.bf16 %v2795, %v2793
        %v2886 = vpack.c.bf16 %v2798, %v2796
        %v2887 = vpack.c.bf16 %v2799, %v2797
        %v2888 = vpack.c.bf16 %v2802, %v2800
        %v2889 = vpack.c.bf16 %v2803, %v2801
        %v2890 = vpack.c.bf16 %v2806, %v2804
        %v2891 = vpack.c.bf16 %v2807, %v2805
        %v2892 = vpack.c.bf16 %v2810, %v2808
        %v2893 = vpack.c.bf16 %v2811, %v2809
        %v2894 = vpack.c.bf16 %v2814, %v2812
        %v2895 = vpack.c.bf16 %v2815, %v2813
        %v2896 = vpack.c.bf16 %v2818, %v2816
        %v2897 = vpack.c.bf16 %v2819, %v2817
        %v2898 = vpack.c.bf16 %v2822, %v2820
        %v2899 = vpack.c.bf16 %v2823, %v2821
        %v2900 = vpack.c.bf16 %v2826, %v2824
        %v2901 = vpack.c.bf16 %v2827, %v2825
        %v2902 = vpack.c.bf16 %v2830, %v2828
        %v2903 = vpack.c.bf16 %v2831, %v2829
        %v2904 = vpack.c.bf16 %v2834, %v2832
        %v2905 = vpack.c.bf16 %v2835, %v2833
        %v2906 = vpack.c.bf16 %v2838, %v2836
        %v2907 = vpack.c.bf16 %v2839, %v2837
        %v2908 = vpack.c.bf16 %v2842, %v2840
        %v2909 = vpack.c.bf16 %v2843, %v2841
        %v2910 = vpack.c.bf16 %v2846, %v2844
        %v2911 = vpack.c.bf16 %v2847, %v2845
        %s2912 = scalar_lea.vmem %s4, 512
        %v2913 = vld [vmem:[%s2912] sm:$0xff]
        %v2914 = vld [vmem:[%s2912 + $0x8] sm:$0xff]
        %v2915 = vld [vmem:[%s2912 + $0x10] sm:$0xff]
        %v2916 = vld [vmem:[%s2912 + $0x18] sm:$0xff]
        %v2917 = vld [vmem:[%s2912 + $0x20] sm:$0xff]
        %v2918 = vld [vmem:[%s2912 + $0x28] sm:$0xff]
        %v2919 = vld [vmem:[%s2912 + $0x30] sm:$0xff]
        %v2920 = vld [vmem:[%s2912 + $0x38] sm:$0xff]
        %v2921 = vld [vmem:[%s2912 + $0x40] sm:$0xff]
        %v2922 = vld [vmem:[%s2912 + $0x48] sm:$0xff]
        %v2923 = vld [vmem:[%s2912 + $0x50] sm:$0xff]
        %v2924 = vld [vmem:[%s2912 + $0x58] sm:$0xff]
        %v2925 = vld [vmem:[%s2912 + $0x60] sm:$0xff]
        %v2926 = vld [vmem:[%s2912 + $0x68] sm:$0xff]
        %v2927 = vld [vmem:[%s2912 + $0x70] sm:$0xff]
        %v2928 = vld [vmem:[%s2912 + $0x78] sm:$0xff]
        %v2929 = vld [vmem:[%s2912 + $0x80] sm:$0xff]
        %v2930 = vld [vmem:[%s2912 + $0x88] sm:$0xff]
        %v2931 = vld [vmem:[%s2912 + $0x90] sm:$0xff]
        %v2932 = vld [vmem:[%s2912 + $0x98] sm:$0xff]
        %v2933 = vld [vmem:[%s2912 + $0xa0] sm:$0xff]
        %v2934 = vld [vmem:[%s2912 + $0xa8] sm:$0xff]
        %v2935 = vld [vmem:[%s2912 + $0xb0] sm:$0xff]
        %v2936 = vld [vmem:[%s2912 + $0xb8] sm:$0xff]
        %v2937 = vld [vmem:[%s2912 + $0xc0] sm:$0xff]
        %v2938 = vld [vmem:[%s2912 + $0xc8] sm:$0xff]
        %v2939 = vld [vmem:[%s2912 + $0xd0] sm:$0xff]
        %v2940 = vld [vmem:[%s2912 + $0xd8] sm:$0xff]
        %v2941 = vld [vmem:[%s2912 + $0xe0] sm:$0xff]
        %v2942 = vld [vmem:[%s2912 + $0xe8] sm:$0xff]
        %v2943 = vld [vmem:[%s2912 + $0xf0] sm:$0xff]
        %v2944 = vld [vmem:[%s2912 + $0xf8] sm:$0xff]
        %s2945 = scalar_lea.vmem %s5, 2
        %v2946 = vld [vmem:[%s2945] ss:$8 sm:$0x3]
        %v2948 = vlaneseq
        %v2949 = vshrl.u32 %v2948, 7
        %v2950 = vsub.s32 0, %v2949
        %v2951 = vrot.slane %v2946, %v2950
        %v2952 = vlaneseq
        %v2953 = vshrl.u32 %v2952, 7
        %v2954 = vsub.s32 1, %v2953
        %v2955 = vrot.slane %v2946, %v2954
        %v2990 = vunpack.c.l.b16 %v2913
        %v2991 = vunpack.c.h.b16 %v2913
        %v2992 = vunpack.c.l.b16 %v2914
        %v2993 = vunpack.c.h.b16 %v2914
        %v2994 = vunpack.c.l.b16 %v2915
        %v2995 = vunpack.c.h.b16 %v2915
        %v2996 = vunpack.c.l.b16 %v2916
        %v2997 = vunpack.c.h.b16 %v2916
        %v2998 = vunpack.c.l.b16 %v2917
        %v2999 = vunpack.c.h.b16 %v2917
        %v3000 = vunpack.c.l.b16 %v2918
        %v3001 = vunpack.c.h.b16 %v2918
        %v3002 = vunpack.c.l.b16 %v2919
        %v3003 = vunpack.c.h.b16 %v2919
        %v3004 = vunpack.c.l.b16 %v2920
        %v3005 = vunpack.c.h.b16 %v2920
        %v3006 = vunpack.c.l.b16 %v2921
        %v3007 = vunpack.c.h.b16 %v2921
        %v3008 = vunpack.c.l.b16 %v2922
        %v3009 = vunpack.c.h.b16 %v2922
        %v3010 = vunpack.c.l.b16 %v2923
        %v3011 = vunpack.c.h.b16 %v2923
        %v3012 = vunpack.c.l.b16 %v2924
        %v3013 = vunpack.c.h.b16 %v2924
        %v3014 = vunpack.c.l.b16 %v2925
        %v3015 = vunpack.c.h.b16 %v2925
        %v3016 = vunpack.c.l.b16 %v2926
        %v3017 = vunpack.c.h.b16 %v2926
        %v3018 = vunpack.c.l.b16 %v2927
        %v3019 = vunpack.c.h.b16 %v2927
        %v3020 = vunpack.c.l.b16 %v2928
        %v3021 = vunpack.c.h.b16 %v2928
        %v3022 = vunpack.c.l.b16 %v2929
        %v3023 = vunpack.c.h.b16 %v2929
        %v3024 = vunpack.c.l.b16 %v2930
        %v3025 = vunpack.c.h.b16 %v2930
        %v3026 = vunpack.c.l.b16 %v2931
        %v3027 = vunpack.c.h.b16 %v2931
        %v3028 = vunpack.c.l.b16 %v2932
        %v3029 = vunpack.c.h.b16 %v2932
        %v3030 = vunpack.c.l.b16 %v2933
        %v3031 = vunpack.c.h.b16 %v2933
        %v3032 = vunpack.c.l.b16 %v2934
        %v3033 = vunpack.c.h.b16 %v2934
        %v3034 = vunpack.c.l.b16 %v2935
        %v3035 = vunpack.c.h.b16 %v2935
        %v3036 = vunpack.c.l.b16 %v2936
        %v3037 = vunpack.c.h.b16 %v2936
        %v3038 = vunpack.c.l.b16 %v2937
        %v3039 = vunpack.c.h.b16 %v2937
        %v3040 = vunpack.c.l.b16 %v2938
        %v3041 = vunpack.c.h.b16 %v2938
        %v3042 = vunpack.c.l.b16 %v2939
        %v3043 = vunpack.c.h.b16 %v2939
        %v3044 = vunpack.c.l.b16 %v2940
        %v3045 = vunpack.c.h.b16 %v2940
        %v3046 = vunpack.c.l.b16 %v2941
        %v3047 = vunpack.c.h.b16 %v2941
        %v3048 = vunpack.c.l.b16 %v2942
        %v3049 = vunpack.c.h.b16 %v2942
        %v3050 = vunpack.c.l.b16 %v2943
        %v3051 = vunpack.c.h.b16 %v2943
        %v3052 = vunpack.c.l.b16 %v2944
        %v3053 = vunpack.c.h.b16 %v2944
        %v3054 = vpack.c.b16 %v2992, %v2990
        %v3055 = vpack.c.b16 %v2993, %v2991
        %v3056 = vpack.c.b16 %v2996, %v2994
        %v3057 = vpack.c.b16 %v2997, %v2995
        %v3058 = vpack.c.b16 %v3000, %v2998
        %v3059 = vpack.c.b16 %v3001, %v2999
        %v3060 = vpack.c.b16 %v3004, %v3002
        %v3061 = vpack.c.b16 %v3005, %v3003
        %v3062 = vpack.c.b16 %v3008, %v3006
        %v3063 = vpack.c.b16 %v3009, %v3007
        %v3064 = vpack.c.b16 %v3012, %v3010
        %v3065 = vpack.c.b16 %v3013, %v3011
        %v3066 = vpack.c.b16 %v3016, %v3014
        %v3067 = vpack.c.b16 %v3017, %v3015
        %v3068 = vpack.c.b16 %v3020, %v3018
        %v3069 = vpack.c.b16 %v3021, %v3019
        %v3070 = vpack.c.b16 %v3024, %v3022
        %v3071 = vpack.c.b16 %v3025, %v3023
        %v3072 = vpack.c.b16 %v3028, %v3026
        %v3073 = vpack.c.b16 %v3029, %v3027
        %v3074 = vpack.c.b16 %v3032, %v3030
        %v3075 = vpack.c.b16 %v3033, %v3031
        %v3076 = vpack.c.b16 %v3036, %v3034
        %v3077 = vpack.c.b16 %v3037, %v3035
        %v3078 = vpack.c.b16 %v3040, %v3038
        %v3079 = vpack.c.b16 %v3041, %v3039
        %v3080 = vpack.c.b16 %v3044, %v3042
        %v3081 = vpack.c.b16 %v3045, %v3043
        %v3082 = vpack.c.b16 %v3048, %v3046
        %v3083 = vpack.c.b16 %v3049, %v3047
        %v3084 = vpack.c.b16 %v3052, %v3050
        %v3085 = vpack.c.b16 %v3053, %v3051
        %3118 = vmatprep.subr.bf16.mxu0 %v3055
        %3119 = vmatpush1.bf16.msra.mxu0 %v3054
        %3120 = vmatprep.subr.bf16.mxu0 %v3057
        %3121 = vmatpush1.bf16.msra.mxu0 %v3056
        %3122 = vmatprep.subr.bf16.mxu0 %v3059
        %3123 = vmatpush1.bf16.msra.mxu0 %v3058
        %3124 = vmatprep.subr.bf16.mxu0 %v3061
        %3125 = vmatpush1.bf16.msra.mxu0 %v3060
        %3126 = vmatprep.subr.bf16.mxu0 %v3063
        %3127 = vmatpush1.bf16.msra.mxu0 %v3062
        %3128 = vmatprep.subr.bf16.mxu0 %v3065
        %3129 = vmatpush1.bf16.msra.mxu0 %v3064
        %3130 = vmatprep.subr.bf16.mxu0 %v3067
        %3131 = vmatpush1.bf16.msra.mxu0 %v3066
        %3132 = vmatprep.subr.bf16.mxu0 %v3069
        %3133 = vmatpush1.bf16.msra.mxu0 %v3068
        %3134 = vmatprep.subr.bf16.mxu0 %v3071
        %3135 = vmatpush1.bf16.msra.mxu0 %v3070
        %3136 = vmatprep.subr.bf16.mxu0 %v3073
        %3137 = vmatpush1.bf16.msra.mxu0 %v3072
        %3138 = vmatprep.subr.bf16.mxu0 %v3075
        %3139 = vmatpush1.bf16.msra.mxu0 %v3074
        %3140 = vmatprep.subr.bf16.mxu0 %v3077
        %3141 = vmatpush1.bf16.msra.mxu0 %v3076
        %3142 = vmatprep.subr.bf16.mxu0 %v3079
        %3143 = vmatpush1.bf16.msra.mxu0 %v3078
        %3144 = vmatprep.subr.bf16.mxu0 %v3081
        %3145 = vmatpush1.bf16.msra.mxu0 %v3080
        %3146 = vmatprep.subr.bf16.mxu0 %v3083
        %3147 = vmatpush1.bf16.msra.mxu0 %v3082
        %3148 = vmatprep.subr.bf16.mxu0 %v3085
        %3149 = vmatpush1.bf16.msra.mxu0 %v3084
        %3150 = vmatprep.mubr.bf16.mxu0 %v2849
        %3151 = vmatmul.mubr.bf16.gmra.mrb[0].mxu0 %v2848
        %v3152 = vpop.f32.mrb[0].mxu0
        %v3153 = vadd.f32 %v2951, %v3152
        %v3154 = vpop.f32.mrb[0].mxu0
        %v3155 = vadd.f32 %v2955, %v3154
        %v3156 = vpop.f32.mrb[0].mxu0
        %v3157 = vadd.f32 %v2951, %v3156
        %v3158 = vpop.f32.mrb[0].mxu0
        %v3159 = vadd.f32 %v2955, %v3158
        %3160 = vmatprep.mubr.bf16.mxu0 %v2851
        %3161 = vmatmul.mubr.bf16.gmra.mrb[0].mxu0 %v2850
        %v3162 = vpop.f32.mrb[0].mxu0
        %v3163 = vadd.f32 %v2951, %v3162
        %v3164 = vpop.f32.mrb[0].mxu0
        %v3165 = vadd.f32 %v2955, %v3164
        %v3166 = vpop.f32.mrb[0].mxu0
        %v3167 = vadd.f32 %v2951, %v3166
        %v3168 = vpop.f32.mrb[0].mxu0
        %v3169 = vadd.f32 %v2955, %v3168
        %3170 = vmatprep.mubr.bf16.mxu0 %v2853
        %3171 = vmatmul.mubr.bf16.gmra.mrb[0].mxu0 %v2852
        %v3172 = vpop.f32.mrb[0].mxu0
        %v3173 = vadd.f32 %v2951, %v3172
        %v3174 = vpop.f32.mrb[0].mxu0
        %v3175 = vadd.f32 %v2955, %v3174
        %v3176 = vpop.f32.mrb[0].mxu0
        %v3177 = vadd.f32 %v2951, %v3176
        %v3178 = vpop.f32.mrb[0].mxu0
        %v3179 = vadd.f32 %v2955, %v3178
        %3180 = vmatprep.mubr.bf16.mxu0 %v2855
        %3181 = vmatmul.mubr.bf16.gmra.mrb[0].mxu0 %v2854
        %v3182 = vpop.f32.mrb[0].mxu0
        %v3183 = vadd.f32 %v2951, %v3182
        %v3184 = vpop.f32.mrb[0].mxu0
        %v3185 = vadd.f32 %v2955, %v3184
        %v3186 = vpop.f32.mrb[0].mxu0
        %v3187 = vadd.f32 %v2951, %v3186
        %v3188 = vpop.f32.mrb[0].mxu0
        %v3189 = vadd.f32 %v2955, %v3188
        %3190 = vmatprep.mubr.bf16.mxu0 %v2857
        %3191 = vmatmul.mubr.bf16.gmra.mrb[0].mxu0 %v2856
        %v3192 = vpop.f32.mrb[0].mxu0
        %v3193 = vadd.f32 %v2951, %v3192
        %v3194 = vpop.f32.mrb[0].mxu0
        %v3195 = vadd.f32 %v2955, %v3194
        %v3196 = vpop.f32.mrb[0].mxu0
        %v3197 = vadd.f32 %v2951, %v3196
        %v3198 = vpop.f32.mrb[0].mxu0
        %v3199 = vadd.f32 %v2955, %v3198
        %3200 = vmatprep.mubr.bf16.mxu0 %v2859
        %3201 = vmatmul.mubr.bf16.gmra.mrb[0].mxu0 %v2858
        %v3202 = vpop.f32.mrb[0].mxu0
        %v3203 = vadd.f32 %v2951, %v3202
        %v3204 = vpop.f32.mrb[0].mxu0
        %v3205 = vadd.f32 %v2955, %v3204
        %v3206 = vpop.f32.mrb[0].mxu0
        %v3207 = vadd.f32 %v2951, %v3206
        %v3208 = vpop.f32.mrb[0].mxu0
        %v3209 = vadd.f32 %v2955, %v3208
        %3210 = vmatprep.mubr.bf16.mxu0 %v2861
        %3211 = vmatmul.mubr.bf16.gmra.mrb[0].mxu0 %v2860
        %v3212 = vpop.f32.mrb[0].mxu0
        %v3213 = vadd.f32 %v2951, %v3212
        %v3214 = vpop.f32.mrb[0].mxu0
        %v3215 = vadd.f32 %v2955, %v3214
        %v3216 = vpop.f32.mrb[0].mxu0
        %v3217 = vadd.f32 %v2951, %v3216
        %v3218 = vpop.f32.mrb[0].mxu0
        %v3219 = vadd.f32 %v2955, %v3218
        %3220 = vmatprep.mubr.bf16.mxu0 %v2863
        %3221 = vmatmul.mubr.bf16.gmra.mrb[0].mxu0 %v2862
        %v3222 = vpop.f32.mrb[0].mxu0
        %v3223 = vadd.f32 %v2951, %v3222
        %v3224 = vpop.f32.mrb[0].mxu0
        %v3225 = vadd.f32 %v2955, %v3224
        %v3226 = vpop.f32.mrb[0].mxu0
        %v3227 = vadd.f32 %v2951, %v3226
        %v3228 = vpop.f32.mrb[0].mxu0
        %v3229 = vadd.f32 %v2955, %v3228
        %3230 = vmatprep.mubr.bf16.mxu0 %v2865
        %3231 = vmatmul.mubr.bf16.gmra.mrb[0].mxu0 %v2864
        %v3232 = vpop.f32.mrb[0].mxu0
        %v3233 = vadd.f32 %v2951, %v3232
        %v3234 = vpop.f32.mrb[0].mxu0
        %v3235 = vadd.f32 %v2955, %v3234
        %v3236 = vpop.f32.mrb[0].mxu0
        %v3237 = vadd.f32 %v2951, %v3236
        %v3238 = vpop.f32.mrb[0].mxu0
        %v3239 = vadd.f32 %v2955, %v3238
        %3240 = vmatprep.mubr.bf16.mxu0 %v2867
        %3241 = vmatmul.mubr.bf16.gmra.mrb[0].mxu0 %v2866
        %v3242 = vpop.f32.mrb[0].mxu0
        %v3243 = vadd.f32 %v2951, %v3242
        %v3244 = vpop.f32.mrb[0].mxu0
        %v3245 = vadd.f32 %v2955, %v3244
        %v3246 = vpop.f32.mrb[0].mxu0
        %v3247 = vadd.f32 %v2951, %v3246
        %v3248 = vpop.f32.mrb[0].mxu0
        %v3249 = vadd.f32 %v2955, %v3248
        %3250 = vmatprep.mubr.bf16.mxu0 %v2869
        %3251 = vmatmul.mubr.bf16.gmra.mrb[0].mxu0 %v2868
        %v3252 = vpop.f32.mrb[0].mxu0
        %v3253 = vadd.f32 %v2951, %v3252
        %v3254 = vpop.f32.mrb[0].mxu0
        %v3255 = vadd.f32 %v2955, %v3254
        %v3256 = vpop.f32.mrb[0].mxu0
        %v3257 = vadd.f32 %v2951, %v3256
        %v3258 = vpop.f32.mrb[0].mxu0
        %v3259 = vadd.f32 %v2955, %v3258
        %3260 = vmatprep.mubr.bf16.mxu0 %v2871
        %3261 = vmatmul.mubr.bf16.gmra.mrb[0].mxu0 %v2870
        %v3262 = vpop.f32.mrb[0].mxu0
        %v3263 = vadd.f32 %v2951, %v3262
        %v3264 = vpop.f32.mrb[0].mxu0
        %v3265 = vadd.f32 %v2955, %v3264
        %v3266 = vpop.f32.mrb[0].mxu0
        %v3267 = vadd.f32 %v2951, %v3266
        %v3268 = vpop.f32.mrb[0].mxu0
        %v3269 = vadd.f32 %v2955, %v3268
        %3270 = vmatprep.mubr.bf16.mxu0 %v2873
        %3271 = vmatmul.mubr.bf16.gmra.mrb[0].mxu0 %v2872
        %v3272 = vpop.f32.mrb[0].mxu0
        %v3273 = vadd.f32 %v2951, %v3272
        %v3274 = vpop.f32.mrb[0].mxu0
        %v3275 = vadd.f32 %v2955, %v3274
        %v3276 = vpop.f32.mrb[0].mxu0
        %v3277 = vadd.f32 %v2951, %v3276
        %v3278 = vpop.f32.mrb[0].mxu0
        %v3279 = vadd.f32 %v2955, %v3278
        %3280 = vmatprep.mubr.bf16.mxu0 %v2875
        %3281 = vmatmul.mubr.bf16.gmra.mrb[0].mxu0 %v2874
        %v3282 = vpop.f32.mrb[0].mxu0
        %v3283 = vadd.f32 %v2951, %v3282
        %v3284 = vpop.f32.mrb[0].mxu0
        %v3285 = vadd.f32 %v2955, %v3284
        %v3286 = vpop.f32.mrb[0].mxu0
        %v3287 = vadd.f32 %v2951, %v3286
        %v3288 = vpop.f32.mrb[0].mxu0
        %v3289 = vadd.f32 %v2955, %v3288
        %3290 = vmatprep.mubr.bf16.mxu0 %v2877
        %3291 = vmatmul.mubr.bf16.gmra.mrb[0].mxu0 %v2876
        %v3292 = vpop.f32.mrb[0].mxu0
        %v3293 = vadd.f32 %v2951, %v3292
        %v3294 = vpop.f32.mrb[0].mxu0
        %v3295 = vadd.f32 %v2955, %v3294
        %v3296 = vpop.f32.mrb[0].mxu0
        %v3297 = vadd.f32 %v2951, %v3296
        %v3298 = vpop.f32.mrb[0].mxu0
        %v3299 = vadd.f32 %v2955, %v3298
        %3300 = vmatprep.mubr.bf16.mxu0 %v2879
        %3301 = vmatmul.mubr.bf16.gmra.mrb[0].mxu0 %v2878
        %v3302 = vpop.f32.mrb[0].mxu0
        %v3303 = vadd.f32 %v2951, %v3302
        %v3304 = vpop.f32.mrb[0].mxu0
        %v3305 = vadd.f32 %v2955, %v3304
        %v3306 = vpop.f32.mrb[0].mxu0
        %v3307 = vadd.f32 %v2951, %v3306
        %v3308 = vpop.f32.mrb[0].mxu0
        %v3309 = vadd.f32 %v2955, %v3308
        %3310 = vmatprep.mubr.bf16.mxu0 %v2881
        %3311 = vmatmul.mubr.bf16.gmra.mrb[0].mxu0 %v2880
        %v3312 = vpop.f32.mrb[0].mxu0
        %v3313 = vadd.f32 %v2951, %v3312
        %v3314 = vpop.f32.mrb[0].mxu0
        %v3315 = vadd.f32 %v2955, %v3314
        %v3316 = vpop.f32.mrb[0].mxu0
        %v3317 = vadd.f32 %v2951, %v3316
        %v3318 = vpop.f32.mrb[0].mxu0
        %v3319 = vadd.f32 %v2955, %v3318
        %3320 = vmatprep.mubr.bf16.mxu0 %v2883
        %3321 = vmatmul.mubr.bf16.gmra.mrb[0].mxu0 %v2882
        %v3322 = vpop.f32.mrb[0].mxu0
        %v3323 = vadd.f32 %v2951, %v3322
        %v3324 = vpop.f32.mrb[0].mxu0
        %v3325 = vadd.f32 %v2955, %v3324
        %v3326 = vpop.f32.mrb[0].mxu0
        %v3327 = vadd.f32 %v2951, %v3326
        %v3328 = vpop.f32.mrb[0].mxu0
        %v3329 = vadd.f32 %v2955, %v3328
        %3330 = vmatprep.mubr.bf16.mxu0 %v2885
        %3331 = vmatmul.mubr.bf16.gmra.mrb[0].mxu0 %v2884
        %v3332 = vpop.f32.mrb[0].mxu0
        %v3333 = vadd.f32 %v2951, %v3332
        %v3334 = vpop.f32.mrb[0].mxu0
        %v3335 = vadd.f32 %v2955, %v3334
        %v3336 = vpop.f32.mrb[0].mxu0
        %v3337 = vadd.f32 %v2951, %v3336
        %v3338 = vpop.f32.mrb[0].mxu0
        %v3339 = vadd.f32 %v2955, %v3338
        %3340 = vmatprep.mubr.bf16.mxu0 %v2887
        %3341 = vmatmul.mubr.bf16.gmra.mrb[0].mxu0 %v2886
        %v3342 = vpop.f32.mrb[0].mxu0
        %v3343 = vadd.f32 %v2951, %v3342
        %v3344 = vpop.f32.mrb[0].mxu0
        %v3345 = vadd.f32 %v2955, %v3344
        %v3346 = vpop.f32.mrb[0].mxu0
        %v3347 = vadd.f32 %v2951, %v3346
        %v3348 = vpop.f32.mrb[0].mxu0
        %v3349 = vadd.f32 %v2955, %v3348
        %3350 = vmatprep.mubr.bf16.mxu0 %v2889
        %3351 = vmatmul.mubr.bf16.gmra.mrb[0].mxu0 %v2888
        %v3352 = vpop.f32.mrb[0].mxu0
        %v3353 = vadd.f32 %v2951, %v3352
        %v3354 = vpop.f32.mrb[0].mxu0
        %v3355 = vadd.f32 %v2955, %v3354
        %v3356 = vpop.f32.mrb[0].mxu0
        %v3357 = vadd.f32 %v2951, %v3356
        %v3358 = vpop.f32.mrb[0].mxu0
        %v3359 = vadd.f32 %v2955, %v3358
        %3360 = vmatprep.mubr.bf16.mxu0 %v2891
        %3361 = vmatmul.mubr.bf16.gmra.mrb[0].mxu0 %v2890
        %v3362 = vpop.f32.mrb[0].mxu0
        %v3363 = vadd.f32 %v2951, %v3362
        %v3364 = vpop.f32.mrb[0].mxu0
        %v3365 = vadd.f32 %v2955, %v3364
        %v3366 = vpop.f32.mrb[0].mxu0
        %v3367 = vadd.f32 %v2951, %v3366
        %v3368 = vpop.f32.mrb[0].mxu0
        %v3369 = vadd.f32 %v2955, %v3368
        %3370 = vmatprep.mubr.bf16.mxu0 %v2893
        %3371 = vmatmul.mubr.bf16.gmra.mrb[0].mxu0 %v2892
        %v3372 = vpop.f32.mrb[0].mxu0
        %v3373 = vadd.f32 %v2951, %v3372
        %v3374 = vpop.f32.mrb[0].mxu0
        %v3375 = vadd.f32 %v2955, %v3374
        %v3376 = vpop.f32.mrb[0].mxu0
        %v3377 = vadd.f32 %v2951, %v3376
        %v3378 = vpop.f32.mrb[0].mxu0
        %v3379 = vadd.f32 %v2955, %v3378
        %3380 = vmatprep.mubr.bf16.mxu0 %v2895
        %3381 = vmatmul.mubr.bf16.gmra.mrb[0].mxu0 %v2894
        %v3382 = vpop.f32.mrb[0].mxu0
        %v3383 = vadd.f32 %v2951, %v3382
        %v3384 = vpop.f32.mrb[0].mxu0
        %v3385 = vadd.f32 %v2955, %v3384
        %v3386 = vpop.f32.mrb[0].mxu0
        %v3387 = vadd.f32 %v2951, %v3386
        %v3388 = vpop.f32.mrb[0].mxu0
        %v3389 = vadd.f32 %v2955, %v3388
        %3390 = vmatprep.mubr.bf16.mxu0 %v2897
        %3391 = vmatmul.mubr.bf16.gmra.mrb[0].mxu0 %v2896
        %v3392 = vpop.f32.mrb[0].mxu0
        %v3393 = vadd.f32 %v2951, %v3392
        %v3394 = vpop.f32.mrb[0].mxu0
        %v3395 = vadd.f32 %v2955, %v3394
        %v3396 = vpop.f32.mrb[0].mxu0
        %v3397 = vadd.f32 %v2951, %v3396
        %v3398 = vpop.f32.mrb[0].mxu0
        %v3399 = vadd.f32 %v2955, %v3398
        %3400 = vmatprep.mubr.bf16.mxu0 %v2899
        %3401 = vmatmul.mubr.bf16.gmra.mrb[0].mxu0 %v2898
        %v3402 = vpop.f32.mrb[0].mxu0
        %v3403 = vadd.f32 %v2951, %v3402
        %v3404 = vpop.f32.mrb[0].mxu0
        %v3405 = vadd.f32 %v2955, %v3404
        %v3406 = vpop.f32.mrb[0].mxu0
        %v3407 = vadd.f32 %v2951, %v3406
        %v3408 = vpop.f32.mrb[0].mxu0
        %v3409 = vadd.f32 %v2955, %v3408
        %3410 = vmatprep.mubr.bf16.mxu0 %v2901
        %3411 = vmatmul.mubr.bf16.gmra.mrb[0].mxu0 %v2900
        %v3412 = vpop.f32.mrb[0].mxu0
        %v3413 = vadd.f32 %v2951, %v3412
        %v3414 = vpop.f32.mrb[0].mxu0
        %v3415 = vadd.f32 %v2955, %v3414
        %v3416 = vpop.f32.mrb[0].mxu0
        %v3417 = vadd.f32 %v2951, %v3416
        %v3418 = vpop.f32.mrb[0].mxu0
        %v3419 = vadd.f32 %v2955, %v3418
        %3420 = vmatprep.mubr.bf16.mxu0 %v2903
        %3421 = vmatmul.mubr.bf16.gmra.mrb[0].mxu0 %v2902
        %v3422 = vpop.f32.mrb[0].mxu0
        %v3423 = vadd.f32 %v2951, %v3422
        %v3424 = vpop.f32.mrb[0].mxu0
        %v3425 = vadd.f32 %v2955, %v3424
        %v3426 = vpop.f32.mrb[0].mxu0
        %v3427 = vadd.f32 %v2951, %v3426
        %v3428 = vpop.f32.mrb[0].mxu0
        %v3429 = vadd.f32 %v2955, %v3428
        %3430 = vmatprep.mubr.bf16.mxu0 %v2905
        %3431 = vmatmul.mubr.bf16.gmra.mrb[0].mxu0 %v2904
        %v3432 = vpop.f32.mrb[0].mxu0
        %v3433 = vadd.f32 %v2951, %v3432
        %v3434 = vpop.f32.mrb[0].mxu0
        %v3435 = vadd.f32 %v2955, %v3434
        %v3436 = vpop.f32.mrb[0].mxu0
        %v3437 = vadd.f32 %v2951, %v3436
        %v3438 = vpop.f32.mrb[0].mxu0
        %v3439 = vadd.f32 %v2955, %v3438
        %3440 = vmatprep.mubr.bf16.mxu0 %v2907
        %3441 = vmatmul.mubr.bf16.gmra.mrb[0].mxu0 %v2906
        %v3442 = vpop.f32.mrb[0].mxu0
        %v3443 = vadd.f32 %v2951, %v3442
        %v3444 = vpop.f32.mrb[0].mxu0
        %v3445 = vadd.f32 %v2955, %v3444
        %v3446 = vpop.f32.mrb[0].mxu0
        %v3447 = vadd.f32 %v2951, %v3446
        %v3448 = vpop.f32.mrb[0].mxu0
        %v3449 = vadd.f32 %v2955, %v3448
        %3450 = vmatprep.mubr.bf16.mxu0 %v2909
        %3451 = vmatmul.mubr.bf16.gmra.mrb[0].mxu0 %v2908
        %v3452 = vpop.f32.mrb[0].mxu0
        %v3453 = vadd.f32 %v2951, %v3452
        %v3454 = vpop.f32.mrb[0].mxu0
        %v3455 = vadd.f32 %v2955, %v3454
        %v3456 = vpop.f32.mrb[0].mxu0
        %v3457 = vadd.f32 %v2951, %v3456
        %v3458 = vpop.f32.mrb[0].mxu0
        %v3459 = vadd.f32 %v2955, %v3458
        %3460 = vmatprep.mubr.bf16.mxu0 %v2911
        %3461 = vmatmul.mubr.bf16.gmra.mrb[0].mxu0 %v2910
        %v3462 = vpop.f32.mrb[0].mxu0
        %v3463 = vadd.f32 %v2951, %v3462
        %v3464 = vpop.f32.mrb[0].mxu0
        %v3465 = vadd.f32 %v2955, %v3464
        %v3466 = vpop.f32.mrb[0].mxu0
        %v3467 = vadd.f32 %v2951, %v3466
        %v3468 = vpop.f32.mrb[0].mxu0
        %v3469 = vadd.f32 %v2955, %v3468
        %3470 = vdwg.mxu0
        %v3471 = vmax.f32 %v3153, 0.0
        %v3472 = vmax.f32 %v3155, 0.0
        %v3473 = vmax.f32 %v3157, 0.0
        %v3474 = vmax.f32 %v3159, 0.0
        %v3475 = vmax.f32 %v3163, 0.0
        %v3476 = vmax.f32 %v3165, 0.0
        %v3477 = vmax.f32 %v3167, 0.0
        %v3478 = vmax.f32 %v3169, 0.0
        %v3479 = vmax.f32 %v3173, 0.0
        %v3480 = vmax.f32 %v3175, 0.0
        %v3481 = vmax.f32 %v3177, 0.0
        %v3482 = vmax.f32 %v3179, 0.0
        %v3483 = vmax.f32 %v3183, 0.0
        %v3484 = vmax.f32 %v3185, 0.0
        %v3485 = vmax.f32 %v3187, 0.0
        %v3486 = vmax.f32 %v3189, 0.0
        %v3487 = vmax.f32 %v3193, 0.0
        %v3488 = vmax.f32 %v3195, 0.0
        %v3489 = vmax.f32 %v3197, 0.0
        %v3490 = vmax.f32 %v3199, 0.0
        %v3491 = vmax.f32 %v3203, 0.0
        %v3492 = vmax.f32 %v3205, 0.0
        %v3493 = vmax.f32 %v3207, 0.0
        %v3494 = vmax.f32 %v3209, 0.0
        %v3495 = vmax.f32 %v3213, 0.0
        %v3496 = vmax.f32 %v3215, 0.0
        %v3497 = vmax.f32 %v3217, 0.0
        %v3498 = vmax.f32 %v3219, 0.0
        %v3499 = vmax.f32 %v3223, 0.0
        %v3500 = vmax.f32 %v3225, 0.0
        %v3501 = vmax.f32 %v3227, 0.0
        %v3502 = vmax.f32 %v3229, 0.0
        %v3503 = vmax.f32 %v3233, 0.0
        %v3504 = vmax.f32 %v3235, 0.0
        %v3505 = vmax.f32 %v3237, 0.0
        %v3506 = vmax.f32 %v3239, 0.0
        %v3507 = vmax.f32 %v3243, 0.0
        %v3508 = vmax.f32 %v3245, 0.0
        %v3509 = vmax.f32 %v3247, 0.0
        %v3510 = vmax.f32 %v3249, 0.0
        %v3511 = vmax.f32 %v3253, 0.0
        %v3512 = vmax.f32 %v3255, 0.0
        %v3513 = vmax.f32 %v3257, 0.0
        %v3514 = vmax.f32 %v3259, 0.0
        %v3515 = vmax.f32 %v3263, 0.0
        %v3516 = vmax.f32 %v3265, 0.0
        %v3517 = vmax.f32 %v3267, 0.0
        %v3518 = vmax.f32 %v3269, 0.0
        %v3519 = vmax.f32 %v3273, 0.0
        %v3520 = vmax.f32 %v3275, 0.0
        %v3521 = vmax.f32 %v3277, 0.0
        %v3522 = vmax.f32 %v3279, 0.0
        %v3523 = vmax.f32 %v3283, 0.0
        %v3524 = vmax.f32 %v3285, 0.0
        %v3525 = vmax.f32 %v3287, 0.0
        %v3526 = vmax.f32 %v3289, 0.0
        %v3527 = vmax.f32 %v3293, 0.0
        %v3528 = vmax.f32 %v3295, 0.0
        %v3529 = vmax.f32 %v3297, 0.0
        %v3530 = vmax.f32 %v3299, 0.0
        %v3531 = vmax.f32 %v3303, 0.0
        %v3532 = vmax.f32 %v3305, 0.0
        %v3533 = vmax.f32 %v3307, 0.0
        %v3534 = vmax.f32 %v3309, 0.0
        %v3535 = vmax.f32 %v3313, 0.0
        %v3536 = vmax.f32 %v3315, 0.0
        %v3537 = vmax.f32 %v3317, 0.0
        %v3538 = vmax.f32 %v3319, 0.0
        %v3539 = vmax.f32 %v3323, 0.0
        %v3540 = vmax.f32 %v3325, 0.0
        %v3541 = vmax.f32 %v3327, 0.0
        %v3542 = vmax.f32 %v3329, 0.0
        %v3543 = vmax.f32 %v3333, 0.0
        %v3544 = vmax.f32 %v3335, 0.0
        %v3545 = vmax.f32 %v3337, 0.0
        %v3546 = vmax.f32 %v3339, 0.0
        %v3547 = vmax.f32 %v3343, 0.0
        %v3548 = vmax.f32 %v3345, 0.0
        %v3549 = vmax.f32 %v3347, 0.0
        %v3550 = vmax.f32 %v3349, 0.0
        %v3551 = vmax.f32 %v3353, 0.0
        %v3552 = vmax.f32 %v3355, 0.0
        %v3553 = vmax.f32 %v3357, 0.0
        %v3554 = vmax.f32 %v3359, 0.0
        %v3555 = vmax.f32 %v3363, 0.0
        %v3556 = vmax.f32 %v3365, 0.0
        %v3557 = vmax.f32 %v3367, 0.0
        %v3558 = vmax.f32 %v3369, 0.0
        %v3559 = vmax.f32 %v3373, 0.0
        %v3560 = vmax.f32 %v3375, 0.0
        %v3561 = vmax.f32 %v3377, 0.0
        %v3562 = vmax.f32 %v3379, 0.0
        %v3563 = vmax.f32 %v3383, 0.0
        %v3564 = vmax.f32 %v3385, 0.0
        %v3565 = vmax.f32 %v3387, 0.0
        %v3566 = vmax.f32 %v3389, 0.0
        %v3567 = vmax.f32 %v3393, 0.0
        %v3568 = vmax.f32 %v3395, 0.0
        %v3569 = vmax.f32 %v3397, 0.0
        %v3570 = vmax.f32 %v3399, 0.0
        %v3571 = vmax.f32 %v3403, 0.0
        %v3572 = vmax.f32 %v3405, 0.0
        %v3573 = vmax.f32 %v3407, 0.0
        %v3574 = vmax.f32 %v3409, 0.0
        %v3575 = vmax.f32 %v3413, 0.0
        %v3576 = vmax.f32 %v3415, 0.0
        %v3577 = vmax.f32 %v3417, 0.0
        %v3578 = vmax.f32 %v3419, 0.0
        %v3579 = vmax.f32 %v3423, 0.0
        %v3580 = vmax.f32 %v3425, 0.0
        %v3581 = vmax.f32 %v3427, 0.0
        %v3582 = vmax.f32 %v3429, 0.0
        %v3583 = vmax.f32 %v3433, 0.0
        %v3584 = vmax.f32 %v3435, 0.0
        %v3585 = vmax.f32 %v3437, 0.0
        %v3586 = vmax.f32 %v3439, 0.0
        %v3587 = vmax.f32 %v3443, 0.0
        %v3588 = vmax.f32 %v3445, 0.0
        %v3589 = vmax.f32 %v3447, 0.0
        %v3590 = vmax.f32 %v3449, 0.0
        %v3591 = vmax.f32 %v3453, 0.0
        %v3592 = vmax.f32 %v3455, 0.0
        %v3593 = vmax.f32 %v3457, 0.0
        %v3594 = vmax.f32 %v3459, 0.0
        %v3595 = vmax.f32 %v3463, 0.0
        %v3596 = vmax.f32 %v3465, 0.0
        %v3597 = vmax.f32 %v3467, 0.0
        %v3598 = vmax.f32 %v3469, 0.0
        %v3599 = vpack.c.bf16 %v3473, %v3471
        %v3600 = vpack.c.bf16 %v3474, %v3472
        %v3601 = vpack.c.bf16 %v3477, %v3475
        %v3602 = vpack.c.bf16 %v3478, %v3476
        %v3603 = vpack.c.bf16 %v3481, %v3479
        %v3604 = vpack.c.bf16 %v3482, %v3480
        %v3605 = vpack.c.bf16 %v3485, %v3483
        %v3606 = vpack.c.bf16 %v3486, %v3484
        %v3607 = vpack.c.bf16 %v3489, %v3487
        %v3608 = vpack.c.bf16 %v3490, %v3488
        %v3609 = vpack.c.bf16 %v3493, %v3491
        %v3610 = vpack.c.bf16 %v3494, %v3492
        %v3611 = vpack.c.bf16 %v3497, %v3495
        %v3612 = vpack.c.bf16 %v3498, %v3496
        %v3613 = vpack.c.bf16 %v3501, %v3499
        %v3614 = vpack.c.bf16 %v3502, %v3500
        %v3615 = vpack.c.bf16 %v3505, %v3503
        %v3616 = vpack.c.bf16 %v3506, %v3504
        %v3617 = vpack.c.bf16 %v3509, %v3507
        %v3618 = vpack.c.bf16 %v3510, %v3508
        %v3619 = vpack.c.bf16 %v3513, %v3511
        %v3620 = vpack.c.bf16 %v3514, %v3512
        %v3621 = vpack.c.bf16 %v3517, %v3515
        %v3622 = vpack.c.bf16 %v3518, %v3516
        %v3623 = vpack.c.bf16 %v3521, %v3519
        %v3624 = vpack.c.bf16 %v3522, %v3520
        %v3625 = vpack.c.bf16 %v3525, %v3523
        %v3626 = vpack.c.bf16 %v3526, %v3524
        %v3627 = vpack.c.bf16 %v3529, %v3527
        %v3628 = vpack.c.bf16 %v3530, %v3528
        %v3629 = vpack.c.bf16 %v3533, %v3531
        %v3630 = vpack.c.bf16 %v3534, %v3532
        %v3631 = vpack.c.bf16 %v3537, %v3535
        %v3632 = vpack.c.bf16 %v3538, %v3536
        %v3633 = vpack.c.bf16 %v3541, %v3539
        %v3634 = vpack.c.bf16 %v3542, %v3540
        %v3635 = vpack.c.bf16 %v3545, %v3543
        %v3636 = vpack.c.bf16 %v3546, %v3544
        %v3637 = vpack.c.bf16 %v3549, %v3547
        %v3638 = vpack.c.bf16 %v3550, %v3548
        %v3639 = vpack.c.bf16 %v3553, %v3551
        %v3640 = vpack.c.bf16 %v3554, %v3552
        %v3641 = vpack.c.bf16 %v3557, %v3555
        %v3642 = vpack.c.bf16 %v3558, %v3556
        %v3643 = vpack.c.bf16 %v3561, %v3559
        %v3644 = vpack.c.bf16 %v3562, %v3560
        %v3645 = vpack.c.bf16 %v3565, %v3563
        %v3646 = vpack.c.bf16 %v3566, %v3564
        %v3647 = vpack.c.bf16 %v3569, %v3567
        %v3648 = vpack.c.bf16 %v3570, %v3568
        %v3649 = vpack.c.bf16 %v3573, %v3571
        %v3650 = vpack.c.bf16 %v3574, %v3572
        %v3651 = vpack.c.bf16 %v3577, %v3575
        %v3652 = vpack.c.bf16 %v3578, %v3576
        %v3653 = vpack.c.bf16 %v3581, %v3579
        %v3654 = vpack.c.bf16 %v3582, %v3580
        %v3655 = vpack.c.bf16 %v3585, %v3583
        %v3656 = vpack.c.bf16 %v3586, %v3584
        %v3657 = vpack.c.bf16 %v3589, %v3587
        %v3658 = vpack.c.bf16 %v3590, %v3588
        %v3659 = vpack.c.bf16 %v3593, %v3591
        %v3660 = vpack.c.bf16 %v3594, %v3592
        %v3661 = vpack.c.bf16 %v3597, %v3595
        %v3662 = vpack.c.bf16 %v3598, %v3596
        %s3663 = scalar_lea.vmem %s4, 768
        %v3664 = vld [vmem:[%s3663] sm:$0xff]
        %v3665 = vld [vmem:[%s3663 + $0x8] sm:$0xff]
        %v3666 = vld [vmem:[%s3663 + $0x10] sm:$0xff]
        %v3667 = vld [vmem:[%s3663 + $0x18] sm:$0xff]
        %v3668 = vld [vmem:[%s3663 + $0x20] sm:$0xff]
        %v3669 = vld [vmem:[%s3663 + $0x28] sm:$0xff]
        %v3670 = vld [vmem:[%s3663 + $0x30] sm:$0xff]
        %v3671 = vld [vmem:[%s3663 + $0x38] sm:$0xff]
        %v3672 = vld [vmem:[%s3663 + $0x40] sm:$0xff]
        %v3673 = vld [vmem:[%s3663 + $0x48] sm:$0xff]
        %v3674 = vld [vmem:[%s3663 + $0x50] sm:$0xff]
        %v3675 = vld [vmem:[%s3663 + $0x58] sm:$0xff]
        %v3676 = vld [vmem:[%s3663 + $0x60] sm:$0xff]
        %v3677 = vld [vmem:[%s3663 + $0x68] sm:$0xff]
        %v3678 = vld [vmem:[%s3663 + $0x70] sm:$0xff]
        %v3679 = vld [vmem:[%s3663 + $0x78] sm:$0xff]
        %v3680 = vld [vmem:[%s3663 + $0x80] sm:$0xff]
        %v3681 = vld [vmem:[%s3663 + $0x88] sm:$0xff]
        %v3682 = vld [vmem:[%s3663 + $0x90] sm:$0xff]
        %v3683 = vld [vmem:[%s3663 + $0x98] sm:$0xff]
        %v3684 = vld [vmem:[%s3663 + $0xa0] sm:$0xff]
        %v3685 = vld [vmem:[%s3663 + $0xa8] sm:$0xff]
        %v3686 = vld [vmem:[%s3663 + $0xb0] sm:$0xff]
        %v3687 = vld [vmem:[%s3663 + $0xb8] sm:$0xff]
        %v3688 = vld [vmem:[%s3663 + $0xc0] sm:$0xff]
        %v3689 = vld [vmem:[%s3663 + $0xc8] sm:$0xff]
        %v3690 = vld [vmem:[%s3663 + $0xd0] sm:$0xff]
        %v3691 = vld [vmem:[%s3663 + $0xd8] sm:$0xff]
        %v3692 = vld [vmem:[%s3663 + $0xe0] sm:$0xff]
        %v3693 = vld [vmem:[%s3663 + $0xe8] sm:$0xff]
        %v3694 = vld [vmem:[%s3663 + $0xf0] sm:$0xff]
        %v3695 = vld [vmem:[%s3663 + $0xf8] sm:$0xff]
        %s3696 = scalar_lea.vmem %s5, 3
        %v3697 = vld [vmem:[%s3696] ss:$8 sm:$0x3]
        %v3699 = vlaneseq
        %v3700 = vshrl.u32 %v3699, 7
        %v3701 = vsub.s32 0, %v3700
        %v3702 = vrot.slane %v3697, %v3701
        %v3703 = vlaneseq
        %v3704 = vshrl.u32 %v3703, 7
        %v3705 = vsub.s32 1, %v3704
        %v3706 = vrot.slane %v3697, %v3705
        %v3741 = vunpack.c.l.b16 %v3664
        %v3742 = vunpack.c.h.b16 %v3664
        %v3743 = vunpack.c.l.b16 %v3665
        %v3744 = vunpack.c.h.b16 %v3665
        %v3745 = vunpack.c.l.b16 %v3666
        %v3746 = vunpack.c.h.b16 %v3666
        %v3747 = vunpack.c.l.b16 %v3667
        %v3748 = vunpack.c.h.b16 %v3667
        %v3749 = vunpack.c.l.b16 %v3668
        %v3750 = vunpack.c.h.b16 %v3668
        %v3751 = vunpack.c.l.b16 %v3669
        %v3752 = vunpack.c.h.b16 %v3669
        %v3753 = vunpack.c.l.b16 %v3670
        %v3754 = vunpack.c.h.b16 %v3670
        %v3755 = vunpack.c.l.b16 %v3671
        %v3756 = vunpack.c.h.b16 %v3671
        %v3757 = vunpack.c.l.b16 %v3672
        %v3758 = vunpack.c.h.b16 %v3672
        %v3759 = vunpack.c.l.b16 %v3673
        %v3760 = vunpack.c.h.b16 %v3673
        %v3761 = vunpack.c.l.b16 %v3674
        %v3762 = vunpack.c.h.b16 %v3674
        %v3763 = vunpack.c.l.b16 %v3675
        %v3764 = vunpack.c.h.b16 %v3675
        %v3765 = vunpack.c.l.b16 %v3676
        %v3766 = vunpack.c.h.b16 %v3676
        %v3767 = vunpack.c.l.b16 %v3677
        %v3768 = vunpack.c.h.b16 %v3677
        %v3769 = vunpack.c.l.b16 %v3678
        %v3770 = vunpack.c.h.b16 %v3678
        %v3771 = vunpack.c.l.b16 %v3679
        %v3772 = vunpack.c.h.b16 %v3679
        %v3773 = vunpack.c.l.b16 %v3680
        %v3774 = vunpack.c.h.b16 %v3680
        %v3775 = vunpack.c.l.b16 %v3681
        %v3776 = vunpack.c.h.b16 %v3681
        %v3777 = vunpack.c.l.b16 %v3682
        %v3778 = vunpack.c.h.b16 %v3682
        %v3779 = vunpack.c.l.b16 %v3683
        %v3780 = vunpack.c.h.b16 %v3683
        %v3781 = vunpack.c.l.b16 %v3684
        %v3782 = vunpack.c.h.b16 %v3684
        %v3783 = vunpack.c.l.b16 %v3685
        %v3784 = vunpack.c.h.b16 %v3685
        %v3785 = vunpack.c.l.b16 %v3686
        %v3786 = vunpack.c.h.b16 %v3686
        %v3787 = vunpack.c.l.b16 %v3687
        %v3788 = vunpack.c.h.b16 %v3687
        %v3789 = vunpack.c.l.b16 %v3688
        %v3790 = vunpack.c.h.b16 %v3688
        %v3791 = vunpack.c.l.b16 %v3689
        %v3792 = vunpack.c.h.b16 %v3689
        %v3793 = vunpack.c.l.b16 %v3690
        %v3794 = vunpack.c.h.b16 %v3690
        %v3795 = vunpack.c.l.b16 %v3691
        %v3796 = vunpack.c.h.b16 %v3691
        %v3797 = vunpack.c.l.b16 %v3692
        %v3798 = vunpack.c.h.b16 %v3692
        %v3799 = vunpack.c.l.b16 %v3693
        %v3800 = vunpack.c.h.b16 %v3693
        %v3801 = vunpack.c.l.b16 %v3694
        %v3802 = vunpack.c.h.b16 %v3694
        %v3803 = vunpack.c.l.b16 %v3695
        %v3804 = vunpack.c.h.b16 %v3695
        %v3805 = vpack.c.b16 %v3743, %v3741
        %v3806 = vpack.c.b16 %v3744, %v3742
        %v3807 = vpack.c.b16 %v3747, %v3745
        %v3808 = vpack.c.b16 %v3748, %v3746
        %v3809 = vpack.c.b16 %v3751, %v3749
        %v3810 = vpack.c.b16 %v3752, %v3750
        %v3811 = vpack.c.b16 %v3755, %v3753
        %v3812 = vpack.c.b16 %v3756, %v3754
        %v3813 = vpack.c.b16 %v3759, %v3757
        %v3814 = vpack.c.b16 %v3760, %v3758
        %v3815 = vpack.c.b16 %v3763, %v3761
        %v3816 = vpack.c.b16 %v3764, %v3762
        %v3817 = vpack.c.b16 %v3767, %v3765
        %v3818 = vpack.c.b16 %v3768, %v3766
        %v3819 = vpack.c.b16 %v3771, %v3769
        %v3820 = vpack.c.b16 %v3772, %v3770
        %v3821 = vpack.c.b16 %v3775, %v3773
        %v3822 = vpack.c.b16 %v3776, %v3774
        %v3823 = vpack.c.b16 %v3779, %v3777
        %v3824 = vpack.c.b16 %v3780, %v3778
        %v3825 = vpack.c.b16 %v3783, %v3781
        %v3826 = vpack.c.b16 %v3784, %v3782
        %v3827 = vpack.c.b16 %v3787, %v3785
        %v3828 = vpack.c.b16 %v3788, %v3786
        %v3829 = vpack.c.b16 %v3791, %v3789
        %v3830 = vpack.c.b16 %v3792, %v3790
        %v3831 = vpack.c.b16 %v3795, %v3793
        %v3832 = vpack.c.b16 %v3796, %v3794
        %v3833 = vpack.c.b16 %v3799, %v3797
        %v3834 = vpack.c.b16 %v3800, %v3798
        %v3835 = vpack.c.b16 %v3803, %v3801
        %v3836 = vpack.c.b16 %v3804, %v3802
        %3869 = vmatprep.subr.bf16.mxu0 %v3806
        %3870 = vmatpush1.bf16.msra.mxu0 %v3805
        %3871 = vmatprep.subr.bf16.mxu0 %v3808
        %3872 = vmatpush1.bf16.msra.mxu0 %v3807
        %3873 = vmatprep.subr.bf16.mxu0 %v3810
        %3874 = vmatpush1.bf16.msra.mxu0 %v3809
        %3875 = vmatprep.subr.bf16.mxu0 %v3812
        %3876 = vmatpush1.bf16.msra.mxu0 %v3811
        %3877 = vmatprep.subr.bf16.mxu0 %v3814
        %3878 = vmatpush1.bf16.msra.mxu0 %v3813
        %3879 = vmatprep.subr.bf16.mxu0 %v3816
        %3880 = vmatpush1.bf16.msra.mxu0 %v3815
        %3881 = vmatprep.subr.bf16.mxu0 %v3818
        %3882 = vmatpush1.bf16.msra.mxu0 %v3817
        %3883 = vmatprep.subr.bf16.mxu0 %v3820
        %3884 = vmatpush1.bf16.msra.mxu0 %v3819
        %3885 = vmatprep.subr.bf16.mxu0 %v3822
        %3886 = vmatpush1.bf16.msra.mxu0 %v3821
        %3887 = vmatprep.subr.bf16.mxu0 %v3824
        %3888 = vmatpush1.bf16.msra.mxu0 %v3823
        %3889 = vmatprep.subr.bf16.mxu0 %v3826
        %3890 = vmatpush1.bf16.msra.mxu0 %v3825
        %3891 = vmatprep.subr.bf16.mxu0 %v3828
        %3892 = vmatpush1.bf16.msra.mxu0 %v3827
        %3893 = vmatprep.subr.bf16.mxu0 %v3830
        %3894 = vmatpush1.bf16.msra.mxu0 %v3829
        %3895 = vmatprep.subr.bf16.mxu0 %v3832
        %3896 = vmatpush1.bf16.msra.mxu0 %v3831
        %3897 = vmatprep.subr.bf16.mxu0 %v3834
        %3898 = vmatpush1.bf16.msra.mxu0 %v3833
        %3899 = vmatprep.subr.bf16.mxu0 %v3836
        %3900 = vmatpush1.bf16.msra.mxu0 %v3835
        %3901 = vmatprep.mubr.bf16.mxu0 %v3600
        %3902 = vmatmul.mubr.bf16.gmra.mrb[0].mxu0 %v3599
        %v3903 = vpop.f32.mrb[0].mxu0
        %v3904 = vadd.f32 %v3702, %v3903
        %v3905 = vpop.f32.mrb[0].mxu0
        %v3906 = vadd.f32 %v3706, %v3905
        %v3907 = vpop.f32.mrb[0].mxu0
        %v3908 = vadd.f32 %v3702, %v3907
        %v3909 = vpop.f32.mrb[0].mxu0
        %v3910 = vadd.f32 %v3706, %v3909
        %3911 = vmatprep.mubr.bf16.mxu0 %v3602
        %3912 = vmatmul.mubr.bf16.gmra.mrb[0].mxu0 %v3601
        %v3913 = vpop.f32.mrb[0].mxu0
        %v3914 = vadd.f32 %v3702, %v3913
        %v3915 = vpop.f32.mrb[0].mxu0
        %v3916 = vadd.f32 %v3706, %v3915
        %v3917 = vpop.f32.mrb[0].mxu0
        %v3918 = vadd.f32 %v3702, %v3917
        %v3919 = vpop.f32.mrb[0].mxu0
        %v3920 = vadd.f32 %v3706, %v3919
        %3921 = vmatprep.mubr.bf16.mxu0 %v3604
        %3922 = vmatmul.mubr.bf16.gmra.mrb[0].mxu0 %v3603
        %v3923 = vpop.f32.mrb[0].mxu0
        %v3924 = vadd.f32 %v3702, %v3923
        %v3925 = vpop.f32.mrb[0].mxu0
        %v3926 = vadd.f32 %v3706, %v3925
        %v3927 = vpop.f32.mrb[0].mxu0
        %v3928 = vadd.f32 %v3702, %v3927
        %v3929 = vpop.f32.mrb[0].mxu0
        %v3930 = vadd.f32 %v3706, %v3929
        %3931 = vmatprep.mubr.bf16.mxu0 %v3606
        %3932 = vmatmul.mubr.bf16.gmra.mrb[0].mxu0 %v3605
        %v3933 = vpop.f32.mrb[0].mxu0
        %v3934 = vadd.f32 %v3702, %v3933
        %v3935 = vpop.f32.mrb[0].mxu0
        %v3936 = vadd.f32 %v3706, %v3935
        %v3937 = vpop.f32.mrb[0].mxu0
        %v3938 = vadd.f32 %v3702, %v3937
        %v3939 = vpop.f32.mrb[0].mxu0
        %v3940 = vadd.f32 %v3706, %v3939
        %3941 = vmatprep.mubr.bf16.mxu0 %v3608
        %3942 = vmatmul.mubr.bf16.gmra.mrb[0].mxu0 %v3607
        %v3943 = vpop.f32.mrb[0].mxu0
        %v3944 = vadd.f32 %v3702, %v3943
        %v3945 = vpop.f32.mrb[0].mxu0
        %v3946 = vadd.f32 %v3706, %v3945
        %v3947 = vpop.f32.mrb[0].mxu0
        %v3948 = vadd.f32 %v3702, %v3947
        %v3949 = vpop.f32.mrb[0].mxu0
        %v3950 = vadd.f32 %v3706, %v3949
        %3951 = vmatprep.mubr.bf16.mxu0 %v3610
        %3952 = vmatmul.mubr.bf16.gmra.mrb[0].mxu0 %v3609
        %v3953 = vpop.f32.mrb[0].mxu0
        %v3954 = vadd.f32 %v3702, %v3953
        %v3955 = vpop.f32.mrb[0].mxu0
        %v3956 = vadd.f32 %v3706, %v3955
        %v3957 = vpop.f32.mrb[0].mxu0
        %v3958 = vadd.f32 %v3702, %v3957
        %v3959 = vpop.f32.mrb[0].mxu0
        %v3960 = vadd.f32 %v3706, %v3959
        %3961 = vmatprep.mubr.bf16.mxu0 %v3612
        %3962 = vmatmul.mubr.bf16.gmra.mrb[0].mxu0 %v3611
        %v3963 = vpop.f32.mrb[0].mxu0
        %v3964 = vadd.f32 %v3702, %v3963
        %v3965 = vpop.f32.mrb[0].mxu0
        %v3966 = vadd.f32 %v3706, %v3965
        %v3967 = vpop.f32.mrb[0].mxu0
        %v3968 = vadd.f32 %v3702, %v3967
        %v3969 = vpop.f32.mrb[0].mxu0
        %v3970 = vadd.f32 %v3706, %v3969
        %3971 = vmatprep.mubr.bf16.mxu0 %v3614
        %3972 = vmatmul.mubr.bf16.gmra.mrb[0].mxu0 %v3613
        %v3973 = vpop.f32.mrb[0].mxu0
        %v3974 = vadd.f32 %v3702, %v3973
        %v3975 = vpop.f32.mrb[0].mxu0
        %v3976 = vadd.f32 %v3706, %v3975
        %v3977 = vpop.f32.mrb[0].mxu0
        %v3978 = vadd.f32 %v3702, %v3977
        %v3979 = vpop.f32.mrb[0].mxu0
        %v3980 = vadd.f32 %v3706, %v3979
        %3981 = vmatprep.mubr.bf16.mxu0 %v3616
        %3982 = vmatmul.mubr.bf16.gmra.mrb[0].mxu0 %v3615
        %v3983 = vpop.f32.mrb[0].mxu0
        %v3984 = vadd.f32 %v3702, %v3983
        %v3985 = vpop.f32.mrb[0].mxu0
        %v3986 = vadd.f32 %v3706, %v3985
        %v3987 = vpop.f32.mrb[0].mxu0
        %v3988 = vadd.f32 %v3702, %v3987
        %v3989 = vpop.f32.mrb[0].mxu0
        %v3990 = vadd.f32 %v3706, %v3989
        %3991 = vmatprep.mubr.bf16.mxu0 %v3618
        %3992 = vmatmul.mubr.bf16.gmra.mrb[0].mxu0 %v3617
        %v3993 = vpop.f32.mrb[0].mxu0
        %v3994 = vadd.f32 %v3702, %v3993
        %v3995 = vpop.f32.mrb[0].mxu0
        %v3996 = vadd.f32 %v3706, %v3995
        %v3997 = vpop.f32.mrb[0].mxu0
        %v3998 = vadd.f32 %v3702, %v3997
        %v3999 = vpop.f32.mrb[0].mxu0
        %v4000 = vadd.f32 %v3706, %v3999
        %4001 = vmatprep.mubr.bf16.mxu0 %v3620
        %4002 = vmatmul.mubr.bf16.gmra.mrb[0].mxu0 %v3619
        %v4003 = vpop.f32.mrb[0].mxu0
        %v4004 = vadd.f32 %v3702, %v4003
        %v4005 = vpop.f32.mrb[0].mxu0
        %v4006 = vadd.f32 %v3706, %v4005
        %v4007 = vpop.f32.mrb[0].mxu0
        %v4008 = vadd.f32 %v3702, %v4007
        %v4009 = vpop.f32.mrb[0].mxu0
        %v4010 = vadd.f32 %v3706, %v4009
        %4011 = vmatprep.mubr.bf16.mxu0 %v3622
        %4012 = vmatmul.mubr.bf16.gmra.mrb[0].mxu0 %v3621
        %v4013 = vpop.f32.mrb[0].mxu0
        %v4014 = vadd.f32 %v3702, %v4013
        %v4015 = vpop.f32.mrb[0].mxu0
        %v4016 = vadd.f32 %v3706, %v4015
        %v4017 = vpop.f32.mrb[0].mxu0
        %v4018 = vadd.f32 %v3702, %v4017
        %v4019 = vpop.f32.mrb[0].mxu0
        %v4020 = vadd.f32 %v3706, %v4019
        %4021 = vmatprep.mubr.bf16.mxu0 %v3624
        %4022 = vmatmul.mubr.bf16.gmra.mrb[0].mxu0 %v3623
        %v4023 = vpop.f32.mrb[0].mxu0
        %v4024 = vadd.f32 %v3702, %v4023
        %v4025 = vpop.f32.mrb[0].mxu0
        %v4026 = vadd.f32 %v3706, %v4025
        %v4027 = vpop.f32.mrb[0].mxu0
        %v4028 = vadd.f32 %v3702, %v4027
        %v4029 = vpop.f32.mrb[0].mxu0
        %v4030 = vadd.f32 %v3706, %v4029
        %4031 = vmatprep.mubr.bf16.mxu0 %v3626
        %4032 = vmatmul.mubr.bf16.gmra.mrb[0].mxu0 %v3625
        %v4033 = vpop.f32.mrb[0].mxu0
        %v4034 = vadd.f32 %v3702, %v4033
        %v4035 = vpop.f32.mrb[0].mxu0
        %v4036 = vadd.f32 %v3706, %v4035
        %v4037 = vpop.f32.mrb[0].mxu0
        %v4038 = vadd.f32 %v3702, %v4037
        %v4039 = vpop.f32.mrb[0].mxu0
        %v4040 = vadd.f32 %v3706, %v4039
        %4041 = vmatprep.mubr.bf16.mxu0 %v3628
        %4042 = vmatmul.mubr.bf16.gmra.mrb[0].mxu0 %v3627
        %v4043 = vpop.f32.mrb[0].mxu0
        %v4044 = vadd.f32 %v3702, %v4043
        %v4045 = vpop.f32.mrb[0].mxu0
        %v4046 = vadd.f32 %v3706, %v4045
        %v4047 = vpop.f32.mrb[0].mxu0
        %v4048 = vadd.f32 %v3702, %v4047
        %v4049 = vpop.f32.mrb[0].mxu0
        %v4050 = vadd.f32 %v3706, %v4049
        %4051 = vmatprep.mubr.bf16.mxu0 %v3630
        %4052 = vmatmul.mubr.bf16.gmra.mrb[0].mxu0 %v3629
        %v4053 = vpop.f32.mrb[0].mxu0
        %v4054 = vadd.f32 %v3702, %v4053
        %v4055 = vpop.f32.mrb[0].mxu0
        %v4056 = vadd.f32 %v3706, %v4055
        %v4057 = vpop.f32.mrb[0].mxu0
        %v4058 = vadd.f32 %v3702, %v4057
        %v4059 = vpop.f32.mrb[0].mxu0
        %v4060 = vadd.f32 %v3706, %v4059
        %4061 = vmatprep.mubr.bf16.mxu0 %v3632
        %4062 = vmatmul.mubr.bf16.gmra.mrb[0].mxu0 %v3631
        %v4063 = vpop.f32.mrb[0].mxu0
        %v4064 = vadd.f32 %v3702, %v4063
        %v4065 = vpop.f32.mrb[0].mxu0
        %v4066 = vadd.f32 %v3706, %v4065
        %v4067 = vpop.f32.mrb[0].mxu0
        %v4068 = vadd.f32 %v3702, %v4067
        %v4069 = vpop.f32.mrb[0].mxu0
        %v4070 = vadd.f32 %v3706, %v4069
        %4071 = vmatprep.mubr.bf16.mxu0 %v3634
        %4072 = vmatmul.mubr.bf16.gmra.mrb[0].mxu0 %v3633
        %v4073 = vpop.f32.mrb[0].mxu0
        %v4074 = vadd.f32 %v3702, %v4073
        %v4075 = vpop.f32.mrb[0].mxu0
        %v4076 = vadd.f32 %v3706, %v4075
        %v4077 = vpop.f32.mrb[0].mxu0
        %v4078 = vadd.f32 %v3702, %v4077
        %v4079 = vpop.f32.mrb[0].mxu0
        %v4080 = vadd.f32 %v3706, %v4079
        %4081 = vmatprep.mubr.bf16.mxu0 %v3636
        %4082 = vmatmul.mubr.bf16.gmra.mrb[0].mxu0 %v3635
        %v4083 = vpop.f32.mrb[0].mxu0
        %v4084 = vadd.f32 %v3702, %v4083
        %v4085 = vpop.f32.mrb[0].mxu0
        %v4086 = vadd.f32 %v3706, %v4085
        %v4087 = vpop.f32.mrb[0].mxu0
        %v4088 = vadd.f32 %v3702, %v4087
        %v4089 = vpop.f32.mrb[0].mxu0
        %v4090 = vadd.f32 %v3706, %v4089
        %4091 = vmatprep.mubr.bf16.mxu0 %v3638
        %4092 = vmatmul.mubr.bf16.gmra.mrb[0].mxu0 %v3637
        %v4093 = vpop.f32.mrb[0].mxu0
        %v4094 = vadd.f32 %v3702, %v4093
        %v4095 = vpop.f32.mrb[0].mxu0
        %v4096 = vadd.f32 %v3706, %v4095
        %v4097 = vpop.f32.mrb[0].mxu0
        %v4098 = vadd.f32 %v3702, %v4097
        %v4099 = vpop.f32.mrb[0].mxu0
        %v4100 = vadd.f32 %v3706, %v4099
        %4101 = vmatprep.mubr.bf16.mxu0 %v3640
        %4102 = vmatmul.mubr.bf16.gmra.mrb[0].mxu0 %v3639
        %v4103 = vpop.f32.mrb[0].mxu0
        %v4104 = vadd.f32 %v3702, %v4103
        %v4105 = vpop.f32.mrb[0].mxu0
        %v4106 = vadd.f32 %v3706, %v4105
        %v4107 = vpop.f32.mrb[0].mxu0
        %v4108 = vadd.f32 %v3702, %v4107
        %v4109 = vpop.f32.mrb[0].mxu0
        %v4110 = vadd.f32 %v3706, %v4109
        %4111 = vmatprep.mubr.bf16.mxu0 %v3642
        %4112 = vmatmul.mubr.bf16.gmra.mrb[0].mxu0 %v3641
        %v4113 = vpop.f32.mrb[0].mxu0
        %v4114 = vadd.f32 %v3702, %v4113
        %v4115 = vpop.f32.mrb[0].mxu0
        %v4116 = vadd.f32 %v3706, %v4115
        %v4117 = vpop.f32.mrb[0].mxu0
        %v4118 = vadd.f32 %v3702, %v4117
        %v4119 = vpop.f32.mrb[0].mxu0
        %v4120 = vadd.f32 %v3706, %v4119
        %4121 = vmatprep.mubr.bf16.mxu0 %v3644
        %4122 = vmatmul.mubr.bf16.gmra.mrb[0].mxu0 %v3643
        %v4123 = vpop.f32.mrb[0].mxu0
        %v4124 = vadd.f32 %v3702, %v4123
        %v4125 = vpop.f32.mrb[0].mxu0
        %v4126 = vadd.f32 %v3706, %v4125
        %v4127 = vpop.f32.mrb[0].mxu0
        %v4128 = vadd.f32 %v3702, %v4127
        %v4129 = vpop.f32.mrb[0].mxu0
        %v4130 = vadd.f32 %v3706, %v4129
        %4131 = vmatprep.mubr.bf16.mxu0 %v3646
        %4132 = vmatmul.mubr.bf16.gmra.mrb[0].mxu0 %v3645
        %v4133 = vpop.f32.mrb[0].mxu0
        %v4134 = vadd.f32 %v3702, %v4133
        %v4135 = vpop.f32.mrb[0].mxu0
        %v4136 = vadd.f32 %v3706, %v4135
        %v4137 = vpop.f32.mrb[0].mxu0
        %v4138 = vadd.f32 %v3702, %v4137
        %v4139 = vpop.f32.mrb[0].mxu0
        %v4140 = vadd.f32 %v3706, %v4139
        %4141 = vmatprep.mubr.bf16.mxu0 %v3648
        %4142 = vmatmul.mubr.bf16.gmra.mrb[0].mxu0 %v3647
        %v4143 = vpop.f32.mrb[0].mxu0
        %v4144 = vadd.f32 %v3702, %v4143
        %v4145 = vpop.f32.mrb[0].mxu0
        %v4146 = vadd.f32 %v3706, %v4145
        %v4147 = vpop.f32.mrb[0].mxu0
        %v4148 = vadd.f32 %v3702, %v4147
        %v4149 = vpop.f32.mrb[0].mxu0
        %v4150 = vadd.f32 %v3706, %v4149
        %4151 = vmatprep.mubr.bf16.mxu0 %v3650
        %4152 = vmatmul.mubr.bf16.gmra.mrb[0].mxu0 %v3649
        %v4153 = vpop.f32.mrb[0].mxu0
        %v4154 = vadd.f32 %v3702, %v4153
        %v4155 = vpop.f32.mrb[0].mxu0
        %v4156 = vadd.f32 %v3706, %v4155
        %v4157 = vpop.f32.mrb[0].mxu0
        %v4158 = vadd.f32 %v3702, %v4157
        %v4159 = vpop.f32.mrb[0].mxu0
        %v4160 = vadd.f32 %v3706, %v4159
        %4161 = vmatprep.mubr.bf16.mxu0 %v3652
        %4162 = vmatmul.mubr.bf16.gmra.mrb[0].mxu0 %v3651
        %v4163 = vpop.f32.mrb[0].mxu0
        %v4164 = vadd.f32 %v3702, %v4163
        %v4165 = vpop.f32.mrb[0].mxu0
        %v4166 = vadd.f32 %v3706, %v4165
        %v4167 = vpop.f32.mrb[0].mxu0
        %v4168 = vadd.f32 %v3702, %v4167
        %v4169 = vpop.f32.mrb[0].mxu0
        %v4170 = vadd.f32 %v3706, %v4169
        %4171 = vmatprep.mubr.bf16.mxu0 %v3654
        %4172 = vmatmul.mubr.bf16.gmra.mrb[0].mxu0 %v3653
        %v4173 = vpop.f32.mrb[0].mxu0
        %v4174 = vadd.f32 %v3702, %v4173
        %v4175 = vpop.f32.mrb[0].mxu0
        %v4176 = vadd.f32 %v3706, %v4175
        %v4177 = vpop.f32.mrb[0].mxu0
        %v4178 = vadd.f32 %v3702, %v4177
        %v4179 = vpop.f32.mrb[0].mxu0
        %v4180 = vadd.f32 %v3706, %v4179
        %4181 = vmatprep.mubr.bf16.mxu0 %v3656
        %4182 = vmatmul.mubr.bf16.gmra.mrb[0].mxu0 %v3655
        %v4183 = vpop.f32.mrb[0].mxu0
        %v4184 = vadd.f32 %v3702, %v4183
        %v4185 = vpop.f32.mrb[0].mxu0
        %v4186 = vadd.f32 %v3706, %v4185
        %v4187 = vpop.f32.mrb[0].mxu0
        %v4188 = vadd.f32 %v3702, %v4187
        %v4189 = vpop.f32.mrb[0].mxu0
        %v4190 = vadd.f32 %v3706, %v4189
        %4191 = vmatprep.mubr.bf16.mxu0 %v3658
        %4192 = vmatmul.mubr.bf16.gmra.mrb[0].mxu0 %v3657
        %v4193 = vpop.f32.mrb[0].mxu0
        %v4194 = vadd.f32 %v3702, %v4193
        %v4195 = vpop.f32.mrb[0].mxu0
        %v4196 = vadd.f32 %v3706, %v4195
        %v4197 = vpop.f32.mrb[0].mxu0
        %v4198 = vadd.f32 %v3702, %v4197
        %v4199 = vpop.f32.mrb[0].mxu0
        %v4200 = vadd.f32 %v3706, %v4199
        %4201 = vmatprep.mubr.bf16.mxu0 %v3660
        %4202 = vmatmul.mubr.bf16.gmra.mrb[0].mxu0 %v3659
        %v4203 = vpop.f32.mrb[0].mxu0
        %v4204 = vadd.f32 %v3702, %v4203
        %v4205 = vpop.f32.mrb[0].mxu0
        %v4206 = vadd.f32 %v3706, %v4205
        %v4207 = vpop.f32.mrb[0].mxu0
        %v4208 = vadd.f32 %v3702, %v4207
        %v4209 = vpop.f32.mrb[0].mxu0
        %v4210 = vadd.f32 %v3706, %v4209
        %4211 = vmatprep.mubr.bf16.mxu0 %v3662
        %4212 = vmatmul.mubr.bf16.gmra.mrb[0].mxu0 %v3661
        %v4213 = vpop.f32.mrb[0].mxu0
        %v4214 = vadd.f32 %v3702, %v4213
        %v4215 = vpop.f32.mrb[0].mxu0
        %v4216 = vadd.f32 %v3706, %v4215
        %v4217 = vpop.f32.mrb[0].mxu0
        %v4218 = vadd.f32 %v3702, %v4217
        %v4219 = vpop.f32.mrb[0].mxu0
        %v4220 = vadd.f32 %v3706, %v4219
        %4221 = vdwg.mxu0
        %v4222 = vmax.f32 %v3904, 0.0
        %v4223 = vmax.f32 %v3906, 0.0
        %v4224 = vmax.f32 %v3908, 0.0
        %v4225 = vmax.f32 %v3910, 0.0
        %v4226 = vmax.f32 %v3914, 0.0
        %v4227 = vmax.f32 %v3916, 0.0
        %v4228 = vmax.f32 %v3918, 0.0
        %v4229 = vmax.f32 %v3920, 0.0
        %v4230 = vmax.f32 %v3924, 0.0
        %v4231 = vmax.f32 %v3926, 0.0
        %v4232 = vmax.f32 %v3928, 0.0
        %v4233 = vmax.f32 %v3930, 0.0
        %v4234 = vmax.f32 %v3934, 0.0
        %v4235 = vmax.f32 %v3936, 0.0
        %v4236 = vmax.f32 %v3938, 0.0
        %v4237 = vmax.f32 %v3940, 0.0
        %v4238 = vmax.f32 %v3944, 0.0
        %v4239 = vmax.f32 %v3946, 0.0
        %v4240 = vmax.f32 %v3948, 0.0
        %v4241 = vmax.f32 %v3950, 0.0
        %v4242 = vmax.f32 %v3954, 0.0
        %v4243 = vmax.f32 %v3956, 0.0
        %v4244 = vmax.f32 %v3958, 0.0
        %v4245 = vmax.f32 %v3960, 0.0
        %v4246 = vmax.f32 %v3964, 0.0
        %v4247 = vmax.f32 %v3966, 0.0
        %v4248 = vmax.f32 %v3968, 0.0
        %v4249 = vmax.f32 %v3970, 0.0
        %v4250 = vmax.f32 %v3974, 0.0
        %v4251 = vmax.f32 %v3976, 0.0
        %v4252 = vmax.f32 %v3978, 0.0
        %v4253 = vmax.f32 %v3980, 0.0
        %v4254 = vmax.f32 %v3984, 0.0
        %v4255 = vmax.f32 %v3986, 0.0
        %v4256 = vmax.f32 %v3988, 0.0
        %v4257 = vmax.f32 %v3990, 0.0
        %v4258 = vmax.f32 %v3994, 0.0
        %v4259 = vmax.f32 %v3996, 0.0
        %v4260 = vmax.f32 %v3998, 0.0
        %v4261 = vmax.f32 %v4000, 0.0
        %v4262 = vmax.f32 %v4004, 0.0
        %v4263 = vmax.f32 %v4006, 0.0
        %v4264 = vmax.f32 %v4008, 0.0
        %v4265 = vmax.f32 %v4010, 0.0
        %v4266 = vmax.f32 %v4014, 0.0
        %v4267 = vmax.f32 %v4016, 0.0
        %v4268 = vmax.f32 %v4018, 0.0
        %v4269 = vmax.f32 %v4020, 0.0
        %v4270 = vmax.f32 %v4024, 0.0
        %v4271 = vmax.f32 %v4026, 0.0
        %v4272 = vmax.f32 %v4028, 0.0
        %v4273 = vmax.f32 %v4030, 0.0
        %v4274 = vmax.f32 %v4034, 0.0
        %v4275 = vmax.f32 %v4036, 0.0
        %v4276 = vmax.f32 %v4038, 0.0
        %v4277 = vmax.f32 %v4040, 0.0
        %v4278 = vmax.f32 %v4044, 0.0
        %v4279 = vmax.f32 %v4046, 0.0
        %v4280 = vmax.f32 %v4048, 0.0
        %v4281 = vmax.f32 %v4050, 0.0
        %v4282 = vmax.f32 %v4054, 0.0
        %v4283 = vmax.f32 %v4056, 0.0
        %v4284 = vmax.f32 %v4058, 0.0
        %v4285 = vmax.f32 %v4060, 0.0
        %v4286 = vmax.f32 %v4064, 0.0
        %v4287 = vmax.f32 %v4066, 0.0
        %v4288 = vmax.f32 %v4068, 0.0
        %v4289 = vmax.f32 %v4070, 0.0
        %v4290 = vmax.f32 %v4074, 0.0
        %v4291 = vmax.f32 %v4076, 0.0
        %v4292 = vmax.f32 %v4078, 0.0
        %v4293 = vmax.f32 %v4080, 0.0
        %v4294 = vmax.f32 %v4084, 0.0
        %v4295 = vmax.f32 %v4086, 0.0
        %v4296 = vmax.f32 %v4088, 0.0
        %v4297 = vmax.f32 %v4090, 0.0
        %v4298 = vmax.f32 %v4094, 0.0
        %v4299 = vmax.f32 %v4096, 0.0
        %v4300 = vmax.f32 %v4098, 0.0
        %v4301 = vmax.f32 %v4100, 0.0
        %v4302 = vmax.f32 %v4104, 0.0
        %v4303 = vmax.f32 %v4106, 0.0
        %v4304 = vmax.f32 %v4108, 0.0
        %v4305 = vmax.f32 %v4110, 0.0
        %v4306 = vmax.f32 %v4114, 0.0
        %v4307 = vmax.f32 %v4116, 0.0
        %v4308 = vmax.f32 %v4118, 0.0
        %v4309 = vmax.f32 %v4120, 0.0
        %v4310 = vmax.f32 %v4124, 0.0
        %v4311 = vmax.f32 %v4126, 0.0
        %v4312 = vmax.f32 %v4128, 0.0
        %v4313 = vmax.f32 %v4130, 0.0
        %v4314 = vmax.f32 %v4134, 0.0
        %v4315 = vmax.f32 %v4136, 0.0
        %v4316 = vmax.f32 %v4138, 0.0
        %v4317 = vmax.f32 %v4140, 0.0
        %v4318 = vmax.f32 %v4144, 0.0
        %v4319 = vmax.f32 %v4146, 0.0
        %v4320 = vmax.f32 %v4148, 0.0
        %v4321 = vmax.f32 %v4150, 0.0
        %v4322 = vmax.f32 %v4154, 0.0
        %v4323 = vmax.f32 %v4156, 0.0
        %v4324 = vmax.f32 %v4158, 0.0
        %v4325 = vmax.f32 %v4160, 0.0
        %v4326 = vmax.f32 %v4164, 0.0
        %v4327 = vmax.f32 %v4166, 0.0
        %v4328 = vmax.f32 %v4168, 0.0
        %v4329 = vmax.f32 %v4170, 0.0
        %v4330 = vmax.f32 %v4174, 0.0
        %v4331 = vmax.f32 %v4176, 0.0
        %v4332 = vmax.f32 %v4178, 0.0
        %v4333 = vmax.f32 %v4180, 0.0
        %v4334 = vmax.f32 %v4184, 0.0
        %v4335 = vmax.f32 %v4186, 0.0
        %v4336 = vmax.f32 %v4188, 0.0
        %v4337 = vmax.f32 %v4190, 0.0
        %v4338 = vmax.f32 %v4194, 0.0
        %v4339 = vmax.f32 %v4196, 0.0
        %v4340 = vmax.f32 %v4198, 0.0
        %v4341 = vmax.f32 %v4200, 0.0
        %v4342 = vmax.f32 %v4204, 0.0
        %v4343 = vmax.f32 %v4206, 0.0
        %v4344 = vmax.f32 %v4208, 0.0
        %v4345 = vmax.f32 %v4210, 0.0
        %v4346 = vmax.f32 %v4214, 0.0
        %v4347 = vmax.f32 %v4216, 0.0
        %v4348 = vmax.f32 %v4218, 0.0
        %v4349 = vmax.f32 %v4220, 0.0
        %v4350 = vld [vmem:[%s6] sm:$0xf]
        %v4351 = vpack.c.bf16 %v4224, %v4222
        %v4352 = vpack.c.bf16 %v4225, %v4223
        %v4353 = vpack.c.bf16 %v4228, %v4226
        %v4354 = vpack.c.bf16 %v4229, %v4227
        %v4355 = vpack.c.bf16 %v4232, %v4230
        %v4356 = vpack.c.bf16 %v4233, %v4231
        %v4357 = vpack.c.bf16 %v4236, %v4234
        %v4358 = vpack.c.bf16 %v4237, %v4235
        %v4359 = vpack.c.bf16 %v4240, %v4238
        %v4360 = vpack.c.bf16 %v4241, %v4239
        %v4361 = vpack.c.bf16 %v4244, %v4242
        %v4362 = vpack.c.bf16 %v4245, %v4243
        %v4363 = vpack.c.bf16 %v4248, %v4246
        %v4364 = vpack.c.bf16 %v4249, %v4247
        %v4365 = vpack.c.bf16 %v4252, %v4250
        %v4366 = vpack.c.bf16 %v4253, %v4251
        %v4367 = vpack.c.bf16 %v4256, %v4254
        %v4368 = vpack.c.bf16 %v4257, %v4255
        %v4369 = vpack.c.bf16 %v4260, %v4258
        %v4370 = vpack.c.bf16 %v4261, %v4259
        %v4371 = vpack.c.bf16 %v4264, %v4262
        %v4372 = vpack.c.bf16 %v4265, %v4263
        %v4373 = vpack.c.bf16 %v4268, %v4266
        %v4374 = vpack.c.bf16 %v4269, %v4267
        %v4375 = vpack.c.bf16 %v4272, %v4270
        %v4376 = vpack.c.bf16 %v4273, %v4271
        %v4377 = vpack.c.bf16 %v4276, %v4274
        %v4378 = vpack.c.bf16 %v4277, %v4275
        %v4379 = vpack.c.bf16 %v4280, %v4278
        %v4380 = vpack.c.bf16 %v4281, %v4279
        %v4381 = vpack.c.bf16 %v4284, %v4282
        %v4382 = vpack.c.bf16 %v4285, %v4283
        %v4383 = vpack.c.bf16 %v4288, %v4286
        %v4384 = vpack.c.bf16 %v4289, %v4287
        %v4385 = vpack.c.bf16 %v4292, %v4290
        %v4386 = vpack.c.bf16 %v4293, %v4291
        %v4387 = vpack.c.bf16 %v4296, %v4294
        %v4388 = vpack.c.bf16 %v4297, %v4295
        %v4389 = vpack.c.bf16 %v4300, %v4298
        %v4390 = vpack.c.bf16 %v4301, %v4299
        %v4391 = vpack.c.bf16 %v4304, %v4302
        %v4392 = vpack.c.bf16 %v4305, %v4303
        %v4393 = vpack.c.bf16 %v4308, %v4306
        %v4394 = vpack.c.bf16 %v4309, %v4307
        %v4395 = vpack.c.bf16 %v4312, %v4310
        %v4396 = vpack.c.bf16 %v4313, %v4311
        %v4397 = vpack.c.bf16 %v4316, %v4314
        %v4398 = vpack.c.bf16 %v4317, %v4315
        %v4399 = vpack.c.bf16 %v4320, %v4318
        %v4400 = vpack.c.bf16 %v4321, %v4319
        %v4401 = vpack.c.bf16 %v4324, %v4322
        %v4402 = vpack.c.bf16 %v4325, %v4323
        %v4403 = vpack.c.bf16 %v4328, %v4326
        %v4404 = vpack.c.bf16 %v4329, %v4327
        %v4405 = vpack.c.bf16 %v4332, %v4330
        %v4406 = vpack.c.bf16 %v4333, %v4331
        %v4407 = vpack.c.bf16 %v4336, %v4334
        %v4408 = vpack.c.bf16 %v4337, %v4335
        %v4409 = vpack.c.bf16 %v4340, %v4338
        %v4410 = vpack.c.bf16 %v4341, %v4339
        %v4411 = vpack.c.bf16 %v4344, %v4342
        %v4412 = vpack.c.bf16 %v4345, %v4343
        %v4413 = vpack.c.bf16 %v4348, %v4346
        %v4414 = vpack.c.bf16 %v4349, %v4347
        %v4415 = vld [vmem:[%s7] sm:$0xff]
        %v4416 = vld [vmem:[%s7 + $0x8] sm:$0xff]
        %v4417 = vld [vmem:[%s7 + $0x10] sm:$0xff]
        %v4418 = vld [vmem:[%s7 + $0x18] sm:$0xff]
        %v4419 = vld [vmem:[%s7 + $0x20] sm:$0xff]
        %v4420 = vld [vmem:[%s7 + $0x28] sm:$0xff]
        %v4421 = vld [vmem:[%s7 + $0x30] sm:$0xff]
        %v4422 = vld [vmem:[%s7 + $0x38] sm:$0xff]
        %v4423 = vld [vmem:[%s7 + $0x40] sm:$0xff]
        %v4424 = vld [vmem:[%s7 + $0x48] sm:$0xff]
        %v4425 = vld [vmem:[%s7 + $0x50] sm:$0xff]
        %v4426 = vld [vmem:[%s7 + $0x58] sm:$0xff]
        %v4427 = vld [vmem:[%s7 + $0x60] sm:$0xff]
        %v4428 = vld [vmem:[%s7 + $0x68] sm:$0xff]
        %v4429 = vld [vmem:[%s7 + $0x70] sm:$0xff]
        %v4430 = vld [vmem:[%s7 + $0x78] sm:$0xff]
        %v4431 = vld [vmem:[%s7 + $0x80] sm:$0xff]
        %v4432 = vld [vmem:[%s7 + $0x88] sm:$0xff]
        %v4433 = vld [vmem:[%s7 + $0x90] sm:$0xff]
        %v4434 = vld [vmem:[%s7 + $0x98] sm:$0xff]
        %v4435 = vld [vmem:[%s7 + $0xa0] sm:$0xff]
        %v4436 = vld [vmem:[%s7 + $0xa8] sm:$0xff]
        %v4437 = vld [vmem:[%s7 + $0xb0] sm:$0xff]
        %v4438 = vld [vmem:[%s7 + $0xb8] sm:$0xff]
        %v4439 = vld [vmem:[%s7 + $0xc0] sm:$0xff]
        %v4440 = vld [vmem:[%s7 + $0xc8] sm:$0xff]
        %v4441 = vld [vmem:[%s7 + $0xd0] sm:$0xff]
        %v4442 = vld [vmem:[%s7 + $0xd8] sm:$0xff]
        %v4443 = vld [vmem:[%s7 + $0xe0] sm:$0xff]
        %v4444 = vld [vmem:[%s7 + $0xe8] sm:$0xff]
        %v4445 = vld [vmem:[%s7 + $0xf0] sm:$0xff]
        %v4446 = vld [vmem:[%s7 + $0xf8] sm:$0xff]
        %v4479 = vunpack.c.l.b16 %v4415
        %v4480 = vunpack.c.h.b16 %v4415
        %v4481 = vunpack.c.l.b16 %v4416
        %v4482 = vunpack.c.h.b16 %v4416
        %v4483 = vunpack.c.l.b16 %v4417
        %v4484 = vunpack.c.h.b16 %v4417
        %v4485 = vunpack.c.l.b16 %v4418
        %v4486 = vunpack.c.h.b16 %v4418
        %v4487 = vunpack.c.l.b16 %v4419
        %v4488 = vunpack.c.h.b16 %v4419
        %v4489 = vunpack.c.l.b16 %v4420
        %v4490 = vunpack.c.h.b16 %v4420
        %v4491 = vunpack.c.l.b16 %v4421
        %v4492 = vunpack.c.h.b16 %v4421
        %v4493 = vunpack.c.l.b16 %v4422
        %v4494 = vunpack.c.h.b16 %v4422
        %v4495 = vunpack.c.l.b16 %v4423
        %v4496 = vunpack.c.h.b16 %v4423
        %v4497 = vunpack.c.l.b16 %v4424
        %v4498 = vunpack.c.h.b16 %v4424
        %v4499 = vunpack.c.l.b16 %v4425
        %v4500 = vunpack.c.h.b16 %v4425
        %v4501 = vunpack.c.l.b16 %v4426
        %v4502 = vunpack.c.h.b16 %v4426
        %v4503 = vunpack.c.l.b16 %v4427
        %v4504 = vunpack.c.h.b16 %v4427
        %v4505 = vunpack.c.l.b16 %v4428
        %v4506 = vunpack.c.h.b16 %v4428
        %v4507 = vunpack.c.l.b16 %v4429
        %v4508 = vunpack.c.h.b16 %v4429
        %v4509 = vunpack.c.l.b16 %v4430
        %v4510 = vunpack.c.h.b16 %v4430
        %v4511 = vunpack.c.l.b16 %v4431
        %v4512 = vunpack.c.h.b16 %v4431
        %v4513 = vunpack.c.l.b16 %v4432
        %v4514 = vunpack.c.h.b16 %v4432
        %v4515 = vunpack.c.l.b16 %v4433
        %v4516 = vunpack.c.h.b16 %v4433
        %v4517 = vunpack.c.l.b16 %v4434
        %v4518 = vunpack.c.h.b16 %v4434
        %v4519 = vunpack.c.l.b16 %v4435
        %v4520 = vunpack.c.h.b16 %v4435
        %v4521 = vunpack.c.l.b16 %v4436
        %v4522 = vunpack.c.h.b16 %v4436
        %v4523 = vunpack.c.l.b16 %v4437
        %v4524 = vunpack.c.h.b16 %v4437
        %v4525 = vunpack.c.l.b16 %v4438
        %v4526 = vunpack.c.h.b16 %v4438
        %v4527 = vunpack.c.l.b16 %v4439
        %v4528 = vunpack.c.h.b16 %v4439
        %v4529 = vunpack.c.l.b16 %v4440
        %v4530 = vunpack.c.h.b16 %v4440
        %v4531 = vunpack.c.l.b16 %v4441
        %v4532 = vunpack.c.h.b16 %v4441
        %v4533 = vunpack.c.l.b16 %v4442
        %v4534 = vunpack.c.h.b16 %v4442
        %v4535 = vunpack.c.l.b16 %v4443
        %v4536 = vunpack.c.h.b16 %v4443
        %v4537 = vunpack.c.l.b16 %v4444
        %v4538 = vunpack.c.h.b16 %v4444
        %v4539 = vunpack.c.l.b16 %v4445
        %v4540 = vunpack.c.h.b16 %v4445
        %v4541 = vunpack.c.l.b16 %v4446
        %v4542 = vunpack.c.h.b16 %v4446
        %v4543 = vpack.c.b16 %v4481, %v4479
        %v4544 = vpack.c.b16 %v4482, %v4480
        %v4545 = vpack.c.b16 %v4485, %v4483
        %v4546 = vpack.c.b16 %v4486, %v4484
        %v4547 = vpack.c.b16 %v4489, %v4487
        %v4548 = vpack.c.b16 %v4490, %v4488
        %v4549 = vpack.c.b16 %v4493, %v4491
        %v4550 = vpack.c.b16 %v4494, %v4492
        %v4551 = vpack.c.b16 %v4497, %v4495
        %v4552 = vpack.c.b16 %v4498, %v4496
        %v4553 = vpack.c.b16 %v4501, %v4499
        %v4554 = vpack.c.b16 %v4502, %v4500
        %v4555 = vpack.c.b16 %v4505, %v4503
        %v4556 = vpack.c.b16 %v4506, %v4504
        %v4557 = vpack.c.b16 %v4509, %v4507
        %v4558 = vpack.c.b16 %v4510, %v4508
        %v4559 = vpack.c.b16 %v4513, %v4511
        %v4560 = vpack.c.b16 %v4514, %v4512
        %v4561 = vpack.c.b16 %v4517, %v4515
        %v4562 = vpack.c.b16 %v4518, %v4516
        %v4563 = vpack.c.b16 %v4521, %v4519
        %v4564 = vpack.c.b16 %v4522, %v4520
        %v4565 = vpack.c.b16 %v4525, %v4523
        %v4566 = vpack.c.b16 %v4526, %v4524
        %v4567 = vpack.c.b16 %v4529, %v4527
        %v4568 = vpack.c.b16 %v4530, %v4528
        %v4569 = vpack.c.b16 %v4533, %v4531
        %v4570 = vpack.c.b16 %v4534, %v4532
        %v4571 = vpack.c.b16 %v4537, %v4535
        %v4572 = vpack.c.b16 %v4538, %v4536
        %v4573 = vpack.c.b16 %v4541, %v4539
        %v4574 = vpack.c.b16 %v4542, %v4540
        %4607 = vmatprep.subr.bf16.mxu0 %v4544
        %4608 = vmatpush1.bf16.msra.mxu0 %v4543
        %4609 = vmatprep.subr.bf16.mxu0 %v4546
        %4610 = vmatpush1.bf16.msra.mxu0 %v4545
        %4611 = vmatprep.subr.bf16.mxu0 %v4548
        %4612 = vmatpush1.bf16.msra.mxu0 %v4547
        %4613 = vmatprep.subr.bf16.mxu0 %v4550
        %4614 = vmatpush1.bf16.msra.mxu0 %v4549
        %4615 = vmatprep.subr.bf16.mxu0 %v4552
        %4616 = vmatpush1.bf16.msra.mxu0 %v4551
        %4617 = vmatprep.subr.bf16.mxu0 %v4554
        %4618 = vmatpush1.bf16.msra.mxu0 %v4553
        %4619 = vmatprep.subr.bf16.mxu0 %v4556
        %4620 = vmatpush1.bf16.msra.mxu0 %v4555
        %4621 = vmatprep.subr.bf16.mxu0 %v4558
        %4622 = vmatpush1.bf16.msra.mxu0 %v4557
        %4623 = vmatprep.subr.bf16.mxu0 %v4560
        %4624 = vmatpush1.bf16.msra.mxu0 %v4559
        %4625 = vmatprep.subr.bf16.mxu0 %v4562
        %4626 = vmatpush1.bf16.msra.mxu0 %v4561
        %4627 = vmatprep.subr.bf16.mxu0 %v4564
        %4628 = vmatpush1.bf16.msra.mxu0 %v4563
        %4629 = vmatprep.subr.bf16.mxu0 %v4566
        %4630 = vmatpush1.bf16.msra.mxu0 %v4565
        %4631 = vmatprep.subr.bf16.mxu0 %v4568
        %4632 = vmatpush1.bf16.msra.mxu0 %v4567
        %4633 = vmatprep.subr.bf16.mxu0 %v4570
        %4634 = vmatpush1.bf16.msra.mxu0 %v4569
        %4635 = vmatprep.subr.bf16.mxu0 %v4572
        %4636 = vmatpush1.bf16.msra.mxu0 %v4571
        %4637 = vmatprep.subr.bf16.mxu0 %v4574
        %4638 = vmatpush1.bf16.msra.mxu0 %v4573
        %4639 = vmatprep.mubr.bf16.mxu0 %v4352
        %4640 = vmatmul.mubr.bf16.gmra.mrb[0].mxu0 %v4351
        %v4641 = vpop.f32.mrb[0].mxu0
        %v4642 = vadd.f32 0.0, %v4641
        %v4643 = vpop.f32.mrb[0].mxu0
        %v4644 = vadd.f32 0.0, %v4643
        %v4645 = vpop.f32.mrb[0].mxu0
        %v4646 = vadd.f32 0.0, %v4645
        %v4647 = vpop.f32.mrb[0].mxu0
        %v4648 = vadd.f32 0.0, %v4647
        %4649 = vmatprep.mubr.bf16.mxu0 %v4354
        %4650 = vmatmul.mubr.bf16.gmra.mrb[0].mxu0 %v4353
        %v4651 = vpop.f32.mrb[0].mxu0
        %v4652 = vadd.f32 0.0, %v4651
        %v4653 = vpop.f32.mrb[0].mxu0
        %v4654 = vadd.f32 0.0, %v4653
        %v4655 = vpop.f32.mrb[0].mxu0
        %v4656 = vadd.f32 0.0, %v4655
        %v4657 = vpop.f32.mrb[0].mxu0
        %v4658 = vadd.f32 0.0, %v4657
        %4659 = vmatprep.mubr.bf16.mxu0 %v4356
        %4660 = vmatmul.mubr.bf16.gmra.mrb[0].mxu0 %v4355
        %v4661 = vpop.f32.mrb[0].mxu0
        %v4662 = vadd.f32 0.0, %v4661
        %v4663 = vpop.f32.mrb[0].mxu0
        %v4664 = vadd.f32 0.0, %v4663
        %v4665 = vpop.f32.mrb[0].mxu0
        %v4666 = vadd.f32 0.0, %v4665
        %v4667 = vpop.f32.mrb[0].mxu0
        %v4668 = vadd.f32 0.0, %v4667
        %4669 = vmatprep.mubr.bf16.mxu0 %v4358
        %4670 = vmatmul.mubr.bf16.gmra.mrb[0].mxu0 %v4357
        %v4671 = vpop.f32.mrb[0].mxu0
        %v4672 = vadd.f32 0.0, %v4671
        %v4673 = vpop.f32.mrb[0].mxu0
        %v4674 = vadd.f32 0.0, %v4673
        %v4675 = vpop.f32.mrb[0].mxu0
        %v4676 = vadd.f32 0.0, %v4675
        %v4677 = vpop.f32.mrb[0].mxu0
        %v4678 = vadd.f32 0.0, %v4677
        %4679 = vmatprep.mubr.bf16.mxu0 %v4360
        %4680 = vmatmul.mubr.bf16.gmra.mrb[0].mxu0 %v4359
        %v4681 = vpop.f32.mrb[0].mxu0
        %v4682 = vadd.f32 0.0, %v4681
        %v4683 = vpop.f32.mrb[0].mxu0
        %v4684 = vadd.f32 0.0, %v4683
        %v4685 = vpop.f32.mrb[0].mxu0
        %v4686 = vadd.f32 0.0, %v4685
        %v4687 = vpop.f32.mrb[0].mxu0
        %v4688 = vadd.f32 0.0, %v4687
        %4689 = vmatprep.mubr.bf16.mxu0 %v4362
        %4690 = vmatmul.mubr.bf16.gmra.mrb[0].mxu0 %v4361
        %v4691 = vpop.f32.mrb[0].mxu0
        %v4692 = vadd.f32 0.0, %v4691
        %v4693 = vpop.f32.mrb[0].mxu0
        %v4694 = vadd.f32 0.0, %v4693
        %v4695 = vpop.f32.mrb[0].mxu0
        %v4696 = vadd.f32 0.0, %v4695
        %v4697 = vpop.f32.mrb[0].mxu0
        %v4698 = vadd.f32 0.0, %v4697
        %4699 = vmatprep.mubr.bf16.mxu0 %v4364
        %4700 = vmatmul.mubr.bf16.gmra.mrb[0].mxu0 %v4363
        %v4701 = vpop.f32.mrb[0].mxu0
        %v4702 = vadd.f32 0.0, %v4701
        %v4703 = vpop.f32.mrb[0].mxu0
        %v4704 = vadd.f32 0.0, %v4703
        %v4705 = vpop.f32.mrb[0].mxu0
        %v4706 = vadd.f32 0.0, %v4705
        %v4707 = vpop.f32.mrb[0].mxu0
        %v4708 = vadd.f32 0.0, %v4707
        %4709 = vmatprep.mubr.bf16.mxu0 %v4366
        %4710 = vmatmul.mubr.bf16.gmra.mrb[0].mxu0 %v4365
        %v4711 = vpop.f32.mrb[0].mxu0
        %v4712 = vadd.f32 0.0, %v4711
        %v4713 = vpop.f32.mrb[0].mxu0
        %v4714 = vadd.f32 0.0, %v4713
        %v4715 = vpop.f32.mrb[0].mxu0
        %v4716 = vadd.f32 0.0, %v4715
        %v4717 = vpop.f32.mrb[0].mxu0
        %v4718 = vadd.f32 0.0, %v4717
        %4719 = vmatprep.mubr.bf16.mxu0 %v4368
        %4720 = vmatmul.mubr.bf16.gmra.mrb[0].mxu0 %v4367
        %v4721 = vpop.f32.mrb[0].mxu0
        %v4722 = vadd.f32 0.0, %v4721
        %v4723 = vpop.f32.mrb[0].mxu0
        %v4724 = vadd.f32 0.0, %v4723
        %v4725 = vpop.f32.mrb[0].mxu0
        %v4726 = vadd.f32 0.0, %v4725
        %v4727 = vpop.f32.mrb[0].mxu0
        %v4728 = vadd.f32 0.0, %v4727
        %4729 = vmatprep.mubr.bf16.mxu0 %v4370
        %4730 = vmatmul.mubr.bf16.gmra.mrb[0].mxu0 %v4369
        %v4731 = vpop.f32.mrb[0].mxu0
        %v4732 = vadd.f32 0.0, %v4731
        %v4733 = vpop.f32.mrb[0].mxu0
        %v4734 = vadd.f32 0.0, %v4733
        %v4735 = vpop.f32.mrb[0].mxu0
        %v4736 = vadd.f32 0.0, %v4735
        %v4737 = vpop.f32.mrb[0].mxu0
        %v4738 = vadd.f32 0.0, %v4737
        %4739 = vmatprep.mubr.bf16.mxu0 %v4372
        %4740 = vmatmul.mubr.bf16.gmra.mrb[0].mxu0 %v4371
        %v4741 = vpop.f32.mrb[0].mxu0
        %v4742 = vadd.f32 0.0, %v4741
        %v4743 = vpop.f32.mrb[0].mxu0
        %v4744 = vadd.f32 0.0, %v4743
        %v4745 = vpop.f32.mrb[0].mxu0
        %v4746 = vadd.f32 0.0, %v4745
        %v4747 = vpop.f32.mrb[0].mxu0
        %v4748 = vadd.f32 0.0, %v4747
        %4749 = vmatprep.mubr.bf16.mxu0 %v4374
        %4750 = vmatmul.mubr.bf16.gmra.mrb[0].mxu0 %v4373
        %v4751 = vpop.f32.mrb[0].mxu0
        %v4752 = vadd.f32 0.0, %v4751
        %v4753 = vpop.f32.mrb[0].mxu0
        %v4754 = vadd.f32 0.0, %v4753
        %v4755 = vpop.f32.mrb[0].mxu0
        %v4756 = vadd.f32 0.0, %v4755
        %v4757 = vpop.f32.mrb[0].mxu0
        %v4758 = vadd.f32 0.0, %v4757
        %4759 = vmatprep.mubr.bf16.mxu0 %v4376
        %4760 = vmatmul.mubr.bf16.gmra.mrb[0].mxu0 %v4375
        %v4761 = vpop.f32.mrb[0].mxu0
        %v4762 = vadd.f32 0.0, %v4761
        %v4763 = vpop.f32.mrb[0].mxu0
        %v4764 = vadd.f32 0.0, %v4763
        %v4765 = vpop.f32.mrb[0].mxu0
        %v4766 = vadd.f32 0.0, %v4765
        %v4767 = vpop.f32.mrb[0].mxu0
        %v4768 = vadd.f32 0.0, %v4767
        %4769 = vmatprep.mubr.bf16.mxu0 %v4378
        %4770 = vmatmul.mubr.bf16.gmra.mrb[0].mxu0 %v4377
        %v4771 = vpop.f32.mrb[0].mxu0
        %v4772 = vadd.f32 0.0, %v4771
        %v4773 = vpop.f32.mrb[0].mxu0
        %v4774 = vadd.f32 0.0, %v4773
        %v4775 = vpop.f32.mrb[0].mxu0
        %v4776 = vadd.f32 0.0, %v4775
        %v4777 = vpop.f32.mrb[0].mxu0
        %v4778 = vadd.f32 0.0, %v4777
        %4779 = vmatprep.mubr.bf16.mxu0 %v4380
        %4780 = vmatmul.mubr.bf16.gmra.mrb[0].mxu0 %v4379
        %v4781 = vpop.f32.mrb[0].mxu0
        %v4782 = vadd.f32 0.0, %v4781
        %v4783 = vpop.f32.mrb[0].mxu0
        %v4784 = vadd.f32 0.0, %v4783
        %v4785 = vpop.f32.mrb[0].mxu0
        %v4786 = vadd.f32 0.0, %v4785
        %v4787 = vpop.f32.mrb[0].mxu0
        %v4788 = vadd.f32 0.0, %v4787
        %4789 = vmatprep.mubr.bf16.mxu0 %v4382
        %4790 = vmatmul.mubr.bf16.gmra.mrb[0].mxu0 %v4381
        %v4791 = vpop.f32.mrb[0].mxu0
        %v4792 = vadd.f32 0.0, %v4791
        %v4793 = vpop.f32.mrb[0].mxu0
        %v4794 = vadd.f32 0.0, %v4793
        %v4795 = vpop.f32.mrb[0].mxu0
        %v4796 = vadd.f32 0.0, %v4795
        %v4797 = vpop.f32.mrb[0].mxu0
        %v4798 = vadd.f32 0.0, %v4797
        %4799 = vmatprep.mubr.bf16.mxu0 %v4384
        %4800 = vmatmul.mubr.bf16.gmra.mrb[0].mxu0 %v4383
        %v4801 = vpop.f32.mrb[0].mxu0
        %v4802 = vadd.f32 0.0, %v4801
        %v4803 = vpop.f32.mrb[0].mxu0
        %v4804 = vadd.f32 0.0, %v4803
        %v4805 = vpop.f32.mrb[0].mxu0
        %v4806 = vadd.f32 0.0, %v4805
        %v4807 = vpop.f32.mrb[0].mxu0
        %v4808 = vadd.f32 0.0, %v4807
        %4809 = vmatprep.mubr.bf16.mxu0 %v4386
        %4810 = vmatmul.mubr.bf16.gmra.mrb[0].mxu0 %v4385
        %v4811 = vpop.f32.mrb[0].mxu0
        %v4812 = vadd.f32 0.0, %v4811
        %v4813 = vpop.f32.mrb[0].mxu0
        %v4814 = vadd.f32 0.0, %v4813
        %v4815 = vpop.f32.mrb[0].mxu0
        %v4816 = vadd.f32 0.0, %v4815
        %v4817 = vpop.f32.mrb[0].mxu0
        %v4818 = vadd.f32 0.0, %v4817
        %4819 = vmatprep.mubr.bf16.mxu0 %v4388
        %4820 = vmatmul.mubr.bf16.gmra.mrb[0].mxu0 %v4387
        %v4821 = vpop.f32.mrb[0].mxu0
        %v4822 = vadd.f32 0.0, %v4821
        %v4823 = vpop.f32.mrb[0].mxu0
        %v4824 = vadd.f32 0.0, %v4823
        %v4825 = vpop.f32.mrb[0].mxu0
        %v4826 = vadd.f32 0.0, %v4825
        %v4827 = vpop.f32.mrb[0].mxu0
        %v4828 = vadd.f32 0.0, %v4827
        %4829 = vmatprep.mubr.bf16.mxu0 %v4390
        %4830 = vmatmul.mubr.bf16.gmra.mrb[0].mxu0 %v4389
        %v4831 = vpop.f32.mrb[0].mxu0
        %v4832 = vadd.f32 0.0, %v4831
        %v4833 = vpop.f32.mrb[0].mxu0
        %v4834 = vadd.f32 0.0, %v4833
        %v4835 = vpop.f32.mrb[0].mxu0
        %v4836 = vadd.f32 0.0, %v4835
        %v4837 = vpop.f32.mrb[0].mxu0
        %v4838 = vadd.f32 0.0, %v4837
        %4839 = vmatprep.mubr.bf16.mxu0 %v4392
        %4840 = vmatmul.mubr.bf16.gmra.mrb[0].mxu0 %v4391
        %v4841 = vpop.f32.mrb[0].mxu0
        %v4842 = vadd.f32 0.0, %v4841
        %v4843 = vpop.f32.mrb[0].mxu0
        %v4844 = vadd.f32 0.0, %v4843
        %v4845 = vpop.f32.mrb[0].mxu0
        %v4846 = vadd.f32 0.0, %v4845
        %v4847 = vpop.f32.mrb[0].mxu0
        %v4848 = vadd.f32 0.0, %v4847
        %4849 = vmatprep.mubr.bf16.mxu0 %v4394
        %4850 = vmatmul.mubr.bf16.gmra.mrb[0].mxu0 %v4393
        %v4851 = vpop.f32.mrb[0].mxu0
        %v4852 = vadd.f32 0.0, %v4851
        %v4853 = vpop.f32.mrb[0].mxu0
        %v4854 = vadd.f32 0.0, %v4853
        %v4855 = vpop.f32.mrb[0].mxu0
        %v4856 = vadd.f32 0.0, %v4855
        %v4857 = vpop.f32.mrb[0].mxu0
        %v4858 = vadd.f32 0.0, %v4857
        %4859 = vmatprep.mubr.bf16.mxu0 %v4396
        %4860 = vmatmul.mubr.bf16.gmra.mrb[0].mxu0 %v4395
        %v4861 = vpop.f32.mrb[0].mxu0
        %v4862 = vadd.f32 0.0, %v4861
        %v4863 = vpop.f32.mrb[0].mxu0
        %v4864 = vadd.f32 0.0, %v4863
        %v4865 = vpop.f32.mrb[0].mxu0
        %v4866 = vadd.f32 0.0, %v4865
        %v4867 = vpop.f32.mrb[0].mxu0
        %v4868 = vadd.f32 0.0, %v4867
        %4869 = vmatprep.mubr.bf16.mxu0 %v4398
        %4870 = vmatmul.mubr.bf16.gmra.mrb[0].mxu0 %v4397
        %v4871 = vpop.f32.mrb[0].mxu0
        %v4872 = vadd.f32 0.0, %v4871
        %v4873 = vpop.f32.mrb[0].mxu0
        %v4874 = vadd.f32 0.0, %v4873
        %v4875 = vpop.f32.mrb[0].mxu0
        %v4876 = vadd.f32 0.0, %v4875
        %v4877 = vpop.f32.mrb[0].mxu0
        %v4878 = vadd.f32 0.0, %v4877
        %4879 = vmatprep.mubr.bf16.mxu0 %v4400
        %4880 = vmatmul.mubr.bf16.gmra.mrb[0].mxu0 %v4399
        %v4881 = vpop.f32.mrb[0].mxu0
        %v4882 = vadd.f32 0.0, %v4881
        %v4883 = vpop.f32.mrb[0].mxu0
        %v4884 = vadd.f32 0.0, %v4883
        %v4885 = vpop.f32.mrb[0].mxu0
        %v4886 = vadd.f32 0.0, %v4885
        %v4887 = vpop.f32.mrb[0].mxu0
        %v4888 = vadd.f32 0.0, %v4887
        %4889 = vmatprep.mubr.bf16.mxu0 %v4402
        %4890 = vmatmul.mubr.bf16.gmra.mrb[0].mxu0 %v4401
        %v4891 = vpop.f32.mrb[0].mxu0
        %v4892 = vadd.f32 0.0, %v4891
        %v4893 = vpop.f32.mrb[0].mxu0
        %v4894 = vadd.f32 0.0, %v4893
        %v4895 = vpop.f32.mrb[0].mxu0
        %v4896 = vadd.f32 0.0, %v4895
        %v4897 = vpop.f32.mrb[0].mxu0
        %v4898 = vadd.f32 0.0, %v4897
        %4899 = vmatprep.mubr.bf16.mxu0 %v4404
        %4900 = vmatmul.mubr.bf16.gmra.mrb[0].mxu0 %v4403
        %v4901 = vpop.f32.mrb[0].mxu0
        %v4902 = vadd.f32 0.0, %v4901
        %v4903 = vpop.f32.mrb[0].mxu0
        %v4904 = vadd.f32 0.0, %v4903
        %v4905 = vpop.f32.mrb[0].mxu0
        %v4906 = vadd.f32 0.0, %v4905
        %v4907 = vpop.f32.mrb[0].mxu0
        %v4908 = vadd.f32 0.0, %v4907
        %4909 = vmatprep.mubr.bf16.mxu0 %v4406
        %4910 = vmatmul.mubr.bf16.gmra.mrb[0].mxu0 %v4405
        %v4911 = vpop.f32.mrb[0].mxu0
        %v4912 = vadd.f32 0.0, %v4911
        %v4913 = vpop.f32.mrb[0].mxu0
        %v4914 = vadd.f32 0.0, %v4913
        %v4915 = vpop.f32.mrb[0].mxu0
        %v4916 = vadd.f32 0.0, %v4915
        %v4917 = vpop.f32.mrb[0].mxu0
        %v4918 = vadd.f32 0.0, %v4917
        %4919 = vmatprep.mubr.bf16.mxu0 %v4408
        %4920 = vmatmul.mubr.bf16.gmra.mrb[0].mxu0 %v4407
        %v4921 = vpop.f32.mrb[0].mxu0
        %v4922 = vadd.f32 0.0, %v4921
        %v4923 = vpop.f32.mrb[0].mxu0
        %v4924 = vadd.f32 0.0, %v4923
        %v4925 = vpop.f32.mrb[0].mxu0
        %v4926 = vadd.f32 0.0, %v4925
        %v4927 = vpop.f32.mrb[0].mxu0
        %v4928 = vadd.f32 0.0, %v4927
        %4929 = vmatprep.mubr.bf16.mxu0 %v4410
        %4930 = vmatmul.mubr.bf16.gmra.mrb[0].mxu0 %v4409
        %v4931 = vpop.f32.mrb[0].mxu0
        %v4932 = vadd.f32 0.0, %v4931
        %v4933 = vpop.f32.mrb[0].mxu0
        %v4934 = vadd.f32 0.0, %v4933
        %v4935 = vpop.f32.mrb[0].mxu0
        %v4936 = vadd.f32 0.0, %v4935
        %v4937 = vpop.f32.mrb[0].mxu0
        %v4938 = vadd.f32 0.0, %v4937
        %4939 = vmatprep.mubr.bf16.mxu0 %v4412
        %4940 = vmatmul.mubr.bf16.gmra.mrb[0].mxu0 %v4411
        %v4941 = vpop.f32.mrb[0].mxu0
        %v4942 = vadd.f32 0.0, %v4941
        %v4943 = vpop.f32.mrb[0].mxu0
        %v4944 = vadd.f32 0.0, %v4943
        %v4945 = vpop.f32.mrb[0].mxu0
        %v4946 = vadd.f32 0.0, %v4945
        %v4947 = vpop.f32.mrb[0].mxu0
        %v4948 = vadd.f32 0.0, %v4947
        %4949 = vmatprep.mubr.bf16.mxu0 %v4414
        %4950 = vmatmul.mubr.bf16.gmra.mrb[0].mxu0 %v4413
        %v4951 = vpop.f32.mrb[0].mxu0
        %v4952 = vadd.f32 0.0, %v4951
        %v4953 = vpop.f32.mrb[0].mxu0
        %v4954 = vadd.f32 0.0, %v4953
        %v4955 = vpop.f32.mrb[0].mxu0
        %v4956 = vadd.f32 0.0, %v4955
        %v4957 = vpop.f32.mrb[0].mxu0
        %v4958 = vadd.f32 0.0, %v4957
        %4959 = vdwg.mxu0
        %v4962 = vunpack.c.l.s4 1983009808
        %v4963 = vunpack.c.0.s8 %v4962
        %v4964 = vlaneseq
        %v4965 = vshrl.u32 %v4964, 7
        %v4966 = vsub.s32 %v4963, %v4965
        %v4967 = vrot.slane %v4350, %v4966
        %v4968 = vcombine.high %v4967, %v4967
        %v4970 = vand.u32 %v4967, %v860
        %v4973 = vand.u32 %v4968, %v860
        %4975 = vmatprep.subr.bf16.mxu0 %v4973
        %4976 = vmatpush1.bf16.msra.mxu0 %v4970
        %4977 = vmatprep.subr.bf16.mxu0 0
        %4978 = vmatpush1.bf16.msra.mxu0 0
        %4979 = vmatprep.subr.bf16.mxu0 0
        %4980 = vmatpush1.bf16.msra.mxu0 0
        %4981 = vmatprep.subr.bf16.mxu0 0
        %4982 = vmatpush1.bf16.msra.mxu0 0
        %4983 = vmatprep.subr.bf16.mxu0 0
        %4984 = vmatpush1.bf16.msra.mxu0 0
        %4985 = vmatprep.subr.bf16.mxu0 0
        %4986 = vmatpush1.bf16.msra.mxu0 0
        %4987 = vmatprep.subr.bf16.mxu0 0
        %4988 = vmatpush1.bf16.msra.mxu0 0
        %4989 = vmatprep.subr.bf16.mxu0 0
        %4990 = vmatpush1.bf16.msra.mxu0 0
        %4991 = vmatprep.subr.bf16.mxu0 0
        %4992 = vmatpush1.bf16.msra.mxu0 0
        %4993 = vmatprep.subr.bf16.mxu0 0
        %4994 = vmatpush1.bf16.msra.mxu0 0
        %4995 = vmatprep.subr.bf16.mxu0 0
        %4996 = vmatpush1.bf16.msra.mxu0 0
        %4997 = vmatprep.subr.bf16.mxu0 0
        %4998 = vmatpush1.bf16.msra.mxu0 0
        %4999 = vmatprep.subr.bf16.mxu0 0
        %5000 = vmatpush1.bf16.msra.mxu0 0
        %5001 = vmatprep.subr.bf16.mxu0 0
        %5002 = vmatpush1.bf16.msra.mxu0 0
        %5003 = vmatprep.subr.bf16.mxu0 0
        %5004 = vmatpush1.bf16.msra.mxu0 0
        %5005 = vmatprep.subr.bf16.mxu0 0
        %5006 = vmatpush1.bf16.msra.mxu0 0
        %5007 = vmatprep.mubr.bf16.mxu0 0
        %5008 = vmatmul.mubr.bf16.gmra.mrb[0].mxu0 %v762
        %v5009 = vpop.f32.mrb[0].mxu0
        %v5010 = vadd.f32 %v4642, %v5009
        %v5011 = vpop.f32.mrb[0].mxu0
        %v5012 = vadd.f32 %v4644, %v5011
        %v5013 = vpop.f32.mrb[0].mxu0
        %v5014 = vadd.f32 %v4646, %v5013
        %v5015 = vpop.f32.mrb[0].mxu0
        %v5016 = vadd.f32 %v4648, %v5015
        %5017 = vmatprep.mubr.bf16.mxu0 0
        %5018 = vmatmul.mubr.bf16.gmra.mrb[0].mxu0 %v765
        %v5019 = vpop.f32.mrb[0].mxu0
        %v5020 = vadd.f32 %v4652, %v5019
        %v5021 = vpop.f32.mrb[0].mxu0
        %v5022 = vadd.f32 %v4654, %v5021
        %v5023 = vpop.f32.mrb[0].mxu0
        %v5024 = vadd.f32 %v4656, %v5023
        %v5025 = vpop.f32.mrb[0].mxu0
        %v5026 = vadd.f32 %v4658, %v5025
        %5027 = vmatprep.mubr.bf16.mxu0 0
        %5028 = vmatmul.mubr.bf16.gmra.mrb[0].mxu0 %v768
        %v5029 = vpop.f32.mrb[0].mxu0
        %v5030 = vadd.f32 %v4662, %v5029
        %v5031 = vpop.f32.mrb[0].mxu0
        %v5032 = vadd.f32 %v4664, %v5031
        %v5033 = vpop.f32.mrb[0].mxu0
        %v5034 = vadd.f32 %v4666, %v5033
        %v5035 = vpop.f32.mrb[0].mxu0
        %v5036 = vadd.f32 %v4668, %v5035
        %5037 = vmatprep.mubr.bf16.mxu0 0
        %5038 = vmatmul.mubr.bf16.gmra.mrb[0].mxu0 %v771
        %v5039 = vpop.f32.mrb[0].mxu0
        %v5040 = vadd.f32 %v4672, %v5039
        %v5041 = vpop.f32.mrb[0].mxu0
        %v5042 = vadd.f32 %v4674, %v5041
        %v5043 = vpop.f32.mrb[0].mxu0
        %v5044 = vadd.f32 %v4676, %v5043
        %v5045 = vpop.f32.mrb[0].mxu0
        %v5046 = vadd.f32 %v4678, %v5045
        %5047 = vmatprep.mubr.bf16.mxu0 0
        %5048 = vmatmul.mubr.bf16.gmra.mrb[0].mxu0 %v774
        %v5049 = vpop.f32.mrb[0].mxu0
        %v5050 = vadd.f32 %v4682, %v5049
        %v5051 = vpop.f32.mrb[0].mxu0
        %v5052 = vadd.f32 %v4684, %v5051
        %v5053 = vpop.f32.mrb[0].mxu0
        %v5054 = vadd.f32 %v4686, %v5053
        %v5055 = vpop.f32.mrb[0].mxu0
        %v5056 = vadd.f32 %v4688, %v5055
        %5057 = vmatprep.mubr.bf16.mxu0 0
        %5058 = vmatmul.mubr.bf16.gmra.mrb[0].mxu0 %v777
        %v5059 = vpop.f32.mrb[0].mxu0
        %v5060 = vadd.f32 %v4692, %v5059
        %v5061 = vpop.f32.mrb[0].mxu0
        %v5062 = vadd.f32 %v4694, %v5061
        %v5063 = vpop.f32.mrb[0].mxu0
        %v5064 = vadd.f32 %v4696, %v5063
        %v5065 = vpop.f32.mrb[0].mxu0
        %v5066 = vadd.f32 %v4698, %v5065
        %5067 = vmatprep.mubr.bf16.mxu0 0
        %5068 = vmatmul.mubr.bf16.gmra.mrb[0].mxu0 %v780
        %v5069 = vpop.f32.mrb[0].mxu0
        %v5070 = vadd.f32 %v4702, %v5069
        %v5071 = vpop.f32.mrb[0].mxu0
        %v5072 = vadd.f32 %v4704, %v5071
        %v5073 = vpop.f32.mrb[0].mxu0
        %v5074 = vadd.f32 %v4706, %v5073
        %v5075 = vpop.f32.mrb[0].mxu0
        %v5076 = vadd.f32 %v4708, %v5075
        %5077 = vmatprep.mubr.bf16.mxu0 0
        %5078 = vmatmul.mubr.bf16.gmra.mrb[0].mxu0 %v783
        %v5079 = vpop.f32.mrb[0].mxu0
        %v5080 = vadd.f32 %v4712, %v5079
        %v5081 = vpop.f32.mrb[0].mxu0
        %v5082 = vadd.f32 %v4714, %v5081
        %v5083 = vpop.f32.mrb[0].mxu0
        %v5084 = vadd.f32 %v4716, %v5083
        %v5085 = vpop.f32.mrb[0].mxu0
        %v5086 = vadd.f32 %v4718, %v5085
        %5087 = vmatprep.mubr.bf16.mxu0 0
        %5088 = vmatmul.mubr.bf16.gmra.mrb[0].mxu0 %v786
        %v5089 = vpop.f32.mrb[0].mxu0
        %v5090 = vadd.f32 %v4722, %v5089
        %v5091 = vpop.f32.mrb[0].mxu0
        %v5092 = vadd.f32 %v4724, %v5091
        %v5093 = vpop.f32.mrb[0].mxu0
        %v5094 = vadd.f32 %v4726, %v5093
        %v5095 = vpop.f32.mrb[0].mxu0
        %v5096 = vadd.f32 %v4728, %v5095
        %5097 = vmatprep.mubr.bf16.mxu0 0
        %5098 = vmatmul.mubr.bf16.gmra.mrb[0].mxu0 %v789
        %v5099 = vpop.f32.mrb[0].mxu0
        %v5100 = vadd.f32 %v4732, %v5099
        %v5101 = vpop.f32.mrb[0].mxu0
        %v5102 = vadd.f32 %v4734, %v5101
        %v5103 = vpop.f32.mrb[0].mxu0
        %v5104 = vadd.f32 %v4736, %v5103
        %v5105 = vpop.f32.mrb[0].mxu0
        %v5106 = vadd.f32 %v4738, %v5105
        %5107 = vmatprep.mubr.bf16.mxu0 0
        %5108 = vmatmul.mubr.bf16.gmra.mrb[0].mxu0 %v792
        %v5109 = vpop.f32.mrb[0].mxu0
        %v5110 = vadd.f32 %v4742, %v5109
        %v5111 = vpop.f32.mrb[0].mxu0
        %v5112 = vadd.f32 %v4744, %v5111
        %v5113 = vpop.f32.mrb[0].mxu0
        %v5114 = vadd.f32 %v4746, %v5113
        %v5115 = vpop.f32.mrb[0].mxu0
        %v5116 = vadd.f32 %v4748, %v5115
        %5117 = vmatprep.mubr.bf16.mxu0 0
        %5118 = vmatmul.mubr.bf16.gmra.mrb[0].mxu0 %v795
        %v5119 = vpop.f32.mrb[0].mxu0
        %v5120 = vadd.f32 %v4752, %v5119
        %v5121 = vpop.f32.mrb[0].mxu0
        %v5122 = vadd.f32 %v4754, %v5121
        %v5123 = vpop.f32.mrb[0].mxu0
        %v5124 = vadd.f32 %v4756, %v5123
        %v5125 = vpop.f32.mrb[0].mxu0
        %v5126 = vadd.f32 %v4758, %v5125
        %5127 = vmatprep.mubr.bf16.mxu0 0
        %5128 = vmatmul.mubr.bf16.gmra.mrb[0].mxu0 %v798
        %v5129 = vpop.f32.mrb[0].mxu0
        %v5130 = vadd.f32 %v4762, %v5129
        %v5131 = vpop.f32.mrb[0].mxu0
        %v5132 = vadd.f32 %v4764, %v5131
        %v5133 = vpop.f32.mrb[0].mxu0
        %v5134 = vadd.f32 %v4766, %v5133
        %v5135 = vpop.f32.mrb[0].mxu0
        %v5136 = vadd.f32 %v4768, %v5135
        %5137 = vmatprep.mubr.bf16.mxu0 0
        %5138 = vmatmul.mubr.bf16.gmra.mrb[0].mxu0 %v801
        %v5139 = vpop.f32.mrb[0].mxu0
        %v5140 = vadd.f32 %v4772, %v5139
        %v5141 = vpop.f32.mrb[0].mxu0
        %v5142 = vadd.f32 %v4774, %v5141
        %v5143 = vpop.f32.mrb[0].mxu0
        %v5144 = vadd.f32 %v4776, %v5143
        %v5145 = vpop.f32.mrb[0].mxu0
        %v5146 = vadd.f32 %v4778, %v5145
        %5147 = vmatprep.mubr.bf16.mxu0 0
        %5148 = vmatmul.mubr.bf16.gmra.mrb[0].mxu0 %v804
        %v5149 = vpop.f32.mrb[0].mxu0
        %v5150 = vadd.f32 %v4782, %v5149
        %v5151 = vpop.f32.mrb[0].mxu0
        %v5152 = vadd.f32 %v4784, %v5151
        %v5153 = vpop.f32.mrb[0].mxu0
        %v5154 = vadd.f32 %v4786, %v5153
        %v5155 = vpop.f32.mrb[0].mxu0
        %v5156 = vadd.f32 %v4788, %v5155
        %5157 = vmatprep.mubr.bf16.mxu0 0
        %5158 = vmatmul.mubr.bf16.gmra.mrb[0].mxu0 %v807
        %v5159 = vpop.f32.mrb[0].mxu0
        %v5160 = vadd.f32 %v4792, %v5159
        %v5161 = vpop.f32.mrb[0].mxu0
        %v5162 = vadd.f32 %v4794, %v5161
        %v5163 = vpop.f32.mrb[0].mxu0
        %v5164 = vadd.f32 %v4796, %v5163
        %v5165 = vpop.f32.mrb[0].mxu0
        %v5166 = vadd.f32 %v4798, %v5165
        %5167 = vmatprep.mubr.bf16.mxu0 0
        %5168 = vmatmul.mubr.bf16.gmra.mrb[0].mxu0 %v810
        %v5169 = vpop.f32.mrb[0].mxu0
        %v5170 = vadd.f32 %v4802, %v5169
        %v5171 = vpop.f32.mrb[0].mxu0
        %v5172 = vadd.f32 %v4804, %v5171
        %v5173 = vpop.f32.mrb[0].mxu0
        %v5174 = vadd.f32 %v4806, %v5173
        %v5175 = vpop.f32.mrb[0].mxu0
        %v5176 = vadd.f32 %v4808, %v5175
        %5177 = vmatprep.mubr.bf16.mxu0 0
        %5178 = vmatmul.mubr.bf16.gmra.mrb[0].mxu0 %v813
        %v5179 = vpop.f32.mrb[0].mxu0
        %v5180 = vadd.f32 %v4812, %v5179
        %v5181 = vpop.f32.mrb[0].mxu0
        %v5182 = vadd.f32 %v4814, %v5181
        %v5183 = vpop.f32.mrb[0].mxu0
        %v5184 = vadd.f32 %v4816, %v5183
        %v5185 = vpop.f32.mrb[0].mxu0
        %v5186 = vadd.f32 %v4818, %v5185
        %5187 = vmatprep.mubr.bf16.mxu0 0
        %5188 = vmatmul.mubr.bf16.gmra.mrb[0].mxu0 %v816
        %v5189 = vpop.f32.mrb[0].mxu0
        %v5190 = vadd.f32 %v4822, %v5189
        %v5191 = vpop.f32.mrb[0].mxu0
        %v5192 = vadd.f32 %v4824, %v5191
        %v5193 = vpop.f32.mrb[0].mxu0
        %v5194 = vadd.f32 %v4826, %v5193
        %v5195 = vpop.f32.mrb[0].mxu0
        %v5196 = vadd.f32 %v4828, %v5195
        %5197 = vmatprep.mubr.bf16.mxu0 0
        %5198 = vmatmul.mubr.bf16.gmra.mrb[0].mxu0 %v819
        %v5199 = vpop.f32.mrb[0].mxu0
        %v5200 = vadd.f32 %v4832, %v5199
        %v5201 = vpop.f32.mrb[0].mxu0
        %v5202 = vadd.f32 %v4834, %v5201
        %v5203 = vpop.f32.mrb[0].mxu0
        %v5204 = vadd.f32 %v4836, %v5203
        %v5205 = vpop.f32.mrb[0].mxu0
        %v5206 = vadd.f32 %v4838, %v5205
        %5207 = vmatprep.mubr.bf16.mxu0 0
        %5208 = vmatmul.mubr.bf16.gmra.mrb[0].mxu0 %v822
        %v5209 = vpop.f32.mrb[0].mxu0
        %v5210 = vadd.f32 %v4842, %v5209
        %v5211 = vpop.f32.mrb[0].mxu0
        %v5212 = vadd.f32 %v4844, %v5211
        %v5213 = vpop.f32.mrb[0].mxu0
        %v5214 = vadd.f32 %v4846, %v5213
        %v5215 = vpop.f32.mrb[0].mxu0
        %v5216 = vadd.f32 %v4848, %v5215
        %5217 = vmatprep.mubr.bf16.mxu0 0
        %5218 = vmatmul.mubr.bf16.gmra.mrb[0].mxu0 %v825
        %v5219 = vpop.f32.mrb[0].mxu0
        %v5220 = vadd.f32 %v4852, %v5219
        %v5221 = vpop.f32.mrb[0].mxu0
        %v5222 = vadd.f32 %v4854, %v5221
        %v5223 = vpop.f32.mrb[0].mxu0
        %v5224 = vadd.f32 %v4856, %v5223
        %v5225 = vpop.f32.mrb[0].mxu0
        %v5226 = vadd.f32 %v4858, %v5225
        %5227 = vmatprep.mubr.bf16.mxu0 0
        %5228 = vmatmul.mubr.bf16.gmra.mrb[0].mxu0 %v828
        %v5229 = vpop.f32.mrb[0].mxu0
        %v5230 = vadd.f32 %v4862, %v5229
        %v5231 = vpop.f32.mrb[0].mxu0
        %v5232 = vadd.f32 %v4864, %v5231
        %v5233 = vpop.f32.mrb[0].mxu0
        %v5234 = vadd.f32 %v4866, %v5233
        %v5235 = vpop.f32.mrb[0].mxu0
        %v5236 = vadd.f32 %v4868, %v5235
        %5237 = vmatprep.mubr.bf16.mxu0 0
        %5238 = vmatmul.mubr.bf16.gmra.mrb[0].mxu0 %v831
        %v5239 = vpop.f32.mrb[0].mxu0
        %v5240 = vadd.f32 %v4872, %v5239
        %v5241 = vpop.f32.mrb[0].mxu0
        %v5242 = vadd.f32 %v4874, %v5241
        %v5243 = vpop.f32.mrb[0].mxu0
        %v5244 = vadd.f32 %v4876, %v5243
        %v5245 = vpop.f32.mrb[0].mxu0
        %v5246 = vadd.f32 %v4878, %v5245
        %5247 = vmatprep.mubr.bf16.mxu0 0
        %5248 = vmatmul.mubr.bf16.gmra.mrb[0].mxu0 %v834
        %v5249 = vpop.f32.mrb[0].mxu0
        %v5250 = vadd.f32 %v4882, %v5249
        %v5251 = vpop.f32.mrb[0].mxu0
        %v5252 = vadd.f32 %v4884, %v5251
        %v5253 = vpop.f32.mrb[0].mxu0
        %v5254 = vadd.f32 %v4886, %v5253
        %v5255 = vpop.f32.mrb[0].mxu0
        %v5256 = vadd.f32 %v4888, %v5255
        %5257 = vmatprep.mubr.bf16.mxu0 0
        %5258 = vmatmul.mubr.bf16.gmra.mrb[0].mxu0 %v837
        %v5259 = vpop.f32.mrb[0].mxu0
        %v5260 = vadd.f32 %v4892, %v5259
        %v5261 = vpop.f32.mrb[0].mxu0
        %v5262 = vadd.f32 %v4894, %v5261
        %v5263 = vpop.f32.mrb[0].mxu0
        %v5264 = vadd.f32 %v4896, %v5263
        %v5265 = vpop.f32.mrb[0].mxu0
        %v5266 = vadd.f32 %v4898, %v5265
        %5267 = vmatprep.mubr.bf16.mxu0 0
        %5268 = vmatmul.mubr.bf16.gmra.mrb[0].mxu0 %v840
        %v5269 = vpop.f32.mrb[0].mxu0
        %v5270 = vadd.f32 %v4902, %v5269
        %v5271 = vpop.f32.mrb[0].mxu0
        %v5272 = vadd.f32 %v4904, %v5271
        %v5273 = vpop.f32.mrb[0].mxu0
        %v5274 = vadd.f32 %v4906, %v5273
        %v5275 = vpop.f32.mrb[0].mxu0
        %v5276 = vadd.f32 %v4908, %v5275
        %5277 = vmatprep.mubr.bf16.mxu0 0
        %5278 = vmatmul.mubr.bf16.gmra.mrb[0].mxu0 %v843
        %v5279 = vpop.f32.mrb[0].mxu0
        %v5280 = vadd.f32 %v4912, %v5279
        %v5281 = vpop.f32.mrb[0].mxu0
        %v5282 = vadd.f32 %v4914, %v5281
        %v5283 = vpop.f32.mrb[0].mxu0
        %v5284 = vadd.f32 %v4916, %v5283
        %v5285 = vpop.f32.mrb[0].mxu0
        %v5286 = vadd.f32 %v4918, %v5285
        %5287 = vmatprep.mubr.bf16.mxu0 0
        %5288 = vmatmul.mubr.bf16.gmra.mrb[0].mxu0 %v846
        %v5289 = vpop.f32.mrb[0].mxu0
        %v5290 = vadd.f32 %v4922, %v5289
        %v5291 = vpop.f32.mrb[0].mxu0
        %v5292 = vadd.f32 %v4924, %v5291
        %v5293 = vpop.f32.mrb[0].mxu0
        %v5294 = vadd.f32 %v4926, %v5293
        %v5295 = vpop.f32.mrb[0].mxu0
        %v5296 = vadd.f32 %v4928, %v5295
        %5297 = vmatprep.mubr.bf16.mxu0 0
        %5298 = vmatmul.mubr.bf16.gmra.mrb[0].mxu0 %v849
        %v5299 = vpop.f32.mrb[0].mxu0
        %v5300 = vadd.f32 %v4932, %v5299
        %v5301 = vpop.f32.mrb[0].mxu0
        %v5302 = vadd.f32 %v4934, %v5301
        %v5303 = vpop.f32.mrb[0].mxu0
        %v5304 = vadd.f32 %v4936, %v5303
        %v5305 = vpop.f32.mrb[0].mxu0
        %v5306 = vadd.f32 %v4938, %v5305
        %5307 = vmatprep.mubr.bf16.mxu0 0
        %5308 = vmatmul.mubr.bf16.gmra.mrb[0].mxu0 %v852
        %v5309 = vpop.f32.mrb[0].mxu0
        %v5310 = vadd.f32 %v4942, %v5309
        %v5311 = vpop.f32.mrb[0].mxu0
        %v5312 = vadd.f32 %v4944, %v5311
        %v5313 = vpop.f32.mrb[0].mxu0
        %v5314 = vadd.f32 %v4946, %v5313
        %v5315 = vpop.f32.mrb[0].mxu0
        %v5316 = vadd.f32 %v4948, %v5315
        %5317 = vmatprep.mubr.bf16.mxu0 0
        %5318 = vmatmul.mubr.bf16.gmra.mrb[0].mxu0 %v855
        %v5319 = vpop.f32.mrb[0].mxu0
        %v5320 = vadd.f32 %v4952, %v5319
        %v5321 = vpop.f32.mrb[0].mxu0
        %v5322 = vadd.f32 %v4954, %v5321
        %v5323 = vpop.f32.mrb[0].mxu0
        %v5324 = vadd.f32 %v4956, %v5323
        %v5325 = vpop.f32.mrb[0].mxu0
        %v5326 = vadd.f32 %v4958, %v5325
        %5327 = vdwg.mxu0
        %v5328 = vld [vmem:[%s8] sm:$0x3]
        %v5330 = vlaneseq
        %v5331 = vshrl.u32 %v5330, 7
        %v5332 = vsub.s32 0, %v5331
        %v5333 = vrot.slane %v5328, %v5332
        %v5334 = vlaneseq
        %v5335 = vshrl.u32 %v5334, 7
        %v5336 = vsub.s32 1, %v5335
        %v5337 = vrot.slane %v5328, %v5336
        %v5340 = vadd.f32 %v5010, %v5333
        %v5341 = vadd.f32 %v5012, %v5337
        %v5342 = vadd.f32 %v5014, %v5333
        %v5343 = vadd.f32 %v5016, %v5337
        %v5344 = vadd.f32 %v5020, %v5333
        %v5345 = vadd.f32 %v5022, %v5337
        %v5346 = vadd.f32 %v5024, %v5333
        %v5347 = vadd.f32 %v5026, %v5337
        %v5348 = vadd.f32 %v5030, %v5333
        %v5349 = vadd.f32 %v5032, %v5337
        %v5350 = vadd.f32 %v5034, %v5333
        %v5351 = vadd.f32 %v5036, %v5337
        %v5352 = vadd.f32 %v5040, %v5333
        %v5353 = vadd.f32 %v5042, %v5337
        %v5354 = vadd.f32 %v5044, %v5333
        %v5355 = vadd.f32 %v5046, %v5337
        %v5356 = vadd.f32 %v5050, %v5333
        %v5357 = vadd.f32 %v5052, %v5337
        %v5358 = vadd.f32 %v5054, %v5333
        %v5359 = vadd.f32 %v5056, %v5337
        %v5360 = vadd.f32 %v5060, %v5333
        %v5361 = vadd.f32 %v5062, %v5337
        %v5362 = vadd.f32 %v5064, %v5333
        %v5363 = vadd.f32 %v5066, %v5337
        %v5364 = vadd.f32 %v5070, %v5333
        %v5365 = vadd.f32 %v5072, %v5337
        %v5366 = vadd.f32 %v5074, %v5333
        %v5367 = vadd.f32 %v5076, %v5337
        %v5368 = vadd.f32 %v5080, %v5333
        %v5369 = vadd.f32 %v5082, %v5337
        %v5370 = vadd.f32 %v5084, %v5333
        %v5371 = vadd.f32 %v5086, %v5337
        %v5372 = vadd.f32 %v5090, %v5333
        %v5373 = vadd.f32 %v5092, %v5337
        %v5374 = vadd.f32 %v5094, %v5333
        %v5375 = vadd.f32 %v5096, %v5337
        %v5376 = vadd.f32 %v5100, %v5333
        %v5377 = vadd.f32 %v5102, %v5337
        %v5378 = vadd.f32 %v5104, %v5333
        %v5379 = vadd.f32 %v5106, %v5337
        %v5380 = vadd.f32 %v5110, %v5333
        %v5381 = vadd.f32 %v5112, %v5337
        %v5382 = vadd.f32 %v5114, %v5333
        %v5383 = vadd.f32 %v5116, %v5337
        %v5384 = vadd.f32 %v5120, %v5333
        %v5385 = vadd.f32 %v5122, %v5337
        %v5386 = vadd.f32 %v5124, %v5333
        %v5387 = vadd.f32 %v5126, %v5337
        %v5388 = vadd.f32 %v5130, %v5333
        %v5389 = vadd.f32 %v5132, %v5337
        %v5390 = vadd.f32 %v5134, %v5333
        %v5391 = vadd.f32 %v5136, %v5337
        %v5392 = vadd.f32 %v5140, %v5333
        %v5393 = vadd.f32 %v5142, %v5337
        %v5394 = vadd.f32 %v5144, %v5333
        %v5395 = vadd.f32 %v5146, %v5337
        %v5396 = vadd.f32 %v5150, %v5333
        %v5397 = vadd.f32 %v5152, %v5337
        %v5398 = vadd.f32 %v5154, %v5333
        %v5399 = vadd.f32 %v5156, %v5337
        %v5400 = vadd.f32 %v5160, %v5333
        %v5401 = vadd.f32 %v5162, %v5337
        %v5402 = vadd.f32 %v5164, %v5333
        %v5403 = vadd.f32 %v5166, %v5337
        %v5404 = vadd.f32 %v5170, %v5333
        %v5405 = vadd.f32 %v5172, %v5337
        %v5406 = vadd.f32 %v5174, %v5333
        %v5407 = vadd.f32 %v5176, %v5337
        %v5408 = vadd.f32 %v5180, %v5333
        %v5409 = vadd.f32 %v5182, %v5337
        %v5410 = vadd.f32 %v5184, %v5333
        %v5411 = vadd.f32 %v5186, %v5337
        %v5412 = vadd.f32 %v5190, %v5333
        %v5413 = vadd.f32 %v5192, %v5337
        %v5414 = vadd.f32 %v5194, %v5333
        %v5415 = vadd.f32 %v5196, %v5337
        %v5416 = vadd.f32 %v5200, %v5333
        %v5417 = vadd.f32 %v5202, %v5337
        %v5418 = vadd.f32 %v5204, %v5333
        %v5419 = vadd.f32 %v5206, %v5337
        %v5420 = vadd.f32 %v5210, %v5333
        %v5421 = vadd.f32 %v5212, %v5337
        %v5422 = vadd.f32 %v5214, %v5333
        %v5423 = vadd.f32 %v5216, %v5337
        %v5424 = vadd.f32 %v5220, %v5333
        %v5425 = vadd.f32 %v5222, %v5337
        %v5426 = vadd.f32 %v5224, %v5333
        %v5427 = vadd.f32 %v5226, %v5337
        %v5428 = vadd.f32 %v5230, %v5333
        %v5429 = vadd.f32 %v5232, %v5337
        %v5430 = vadd.f32 %v5234, %v5333
        %v5431 = vadd.f32 %v5236, %v5337
        %v5432 = vadd.f32 %v5240, %v5333
        %v5433 = vadd.f32 %v5242, %v5337
        %v5434 = vadd.f32 %v5244, %v5333
        %v5435 = vadd.f32 %v5246, %v5337
        %v5436 = vadd.f32 %v5250, %v5333
        %v5437 = vadd.f32 %v5252, %v5337
        %v5438 = vadd.f32 %v5254, %v5333
        %v5439 = vadd.f32 %v5256, %v5337
        %v5440 = vadd.f32 %v5260, %v5333
        %v5441 = vadd.f32 %v5262, %v5337
        %v5442 = vadd.f32 %v5264, %v5333
        %v5443 = vadd.f32 %v5266, %v5337
        %v5444 = vadd.f32 %v5270, %v5333
        %v5445 = vadd.f32 %v5272, %v5337
        %v5446 = vadd.f32 %v5274, %v5333
        %v5447 = vadd.f32 %v5276, %v5337
        %v5448 = vadd.f32 %v5280, %v5333
        %v5449 = vadd.f32 %v5282, %v5337
        %v5450 = vadd.f32 %v5284, %v5333
        %v5451 = vadd.f32 %v5286, %v5337
        %v5452 = vadd.f32 %v5290, %v5333
        %v5453 = vadd.f32 %v5292, %v5337
        %v5454 = vadd.f32 %v5294, %v5333
        %v5455 = vadd.f32 %v5296, %v5337
        %v5456 = vadd.f32 %v5300, %v5333
        %v5457 = vadd.f32 %v5302, %v5337
        %v5458 = vadd.f32 %v5304, %v5333
        %v5459 = vadd.f32 %v5306, %v5337
        %v5460 = vadd.f32 %v5310, %v5333
        %v5461 = vadd.f32 %v5312, %v5337
        %v5462 = vadd.f32 %v5314, %v5333
        %v5463 = vadd.f32 %v5316, %v5337
        %v5464 = vadd.f32 %v5320, %v5333
        %v5465 = vadd.f32 %v5322, %v5337
        %v5466 = vadd.f32 %v5324, %v5333
        %v5467 = vadd.f32 %v5326, %v5337
        %v5468 = vmax.f32 %v5340, 0.0
        %v5469 = vmax.f32 %v5341, 0.0
        %v5470 = vmax.f32 %v5342, 0.0
        %v5471 = vmax.f32 %v5343, 0.0
        %v5472 = vmax.f32 %v5344, 0.0
        %v5473 = vmax.f32 %v5345, 0.0
        %v5474 = vmax.f32 %v5346, 0.0
        %v5475 = vmax.f32 %v5347, 0.0
        %v5476 = vmax.f32 %v5348, 0.0
        %v5477 = vmax.f32 %v5349, 0.0
        %v5478 = vmax.f32 %v5350, 0.0
        %v5479 = vmax.f32 %v5351, 0.0
        %v5480 = vmax.f32 %v5352, 0.0
        %v5481 = vmax.f32 %v5353, 0.0
        %v5482 = vmax.f32 %v5354, 0.0
        %v5483 = vmax.f32 %v5355, 0.0
        %v5484 = vmax.f32 %v5356, 0.0
        %v5485 = vmax.f32 %v5357, 0.0
        %v5486 = vmax.f32 %v5358, 0.0
        %v5487 = vmax.f32 %v5359, 0.0
        %v5488 = vmax.f32 %v5360, 0.0
        %v5489 = vmax.f32 %v5361, 0.0
        %v5490 = vmax.f32 %v5362, 0.0
        %v5491 = vmax.f32 %v5363, 0.0
        %v5492 = vmax.f32 %v5364, 0.0
        %v5493 = vmax.f32 %v5365, 0.0
        %v5494 = vmax.f32 %v5366, 0.0
        %v5495 = vmax.f32 %v5367, 0.0
        %v5496 = vmax.f32 %v5368, 0.0
        %v5497 = vmax.f32 %v5369, 0.0
        %v5498 = vmax.f32 %v5370, 0.0
        %v5499 = vmax.f32 %v5371, 0.0
        %v5500 = vmax.f32 %v5372, 0.0
        %v5501 = vmax.f32 %v5373, 0.0
        %v5502 = vmax.f32 %v5374, 0.0
        %v5503 = vmax.f32 %v5375, 0.0
        %v5504 = vmax.f32 %v5376, 0.0
        %v5505 = vmax.f32 %v5377, 0.0
        %v5506 = vmax.f32 %v5378, 0.0
        %v5507 = vmax.f32 %v5379, 0.0
        %v5508 = vmax.f32 %v5380, 0.0
        %v5509 = vmax.f32 %v5381, 0.0
        %v5510 = vmax.f32 %v5382, 0.0
        %v5511 = vmax.f32 %v5383, 0.0
        %v5512 = vmax.f32 %v5384, 0.0
        %v5513 = vmax.f32 %v5385, 0.0
        %v5514 = vmax.f32 %v5386, 0.0
        %v5515 = vmax.f32 %v5387, 0.0
        %v5516 = vmax.f32 %v5388, 0.0
        %v5517 = vmax.f32 %v5389, 0.0
        %v5518 = vmax.f32 %v5390, 0.0
        %v5519 = vmax.f32 %v5391, 0.0
        %v5520 = vmax.f32 %v5392, 0.0
        %v5521 = vmax.f32 %v5393, 0.0
        %v5522 = vmax.f32 %v5394, 0.0
        %v5523 = vmax.f32 %v5395, 0.0
        %v5524 = vmax.f32 %v5396, 0.0
        %v5525 = vmax.f32 %v5397, 0.0
        %v5526 = vmax.f32 %v5398, 0.0
        %v5527 = vmax.f32 %v5399, 0.0
        %v5528 = vmax.f32 %v5400, 0.0
        %v5529 = vmax.f32 %v5401, 0.0
        %v5530 = vmax.f32 %v5402, 0.0
        %v5531 = vmax.f32 %v5403, 0.0
        %v5532 = vmax.f32 %v5404, 0.0
        %v5533 = vmax.f32 %v5405, 0.0
        %v5534 = vmax.f32 %v5406, 0.0
        %v5535 = vmax.f32 %v5407, 0.0
        %v5536 = vmax.f32 %v5408, 0.0
        %v5537 = vmax.f32 %v5409, 0.0
        %v5538 = vmax.f32 %v5410, 0.0
        %v5539 = vmax.f32 %v5411, 0.0
        %v5540 = vmax.f32 %v5412, 0.0
        %v5541 = vmax.f32 %v5413, 0.0
        %v5542 = vmax.f32 %v5414, 0.0
        %v5543 = vmax.f32 %v5415, 0.0
        %v5544 = vmax.f32 %v5416, 0.0
        %v5545 = vmax.f32 %v5417, 0.0
        %v5546 = vmax.f32 %v5418, 0.0
        %v5547 = vmax.f32 %v5419, 0.0
        %v5548 = vmax.f32 %v5420, 0.0
        %v5549 = vmax.f32 %v5421, 0.0
        %v5550 = vmax.f32 %v5422, 0.0
        %v5551 = vmax.f32 %v5423, 0.0
        %v5552 = vmax.f32 %v5424, 0.0
        %v5553 = vmax.f32 %v5425, 0.0
        %v5554 = vmax.f32 %v5426, 0.0
        %v5555 = vmax.f32 %v5427, 0.0
        %v5556 = vmax.f32 %v5428, 0.0
        %v5557 = vmax.f32 %v5429, 0.0
        %v5558 = vmax.f32 %v5430, 0.0
        %v5559 = vmax.f32 %v5431, 0.0
        %v5560 = vmax.f32 %v5432, 0.0
        %v5561 = vmax.f32 %v5433, 0.0
        %v5562 = vmax.f32 %v5434, 0.0
        %v5563 = vmax.f32 %v5435, 0.0
        %v5564 = vmax.f32 %v5436, 0.0
        %v5565 = vmax.f32 %v5437, 0.0
        %v5566 = vmax.f32 %v5438, 0.0
        %v5567 = vmax.f32 %v5439, 0.0
        %v5568 = vmax.f32 %v5440, 0.0
        %v5569 = vmax.f32 %v5441, 0.0
        %v5570 = vmax.f32 %v5442, 0.0
        %v5571 = vmax.f32 %v5443, 0.0
        %v5572 = vmax.f32 %v5444, 0.0
        %v5573 = vmax.f32 %v5445, 0.0
        %v5574 = vmax.f32 %v5446, 0.0
        %v5575 = vmax.f32 %v5447, 0.0
        %v5576 = vmax.f32 %v5448, 0.0
        %v5577 = vmax.f32 %v5449, 0.0
        %v5578 = vmax.f32 %v5450, 0.0
        %v5579 = vmax.f32 %v5451, 0.0
        %v5580 = vmax.f32 %v5452, 0.0
        %v5581 = vmax.f32 %v5453, 0.0
        %v5582 = vmax.f32 %v5454, 0.0
        %v5583 = vmax.f32 %v5455, 0.0
        %v5584 = vmax.f32 %v5456, 0.0
        %v5585 = vmax.f32 %v5457, 0.0
        %v5586 = vmax.f32 %v5458, 0.0
        %v5587 = vmax.f32 %v5459, 0.0
        %v5588 = vmax.f32 %v5460, 0.0
        %v5589 = vmax.f32 %v5461, 0.0
        %v5590 = vmax.f32 %v5462, 0.0
        %v5591 = vmax.f32 %v5463, 0.0
        %v5592 = vmax.f32 %v5464, 0.0
        %v5593 = vmax.f32 %v5465, 0.0
        %v5594 = vmax.f32 %v5466, 0.0
        %v5595 = vmax.f32 %v5467, 0.0
        %v5596 = vpack.c.bf16 %v5470, %v5468
        %v5597 = vpack.c.bf16 %v5471, %v5469
        %v5598 = vpack.c.bf16 %v5474, %v5472
        %v5599 = vpack.c.bf16 %v5475, %v5473
        %v5600 = vpack.c.bf16 %v5478, %v5476
        %v5601 = vpack.c.bf16 %v5479, %v5477
        %v5602 = vpack.c.bf16 %v5482, %v5480
        %v5603 = vpack.c.bf16 %v5483, %v5481
        %v5604 = vpack.c.bf16 %v5486, %v5484
        %v5605 = vpack.c.bf16 %v5487, %v5485
        %v5606 = vpack.c.bf16 %v5490, %v5488
        %v5607 = vpack.c.bf16 %v5491, %v5489
        %v5608 = vpack.c.bf16 %v5494, %v5492
        %v5609 = vpack.c.bf16 %v5495, %v5493
        %v5610 = vpack.c.bf16 %v5498, %v5496
        %v5611 = vpack.c.bf16 %v5499, %v5497
        %v5612 = vpack.c.bf16 %v5502, %v5500
        %v5613 = vpack.c.bf16 %v5503, %v5501
        %v5614 = vpack.c.bf16 %v5506, %v5504
        %v5615 = vpack.c.bf16 %v5507, %v5505
        %v5616 = vpack.c.bf16 %v5510, %v5508
        %v5617 = vpack.c.bf16 %v5511, %v5509
        %v5618 = vpack.c.bf16 %v5514, %v5512
        %v5619 = vpack.c.bf16 %v5515, %v5513
        %v5620 = vpack.c.bf16 %v5518, %v5516
        %v5621 = vpack.c.bf16 %v5519, %v5517
        %v5622 = vpack.c.bf16 %v5522, %v5520
        %v5623 = vpack.c.bf16 %v5523, %v5521
        %v5624 = vpack.c.bf16 %v5526, %v5524
        %v5625 = vpack.c.bf16 %v5527, %v5525
        %v5626 = vpack.c.bf16 %v5530, %v5528
        %v5627 = vpack.c.bf16 %v5531, %v5529
        %v5628 = vpack.c.bf16 %v5534, %v5532
        %v5629 = vpack.c.bf16 %v5535, %v5533
        %v5630 = vpack.c.bf16 %v5538, %v5536
        %v5631 = vpack.c.bf16 %v5539, %v5537
        %v5632 = vpack.c.bf16 %v5542, %v5540
        %v5633 = vpack.c.bf16 %v5543, %v5541
        %v5634 = vpack.c.bf16 %v5546, %v5544
        %v5635 = vpack.c.bf16 %v5547, %v5545
        %v5636 = vpack.c.bf16 %v5550, %v5548
        %v5637 = vpack.c.bf16 %v5551, %v5549
        %v5638 = vpack.c.bf16 %v5554, %v5552
        %v5639 = vpack.c.bf16 %v5555, %v5553
        %v5640 = vpack.c.bf16 %v5558, %v5556
        %v5641 = vpack.c.bf16 %v5559, %v5557
        %v5642 = vpack.c.bf16 %v5562, %v5560
        %v5643 = vpack.c.bf16 %v5563, %v5561
        %v5644 = vpack.c.bf16 %v5566, %v5564
        %v5645 = vpack.c.bf16 %v5567, %v5565
        %v5646 = vpack.c.bf16 %v5570, %v5568
        %v5647 = vpack.c.bf16 %v5571, %v5569
        %v5648 = vpack.c.bf16 %v5574, %v5572
        %v5649 = vpack.c.bf16 %v5575, %v5573
        %v5650 = vpack.c.bf16 %v5578, %v5576
        %v5651 = vpack.c.bf16 %v5579, %v5577
        %v5652 = vpack.c.bf16 %v5582, %v5580
        %v5653 = vpack.c.bf16 %v5583, %v5581
        %v5654 = vpack.c.bf16 %v5586, %v5584
        %v5655 = vpack.c.bf16 %v5587, %v5585
        %v5656 = vpack.c.bf16 %v5590, %v5588
        %v5657 = vpack.c.bf16 %v5591, %v5589
        %v5658 = vpack.c.bf16 %v5594, %v5592
        %v5659 = vpack.c.bf16 %v5595, %v5593
        %s5660 = scalar_lea.vmem %s4, 1024
        %v5661 = vld [vmem:[%s5660] sm:$0xff]
        %v5662 = vld [vmem:[%s5660 + $0x8] sm:$0xff]
        %v5663 = vld [vmem:[%s5660 + $0x10] sm:$0xff]
        %v5664 = vld [vmem:[%s5660 + $0x18] sm:$0xff]
        %v5665 = vld [vmem:[%s5660 + $0x20] sm:$0xff]
        %v5666 = vld [vmem:[%s5660 + $0x28] sm:$0xff]
        %v5667 = vld [vmem:[%s5660 + $0x30] sm:$0xff]
        %v5668 = vld [vmem:[%s5660 + $0x38] sm:$0xff]
        %v5669 = vld [vmem:[%s5660 + $0x40] sm:$0xff]
        %v5670 = vld [vmem:[%s5660 + $0x48] sm:$0xff]
        %v5671 = vld [vmem:[%s5660 + $0x50] sm:$0xff]
        %v5672 = vld [vmem:[%s5660 + $0x58] sm:$0xff]
        %v5673 = vld [vmem:[%s5660 + $0x60] sm:$0xff]
        %v5674 = vld [vmem:[%s5660 + $0x68] sm:$0xff]
        %v5675 = vld [vmem:[%s5660 + $0x70] sm:$0xff]
        %v5676 = vld [vmem:[%s5660 + $0x78] sm:$0xff]
        %v5677 = vld [vmem:[%s5660 + $0x80] sm:$0xff]
        %v5678 = vld [vmem:[%s5660 + $0x88] sm:$0xff]
        %v5679 = vld [vmem:[%s5660 + $0x90] sm:$0xff]
        %v5680 = vld [vmem:[%s5660 + $0x98] sm:$0xff]
        %v5681 = vld [vmem:[%s5660 + $0xa0] sm:$0xff]
        %v5682 = vld [vmem:[%s5660 + $0xa8] sm:$0xff]
        %v5683 = vld [vmem:[%s5660 + $0xb0] sm:$0xff]
        %v5684 = vld [vmem:[%s5660 + $0xb8] sm:$0xff]
        %v5685 = vld [vmem:[%s5660 + $0xc0] sm:$0xff]
        %v5686 = vld [vmem:[%s5660 + $0xc8] sm:$0xff]
        %v5687 = vld [vmem:[%s5660 + $0xd0] sm:$0xff]
        %v5688 = vld [vmem:[%s5660 + $0xd8] sm:$0xff]
        %v5689 = vld [vmem:[%s5660 + $0xe0] sm:$0xff]
        %v5690 = vld [vmem:[%s5660 + $0xe8] sm:$0xff]
        %v5691 = vld [vmem:[%s5660 + $0xf0] sm:$0xff]
        %v5692 = vld [vmem:[%s5660 + $0xf8] sm:$0xff]
        %s5693 = scalar_lea.vmem %s5, 4
        %v5694 = vld [vmem:[%s5693] ss:$8 sm:$0x3]
        %v5696 = vlaneseq
        %v5697 = vshrl.u32 %v5696, 7
        %v5698 = vsub.s32 0, %v5697
        %v5699 = vrot.slane %v5694, %v5698
        %v5700 = vlaneseq
        %v5701 = vshrl.u32 %v5700, 7
        %v5702 = vsub.s32 1, %v5701
        %v5703 = vrot.slane %v5694, %v5702
        %v5738 = vunpack.c.l.b16 %v5661
        %v5739 = vunpack.c.h.b16 %v5661
        %v5740 = vunpack.c.l.b16 %v5662
        %v5741 = vunpack.c.h.b16 %v5662
        %v5742 = vunpack.c.l.b16 %v5663
        %v5743 = vunpack.c.h.b16 %v5663
        %v5744 = vunpack.c.l.b16 %v5664
        %v5745 = vunpack.c.h.b16 %v5664
        %v5746 = vunpack.c.l.b16 %v5665
        %v5747 = vunpack.c.h.b16 %v5665
        %v5748 = vunpack.c.l.b16 %v5666
        %v5749 = vunpack.c.h.b16 %v5666
        %v5750 = vunpack.c.l.b16 %v5667
        %v5751 = vunpack.c.h.b16 %v5667
        %v5752 = vunpack.c.l.b16 %v5668
        %v5753 = vunpack.c.h.b16 %v5668
        %v5754 = vunpack.c.l.b16 %v5669
        %v5755 = vunpack.c.h.b16 %v5669
        %v5756 = vunpack.c.l.b16 %v5670
        %v5757 = vunpack.c.h.b16 %v5670
        %v5758 = vunpack.c.l.b16 %v5671
        %v5759 = vunpack.c.h.b16 %v5671
        %v5760 = vunpack.c.l.b16 %v5672
        %v5761 = vunpack.c.h.b16 %v5672
        %v5762 = vunpack.c.l.b16 %v5673
        %v5763 = vunpack.c.h.b16 %v5673
        %v5764 = vunpack.c.l.b16 %v5674
        %v5765 = vunpack.c.h.b16 %v5674
        %v5766 = vunpack.c.l.b16 %v5675
        %v5767 = vunpack.c.h.b16 %v5675
        %v5768 = vunpack.c.l.b16 %v5676
        %v5769 = vunpack.c.h.b16 %v5676
        %v5770 = vunpack.c.l.b16 %v5677
        %v5771 = vunpack.c.h.b16 %v5677
        %v5772 = vunpack.c.l.b16 %v5678
        %v5773 = vunpack.c.h.b16 %v5678
        %v5774 = vunpack.c.l.b16 %v5679
        %v5775 = vunpack.c.h.b16 %v5679
        %v5776 = vunpack.c.l.b16 %v5680
        %v5777 = vunpack.c.h.b16 %v5680
        %v5778 = vunpack.c.l.b16 %v5681
        %v5779 = vunpack.c.h.b16 %v5681
        %v5780 = vunpack.c.l.b16 %v5682
        %v5781 = vunpack.c.h.b16 %v5682
        %v5782 = vunpack.c.l.b16 %v5683
        %v5783 = vunpack.c.h.b16 %v5683
        %v5784 = vunpack.c.l.b16 %v5684
        %v5785 = vunpack.c.h.b16 %v5684
        %v5786 = vunpack.c.l.b16 %v5685
        %v5787 = vunpack.c.h.b16 %v5685
        %v5788 = vunpack.c.l.b16 %v5686
        %v5789 = vunpack.c.h.b16 %v5686
        %v5790 = vunpack.c.l.b16 %v5687
        %v5791 = vunpack.c.h.b16 %v5687
        %v5792 = vunpack.c.l.b16 %v5688
        %v5793 = vunpack.c.h.b16 %v5688
        %v5794 = vunpack.c.l.b16 %v5689
        %v5795 = vunpack.c.h.b16 %v5689
        %v5796 = vunpack.c.l.b16 %v5690
        %v5797 = vunpack.c.h.b16 %v5690
        %v5798 = vunpack.c.l.b16 %v5691
        %v5799 = vunpack.c.h.b16 %v5691
        %v5800 = vunpack.c.l.b16 %v5692
        %v5801 = vunpack.c.h.b16 %v5692
        %v5802 = vpack.c.b16 %v5740, %v5738
        %v5803 = vpack.c.b16 %v5741, %v5739
        %v5804 = vpack.c.b16 %v5744, %v5742
        %v5805 = vpack.c.b16 %v5745, %v5743
        %v5806 = vpack.c.b16 %v5748, %v5746
        %v5807 = vpack.c.b16 %v5749, %v5747
        %v5808 = vpack.c.b16 %v5752, %v5750
        %v5809 = vpack.c.b16 %v5753, %v5751
        %v5810 = vpack.c.b16 %v5756, %v5754
        %v5811 = vpack.c.b16 %v5757, %v5755
        %v5812 = vpack.c.b16 %v5760, %v5758
        %v5813 = vpack.c.b16 %v5761, %v5759
        %v5814 = vpack.c.b16 %v5764, %v5762
        %v5815 = vpack.c.b16 %v5765, %v5763
        %v5816 = vpack.c.b16 %v5768, %v5766
        %v5817 = vpack.c.b16 %v5769, %v5767
        %v5818 = vpack.c.b16 %v5772, %v5770
        %v5819 = vpack.c.b16 %v5773, %v5771
        %v5820 = vpack.c.b16 %v5776, %v5774
        %v5821 = vpack.c.b16 %v5777, %v5775
        %v5822 = vpack.c.b16 %v5780, %v5778
        %v5823 = vpack.c.b16 %v5781, %v5779
        %v5824 = vpack.c.b16 %v5784, %v5782
        %v5825 = vpack.c.b16 %v5785, %v5783
        %v5826 = vpack.c.b16 %v5788, %v5786
        %v5827 = vpack.c.b16 %v5789, %v5787
        %v5828 = vpack.c.b16 %v5792, %v5790
        %v5829 = vpack.c.b16 %v5793, %v5791
        %v5830 = vpack.c.b16 %v5796, %v5794
        %v5831 = vpack.c.b16 %v5797, %v5795
        %v5832 = vpack.c.b16 %v5800, %v5798
        %v5833 = vpack.c.b16 %v5801, %v5799
        %5866 = vmatprep.subr.bf16.mxu0 %v5803
        %5867 = vmatpush1.bf16.msra.mxu0 %v5802
        %5868 = vmatprep.subr.bf16.mxu0 %v5805
        %5869 = vmatpush1.bf16.msra.mxu0 %v5804
        %5870 = vmatprep.subr.bf16.mxu0 %v5807
        %5871 = vmatpush1.bf16.msra.mxu0 %v5806
        %5872 = vmatprep.subr.bf16.mxu0 %v5809
        %5873 = vmatpush1.bf16.msra.mxu0 %v5808
        %5874 = vmatprep.subr.bf16.mxu0 %v5811
        %5875 = vmatpush1.bf16.msra.mxu0 %v5810
        %5876 = vmatprep.subr.bf16.mxu0 %v5813
        %5877 = vmatpush1.bf16.msra.mxu0 %v5812
        %5878 = vmatprep.subr.bf16.mxu0 %v5815
        %5879 = vmatpush1.bf16.msra.mxu0 %v5814
        %5880 = vmatprep.subr.bf16.mxu0 %v5817
        %5881 = vmatpush1.bf16.msra.mxu0 %v5816
        %5882 = vmatprep.subr.bf16.mxu0 %v5819
        %5883 = vmatpush1.bf16.msra.mxu0 %v5818
        %5884 = vmatprep.subr.bf16.mxu0 %v5821
        %5885 = vmatpush1.bf16.msra.mxu0 %v5820
        %5886 = vmatprep.subr.bf16.mxu0 %v5823
        %5887 = vmatpush1.bf16.msra.mxu0 %v5822
        %5888 = vmatprep.subr.bf16.mxu0 %v5825
        %5889 = vmatpush1.bf16.msra.mxu0 %v5824
        %5890 = vmatprep.subr.bf16.mxu0 %v5827
        %5891 = vmatpush1.bf16.msra.mxu0 %v5826
        %5892 = vmatprep.subr.bf16.mxu0 %v5829
        %5893 = vmatpush1.bf16.msra.mxu0 %v5828
        %5894 = vmatprep.subr.bf16.mxu0 %v5831
        %5895 = vmatpush1.bf16.msra.mxu0 %v5830
        %5896 = vmatprep.subr.bf16.mxu0 %v5833
        %5897 = vmatpush1.bf16.msra.mxu0 %v5832
        %5898 = vmatprep.mubr.bf16.mxu0 %v5597
        %5899 = vmatmul.mubr.bf16.gmra.mrb[0].mxu0 %v5596
        %v5900 = vpop.f32.mrb[0].mxu0
        %v5901 = vadd.f32 %v5699, %v5900
        %v5902 = vpop.f32.mrb[0].mxu0
        %v5903 = vadd.f32 %v5703, %v5902
        %v5904 = vpop.f32.mrb[0].mxu0
        %v5905 = vadd.f32 %v5699, %v5904
        %v5906 = vpop.f32.mrb[0].mxu0
        %v5907 = vadd.f32 %v5703, %v5906
        %5908 = vmatprep.mubr.bf16.mxu0 %v5599
        %5909 = vmatmul.mubr.bf16.gmra.mrb[0].mxu0 %v5598
        %v5910 = vpop.f32.mrb[0].mxu0
        %v5911 = vadd.f32 %v5699, %v5910
        %v5912 = vpop.f32.mrb[0].mxu0
        %v5913 = vadd.f32 %v5703, %v5912
        %v5914 = vpop.f32.mrb[0].mxu0
        %v5915 = vadd.f32 %v5699, %v5914
        %v5916 = vpop.f32.mrb[0].mxu0
        %v5917 = vadd.f32 %v5703, %v5916
        %5918 = vmatprep.mubr.bf16.mxu0 %v5601
        %5919 = vmatmul.mubr.bf16.gmra.mrb[0].mxu0 %v5600
        %v5920 = vpop.f32.mrb[0].mxu0
        %v5921 = vadd.f32 %v5699, %v5920
        %v5922 = vpop.f32.mrb[0].mxu0
        %v5923 = vadd.f32 %v5703, %v5922
        %v5924 = vpop.f32.mrb[0].mxu0
        %v5925 = vadd.f32 %v5699, %v5924
        %v5926 = vpop.f32.mrb[0].mxu0
        %v5927 = vadd.f32 %v5703, %v5926
        %5928 = vmatprep.mubr.bf16.mxu0 %v5603
        %5929 = vmatmul.mubr.bf16.gmra.mrb[0].mxu0 %v5602
        %v5930 = vpop.f32.mrb[0].mxu0
        %v5931 = vadd.f32 %v5699, %v5930
        %v5932 = vpop.f32.mrb[0].mxu0
        %v5933 = vadd.f32 %v5703, %v5932
        %v5934 = vpop.f32.mrb[0].mxu0
        %v5935 = vadd.f32 %v5699, %v5934
        %v5936 = vpop.f32.mrb[0].mxu0
        %v5937 = vadd.f32 %v5703, %v5936
        %5938 = vmatprep.mubr.bf16.mxu0 %v5605
        %5939 = vmatmul.mubr.bf16.gmra.mrb[0].mxu0 %v5604
        %v5940 = vpop.f32.mrb[0].mxu0
        %v5941 = vadd.f32 %v5699, %v5940
        %v5942 = vpop.f32.mrb[0].mxu0
        %v5943 = vadd.f32 %v5703, %v5942
        %v5944 = vpop.f32.mrb[0].mxu0
        %v5945 = vadd.f32 %v5699, %v5944
        %v5946 = vpop.f32.mrb[0].mxu0
        %v5947 = vadd.f32 %v5703, %v5946
        %5948 = vmatprep.mubr.bf16.mxu0 %v5607
        %5949 = vmatmul.mubr.bf16.gmra.mrb[0].mxu0 %v5606
        %v5950 = vpop.f32.mrb[0].mxu0
        %v5951 = vadd.f32 %v5699, %v5950
        %v5952 = vpop.f32.mrb[0].mxu0
        %v5953 = vadd.f32 %v5703, %v5952
        %v5954 = vpop.f32.mrb[0].mxu0
        %v5955 = vadd.f32 %v5699, %v5954
        %v5956 = vpop.f32.mrb[0].mxu0
        %v5957 = vadd.f32 %v5703, %v5956
        %5958 = vmatprep.mubr.bf16.mxu0 %v5609
        %5959 = vmatmul.mubr.bf16.gmra.mrb[0].mxu0 %v5608
        %v5960 = vpop.f32.mrb[0].mxu0
        %v5961 = vadd.f32 %v5699, %v5960
        %v5962 = vpop.f32.mrb[0].mxu0
        %v5963 = vadd.f32 %v5703, %v5962
        %v5964 = vpop.f32.mrb[0].mxu0
        %v5965 = vadd.f32 %v5699, %v5964
        %v5966 = vpop.f32.mrb[0].mxu0
        %v5967 = vadd.f32 %v5703, %v5966
        %5968 = vmatprep.mubr.bf16.mxu0 %v5611
        %5969 = vmatmul.mubr.bf16.gmra.mrb[0].mxu0 %v5610
        %v5970 = vpop.f32.mrb[0].mxu0
        %v5971 = vadd.f32 %v5699, %v5970
        %v5972 = vpop.f32.mrb[0].mxu0
        %v5973 = vadd.f32 %v5703, %v5972
        %v5974 = vpop.f32.mrb[0].mxu0
        %v5975 = vadd.f32 %v5699, %v5974
        %v5976 = vpop.f32.mrb[0].mxu0
        %v5977 = vadd.f32 %v5703, %v5976
        %5978 = vmatprep.mubr.bf16.mxu0 %v5613
        %5979 = vmatmul.mubr.bf16.gmra.mrb[0].mxu0 %v5612
        %v5980 = vpop.f32.mrb[0].mxu0
        %v5981 = vadd.f32 %v5699, %v5980
        %v5982 = vpop.f32.mrb[0].mxu0
        %v5983 = vadd.f32 %v5703, %v5982
        %v5984 = vpop.f32.mrb[0].mxu0
        %v5985 = vadd.f32 %v5699, %v5984
        %v5986 = vpop.f32.mrb[0].mxu0
        %v5987 = vadd.f32 %v5703, %v5986
        %5988 = vmatprep.mubr.bf16.mxu0 %v5615
        %5989 = vmatmul.mubr.bf16.gmra.mrb[0].mxu0 %v5614
        %v5990 = vpop.f32.mrb[0].mxu0
        %v5991 = vadd.f32 %v5699, %v5990
        %v5992 = vpop.f32.mrb[0].mxu0
        %v5993 = vadd.f32 %v5703, %v5992
        %v5994 = vpop.f32.mrb[0].mxu0
        %v5995 = vadd.f32 %v5699, %v5994
        %v5996 = vpop.f32.mrb[0].mxu0
        %v5997 = vadd.f32 %v5703, %v5996
        %5998 = vmatprep.mubr.bf16.mxu0 %v5617
        %5999 = vmatmul.mubr.bf16.gmra.mrb[0].mxu0 %v5616
        %v6000 = vpop.f32.mrb[0].mxu0
        %v6001 = vadd.f32 %v5699, %v6000
        %v6002 = vpop.f32.mrb[0].mxu0
        %v6003 = vadd.f32 %v5703, %v6002
        %v6004 = vpop.f32.mrb[0].mxu0
        %v6005 = vadd.f32 %v5699, %v6004
        %v6006 = vpop.f32.mrb[0].mxu0
        %v6007 = vadd.f32 %v5703, %v6006
        %6008 = vmatprep.mubr.bf16.mxu0 %v5619
        %6009 = vmatmul.mubr.bf16.gmra.mrb[0].mxu0 %v5618
        %v6010 = vpop.f32.mrb[0].mxu0
        %v6011 = vadd.f32 %v5699, %v6010
        %v6012 = vpop.f32.mrb[0].mxu0
        %v6013 = vadd.f32 %v5703, %v6012
        %v6014 = vpop.f32.mrb[0].mxu0
        %v6015 = vadd.f32 %v5699, %v6014
        %v6016 = vpop.f32.mrb[0].mxu0
        %v6017 = vadd.f32 %v5703, %v6016
        %6018 = vmatprep.mubr.bf16.mxu0 %v5621
        %6019 = vmatmul.mubr.bf16.gmra.mrb[0].mxu0 %v5620
        %v6020 = vpop.f32.mrb[0].mxu0
        %v6021 = vadd.f32 %v5699, %v6020
        %v6022 = vpop.f32.mrb[0].mxu0
        %v6023 = vadd.f32 %v5703, %v6022
        %v6024 = vpop.f32.mrb[0].mxu0
        %v6025 = vadd.f32 %v5699, %v6024
        %v6026 = vpop.f32.mrb[0].mxu0
        %v6027 = vadd.f32 %v5703, %v6026
        %6028 = vmatprep.mubr.bf16.mxu0 %v5623
        %6029 = vmatmul.mubr.bf16.gmra.mrb[0].mxu0 %v5622
        %v6030 = vpop.f32.mrb[0].mxu0
        %v6031 = vadd.f32 %v5699, %v6030
        %v6032 = vpop.f32.mrb[0].mxu0
        %v6033 = vadd.f32 %v5703, %v6032
        %v6034 = vpop.f32.mrb[0].mxu0
        %v6035 = vadd.f32 %v5699, %v6034
        %v6036 = vpop.f32.mrb[0].mxu0
        %v6037 = vadd.f32 %v5703, %v6036
        %6038 = vmatprep.mubr.bf16.mxu0 %v5625
        %6039 = vmatmul.mubr.bf16.gmra.mrb[0].mxu0 %v5624
        %v6040 = vpop.f32.mrb[0].mxu0
        %v6041 = vadd.f32 %v5699, %v6040
        %v6042 = vpop.f32.mrb[0].mxu0
        %v6043 = vadd.f32 %v5703, %v6042
        %v6044 = vpop.f32.mrb[0].mxu0
        %v6045 = vadd.f32 %v5699, %v6044
        %v6046 = vpop.f32.mrb[0].mxu0
        %v6047 = vadd.f32 %v5703, %v6046
        %6048 = vmatprep.mubr.bf16.mxu0 %v5627
        %6049 = vmatmul.mubr.bf16.gmra.mrb[0].mxu0 %v5626
        %v6050 = vpop.f32.mrb[0].mxu0
        %v6051 = vadd.f32 %v5699, %v6050
        %v6052 = vpop.f32.mrb[0].mxu0
        %v6053 = vadd.f32 %v5703, %v6052
        %v6054 = vpop.f32.mrb[0].mxu0
        %v6055 = vadd.f32 %v5699, %v6054
        %v6056 = vpop.f32.mrb[0].mxu0
        %v6057 = vadd.f32 %v5703, %v6056
        %6058 = vmatprep.mubr.bf16.mxu0 %v5629
        %6059 = vmatmul.mubr.bf16.gmra.mrb[0].mxu0 %v5628
        %v6060 = vpop.f32.mrb[0].mxu0
        %v6061 = vadd.f32 %v5699, %v6060
        %v6062 = vpop.f32.mrb[0].mxu0
        %v6063 = vadd.f32 %v5703, %v6062
        %v6064 = vpop.f32.mrb[0].mxu0
        %v6065 = vadd.f32 %v5699, %v6064
        %v6066 = vpop.f32.mrb[0].mxu0
        %v6067 = vadd.f32 %v5703, %v6066
        %6068 = vmatprep.mubr.bf16.mxu0 %v5631
        %6069 = vmatmul.mubr.bf16.gmra.mrb[0].mxu0 %v5630
        %v6070 = vpop.f32.mrb[0].mxu0
        %v6071 = vadd.f32 %v5699, %v6070
        %v6072 = vpop.f32.mrb[0].mxu0
        %v6073 = vadd.f32 %v5703, %v6072
        %v6074 = vpop.f32.mrb[0].mxu0
        %v6075 = vadd.f32 %v5699, %v6074
        %v6076 = vpop.f32.mrb[0].mxu0
        %v6077 = vadd.f32 %v5703, %v6076
        %6078 = vmatprep.mubr.bf16.mxu0 %v5633
        %6079 = vmatmul.mubr.bf16.gmra.mrb[0].mxu0 %v5632
        %v6080 = vpop.f32.mrb[0].mxu0
        %v6081 = vadd.f32 %v5699, %v6080
        %v6082 = vpop.f32.mrb[0].mxu0
        %v6083 = vadd.f32 %v5703, %v6082
        %v6084 = vpop.f32.mrb[0].mxu0
        %v6085 = vadd.f32 %v5699, %v6084
        %v6086 = vpop.f32.mrb[0].mxu0
        %v6087 = vadd.f32 %v5703, %v6086
        %6088 = vmatprep.mubr.bf16.mxu0 %v5635
        %6089 = vmatmul.mubr.bf16.gmra.mrb[0].mxu0 %v5634
        %v6090 = vpop.f32.mrb[0].mxu0
        %v6091 = vadd.f32 %v5699, %v6090
        %v6092 = vpop.f32.mrb[0].mxu0
        %v6093 = vadd.f32 %v5703, %v6092
        %v6094 = vpop.f32.mrb[0].mxu0
        %v6095 = vadd.f32 %v5699, %v6094
        %v6096 = vpop.f32.mrb[0].mxu0
        %v6097 = vadd.f32 %v5703, %v6096
        %6098 = vmatprep.mubr.bf16.mxu0 %v5637
        %6099 = vmatmul.mubr.bf16.gmra.mrb[0].mxu0 %v5636
        %v6100 = vpop.f32.mrb[0].mxu0
        %v6101 = vadd.f32 %v5699, %v6100
        %v6102 = vpop.f32.mrb[0].mxu0
        %v6103 = vadd.f32 %v5703, %v6102
        %v6104 = vpop.f32.mrb[0].mxu0
        %v6105 = vadd.f32 %v5699, %v6104
        %v6106 = vpop.f32.mrb[0].mxu0
        %v6107 = vadd.f32 %v5703, %v6106
        %6108 = vmatprep.mubr.bf16.mxu0 %v5639
        %6109 = vmatmul.mubr.bf16.gmra.mrb[0].mxu0 %v5638
        %v6110 = vpop.f32.mrb[0].mxu0
        %v6111 = vadd.f32 %v5699, %v6110
        %v6112 = vpop.f32.mrb[0].mxu0
        %v6113 = vadd.f32 %v5703, %v6112
        %v6114 = vpop.f32.mrb[0].mxu0
        %v6115 = vadd.f32 %v5699, %v6114
        %v6116 = vpop.f32.mrb[0].mxu0
        %v6117 = vadd.f32 %v5703, %v6116
        %6118 = vmatprep.mubr.bf16.mxu0 %v5641
        %6119 = vmatmul.mubr.bf16.gmra.mrb[0].mxu0 %v5640
        %v6120 = vpop.f32.mrb[0].mxu0
        %v6121 = vadd.f32 %v5699, %v6120
        %v6122 = vpop.f32.mrb[0].mxu0
        %v6123 = vadd.f32 %v5703, %v6122
        %v6124 = vpop.f32.mrb[0].mxu0
        %v6125 = vadd.f32 %v5699, %v6124
        %v6126 = vpop.f32.mrb[0].mxu0
        %v6127 = vadd.f32 %v5703, %v6126
        %6128 = vmatprep.mubr.bf16.mxu0 %v5643
        %6129 = vmatmul.mubr.bf16.gmra.mrb[0].mxu0 %v5642
        %v6130 = vpop.f32.mrb[0].mxu0
        %v6131 = vadd.f32 %v5699, %v6130
        %v6132 = vpop.f32.mrb[0].mxu0
        %v6133 = vadd.f32 %v5703, %v6132
        %v6134 = vpop.f32.mrb[0].mxu0
        %v6135 = vadd.f32 %v5699, %v6134
        %v6136 = vpop.f32.mrb[0].mxu0
        %v6137 = vadd.f32 %v5703, %v6136
        %6138 = vmatprep.mubr.bf16.mxu0 %v5645
        %6139 = vmatmul.mubr.bf16.gmra.mrb[0].mxu0 %v5644
        %v6140 = vpop.f32.mrb[0].mxu0
        %v6141 = vadd.f32 %v5699, %v6140
        %v6142 = vpop.f32.mrb[0].mxu0
        %v6143 = vadd.f32 %v5703, %v6142
        %v6144 = vpop.f32.mrb[0].mxu0
        %v6145 = vadd.f32 %v5699, %v6144
        %v6146 = vpop.f32.mrb[0].mxu0
        %v6147 = vadd.f32 %v5703, %v6146
        %6148 = vmatprep.mubr.bf16.mxu0 %v5647
        %6149 = vmatmul.mubr.bf16.gmra.mrb[0].mxu0 %v5646
        %v6150 = vpop.f32.mrb[0].mxu0
        %v6151 = vadd.f32 %v5699, %v6150
        %v6152 = vpop.f32.mrb[0].mxu0
        %v6153 = vadd.f32 %v5703, %v6152
        %v6154 = vpop.f32.mrb[0].mxu0
        %v6155 = vadd.f32 %v5699, %v6154
        %v6156 = vpop.f32.mrb[0].mxu0
        %v6157 = vadd.f32 %v5703, %v6156
        %6158 = vmatprep.mubr.bf16.mxu0 %v5649
        %6159 = vmatmul.mubr.bf16.gmra.mrb[0].mxu0 %v5648
        %v6160 = vpop.f32.mrb[0].mxu0
        %v6161 = vadd.f32 %v5699, %v6160
        %v6162 = vpop.f32.mrb[0].mxu0
        %v6163 = vadd.f32 %v5703, %v6162
        %v6164 = vpop.f32.mrb[0].mxu0
        %v6165 = vadd.f32 %v5699, %v6164
        %v6166 = vpop.f32.mrb[0].mxu0
        %v6167 = vadd.f32 %v5703, %v6166
        %6168 = vmatprep.mubr.bf16.mxu0 %v5651
        %6169 = vmatmul.mubr.bf16.gmra.mrb[0].mxu0 %v5650
        %v6170 = vpop.f32.mrb[0].mxu0
        %v6171 = vadd.f32 %v5699, %v6170
        %v6172 = vpop.f32.mrb[0].mxu0
        %v6173 = vadd.f32 %v5703, %v6172
        %v6174 = vpop.f32.mrb[0].mxu0
        %v6175 = vadd.f32 %v5699, %v6174
        %v6176 = vpop.f32.mrb[0].mxu0
        %v6177 = vadd.f32 %v5703, %v6176
        %6178 = vmatprep.mubr.bf16.mxu0 %v5653
        %6179 = vmatmul.mubr.bf16.gmra.mrb[0].mxu0 %v5652
        %v6180 = vpop.f32.mrb[0].mxu0
        %v6181 = vadd.f32 %v5699, %v6180
        %v6182 = vpop.f32.mrb[0].mxu0
        %v6183 = vadd.f32 %v5703, %v6182
        %v6184 = vpop.f32.mrb[0].mxu0
        %v6185 = vadd.f32 %v5699, %v6184
        %v6186 = vpop.f32.mrb[0].mxu0
        %v6187 = vadd.f32 %v5703, %v6186
        %6188 = vmatprep.mubr.bf16.mxu0 %v5655
        %6189 = vmatmul.mubr.bf16.gmra.mrb[0].mxu0 %v5654
        %v6190 = vpop.f32.mrb[0].mxu0
        %v6191 = vadd.f32 %v5699, %v6190
        %v6192 = vpop.f32.mrb[0].mxu0
        %v6193 = vadd.f32 %v5703, %v6192
        %v6194 = vpop.f32.mrb[0].mxu0
        %v6195 = vadd.f32 %v5699, %v6194
        %v6196 = vpop.f32.mrb[0].mxu0
        %v6197 = vadd.f32 %v5703, %v6196
        %6198 = vmatprep.mubr.bf16.mxu0 %v5657
        %6199 = vmatmul.mubr.bf16.gmra.mrb[0].mxu0 %v5656
        %v6200 = vpop.f32.mrb[0].mxu0
        %v6201 = vadd.f32 %v5699, %v6200
        %v6202 = vpop.f32.mrb[0].mxu0
        %v6203 = vadd.f32 %v5703, %v6202
        %v6204 = vpop.f32.mrb[0].mxu0
        %v6205 = vadd.f32 %v5699, %v6204
        %v6206 = vpop.f32.mrb[0].mxu0
        %v6207 = vadd.f32 %v5703, %v6206
        %6208 = vmatprep.mubr.bf16.mxu0 %v5659
        %6209 = vmatmul.mubr.bf16.gmra.mrb[0].mxu0 %v5658
        %v6210 = vpop.f32.mrb[0].mxu0
        %v6211 = vadd.f32 %v5699, %v6210
        %v6212 = vpop.f32.mrb[0].mxu0
        %v6213 = vadd.f32 %v5703, %v6212
        %v6214 = vpop.f32.mrb[0].mxu0
        %v6215 = vadd.f32 %v5699, %v6214
        %v6216 = vpop.f32.mrb[0].mxu0
        %v6217 = vadd.f32 %v5703, %v6216
        %6218 = vdwg.mxu0
        %v6219 = vmax.f32 %v5901, 0.0
        %v6220 = vmax.f32 %v5903, 0.0
        %v6221 = vmax.f32 %v5905, 0.0
        %v6222 = vmax.f32 %v5907, 0.0
        %v6223 = vmax.f32 %v5911, 0.0
        %v6224 = vmax.f32 %v5913, 0.0
        %v6225 = vmax.f32 %v5915, 0.0
        %v6226 = vmax.f32 %v5917, 0.0
        %v6227 = vmax.f32 %v5921, 0.0
        %v6228 = vmax.f32 %v5923, 0.0
        %v6229 = vmax.f32 %v5925, 0.0
        %v6230 = vmax.f32 %v5927, 0.0
        %v6231 = vmax.f32 %v5931, 0.0
        %v6232 = vmax.f32 %v5933, 0.0
        %v6233 = vmax.f32 %v5935, 0.0
        %v6234 = vmax.f32 %v5937, 0.0
        %v6235 = vmax.f32 %v5941, 0.0
        %v6236 = vmax.f32 %v5943, 0.0
        %v6237 = vmax.f32 %v5945, 0.0
        %v6238 = vmax.f32 %v5947, 0.0
        %v6239 = vmax.f32 %v5951, 0.0
        %v6240 = vmax.f32 %v5953, 0.0
        %v6241 = vmax.f32 %v5955, 0.0
        %v6242 = vmax.f32 %v5957, 0.0
        %v6243 = vmax.f32 %v5961, 0.0
        %v6244 = vmax.f32 %v5963, 0.0
        %v6245 = vmax.f32 %v5965, 0.0
        %v6246 = vmax.f32 %v5967, 0.0
        %v6247 = vmax.f32 %v5971, 0.0
        %v6248 = vmax.f32 %v5973, 0.0
        %v6249 = vmax.f32 %v5975, 0.0
        %v6250 = vmax.f32 %v5977, 0.0
        %v6251 = vmax.f32 %v5981, 0.0
        %v6252 = vmax.f32 %v5983, 0.0
        %v6253 = vmax.f32 %v5985, 0.0
        %v6254 = vmax.f32 %v5987, 0.0
        %v6255 = vmax.f32 %v5991, 0.0
        %v6256 = vmax.f32 %v5993, 0.0
        %v6257 = vmax.f32 %v5995, 0.0
        %v6258 = vmax.f32 %v5997, 0.0
        %v6259 = vmax.f32 %v6001, 0.0
        %v6260 = vmax.f32 %v6003, 0.0
        %v6261 = vmax.f32 %v6005, 0.0
        %v6262 = vmax.f32 %v6007, 0.0
        %v6263 = vmax.f32 %v6011, 0.0
        %v6264 = vmax.f32 %v6013, 0.0
        %v6265 = vmax.f32 %v6015, 0.0
        %v6266 = vmax.f32 %v6017, 0.0
        %v6267 = vmax.f32 %v6021, 0.0
        %v6268 = vmax.f32 %v6023, 0.0
        %v6269 = vmax.f32 %v6025, 0.0
        %v6270 = vmax.f32 %v6027, 0.0
        %v6271 = vmax.f32 %v6031, 0.0
        %v6272 = vmax.f32 %v6033, 0.0
        %v6273 = vmax.f32 %v6035, 0.0
        %v6274 = vmax.f32 %v6037, 0.0
        %v6275 = vmax.f32 %v6041, 0.0
        %v6276 = vmax.f32 %v6043, 0.0
        %v6277 = vmax.f32 %v6045, 0.0
        %v6278 = vmax.f32 %v6047, 0.0
        %v6279 = vmax.f32 %v6051, 0.0
        %v6280 = vmax.f32 %v6053, 0.0
        %v6281 = vmax.f32 %v6055, 0.0
        %v6282 = vmax.f32 %v6057, 0.0
        %v6283 = vmax.f32 %v6061, 0.0
        %v6284 = vmax.f32 %v6063, 0.0
        %v6285 = vmax.f32 %v6065, 0.0
        %v6286 = vmax.f32 %v6067, 0.0
        %v6287 = vmax.f32 %v6071, 0.0
        %v6288 = vmax.f32 %v6073, 0.0
        %v6289 = vmax.f32 %v6075, 0.0
        %v6290 = vmax.f32 %v6077, 0.0
        %v6291 = vmax.f32 %v6081, 0.0
        %v6292 = vmax.f32 %v6083, 0.0
        %v6293 = vmax.f32 %v6085, 0.0
        %v6294 = vmax.f32 %v6087, 0.0
        %v6295 = vmax.f32 %v6091, 0.0
        %v6296 = vmax.f32 %v6093, 0.0
        %v6297 = vmax.f32 %v6095, 0.0
        %v6298 = vmax.f32 %v6097, 0.0
        %v6299 = vmax.f32 %v6101, 0.0
        %v6300 = vmax.f32 %v6103, 0.0
        %v6301 = vmax.f32 %v6105, 0.0
        %v6302 = vmax.f32 %v6107, 0.0
        %v6303 = vmax.f32 %v6111, 0.0
        %v6304 = vmax.f32 %v6113, 0.0
        %v6305 = vmax.f32 %v6115, 0.0
        %v6306 = vmax.f32 %v6117, 0.0
        %v6307 = vmax.f32 %v6121, 0.0
        %v6308 = vmax.f32 %v6123, 0.0
        %v6309 = vmax.f32 %v6125, 0.0
        %v6310 = vmax.f32 %v6127, 0.0
        %v6311 = vmax.f32 %v6131, 0.0
        %v6312 = vmax.f32 %v6133, 0.0
        %v6313 = vmax.f32 %v6135, 0.0
        %v6314 = vmax.f32 %v6137, 0.0
        %v6315 = vmax.f32 %v6141, 0.0
        %v6316 = vmax.f32 %v6143, 0.0
        %v6317 = vmax.f32 %v6145, 0.0
        %v6318 = vmax.f32 %v6147, 0.0
        %v6319 = vmax.f32 %v6151, 0.0
        %v6320 = vmax.f32 %v6153, 0.0
        %v6321 = vmax.f32 %v6155, 0.0
        %v6322 = vmax.f32 %v6157, 0.0
        %v6323 = vmax.f32 %v6161, 0.0
        %v6324 = vmax.f32 %v6163, 0.0
        %v6325 = vmax.f32 %v6165, 0.0
        %v6326 = vmax.f32 %v6167, 0.0
        %v6327 = vmax.f32 %v6171, 0.0
        %v6328 = vmax.f32 %v6173, 0.0
        %v6329 = vmax.f32 %v6175, 0.0
        %v6330 = vmax.f32 %v6177, 0.0
        %v6331 = vmax.f32 %v6181, 0.0
        %v6332 = vmax.f32 %v6183, 0.0
        %v6333 = vmax.f32 %v6185, 0.0
        %v6334 = vmax.f32 %v6187, 0.0
        %v6335 = vmax.f32 %v6191, 0.0
        %v6336 = vmax.f32 %v6193, 0.0
        %v6337 = vmax.f32 %v6195, 0.0
        %v6338 = vmax.f32 %v6197, 0.0
        %v6339 = vmax.f32 %v6201, 0.0
        %v6340 = vmax.f32 %v6203, 0.0
        %v6341 = vmax.f32 %v6205, 0.0
        %v6342 = vmax.f32 %v6207, 0.0
        %v6343 = vmax.f32 %v6211, 0.0
        %v6344 = vmax.f32 %v6213, 0.0
        %v6345 = vmax.f32 %v6215, 0.0
        %v6346 = vmax.f32 %v6217, 0.0
        %v6347 = vpack.c.bf16 %v6221, %v6219
        %v6348 = vpack.c.bf16 %v6222, %v6220
        %v6349 = vpack.c.bf16 %v6225, %v6223
        %v6350 = vpack.c.bf16 %v6226, %v6224
        %v6351 = vpack.c.bf16 %v6229, %v6227
        %v6352 = vpack.c.bf16 %v6230, %v6228
        %v6353 = vpack.c.bf16 %v6233, %v6231
        %v6354 = vpack.c.bf16 %v6234, %v6232
        %v6355 = vpack.c.bf16 %v6237, %v6235
        %v6356 = vpack.c.bf16 %v6238, %v6236
        %v6357 = vpack.c.bf16 %v6241, %v6239
        %v6358 = vpack.c.bf16 %v6242, %v6240
        %v6359 = vpack.c.bf16 %v6245, %v6243
        %v6360 = vpack.c.bf16 %v6246, %v6244
        %v6361 = vpack.c.bf16 %v6249, %v6247
        %v6362 = vpack.c.bf16 %v6250, %v6248
        %v6363 = vpack.c.bf16 %v6253, %v6251
        %v6364 = vpack.c.bf16 %v6254, %v6252
        %v6365 = vpack.c.bf16 %v6257, %v6255
        %v6366 = vpack.c.bf16 %v6258, %v6256
        %v6367 = vpack.c.bf16 %v6261, %v6259
        %v6368 = vpack.c.bf16 %v6262, %v6260
        %v6369 = vpack.c.bf16 %v6265, %v6263
        %v6370 = vpack.c.bf16 %v6266, %v6264
        %v6371 = vpack.c.bf16 %v6269, %v6267
        %v6372 = vpack.c.bf16 %v6270, %v6268
        %v6373 = vpack.c.bf16 %v6273, %v6271
        %v6374 = vpack.c.bf16 %v6274, %v6272
        %v6375 = vpack.c.bf16 %v6277, %v6275
        %v6376 = vpack.c.bf16 %v6278, %v6276
        %v6377 = vpack.c.bf16 %v6281, %v6279
        %v6378 = vpack.c.bf16 %v6282, %v6280
        %v6379 = vpack.c.bf16 %v6285, %v6283
        %v6380 = vpack.c.bf16 %v6286, %v6284
        %v6381 = vpack.c.bf16 %v6289, %v6287
        %v6382 = vpack.c.bf16 %v6290, %v6288
        %v6383 = vpack.c.bf16 %v6293, %v6291
        %v6384 = vpack.c.bf16 %v6294, %v6292
        %v6385 = vpack.c.bf16 %v6297, %v6295
        %v6386 = vpack.c.bf16 %v6298, %v6296
        %v6387 = vpack.c.bf16 %v6301, %v6299
        %v6388 = vpack.c.bf16 %v6302, %v6300
        %v6389 = vpack.c.bf16 %v6305, %v6303
        %v6390 = vpack.c.bf16 %v6306, %v6304
        %v6391 = vpack.c.bf16 %v6309, %v6307
        %v6392 = vpack.c.bf16 %v6310, %v6308
        %v6393 = vpack.c.bf16 %v6313, %v6311
        %v6394 = vpack.c.bf16 %v6314, %v6312
        %v6395 = vpack.c.bf16 %v6317, %v6315
        %v6396 = vpack.c.bf16 %v6318, %v6316
        %v6397 = vpack.c.bf16 %v6321, %v6319
        %v6398 = vpack.c.bf16 %v6322, %v6320
        %v6399 = vpack.c.bf16 %v6325, %v6323
        %v6400 = vpack.c.bf16 %v6326, %v6324
        %v6401 = vpack.c.bf16 %v6329, %v6327
        %v6402 = vpack.c.bf16 %v6330, %v6328
        %v6403 = vpack.c.bf16 %v6333, %v6331
        %v6404 = vpack.c.bf16 %v6334, %v6332
        %v6405 = vpack.c.bf16 %v6337, %v6335
        %v6406 = vpack.c.bf16 %v6338, %v6336
        %v6407 = vpack.c.bf16 %v6341, %v6339
        %v6408 = vpack.c.bf16 %v6342, %v6340
        %v6409 = vpack.c.bf16 %v6345, %v6343
        %v6410 = vpack.c.bf16 %v6346, %v6344
        %s6411 = scalar_lea.vmem %s4, 1280
        %v6412 = vld [vmem:[%s6411] sm:$0xff]
        %v6413 = vld [vmem:[%s6411 + $0x8] sm:$0xff]
        %v6414 = vld [vmem:[%s6411 + $0x10] sm:$0xff]
        %v6415 = vld [vmem:[%s6411 + $0x18] sm:$0xff]
        %v6416 = vld [vmem:[%s6411 + $0x20] sm:$0xff]
        %v6417 = vld [vmem:[%s6411 + $0x28] sm:$0xff]
        %v6418 = vld [vmem:[%s6411 + $0x30] sm:$0xff]
        %v6419 = vld [vmem:[%s6411 + $0x38] sm:$0xff]
        %v6420 = vld [vmem:[%s6411 + $0x40] sm:$0xff]
        %v6421 = vld [vmem:[%s6411 + $0x48] sm:$0xff]
        %v6422 = vld [vmem:[%s6411 + $0x50] sm:$0xff]
        %v6423 = vld [vmem:[%s6411 + $0x58] sm:$0xff]
        %v6424 = vld [vmem:[%s6411 + $0x60] sm:$0xff]
        %v6425 = vld [vmem:[%s6411 + $0x68] sm:$0xff]
        %v6426 = vld [vmem:[%s6411 + $0x70] sm:$0xff]
        %v6427 = vld [vmem:[%s6411 + $0x78] sm:$0xff]
        %v6428 = vld [vmem:[%s6411 + $0x80] sm:$0xff]
        %v6429 = vld [vmem:[%s6411 + $0x88] sm:$0xff]
        %v6430 = vld [vmem:[%s6411 + $0x90] sm:$0xff]
        %v6431 = vld [vmem:[%s6411 + $0x98] sm:$0xff]
        %v6432 = vld [vmem:[%s6411 + $0xa0] sm:$0xff]
        %v6433 = vld [vmem:[%s6411 + $0xa8] sm:$0xff]
        %v6434 = vld [vmem:[%s6411 + $0xb0] sm:$0xff]
        %v6435 = vld [vmem:[%s6411 + $0xb8] sm:$0xff]
        %v6436 = vld [vmem:[%s6411 + $0xc0] sm:$0xff]
        %v6437 = vld [vmem:[%s6411 + $0xc8] sm:$0xff]
        %v6438 = vld [vmem:[%s6411 + $0xd0] sm:$0xff]
        %v6439 = vld [vmem:[%s6411 + $0xd8] sm:$0xff]
        %v6440 = vld [vmem:[%s6411 + $0xe0] sm:$0xff]
        %v6441 = vld [vmem:[%s6411 + $0xe8] sm:$0xff]
        %v6442 = vld [vmem:[%s6411 + $0xf0] sm:$0xff]
        %v6443 = vld [vmem:[%s6411 + $0xf8] sm:$0xff]
        %s6444 = scalar_lea.vmem %s5, 5
        %v6445 = vld [vmem:[%s6444] ss:$8 sm:$0x3]
        %v6447 = vlaneseq
        %v6448 = vshrl.u32 %v6447, 7
        %v6449 = vsub.s32 0, %v6448
        %v6450 = vrot.slane %v6445, %v6449
        %v6451 = vlaneseq
        %v6452 = vshrl.u32 %v6451, 7
        %v6453 = vsub.s32 1, %v6452
        %v6454 = vrot.slane %v6445, %v6453
        %v6489 = vunpack.c.l.b16 %v6412
        %v6490 = vunpack.c.h.b16 %v6412
        %v6491 = vunpack.c.l.b16 %v6413
        %v6492 = vunpack.c.h.b16 %v6413
        %v6493 = vunpack.c.l.b16 %v6414
        %v6494 = vunpack.c.h.b16 %v6414
        %v6495 = vunpack.c.l.b16 %v6415
        %v6496 = vunpack.c.h.b16 %v6415
        %v6497 = vunpack.c.l.b16 %v6416
        %v6498 = vunpack.c.h.b16 %v6416
        %v6499 = vunpack.c.l.b16 %v6417
        %v6500 = vunpack.c.h.b16 %v6417
        %v6501 = vunpack.c.l.b16 %v6418
        %v6502 = vunpack.c.h.b16 %v6418
        %v6503 = vunpack.c.l.b16 %v6419
        %v6504 = vunpack.c.h.b16 %v6419
        %v6505 = vunpack.c.l.b16 %v6420
        %v6506 = vunpack.c.h.b16 %v6420
        %v6507 = vunpack.c.l.b16 %v6421
        %v6508 = vunpack.c.h.b16 %v6421
        %v6509 = vunpack.c.l.b16 %v6422
        %v6510 = vunpack.c.h.b16 %v6422
        %v6511 = vunpack.c.l.b16 %v6423
        %v6512 = vunpack.c.h.b16 %v6423
        %v6513 = vunpack.c.l.b16 %v6424
        %v6514 = vunpack.c.h.b16 %v6424
        %v6515 = vunpack.c.l.b16 %v6425
        %v6516 = vunpack.c.h.b16 %v6425
        %v6517 = vunpack.c.l.b16 %v6426
        %v6518 = vunpack.c.h.b16 %v6426
        %v6519 = vunpack.c.l.b16 %v6427
        %v6520 = vunpack.c.h.b16 %v6427
        %v6521 = vunpack.c.l.b16 %v6428
        %v6522 = vunpack.c.h.b16 %v6428
        %v6523 = vunpack.c.l.b16 %v6429
        %v6524 = vunpack.c.h.b16 %v6429
        %v6525 = vunpack.c.l.b16 %v6430
        %v6526 = vunpack.c.h.b16 %v6430
        %v6527 = vunpack.c.l.b16 %v6431
        %v6528 = vunpack.c.h.b16 %v6431
        %v6529 = vunpack.c.l.b16 %v6432
        %v6530 = vunpack.c.h.b16 %v6432
        %v6531 = vunpack.c.l.b16 %v6433
        %v6532 = vunpack.c.h.b16 %v6433
        %v6533 = vunpack.c.l.b16 %v6434
        %v6534 = vunpack.c.h.b16 %v6434
        %v6535 = vunpack.c.l.b16 %v6435
        %v6536 = vunpack.c.h.b16 %v6435
        %v6537 = vunpack.c.l.b16 %v6436
        %v6538 = vunpack.c.h.b16 %v6436
        %v6539 = vunpack.c.l.b16 %v6437
        %v6540 = vunpack.c.h.b16 %v6437
        %v6541 = vunpack.c.l.b16 %v6438
        %v6542 = vunpack.c.h.b16 %v6438
        %v6543 = vunpack.c.l.b16 %v6439
        %v6544 = vunpack.c.h.b16 %v6439
        %v6545 = vunpack.c.l.b16 %v6440
        %v6546 = vunpack.c.h.b16 %v6440
        %v6547 = vunpack.c.l.b16 %v6441
        %v6548 = vunpack.c.h.b16 %v6441
        %v6549 = vunpack.c.l.b16 %v6442
        %v6550 = vunpack.c.h.b16 %v6442
        %v6551 = vunpack.c.l.b16 %v6443
        %v6552 = vunpack.c.h.b16 %v6443
        %v6553 = vpack.c.b16 %v6491, %v6489
        %v6554 = vpack.c.b16 %v6492, %v6490
        %v6555 = vpack.c.b16 %v6495, %v6493
        %v6556 = vpack.c.b16 %v6496, %v6494
        %v6557 = vpack.c.b16 %v6499, %v6497
        %v6558 = vpack.c.b16 %v6500, %v6498
        %v6559 = vpack.c.b16 %v6503, %v6501
        %v6560 = vpack.c.b16 %v6504, %v6502
        %v6561 = vpack.c.b16 %v6507, %v6505
        %v6562 = vpack.c.b16 %v6508, %v6506
        %v6563 = vpack.c.b16 %v6511, %v6509
        %v6564 = vpack.c.b16 %v6512, %v6510
        %v6565 = vpack.c.b16 %v6515, %v6513
        %v6566 = vpack.c.b16 %v6516, %v6514
        %v6567 = vpack.c.b16 %v6519, %v6517
        %v6568 = vpack.c.b16 %v6520, %v6518
        %v6569 = vpack.c.b16 %v6523, %v6521
        %v6570 = vpack.c.b16 %v6524, %v6522
        %v6571 = vpack.c.b16 %v6527, %v6525
        %v6572 = vpack.c.b16 %v6528, %v6526
        %v6573 = vpack.c.b16 %v6531, %v6529
        %v6574 = vpack.c.b16 %v6532, %v6530
        %v6575 = vpack.c.b16 %v6535, %v6533
        %v6576 = vpack.c.b16 %v6536, %v6534
        %v6577 = vpack.c.b16 %v6539, %v6537
        %v6578 = vpack.c.b16 %v6540, %v6538
        %v6579 = vpack.c.b16 %v6543, %v6541
        %v6580 = vpack.c.b16 %v6544, %v6542
        %v6581 = vpack.c.b16 %v6547, %v6545
        %v6582 = vpack.c.b16 %v6548, %v6546
        %v6583 = vpack.c.b16 %v6551, %v6549
        %v6584 = vpack.c.b16 %v6552, %v6550
        %6617 = vmatprep.subr.bf16.mxu0 %v6554
        %6618 = vmatpush1.bf16.msra.mxu0 %v6553
        %6619 = vmatprep.subr.bf16.mxu0 %v6556
        %6620 = vmatpush1.bf16.msra.mxu0 %v6555
        %6621 = vmatprep.subr.bf16.mxu0 %v6558
        %6622 = vmatpush1.bf16.msra.mxu0 %v6557
        %6623 = vmatprep.subr.bf16.mxu0 %v6560
        %6624 = vmatpush1.bf16.msra.mxu0 %v6559
        %6625 = vmatprep.subr.bf16.mxu0 %v6562
        %6626 = vmatpush1.bf16.msra.mxu0 %v6561
        %6627 = vmatprep.subr.bf16.mxu0 %v6564
        %6628 = vmatpush1.bf16.msra.mxu0 %v6563
        %6629 = vmatprep.subr.bf16.mxu0 %v6566
        %6630 = vmatpush1.bf16.msra.mxu0 %v6565
        %6631 = vmatprep.subr.bf16.mxu0 %v6568
        %6632 = vmatpush1.bf16.msra.mxu0 %v6567
        %6633 = vmatprep.subr.bf16.mxu0 %v6570
        %6634 = vmatpush1.bf16.msra.mxu0 %v6569
        %6635 = vmatprep.subr.bf16.mxu0 %v6572
        %6636 = vmatpush1.bf16.msra.mxu0 %v6571
        %6637 = vmatprep.subr.bf16.mxu0 %v6574
        %6638 = vmatpush1.bf16.msra.mxu0 %v6573
        %6639 = vmatprep.subr.bf16.mxu0 %v6576
        %6640 = vmatpush1.bf16.msra.mxu0 %v6575
        %6641 = vmatprep.subr.bf16.mxu0 %v6578
        %6642 = vmatpush1.bf16.msra.mxu0 %v6577
        %6643 = vmatprep.subr.bf16.mxu0 %v6580
        %6644 = vmatpush1.bf16.msra.mxu0 %v6579
        %6645 = vmatprep.subr.bf16.mxu0 %v6582
        %6646 = vmatpush1.bf16.msra.mxu0 %v6581
        %6647 = vmatprep.subr.bf16.mxu0 %v6584
        %6648 = vmatpush1.bf16.msra.mxu0 %v6583
        %6649 = vmatprep.mubr.bf16.mxu0 %v6348
        %6650 = vmatmul.mubr.bf16.gmra.mrb[0].mxu0 %v6347
        %v6651 = vpop.f32.mrb[0].mxu0
        %v6652 = vadd.f32 %v6450, %v6651
        %v6653 = vpop.f32.mrb[0].mxu0
        %v6654 = vadd.f32 %v6454, %v6653
        %v6655 = vpop.f32.mrb[0].mxu0
        %v6656 = vadd.f32 %v6450, %v6655
        %v6657 = vpop.f32.mrb[0].mxu0
        %v6658 = vadd.f32 %v6454, %v6657
        %6659 = vmatprep.mubr.bf16.mxu0 %v6350
        %6660 = vmatmul.mubr.bf16.gmra.mrb[0].mxu0 %v6349
        %v6661 = vpop.f32.mrb[0].mxu0
        %v6662 = vadd.f32 %v6450, %v6661
        %v6663 = vpop.f32.mrb[0].mxu0
        %v6664 = vadd.f32 %v6454, %v6663
        %v6665 = vpop.f32.mrb[0].mxu0
        %v6666 = vadd.f32 %v6450, %v6665
        %v6667 = vpop.f32.mrb[0].mxu0
        %v6668 = vadd.f32 %v6454, %v6667
        %6669 = vmatprep.mubr.bf16.mxu0 %v6352
        %6670 = vmatmul.mubr.bf16.gmra.mrb[0].mxu0 %v6351
        %v6671 = vpop.f32.mrb[0].mxu0
        %v6672 = vadd.f32 %v6450, %v6671
        %v6673 = vpop.f32.mrb[0].mxu0
        %v6674 = vadd.f32 %v6454, %v6673
        %v6675 = vpop.f32.mrb[0].mxu0
        %v6676 = vadd.f32 %v6450, %v6675
        %v6677 = vpop.f32.mrb[0].mxu0
        %v6678 = vadd.f32 %v6454, %v6677
        %6679 = vmatprep.mubr.bf16.mxu0 %v6354
        %6680 = vmatmul.mubr.bf16.gmra.mrb[0].mxu0 %v6353
        %v6681 = vpop.f32.mrb[0].mxu0
        %v6682 = vadd.f32 %v6450, %v6681
        %v6683 = vpop.f32.mrb[0].mxu0
        %v6684 = vadd.f32 %v6454, %v6683
        %v6685 = vpop.f32.mrb[0].mxu0
        %v6686 = vadd.f32 %v6450, %v6685
        %v6687 = vpop.f32.mrb[0].mxu0
        %v6688 = vadd.f32 %v6454, %v6687
        %6689 = vmatprep.mubr.bf16.mxu0 %v6356
        %6690 = vmatmul.mubr.bf16.gmra.mrb[0].mxu0 %v6355
        %v6691 = vpop.f32.mrb[0].mxu0
        %v6692 = vadd.f32 %v6450, %v6691
        %v6693 = vpop.f32.mrb[0].mxu0
        %v6694 = vadd.f32 %v6454, %v6693
        %v6695 = vpop.f32.mrb[0].mxu0
        %v6696 = vadd.f32 %v6450, %v6695
        %v6697 = vpop.f32.mrb[0].mxu0
        %v6698 = vadd.f32 %v6454, %v6697
        %6699 = vmatprep.mubr.bf16.mxu0 %v6358
        %6700 = vmatmul.mubr.bf16.gmra.mrb[0].mxu0 %v6357
        %v6701 = vpop.f32.mrb[0].mxu0
        %v6702 = vadd.f32 %v6450, %v6701
        %v6703 = vpop.f32.mrb[0].mxu0
        %v6704 = vadd.f32 %v6454, %v6703
        %v6705 = vpop.f32.mrb[0].mxu0
        %v6706 = vadd.f32 %v6450, %v6705
        %v6707 = vpop.f32.mrb[0].mxu0
        %v6708 = vadd.f32 %v6454, %v6707
        %6709 = vmatprep.mubr.bf16.mxu0 %v6360
        %6710 = vmatmul.mubr.bf16.gmra.mrb[0].mxu0 %v6359
        %v6711 = vpop.f32.mrb[0].mxu0
        %v6712 = vadd.f32 %v6450, %v6711
        %v6713 = vpop.f32.mrb[0].mxu0
        %v6714 = vadd.f32 %v6454, %v6713
        %v6715 = vpop.f32.mrb[0].mxu0
        %v6716 = vadd.f32 %v6450, %v6715
        %v6717 = vpop.f32.mrb[0].mxu0
        %v6718 = vadd.f32 %v6454, %v6717
        %6719 = vmatprep.mubr.bf16.mxu0 %v6362
        %6720 = vmatmul.mubr.bf16.gmra.mrb[0].mxu0 %v6361
        %v6721 = vpop.f32.mrb[0].mxu0
        %v6722 = vadd.f32 %v6450, %v6721
        %v6723 = vpop.f32.mrb[0].mxu0
        %v6724 = vadd.f32 %v6454, %v6723
        %v6725 = vpop.f32.mrb[0].mxu0
        %v6726 = vadd.f32 %v6450, %v6725
        %v6727 = vpop.f32.mrb[0].mxu0
        %v6728 = vadd.f32 %v6454, %v6727
        %6729 = vmatprep.mubr.bf16.mxu0 %v6364
        %6730 = vmatmul.mubr.bf16.gmra.mrb[0].mxu0 %v6363
        %v6731 = vpop.f32.mrb[0].mxu0
        %v6732 = vadd.f32 %v6450, %v6731
        %v6733 = vpop.f32.mrb[0].mxu0
        %v6734 = vadd.f32 %v6454, %v6733
        %v6735 = vpop.f32.mrb[0].mxu0
        %v6736 = vadd.f32 %v6450, %v6735
        %v6737 = vpop.f32.mrb[0].mxu0
        %v6738 = vadd.f32 %v6454, %v6737
        %6739 = vmatprep.mubr.bf16.mxu0 %v6366
        %6740 = vmatmul.mubr.bf16.gmra.mrb[0].mxu0 %v6365
        %v6741 = vpop.f32.mrb[0].mxu0
        %v6742 = vadd.f32 %v6450, %v6741
        %v6743 = vpop.f32.mrb[0].mxu0
        %v6744 = vadd.f32 %v6454, %v6743
        %v6745 = vpop.f32.mrb[0].mxu0
        %v6746 = vadd.f32 %v6450, %v6745
        %v6747 = vpop.f32.mrb[0].mxu0
        %v6748 = vadd.f32 %v6454, %v6747
        %6749 = vmatprep.mubr.bf16.mxu0 %v6368
        %6750 = vmatmul.mubr.bf16.gmra.mrb[0].mxu0 %v6367
        %v6751 = vpop.f32.mrb[0].mxu0
        %v6752 = vadd.f32 %v6450, %v6751
        %v6753 = vpop.f32.mrb[0].mxu0
        %v6754 = vadd.f32 %v6454, %v6753
        %v6755 = vpop.f32.mrb[0].mxu0
        %v6756 = vadd.f32 %v6450, %v6755
        %v6757 = vpop.f32.mrb[0].mxu0
        %v6758 = vadd.f32 %v6454, %v6757
        %6759 = vmatprep.mubr.bf16.mxu0 %v6370
        %6760 = vmatmul.mubr.bf16.gmra.mrb[0].mxu0 %v6369
        %v6761 = vpop.f32.mrb[0].mxu0
        %v6762 = vadd.f32 %v6450, %v6761
        %v6763 = vpop.f32.mrb[0].mxu0
        %v6764 = vadd.f32 %v6454, %v6763
        %v6765 = vpop.f32.mrb[0].mxu0
        %v6766 = vadd.f32 %v6450, %v6765
        %v6767 = vpop.f32.mrb[0].mxu0
        %v6768 = vadd.f32 %v6454, %v6767
        %6769 = vmatprep.mubr.bf16.mxu0 %v6372
        %6770 = vmatmul.mubr.bf16.gmra.mrb[0].mxu0 %v6371
        %v6771 = vpop.f32.mrb[0].mxu0
        %v6772 = vadd.f32 %v6450, %v6771
        %v6773 = vpop.f32.mrb[0].mxu0
        %v6774 = vadd.f32 %v6454, %v6773
        %v6775 = vpop.f32.mrb[0].mxu0
        %v6776 = vadd.f32 %v6450, %v6775
        %v6777 = vpop.f32.mrb[0].mxu0
        %v6778 = vadd.f32 %v6454, %v6777
        %6779 = vmatprep.mubr.bf16.mxu0 %v6374
        %6780 = vmatmul.mubr.bf16.gmra.mrb[0].mxu0 %v6373
        %v6781 = vpop.f32.mrb[0].mxu0
        %v6782 = vadd.f32 %v6450, %v6781
        %v6783 = vpop.f32.mrb[0].mxu0
        %v6784 = vadd.f32 %v6454, %v6783
        %v6785 = vpop.f32.mrb[0].mxu0
        %v6786 = vadd.f32 %v6450, %v6785
        %v6787 = vpop.f32.mrb[0].mxu0
        %v6788 = vadd.f32 %v6454, %v6787
        %6789 = vmatprep.mubr.bf16.mxu0 %v6376
        %6790 = vmatmul.mubr.bf16.gmra.mrb[0].mxu0 %v6375
        %v6791 = vpop.f32.mrb[0].mxu0
        %v6792 = vadd.f32 %v6450, %v6791
        %v6793 = vpop.f32.mrb[0].mxu0
        %v6794 = vadd.f32 %v6454, %v6793
        %v6795 = vpop.f32.mrb[0].mxu0
        %v6796 = vadd.f32 %v6450, %v6795
        %v6797 = vpop.f32.mrb[0].mxu0
        %v6798 = vadd.f32 %v6454, %v6797
        %6799 = vmatprep.mubr.bf16.mxu0 %v6378
        %6800 = vmatmul.mubr.bf16.gmra.mrb[0].mxu0 %v6377
        %v6801 = vpop.f32.mrb[0].mxu0
        %v6802 = vadd.f32 %v6450, %v6801
        %v6803 = vpop.f32.mrb[0].mxu0
        %v6804 = vadd.f32 %v6454, %v6803
        %v6805 = vpop.f32.mrb[0].mxu0
        %v6806 = vadd.f32 %v6450, %v6805
        %v6807 = vpop.f32.mrb[0].mxu0
        %v6808 = vadd.f32 %v6454, %v6807
        %6809 = vmatprep.mubr.bf16.mxu0 %v6380
        %6810 = vmatmul.mubr.bf16.gmra.mrb[0].mxu0 %v6379
        %v6811 = vpop.f32.mrb[0].mxu0
        %v6812 = vadd.f32 %v6450, %v6811
        %v6813 = vpop.f32.mrb[0].mxu0
        %v6814 = vadd.f32 %v6454, %v6813
        %v6815 = vpop.f32.mrb[0].mxu0
        %v6816 = vadd.f32 %v6450, %v6815
        %v6817 = vpop.f32.mrb[0].mxu0
        %v6818 = vadd.f32 %v6454, %v6817
        %6819 = vmatprep.mubr.bf16.mxu0 %v6382
        %6820 = vmatmul.mubr.bf16.gmra.mrb[0].mxu0 %v6381
        %v6821 = vpop.f32.mrb[0].mxu0
        %v6822 = vadd.f32 %v6450, %v6821
        %v6823 = vpop.f32.mrb[0].mxu0
        %v6824 = vadd.f32 %v6454, %v6823
        %v6825 = vpop.f32.mrb[0].mxu0
        %v6826 = vadd.f32 %v6450, %v6825
        %v6827 = vpop.f32.mrb[0].mxu0
        %v6828 = vadd.f32 %v6454, %v6827
        %6829 = vmatprep.mubr.bf16.mxu0 %v6384
        %6830 = vmatmul.mubr.bf16.gmra.mrb[0].mxu0 %v6383
        %v6831 = vpop.f32.mrb[0].mxu0
        %v6832 = vadd.f32 %v6450, %v6831
        %v6833 = vpop.f32.mrb[0].mxu0
        %v6834 = vadd.f32 %v6454, %v6833
        %v6835 = vpop.f32.mrb[0].mxu0
        %v6836 = vadd.f32 %v6450, %v6835
        %v6837 = vpop.f32.mrb[0].mxu0
        %v6838 = vadd.f32 %v6454, %v6837
        %6839 = vmatprep.mubr.bf16.mxu0 %v6386
        %6840 = vmatmul.mubr.bf16.gmra.mrb[0].mxu0 %v6385
        %v6841 = vpop.f32.mrb[0].mxu0
        %v6842 = vadd.f32 %v6450, %v6841
        %v6843 = vpop.f32.mrb[0].mxu0
        %v6844 = vadd.f32 %v6454, %v6843
        %v6845 = vpop.f32.mrb[0].mxu0
        %v6846 = vadd.f32 %v6450, %v6845
        %v6847 = vpop.f32.mrb[0].mxu0
        %v6848 = vadd.f32 %v6454, %v6847
        %6849 = vmatprep.mubr.bf16.mxu0 %v6388
        %6850 = vmatmul.mubr.bf16.gmra.mrb[0].mxu0 %v6387
        %v6851 = vpop.f32.mrb[0].mxu0
        %v6852 = vadd.f32 %v6450, %v6851
        %v6853 = vpop.f32.mrb[0].mxu0
        %v6854 = vadd.f32 %v6454, %v6853
        %v6855 = vpop.f32.mrb[0].mxu0
        %v6856 = vadd.f32 %v6450, %v6855
        %v6857 = vpop.f32.mrb[0].mxu0
        %v6858 = vadd.f32 %v6454, %v6857
        %6859 = vmatprep.mubr.bf16.mxu0 %v6390
        %6860 = vmatmul.mubr.bf16.gmra.mrb[0].mxu0 %v6389
        %v6861 = vpop.f32.mrb[0].mxu0
        %v6862 = vadd.f32 %v6450, %v6861
        %v6863 = vpop.f32.mrb[0].mxu0
        %v6864 = vadd.f32 %v6454, %v6863
        %v6865 = vpop.f32.mrb[0].mxu0
        %v6866 = vadd.f32 %v6450, %v6865
        %v6867 = vpop.f32.mrb[0].mxu0
        %v6868 = vadd.f32 %v6454, %v6867
        %6869 = vmatprep.mubr.bf16.mxu0 %v6392
        %6870 = vmatmul.mubr.bf16.gmra.mrb[0].mxu0 %v6391
        %v6871 = vpop.f32.mrb[0].mxu0
        %v6872 = vadd.f32 %v6450, %v6871
        %v6873 = vpop.f32.mrb[0].mxu0
        %v6874 = vadd.f32 %v6454, %v6873
        %v6875 = vpop.f32.mrb[0].mxu0
        %v6876 = vadd.f32 %v6450, %v6875
        %v6877 = vpop.f32.mrb[0].mxu0
        %v6878 = vadd.f32 %v6454, %v6877
        %6879 = vmatprep.mubr.bf16.mxu0 %v6394
        %6880 = vmatmul.mubr.bf16.gmra.mrb[0].mxu0 %v6393
        %v6881 = vpop.f32.mrb[0].mxu0
        %v6882 = vadd.f32 %v6450, %v6881
        %v6883 = vpop.f32.mrb[0].mxu0
        %v6884 = vadd.f32 %v6454, %v6883
        %v6885 = vpop.f32.mrb[0].mxu0
        %v6886 = vadd.f32 %v6450, %v6885
        %v6887 = vpop.f32.mrb[0].mxu0
        %v6888 = vadd.f32 %v6454, %v6887
        %6889 = vmatprep.mubr.bf16.mxu0 %v6396
        %6890 = vmatmul.mubr.bf16.gmra.mrb[0].mxu0 %v6395
        %v6891 = vpop.f32.mrb[0].mxu0
        %v6892 = vadd.f32 %v6450, %v6891
        %v6893 = vpop.f32.mrb[0].mxu0
        %v6894 = vadd.f32 %v6454, %v6893
        %v6895 = vpop.f32.mrb[0].mxu0
        %v6896 = vadd.f32 %v6450, %v6895
        %v6897 = vpop.f32.mrb[0].mxu0
        %v6898 = vadd.f32 %v6454, %v6897
        %6899 = vmatprep.mubr.bf16.mxu0 %v6398
        %6900 = vmatmul.mubr.bf16.gmra.mrb[0].mxu0 %v6397
        %v6901 = vpop.f32.mrb[0].mxu0
        %v6902 = vadd.f32 %v6450, %v6901
        %v6903 = vpop.f32.mrb[0].mxu0
        %v6904 = vadd.f32 %v6454, %v6903
        %v6905 = vpop.f32.mrb[0].mxu0
        %v6906 = vadd.f32 %v6450, %v6905
        %v6907 = vpop.f32.mrb[0].mxu0
        %v6908 = vadd.f32 %v6454, %v6907
        %6909 = vmatprep.mubr.bf16.mxu0 %v6400
        %6910 = vmatmul.mubr.bf16.gmra.mrb[0].mxu0 %v6399
        %v6911 = vpop.f32.mrb[0].mxu0
        %v6912 = vadd.f32 %v6450, %v6911
        %v6913 = vpop.f32.mrb[0].mxu0
        %v6914 = vadd.f32 %v6454, %v6913
        %v6915 = vpop.f32.mrb[0].mxu0
        %v6916 = vadd.f32 %v6450, %v6915
        %v6917 = vpop.f32.mrb[0].mxu0
        %v6918 = vadd.f32 %v6454, %v6917
        %6919 = vmatprep.mubr.bf16.mxu0 %v6402
        %6920 = vmatmul.mubr.bf16.gmra.mrb[0].mxu0 %v6401
        %v6921 = vpop.f32.mrb[0].mxu0
        %v6922 = vadd.f32 %v6450, %v6921
        %v6923 = vpop.f32.mrb[0].mxu0
        %v6924 = vadd.f32 %v6454, %v6923
        %v6925 = vpop.f32.mrb[0].mxu0
        %v6926 = vadd.f32 %v6450, %v6925
        %v6927 = vpop.f32.mrb[0].mxu0
        %v6928 = vadd.f32 %v6454, %v6927
        %6929 = vmatprep.mubr.bf16.mxu0 %v6404
        %6930 = vmatmul.mubr.bf16.gmra.mrb[0].mxu0 %v6403
        %v6931 = vpop.f32.mrb[0].mxu0
        %v6932 = vadd.f32 %v6450, %v6931
        %v6933 = vpop.f32.mrb[0].mxu0
        %v6934 = vadd.f32 %v6454, %v6933
        %v6935 = vpop.f32.mrb[0].mxu0
        %v6936 = vadd.f32 %v6450, %v6935
        %v6937 = vpop.f32.mrb[0].mxu0
        %v6938 = vadd.f32 %v6454, %v6937
        %6939 = vmatprep.mubr.bf16.mxu0 %v6406
        %6940 = vmatmul.mubr.bf16.gmra.mrb[0].mxu0 %v6405
        %v6941 = vpop.f32.mrb[0].mxu0
        %v6942 = vadd.f32 %v6450, %v6941
        %v6943 = vpop.f32.mrb[0].mxu0
        %v6944 = vadd.f32 %v6454, %v6943
        %v6945 = vpop.f32.mrb[0].mxu0
        %v6946 = vadd.f32 %v6450, %v6945
        %v6947 = vpop.f32.mrb[0].mxu0
        %v6948 = vadd.f32 %v6454, %v6947
        %6949 = vmatprep.mubr.bf16.mxu0 %v6408
        %6950 = vmatmul.mubr.bf16.gmra.mrb[0].mxu0 %v6407
        %v6951 = vpop.f32.mrb[0].mxu0
        %v6952 = vadd.f32 %v6450, %v6951
        %v6953 = vpop.f32.mrb[0].mxu0
        %v6954 = vadd.f32 %v6454, %v6953
        %v6955 = vpop.f32.mrb[0].mxu0
        %v6956 = vadd.f32 %v6450, %v6955
        %v6957 = vpop.f32.mrb[0].mxu0
        %v6958 = vadd.f32 %v6454, %v6957
        %6959 = vmatprep.mubr.bf16.mxu0 %v6410
        %6960 = vmatmul.mubr.bf16.gmra.mrb[0].mxu0 %v6409
        %v6961 = vpop.f32.mrb[0].mxu0
        %v6962 = vadd.f32 %v6450, %v6961
        %v6963 = vpop.f32.mrb[0].mxu0
        %v6964 = vadd.f32 %v6454, %v6963
        %v6965 = vpop.f32.mrb[0].mxu0
        %v6966 = vadd.f32 %v6450, %v6965
        %v6967 = vpop.f32.mrb[0].mxu0
        %v6968 = vadd.f32 %v6454, %v6967
        %6969 = vdwg.mxu0
        %v6970 = vmax.f32 %v6652, 0.0
        %v6971 = vmax.f32 %v6654, 0.0
        %v6972 = vmax.f32 %v6656, 0.0
        %v6973 = vmax.f32 %v6658, 0.0
        %v6974 = vmax.f32 %v6662, 0.0
        %v6975 = vmax.f32 %v6664, 0.0
        %v6976 = vmax.f32 %v6666, 0.0
        %v6977 = vmax.f32 %v6668, 0.0
        %v6978 = vmax.f32 %v6672, 0.0
        %v6979 = vmax.f32 %v6674, 0.0
        %v6980 = vmax.f32 %v6676, 0.0
        %v6981 = vmax.f32 %v6678, 0.0
        %v6982 = vmax.f32 %v6682, 0.0
        %v6983 = vmax.f32 %v6684, 0.0
        %v6984 = vmax.f32 %v6686, 0.0
        %v6985 = vmax.f32 %v6688, 0.0
        %v6986 = vmax.f32 %v6692, 0.0
        %v6987 = vmax.f32 %v6694, 0.0
        %v6988 = vmax.f32 %v6696, 0.0
        %v6989 = vmax.f32 %v6698, 0.0
        %v6990 = vmax.f32 %v6702, 0.0
        %v6991 = vmax.f32 %v6704, 0.0
        %v6992 = vmax.f32 %v6706, 0.0
        %v6993 = vmax.f32 %v6708, 0.0
        %v6994 = vmax.f32 %v6712, 0.0
        %v6995 = vmax.f32 %v6714, 0.0
        %v6996 = vmax.f32 %v6716, 0.0
        %v6997 = vmax.f32 %v6718, 0.0
        %v6998 = vmax.f32 %v6722, 0.0
        %v6999 = vmax.f32 %v6724, 0.0
        %v7000 = vmax.f32 %v6726, 0.0
        %v7001 = vmax.f32 %v6728, 0.0
        %v7002 = vmax.f32 %v6732, 0.0
        %v7003 = vmax.f32 %v6734, 0.0
        %v7004 = vmax.f32 %v6736, 0.0
        %v7005 = vmax.f32 %v6738, 0.0
        %v7006 = vmax.f32 %v6742, 0.0
        %v7007 = vmax.f32 %v6744, 0.0
        %v7008 = vmax.f32 %v6746, 0.0
        %v7009 = vmax.f32 %v6748, 0.0
        %v7010 = vmax.f32 %v6752, 0.0
        %v7011 = vmax.f32 %v6754, 0.0
        %v7012 = vmax.f32 %v6756, 0.0
        %v7013 = vmax.f32 %v6758, 0.0
        %v7014 = vmax.f32 %v6762, 0.0
        %v7015 = vmax.f32 %v6764, 0.0
        %v7016 = vmax.f32 %v6766, 0.0
        %v7017 = vmax.f32 %v6768, 0.0
        %v7018 = vmax.f32 %v6772, 0.0
        %v7019 = vmax.f32 %v6774, 0.0
        %v7020 = vmax.f32 %v6776, 0.0
        %v7021 = vmax.f32 %v6778, 0.0
        %v7022 = vmax.f32 %v6782, 0.0
        %v7023 = vmax.f32 %v6784, 0.0
        %v7024 = vmax.f32 %v6786, 0.0
        %v7025 = vmax.f32 %v6788, 0.0
        %v7026 = vmax.f32 %v6792, 0.0
        %v7027 = vmax.f32 %v6794, 0.0
        %v7028 = vmax.f32 %v6796, 0.0
        %v7029 = vmax.f32 %v6798, 0.0
        %v7030 = vmax.f32 %v6802, 0.0
        %v7031 = vmax.f32 %v6804, 0.0
        %v7032 = vmax.f32 %v6806, 0.0
        %v7033 = vmax.f32 %v6808, 0.0
        %v7034 = vmax.f32 %v6812, 0.0
        %v7035 = vmax.f32 %v6814, 0.0
        %v7036 = vmax.f32 %v6816, 0.0
        %v7037 = vmax.f32 %v6818, 0.0
        %v7038 = vmax.f32 %v6822, 0.0
        %v7039 = vmax.f32 %v6824, 0.0
        %v7040 = vmax.f32 %v6826, 0.0
        %v7041 = vmax.f32 %v6828, 0.0
        %v7042 = vmax.f32 %v6832, 0.0
        %v7043 = vmax.f32 %v6834, 0.0
        %v7044 = vmax.f32 %v6836, 0.0
        %v7045 = vmax.f32 %v6838, 0.0
        %v7046 = vmax.f32 %v6842, 0.0
        %v7047 = vmax.f32 %v6844, 0.0
        %v7048 = vmax.f32 %v6846, 0.0
        %v7049 = vmax.f32 %v6848, 0.0
        %v7050 = vmax.f32 %v6852, 0.0
        %v7051 = vmax.f32 %v6854, 0.0
        %v7052 = vmax.f32 %v6856, 0.0
        %v7053 = vmax.f32 %v6858, 0.0
        %v7054 = vmax.f32 %v6862, 0.0
        %v7055 = vmax.f32 %v6864, 0.0
        %v7056 = vmax.f32 %v6866, 0.0
        %v7057 = vmax.f32 %v6868, 0.0
        %v7058 = vmax.f32 %v6872, 0.0
        %v7059 = vmax.f32 %v6874, 0.0
        %v7060 = vmax.f32 %v6876, 0.0
        %v7061 = vmax.f32 %v6878, 0.0
        %v7062 = vmax.f32 %v6882, 0.0
        %v7063 = vmax.f32 %v6884, 0.0
        %v7064 = vmax.f32 %v6886, 0.0
        %v7065 = vmax.f32 %v6888, 0.0
        %v7066 = vmax.f32 %v6892, 0.0
        %v7067 = vmax.f32 %v6894, 0.0
        %v7068 = vmax.f32 %v6896, 0.0
        %v7069 = vmax.f32 %v6898, 0.0
        %v7070 = vmax.f32 %v6902, 0.0
        %v7071 = vmax.f32 %v6904, 0.0
        %v7072 = vmax.f32 %v6906, 0.0
        %v7073 = vmax.f32 %v6908, 0.0
        %v7074 = vmax.f32 %v6912, 0.0
        %v7075 = vmax.f32 %v6914, 0.0
        %v7076 = vmax.f32 %v6916, 0.0
        %v7077 = vmax.f32 %v6918, 0.0
        %v7078 = vmax.f32 %v6922, 0.0
        %v7079 = vmax.f32 %v6924, 0.0
        %v7080 = vmax.f32 %v6926, 0.0
        %v7081 = vmax.f32 %v6928, 0.0
        %v7082 = vmax.f32 %v6932, 0.0
        %v7083 = vmax.f32 %v6934, 0.0
        %v7084 = vmax.f32 %v6936, 0.0
        %v7085 = vmax.f32 %v6938, 0.0
        %v7086 = vmax.f32 %v6942, 0.0
        %v7087 = vmax.f32 %v6944, 0.0
        %v7088 = vmax.f32 %v6946, 0.0
        %v7089 = vmax.f32 %v6948, 0.0
        %v7090 = vmax.f32 %v6952, 0.0
        %v7091 = vmax.f32 %v6954, 0.0
        %v7092 = vmax.f32 %v6956, 0.0
        %v7093 = vmax.f32 %v6958, 0.0
        %v7094 = vmax.f32 %v6962, 0.0
        %v7095 = vmax.f32 %v6964, 0.0
        %v7096 = vmax.f32 %v6966, 0.0
        %v7097 = vmax.f32 %v6968, 0.0
        %v7098 = vpack.c.bf16 %v6972, %v6970
        %v7099 = vpack.c.bf16 %v6973, %v6971
        %v7100 = vpack.c.bf16 %v6976, %v6974
        %v7101 = vpack.c.bf16 %v6977, %v6975
        %v7102 = vpack.c.bf16 %v6980, %v6978
        %v7103 = vpack.c.bf16 %v6981, %v6979
        %v7104 = vpack.c.bf16 %v6984, %v6982
        %v7105 = vpack.c.bf16 %v6985, %v6983
        %v7106 = vpack.c.bf16 %v6988, %v6986
        %v7107 = vpack.c.bf16 %v6989, %v6987
        %v7108 = vpack.c.bf16 %v6992, %v6990
        %v7109 = vpack.c.bf16 %v6993, %v6991
        %v7110 = vpack.c.bf16 %v6996, %v6994
        %v7111 = vpack.c.bf16 %v6997, %v6995
        %v7112 = vpack.c.bf16 %v7000, %v6998
        %v7113 = vpack.c.bf16 %v7001, %v6999
        %v7114 = vpack.c.bf16 %v7004, %v7002
        %v7115 = vpack.c.bf16 %v7005, %v7003
        %v7116 = vpack.c.bf16 %v7008, %v7006
        %v7117 = vpack.c.bf16 %v7009, %v7007
        %v7118 = vpack.c.bf16 %v7012, %v7010
        %v7119 = vpack.c.bf16 %v7013, %v7011
        %v7120 = vpack.c.bf16 %v7016, %v7014
        %v7121 = vpack.c.bf16 %v7017, %v7015
        %v7122 = vpack.c.bf16 %v7020, %v7018
        %v7123 = vpack.c.bf16 %v7021, %v7019
        %v7124 = vpack.c.bf16 %v7024, %v7022
        %v7125 = vpack.c.bf16 %v7025, %v7023
        %v7126 = vpack.c.bf16 %v7028, %v7026
        %v7127 = vpack.c.bf16 %v7029, %v7027
        %v7128 = vpack.c.bf16 %v7032, %v7030
        %v7129 = vpack.c.bf16 %v7033, %v7031
        %v7130 = vpack.c.bf16 %v7036, %v7034
        %v7131 = vpack.c.bf16 %v7037, %v7035
        %v7132 = vpack.c.bf16 %v7040, %v7038
        %v7133 = vpack.c.bf16 %v7041, %v7039
        %v7134 = vpack.c.bf16 %v7044, %v7042
        %v7135 = vpack.c.bf16 %v7045, %v7043
        %v7136 = vpack.c.bf16 %v7048, %v7046
        %v7137 = vpack.c.bf16 %v7049, %v7047
        %v7138 = vpack.c.bf16 %v7052, %v7050
        %v7139 = vpack.c.bf16 %v7053, %v7051
        %v7140 = vpack.c.bf16 %v7056, %v7054
        %v7141 = vpack.c.bf16 %v7057, %v7055
        %v7142 = vpack.c.bf16 %v7060, %v7058
        %v7143 = vpack.c.bf16 %v7061, %v7059
        %v7144 = vpack.c.bf16 %v7064, %v7062
        %v7145 = vpack.c.bf16 %v7065, %v7063
        %v7146 = vpack.c.bf16 %v7068, %v7066
        %v7147 = vpack.c.bf16 %v7069, %v7067
        %v7148 = vpack.c.bf16 %v7072, %v7070
        %v7149 = vpack.c.bf16 %v7073, %v7071
        %v7150 = vpack.c.bf16 %v7076, %v7074
        %v7151 = vpack.c.bf16 %v7077, %v7075
        %v7152 = vpack.c.bf16 %v7080, %v7078
        %v7153 = vpack.c.bf16 %v7081, %v7079
        %v7154 = vpack.c.bf16 %v7084, %v7082
        %v7155 = vpack.c.bf16 %v7085, %v7083
        %v7156 = vpack.c.bf16 %v7088, %v7086
        %v7157 = vpack.c.bf16 %v7089, %v7087
        %v7158 = vpack.c.bf16 %v7092, %v7090
        %v7159 = vpack.c.bf16 %v7093, %v7091
        %v7160 = vpack.c.bf16 %v7096, %v7094
        %v7161 = vpack.c.bf16 %v7097, %v7095
        %v7162 = vld [vmem:[%s9] sm:$0xff]
        %v7163 = vld [vmem:[%s9 + $0x8] sm:$0xf]
        %v7164 = vld [vmem:[%s9 + $0xc] sm:$0xff]
        %v7165 = vld [vmem:[%s9 + $0x14] sm:$0xf]
        %v7166 = vld [vmem:[%s9 + $0x18] sm:$0xff]
        %v7167 = vld [vmem:[%s9 + $0x20] sm:$0xf]
        %v7168 = vld [vmem:[%s9 + $0x24] sm:$0xff]
        %v7169 = vld [vmem:[%s9 + $0x2c] sm:$0xf]
        %v7170 = vld [vmem:[%s9 + $0x30] sm:$0xff]
        %v7171 = vld [vmem:[%s9 + $0x38] sm:$0xf]
        %v7172 = vld [vmem:[%s9 + $0x3c] sm:$0xff]
        %v7173 = vld [vmem:[%s9 + $0x44] sm:$0xf]
        %v7174 = vld [vmem:[%s9 + $0x48] sm:$0xff]
        %v7175 = vld [vmem:[%s9 + $0x50] sm:$0xf]
        %v7176 = vld [vmem:[%s9 + $0x54] sm:$0xff]
        %v7177 = vld [vmem:[%s9 + $0x5c] sm:$0xf]
        %v7178 = vld [vmem:[%s9 + $0x60] sm:$0xff]
        %v7179 = vld [vmem:[%s9 + $0x68] sm:$0xf]
        %v7180 = vld [vmem:[%s9 + $0x6c] sm:$0xff]
        %v7181 = vld [vmem:[%s9 + $0x74] sm:$0xf]
        %v7182 = vld [vmem:[%s9 + $0x78] sm:$0xff]
        %v7183 = vld [vmem:[%s9 + $0x80] sm:$0xf]
        %v7184 = vld [vmem:[%s9 + $0x84] sm:$0xff]
        %v7185 = vld [vmem:[%s9 + $0x8c] sm:$0xf]
        %v7186 = vld [vmem:[%s9 + $0x90] sm:$0xff]
        %v7187 = vld [vmem:[%s9 + $0x98] sm:$0xf]
        %v7188 = vld [vmem:[%s9 + $0x9c] sm:$0xff]
        %v7189 = vld [vmem:[%s9 + $0xa4] sm:$0xf]
        %v7190 = vld [vmem:[%s9 + $0xa8] sm:$0xff]
        %v7191 = vld [vmem:[%s9 + $0xb0] sm:$0xf]
        %v7192 = vld [vmem:[%s9 + $0xb4] sm:$0xff]
        %v7193 = vld [vmem:[%s9 + $0xbc] sm:$0xf]
        %v7194 = vld [vmem:[%s9 + $0xc0] sm:$0xff]
        %v7195 = vld [vmem:[%s9 + $0xc8] sm:$0xf]
        %v7196 = vld [vmem:[%s9 + $0xcc] sm:$0xff]
        %v7197 = vld [vmem:[%s9 + $0xd4] sm:$0xf]
        %v7198 = vld [vmem:[%s9 + $0xd8] sm:$0xff]
        %v7199 = vld [vmem:[%s9 + $0xe0] sm:$0xf]
        %v7200 = vld [vmem:[%s9 + $0xe4] sm:$0xff]
        %v7201 = vld [vmem:[%s9 + $0xec] sm:$0xf]
        %v7202 = vld [vmem:[%s9 + $0xf0] sm:$0xff]
        %v7203 = vld [vmem:[%s9 + $0xf8] sm:$0xf]
        %v7204 = vld [vmem:[%s9 + $0xfc] sm:$0xff]
        %v7205 = vld [vmem:[%s9 + $0x104] sm:$0xf]
        %v7206 = vld [vmem:[%s9 + $0x108] sm:$0xff]
        %v7207 = vld [vmem:[%s9 + $0x110] sm:$0xf]
        %v7208 = vld [vmem:[%s9 + $0x114] sm:$0xff]
        %v7209 = vld [vmem:[%s9 + $0x11c] sm:$0xf]
        %v7210 = vld [vmem:[%s9 + $0x120] sm:$0xff]
        %v7211 = vld [vmem:[%s9 + $0x128] sm:$0xf]
        %v7212 = vld [vmem:[%s9 + $0x12c] sm:$0xff]
        %v7213 = vld [vmem:[%s9 + $0x134] sm:$0xf]
        %v7214 = vld [vmem:[%s9 + $0x138] sm:$0xff]
        %v7215 = vld [vmem:[%s9 + $0x140] sm:$0xf]
        %v7216 = vld [vmem:[%s9 + $0x144] sm:$0xff]
        %v7217 = vld [vmem:[%s9 + $0x14c] sm:$0xf]
        %v7218 = vld [vmem:[%s9 + $0x150] sm:$0xff]
        %v7219 = vld [vmem:[%s9 + $0x158] sm:$0xf]
        %v7220 = vld [vmem:[%s9 + $0x15c] sm:$0xff]
        %v7221 = vld [vmem:[%s9 + $0x164] sm:$0xf]
        %v7222 = vld [vmem:[%s9 + $0x168] sm:$0xff]
        %v7223 = vld [vmem:[%s9 + $0x170] sm:$0xf]
        %v7224 = vld [vmem:[%s9 + $0x174] sm:$0xff]
        %v7225 = vld [vmem:[%s9 + $0x17c] sm:$0xf]
        %v7226 = vld [vmem:[%s10] sm:$0x7]
        %v7228 = vlaneseq
        %v7229 = vshrl.u32 %v7228, 7
        %v7230 = vsub.s32 0, %v7229
        %v7231 = vrot.slane %v7226, %v7230
        %v7232 = vlaneseq
        %v7233 = vshrl.u32 %v7232, 7
        %v7234 = vsub.s32 1, %v7233
        %v7235 = vrot.slane %v7226, %v7234
        %v7236 = vlaneseq
        %v7237 = vshrl.u32 %v7236, 7
        %v7238 = vsub.s32 2, %v7237
        %v7239 = vrot.slane %v7226, %v7238
        %v7307 = vunpack.c.l.b16 %v7162
        %v7308 = vunpack.c.h.b16 %v7162
        %v7309 = vunpack.c.l.b16 %v7163
        %v7310 = vunpack.c.l.b16 %v7164
        %v7311 = vunpack.c.h.b16 %v7164
        %v7312 = vunpack.c.l.b16 %v7165
        %v7313 = vunpack.c.l.b16 %v7166
        %v7314 = vunpack.c.h.b16 %v7166
        %v7315 = vunpack.c.l.b16 %v7167
        %v7316 = vunpack.c.l.b16 %v7168
        %v7317 = vunpack.c.h.b16 %v7168
        %v7318 = vunpack.c.l.b16 %v7169
        %v7319 = vunpack.c.l.b16 %v7170
        %v7320 = vunpack.c.h.b16 %v7170
        %v7321 = vunpack.c.l.b16 %v7171
        %v7322 = vunpack.c.l.b16 %v7172
        %v7323 = vunpack.c.h.b16 %v7172
        %v7324 = vunpack.c.l.b16 %v7173
        %v7325 = vunpack.c.l.b16 %v7174
        %v7326 = vunpack.c.h.b16 %v7174
        %v7327 = vunpack.c.l.b16 %v7175
        %v7328 = vunpack.c.l.b16 %v7176
        %v7329 = vunpack.c.h.b16 %v7176
        %v7330 = vunpack.c.l.b16 %v7177
        %v7331 = vunpack.c.l.b16 %v7178
        %v7332 = vunpack.c.h.b16 %v7178
        %v7333 = vunpack.c.l.b16 %v7179
        %v7334 = vunpack.c.l.b16 %v7180
        %v7335 = vunpack.c.h.b16 %v7180
        %v7336 = vunpack.c.l.b16 %v7181
        %v7337 = vunpack.c.l.b16 %v7182
        %v7338 = vunpack.c.h.b16 %v7182
        %v7339 = vunpack.c.l.b16 %v7183
        %v7340 = vunpack.c.l.b16 %v7184
        %v7341 = vunpack.c.h.b16 %v7184
        %v7342 = vunpack.c.l.b16 %v7185
        %v7343 = vunpack.c.l.b16 %v7186
        %v7344 = vunpack.c.h.b16 %v7186
        %v7345 = vunpack.c.l.b16 %v7187
        %v7346 = vunpack.c.l.b16 %v7188
        %v7347 = vunpack.c.h.b16 %v7188
        %v7348 = vunpack.c.l.b16 %v7189
        %v7349 = vunpack.c.l.b16 %v7190
        %v7350 = vunpack.c.h.b16 %v7190
        %v7351 = vunpack.c.l.b16 %v7191
        %v7352 = vunpack.c.l.b16 %v7192
        %v7353 = vunpack.c.h.b16 %v7192
        %v7354 = vunpack.c.l.b16 %v7193
        %v7355 = vunpack.c.l.b16 %v7194
        %v7356 = vunpack.c.h.b16 %v7194
        %v7357 = vunpack.c.l.b16 %v7195
        %v7358 = vunpack.c.l.b16 %v7196
        %v7359 = vunpack.c.h.b16 %v7196
        %v7360 = vunpack.c.l.b16 %v7197
        %v7361 = vunpack.c.l.b16 %v7198
        %v7362 = vunpack.c.h.b16 %v7198
        %v7363 = vunpack.c.l.b16 %v7199
        %v7364 = vunpack.c.l.b16 %v7200
        %v7365 = vunpack.c.h.b16 %v7200
        %v7366 = vunpack.c.l.b16 %v7201
        %v7367 = vunpack.c.l.b16 %v7202
        %v7368 = vunpack.c.h.b16 %v7202
        %v7369 = vunpack.c.l.b16 %v7203
        %v7370 = vunpack.c.l.b16 %v7204
        %v7371 = vunpack.c.h.b16 %v7204
        %v7372 = vunpack.c.l.b16 %v7205
        %v7373 = vunpack.c.l.b16 %v7206
        %v7374 = vunpack.c.h.b16 %v7206
        %v7375 = vunpack.c.l.b16 %v7207
        %v7376 = vunpack.c.l.b16 %v7208
        %v7377 = vunpack.c.h.b16 %v7208
        %v7378 = vunpack.c.l.b16 %v7209
        %v7379 = vunpack.c.l.b16 %v7210
        %v7380 = vunpack.c.h.b16 %v7210
        %v7381 = vunpack.c.l.b16 %v7211
        %v7382 = vunpack.c.l.b16 %v7212
        %v7383 = vunpack.c.h.b16 %v7212
        %v7384 = vunpack.c.l.b16 %v7213
        %v7385 = vunpack.c.l.b16 %v7214
        %v7386 = vunpack.c.h.b16 %v7214
        %v7387 = vunpack.c.l.b16 %v7215
        %v7388 = vunpack.c.l.b16 %v7216
        %v7389 = vunpack.c.h.b16 %v7216
        %v7390 = vunpack.c.l.b16 %v7217
        %v7391 = vunpack.c.l.b16 %v7218
        %v7392 = vunpack.c.h.b16 %v7218
        %v7393 = vunpack.c.l.b16 %v7219
        %v7394 = vunpack.c.l.b16 %v7220
        %v7395 = vunpack.c.h.b16 %v7220
        %v7396 = vunpack.c.l.b16 %v7221
        %v7397 = vunpack.c.l.b16 %v7222
        %v7398 = vunpack.c.h.b16 %v7222
        %v7399 = vunpack.c.l.b16 %v7223
        %v7400 = vunpack.c.l.b16 %v7224
        %v7401 = vunpack.c.h.b16 %v7224
        %v7402 = vunpack.c.l.b16 %v7225
        %v7403 = vpack.c.b16 %v7310, %v7307
        %v7404 = vpack.c.b16 %v7311, %v7308
        %v7405 = vpack.c.b16 %v7312, %v7309
        %v7406 = vpack.c.b16 %v7316, %v7313
        %v7407 = vpack.c.b16 %v7317, %v7314
        %v7408 = vpack.c.b16 %v7318, %v7315
        %v7409 = vpack.c.b16 %v7322, %v7319
        %v7410 = vpack.c.b16 %v7323, %v7320
        %v7411 = vpack.c.b16 %v7324, %v7321
        %v7412 = vpack.c.b16 %v7328, %v7325
        %v7413 = vpack.c.b16 %v7329, %v7326
        %v7414 = vpack.c.b16 %v7330, %v7327
        %v7415 = vpack.c.b16 %v7334, %v7331
        %v7416 = vpack.c.b16 %v7335, %v7332
        %v7417 = vpack.c.b16 %v7336, %v7333
        %v7418 = vpack.c.b16 %v7340, %v7337
        %v7419 = vpack.c.b16 %v7341, %v7338
        %v7420 = vpack.c.b16 %v7342, %v7339
        %v7421 = vpack.c.b16 %v7346, %v7343
        %v7422 = vpack.c.b16 %v7347, %v7344
        %v7423 = vpack.c.b16 %v7348, %v7345
        %v7424 = vpack.c.b16 %v7352, %v7349
        %v7425 = vpack.c.b16 %v7353, %v7350
        %v7426 = vpack.c.b16 %v7354, %v7351
        %v7427 = vpack.c.b16 %v7358, %v7355
        %v7428 = vpack.c.b16 %v7359, %v7356
        %v7429 = vpack.c.b16 %v7360, %v7357
        %v7430 = vpack.c.b16 %v7364, %v7361
        %v7431 = vpack.c.b16 %v7365, %v7362
        %v7432 = vpack.c.b16 %v7366, %v7363
        %v7433 = vpack.c.b16 %v7370, %v7367
        %v7434 = vpack.c.b16 %v7371, %v7368
        %v7435 = vpack.c.b16 %v7372, %v7369
        %v7436 = vpack.c.b16 %v7376, %v7373
        %v7437 = vpack.c.b16 %v7377, %v7374
        %v7438 = vpack.c.b16 %v7378, %v7375
        %v7439 = vpack.c.b16 %v7382, %v7379
        %v7440 = vpack.c.b16 %v7383, %v7380
        %v7441 = vpack.c.b16 %v7384, %v7381
        %v7442 = vpack.c.b16 %v7388, %v7385
        %v7443 = vpack.c.b16 %v7389, %v7386
        %v7444 = vpack.c.b16 %v7390, %v7387
        %v7445 = vpack.c.b16 %v7394, %v7391
        %v7446 = vpack.c.b16 %v7395, %v7392
        %v7447 = vpack.c.b16 %v7396, %v7393
        %v7448 = vpack.c.b16 %v7400, %v7397
        %v7449 = vpack.c.b16 %v7401, %v7398
        %v7450 = vpack.c.b16 %v7402, %v7399
        %7499 = vmatprep.subr.bf16.mxu0 %v7404
        %7500 = vmatpush1.bf16.msra.mxu0 %v7403
        %7501 = vmatprep.subr.bf16.mxu0 %v7407
        %7502 = vmatpush1.bf16.msra.mxu0 %v7406
        %7503 = vmatprep.subr.bf16.mxu0 %v7410
        %7504 = vmatpush1.bf16.msra.mxu0 %v7409
        %7505 = vmatprep.subr.bf16.mxu0 %v7413
        %7506 = vmatpush1.bf16.msra.mxu0 %v7412
        %7507 = vmatprep.subr.bf16.mxu0 %v7416
        %7508 = vmatpush1.bf16.msra.mxu0 %v7415
        %7509 = vmatprep.subr.bf16.mxu0 %v7419
        %7510 = vmatpush1.bf16.msra.mxu0 %v7418
        %7511 = vmatprep.subr.bf16.mxu0 %v7422
        %7512 = vmatpush1.bf16.msra.mxu0 %v7421
        %7513 = vmatprep.subr.bf16.mxu0 %v7425
        %7514 = vmatpush1.bf16.msra.mxu0 %v7424
        %7515 = vmatprep.subr.bf16.mxu0 %v7428
        %7516 = vmatpush1.bf16.msra.mxu0 %v7427
        %7517 = vmatprep.subr.bf16.mxu0 %v7431
        %7518 = vmatpush1.bf16.msra.mxu0 %v7430
        %7519 = vmatprep.subr.bf16.mxu0 %v7434
        %7520 = vmatpush1.bf16.msra.mxu0 %v7433
        %7521 = vmatprep.subr.bf16.mxu0 %v7437
        %7522 = vmatpush1.bf16.msra.mxu0 %v7436
        %7523 = vmatprep.subr.bf16.mxu0 %v7440
        %7524 = vmatpush1.bf16.msra.mxu0 %v7439
        %7525 = vmatprep.subr.bf16.mxu0 %v7443
        %7526 = vmatpush1.bf16.msra.mxu0 %v7442
        %7527 = vmatprep.subr.bf16.mxu0 %v7446
        %7528 = vmatpush1.bf16.msra.mxu0 %v7445
        %7529 = vmatprep.subr.bf16.mxu0 %v7449
        %7530 = vmatpush1.bf16.msra.mxu0 %v7448
        %7531 = vmatprep.mubr.bf16.mxu0 %v7099
        %7532 = vmatmul.mubr.bf16.gmra.mrb[0].mxu0 %v7098
        %v7533 = vpop.f32.mrb[0].mxu0
        %v7534 = vadd.f32 %v7231, %v7533
        %v7535 = vpop.f32.mrb[0].mxu0
        %v7536 = vadd.f32 %v7235, %v7535
        %v7537 = vpop.f32.mrb[0].mxu0
        %v7538 = vadd.f32 %v7231, %v7537
        %v7539 = vpop.f32.mrb[0].mxu0
        %v7540 = vadd.f32 %v7235, %v7539
        %7541 = vmatprep.mubr.bf16.mxu0 %v7101
        %7542 = vmatmul.mubr.bf16.gmra.mrb[0].mxu0 %v7100
        %v7543 = vpop.f32.mrb[0].mxu0
        %v7544 = vadd.f32 %v7231, %v7543
        %v7545 = vpop.f32.mrb[0].mxu0
        %v7546 = vadd.f32 %v7235, %v7545
        %v7547 = vpop.f32.mrb[0].mxu0
        %v7548 = vadd.f32 %v7231, %v7547
        %v7549 = vpop.f32.mrb[0].mxu0
        %v7550 = vadd.f32 %v7235, %v7549
        %7551 = vmatprep.mubr.bf16.mxu0 %v7103
        %7552 = vmatmul.mubr.bf16.gmra.mrb[0].mxu0 %v7102
        %v7553 = vpop.f32.mrb[0].mxu0
        %v7554 = vadd.f32 %v7231, %v7553
        %v7555 = vpop.f32.mrb[0].mxu0
        %v7556 = vadd.f32 %v7235, %v7555
        %v7557 = vpop.f32.mrb[0].mxu0
        %v7558 = vadd.f32 %v7231, %v7557
        %v7559 = vpop.f32.mrb[0].mxu0
        %v7560 = vadd.f32 %v7235, %v7559
        %7561 = vmatprep.mubr.bf16.mxu0 %v7105
        %7562 = vmatmul.mubr.bf16.gmra.mrb[0].mxu0 %v7104
        %v7563 = vpop.f32.mrb[0].mxu0
        %v7564 = vadd.f32 %v7231, %v7563
        %v7565 = vpop.f32.mrb[0].mxu0
        %v7566 = vadd.f32 %v7235, %v7565
        %v7567 = vpop.f32.mrb[0].mxu0
        %v7568 = vadd.f32 %v7231, %v7567
        %v7569 = vpop.f32.mrb[0].mxu0
        %v7570 = vadd.f32 %v7235, %v7569
        %7571 = vmatprep.mubr.bf16.mxu0 %v7107
        %7572 = vmatmul.mubr.bf16.gmra.mrb[0].mxu0 %v7106
        %v7573 = vpop.f32.mrb[0].mxu0
        %v7574 = vadd.f32 %v7231, %v7573
        %v7575 = vpop.f32.mrb[0].mxu0
        %v7576 = vadd.f32 %v7235, %v7575
        %v7577 = vpop.f32.mrb[0].mxu0
        %v7578 = vadd.f32 %v7231, %v7577
        %v7579 = vpop.f32.mrb[0].mxu0
        %v7580 = vadd.f32 %v7235, %v7579
        %7581 = vmatprep.mubr.bf16.mxu0 %v7109
        %7582 = vmatmul.mubr.bf16.gmra.mrb[0].mxu0 %v7108
        %v7583 = vpop.f32.mrb[0].mxu0
        %v7584 = vadd.f32 %v7231, %v7583
        %v7585 = vpop.f32.mrb[0].mxu0
        %v7586 = vadd.f32 %v7235, %v7585
        %v7587 = vpop.f32.mrb[0].mxu0
        %v7588 = vadd.f32 %v7231, %v7587
        %v7589 = vpop.f32.mrb[0].mxu0
        %v7590 = vadd.f32 %v7235, %v7589
        %7591 = vmatprep.mubr.bf16.mxu0 %v7111
        %7592 = vmatmul.mubr.bf16.gmra.mrb[0].mxu0 %v7110
        %v7593 = vpop.f32.mrb[0].mxu0
        %v7594 = vadd.f32 %v7231, %v7593
        %v7595 = vpop.f32.mrb[0].mxu0
        %v7596 = vadd.f32 %v7235, %v7595
        %v7597 = vpop.f32.mrb[0].mxu0
        %v7598 = vadd.f32 %v7231, %v7597
        %v7599 = vpop.f32.mrb[0].mxu0
        %v7600 = vadd.f32 %v7235, %v7599
        %7601 = vmatprep.mubr.bf16.mxu0 %v7113
        %7602 = vmatmul.mubr.bf16.gmra.mrb[0].mxu0 %v7112
        %v7603 = vpop.f32.mrb[0].mxu0
        %v7604 = vadd.f32 %v7231, %v7603
        %v7605 = vpop.f32.mrb[0].mxu0
        %v7606 = vadd.f32 %v7235, %v7605
        %v7607 = vpop.f32.mrb[0].mxu0
        %v7608 = vadd.f32 %v7231, %v7607
        %v7609 = vpop.f32.mrb[0].mxu0
        %v7610 = vadd.f32 %v7235, %v7609
        %7611 = vmatprep.mubr.bf16.mxu0 %v7115
        %7612 = vmatmul.mubr.bf16.gmra.mrb[0].mxu0 %v7114
        %v7613 = vpop.f32.mrb[0].mxu0
        %v7614 = vadd.f32 %v7231, %v7613
        %v7615 = vpop.f32.mrb[0].mxu0
        %v7616 = vadd.f32 %v7235, %v7615
        %v7617 = vpop.f32.mrb[0].mxu0
        %v7618 = vadd.f32 %v7231, %v7617
        %v7619 = vpop.f32.mrb[0].mxu0
        %v7620 = vadd.f32 %v7235, %v7619
        %7621 = vmatprep.mubr.bf16.mxu0 %v7117
        %7622 = vmatmul.mubr.bf16.gmra.mrb[0].mxu0 %v7116
        %v7623 = vpop.f32.mrb[0].mxu0
        %v7624 = vadd.f32 %v7231, %v7623
        %v7625 = vpop.f32.mrb[0].mxu0
        %v7626 = vadd.f32 %v7235, %v7625
        %v7627 = vpop.f32.mrb[0].mxu0
        %v7628 = vadd.f32 %v7231, %v7627
        %v7629 = vpop.f32.mrb[0].mxu0
        %v7630 = vadd.f32 %v7235, %v7629
        %7631 = vmatprep.mubr.bf16.mxu0 %v7119
        %7632 = vmatmul.mubr.bf16.gmra.mrb[0].mxu0 %v7118
        %v7633 = vpop.f32.mrb[0].mxu0
        %v7634 = vadd.f32 %v7231, %v7633
        %v7635 = vpop.f32.mrb[0].mxu0
        %v7636 = vadd.f32 %v7235, %v7635
        %v7637 = vpop.f32.mrb[0].mxu0
        %v7638 = vadd.f32 %v7231, %v7637
        %v7639 = vpop.f32.mrb[0].mxu0
        %v7640 = vadd.f32 %v7235, %v7639
        %7641 = vmatprep.mubr.bf16.mxu0 %v7121
        %7642 = vmatmul.mubr.bf16.gmra.mrb[0].mxu0 %v7120
        %v7643 = vpop.f32.mrb[0].mxu0
        %v7644 = vadd.f32 %v7231, %v7643
        %v7645 = vpop.f32.mrb[0].mxu0
        %v7646 = vadd.f32 %v7235, %v7645
        %v7647 = vpop.f32.mrb[0].mxu0
        %v7648 = vadd.f32 %v7231, %v7647
        %v7649 = vpop.f32.mrb[0].mxu0
        %v7650 = vadd.f32 %v7235, %v7649
        %7651 = vmatprep.mubr.bf16.mxu0 %v7123
        %7652 = vmatmul.mubr.bf16.gmra.mrb[0].mxu0 %v7122
        %v7653 = vpop.f32.mrb[0].mxu0
        %v7654 = vadd.f32 %v7231, %v7653
        %v7655 = vpop.f32.mrb[0].mxu0
        %v7656 = vadd.f32 %v7235, %v7655
        %v7657 = vpop.f32.mrb[0].mxu0
        %v7658 = vadd.f32 %v7231, %v7657
        %v7659 = vpop.f32.mrb[0].mxu0
        %v7660 = vadd.f32 %v7235, %v7659
        %7661 = vmatprep.mubr.bf16.mxu0 %v7125
        %7662 = vmatmul.mubr.bf16.gmra.mrb[0].mxu0 %v7124
        %v7663 = vpop.f32.mrb[0].mxu0
        %v7664 = vadd.f32 %v7231, %v7663
        %v7665 = vpop.f32.mrb[0].mxu0
        %v7666 = vadd.f32 %v7235, %v7665
        %v7667 = vpop.f32.mrb[0].mxu0
        %v7668 = vadd.f32 %v7231, %v7667
        %v7669 = vpop.f32.mrb[0].mxu0
        %v7670 = vadd.f32 %v7235, %v7669
        %7671 = vmatprep.mubr.bf16.mxu0 %v7127
        %7672 = vmatmul.mubr.bf16.gmra.mrb[0].mxu0 %v7126
        %v7673 = vpop.f32.mrb[0].mxu0
        %v7674 = vadd.f32 %v7231, %v7673
        %v7675 = vpop.f32.mrb[0].mxu0
        %v7676 = vadd.f32 %v7235, %v7675
        %v7677 = vpop.f32.mrb[0].mxu0
        %v7678 = vadd.f32 %v7231, %v7677
        %v7679 = vpop.f32.mrb[0].mxu0
        %v7680 = vadd.f32 %v7235, %v7679
        %7681 = vmatprep.mubr.bf16.mxu0 %v7129
        %7682 = vmatmul.mubr.bf16.gmra.mrb[0].mxu0 %v7128
        %v7683 = vpop.f32.mrb[0].mxu0
        %v7684 = vadd.f32 %v7231, %v7683
        %v7685 = vpop.f32.mrb[0].mxu0
        %v7686 = vadd.f32 %v7235, %v7685
        %v7687 = vpop.f32.mrb[0].mxu0
        %v7688 = vadd.f32 %v7231, %v7687
        %v7689 = vpop.f32.mrb[0].mxu0
        %v7690 = vadd.f32 %v7235, %v7689
        %7691 = vmatprep.mubr.bf16.mxu0 %v7131
        %7692 = vmatmul.mubr.bf16.gmra.mrb[0].mxu0 %v7130
        %v7693 = vpop.f32.mrb[0].mxu0
        %v7694 = vadd.f32 %v7231, %v7693
        %v7695 = vpop.f32.mrb[0].mxu0
        %v7696 = vadd.f32 %v7235, %v7695
        %v7697 = vpop.f32.mrb[0].mxu0
        %v7698 = vadd.f32 %v7231, %v7697
        %v7699 = vpop.f32.mrb[0].mxu0
        %v7700 = vadd.f32 %v7235, %v7699
        %7701 = vmatprep.mubr.bf16.mxu0 %v7133
        %7702 = vmatmul.mubr.bf16.gmra.mrb[0].mxu0 %v7132
        %v7703 = vpop.f32.mrb[0].mxu0
        %v7704 = vadd.f32 %v7231, %v7703
        %v7705 = vpop.f32.mrb[0].mxu0
        %v7706 = vadd.f32 %v7235, %v7705
        %v7707 = vpop.f32.mrb[0].mxu0
        %v7708 = vadd.f32 %v7231, %v7707
        %v7709 = vpop.f32.mrb[0].mxu0
        %v7710 = vadd.f32 %v7235, %v7709
        %7711 = vmatprep.mubr.bf16.mxu0 %v7135
        %7712 = vmatmul.mubr.bf16.gmra.mrb[0].mxu0 %v7134
        %v7713 = vpop.f32.mrb[0].mxu0
        %v7714 = vadd.f32 %v7231, %v7713
        %v7715 = vpop.f32.mrb[0].mxu0
        %v7716 = vadd.f32 %v7235, %v7715
        %v7717 = vpop.f32.mrb[0].mxu0
        %v7718 = vadd.f32 %v7231, %v7717
        %v7719 = vpop.f32.mrb[0].mxu0
        %v7720 = vadd.f32 %v7235, %v7719
        %7721 = vmatprep.mubr.bf16.mxu0 %v7137
        %7722 = vmatmul.mubr.bf16.gmra.mrb[0].mxu0 %v7136
        %v7723 = vpop.f32.mrb[0].mxu0
        %v7724 = vadd.f32 %v7231, %v7723
        %v7725 = vpop.f32.mrb[0].mxu0
        %v7726 = vadd.f32 %v7235, %v7725
        %v7727 = vpop.f32.mrb[0].mxu0
        %v7728 = vadd.f32 %v7231, %v7727
        %v7729 = vpop.f32.mrb[0].mxu0
        %v7730 = vadd.f32 %v7235, %v7729
        %7731 = vmatprep.mubr.bf16.mxu0 %v7139
        %7732 = vmatmul.mubr.bf16.gmra.mrb[0].mxu0 %v7138
        %v7733 = vpop.f32.mrb[0].mxu0
        %v7734 = vadd.f32 %v7231, %v7733
        %v7735 = vpop.f32.mrb[0].mxu0
        %v7736 = vadd.f32 %v7235, %v7735
        %v7737 = vpop.f32.mrb[0].mxu0
        %v7738 = vadd.f32 %v7231, %v7737
        %v7739 = vpop.f32.mrb[0].mxu0
        %v7740 = vadd.f32 %v7235, %v7739
        %7741 = vmatprep.mubr.bf16.mxu0 %v7141
        %7742 = vmatmul.mubr.bf16.gmra.mrb[0].mxu0 %v7140
        %v7743 = vpop.f32.mrb[0].mxu0
        %v7744 = vadd.f32 %v7231, %v7743
        %v7745 = vpop.f32.mrb[0].mxu0
        %v7746 = vadd.f32 %v7235, %v7745
        %v7747 = vpop.f32.mrb[0].mxu0
        %v7748 = vadd.f32 %v7231, %v7747
        %v7749 = vpop.f32.mrb[0].mxu0
        %v7750 = vadd.f32 %v7235, %v7749
        %7751 = vmatprep.mubr.bf16.mxu0 %v7143
        %7752 = vmatmul.mubr.bf16.gmra.mrb[0].mxu0 %v7142
        %v7753 = vpop.f32.mrb[0].mxu0
        %v7754 = vadd.f32 %v7231, %v7753
        %v7755 = vpop.f32.mrb[0].mxu0
        %v7756 = vadd.f32 %v7235, %v7755
        %v7757 = vpop.f32.mrb[0].mxu0
        %v7758 = vadd.f32 %v7231, %v7757
        %v7759 = vpop.f32.mrb[0].mxu0
        %v7760 = vadd.f32 %v7235, %v7759
        %7761 = vmatprep.mubr.bf16.mxu0 %v7145
        %7762 = vmatmul.mubr.bf16.gmra.mrb[0].mxu0 %v7144
        %v7763 = vpop.f32.mrb[0].mxu0
        %v7764 = vadd.f32 %v7231, %v7763
        %v7765 = vpop.f32.mrb[0].mxu0
        %v7766 = vadd.f32 %v7235, %v7765
        %v7767 = vpop.f32.mrb[0].mxu0
        %v7768 = vadd.f32 %v7231, %v7767
        %v7769 = vpop.f32.mrb[0].mxu0
        %v7770 = vadd.f32 %v7235, %v7769
        %7771 = vmatprep.mubr.bf16.mxu0 %v7147
        %7772 = vmatmul.mubr.bf16.gmra.mrb[0].mxu0 %v7146
        %v7773 = vpop.f32.mrb[0].mxu0
        %v7774 = vadd.f32 %v7231, %v7773
        %v7775 = vpop.f32.mrb[0].mxu0
        %v7776 = vadd.f32 %v7235, %v7775
        %v7777 = vpop.f32.mrb[0].mxu0
        %v7778 = vadd.f32 %v7231, %v7777
        %v7779 = vpop.f32.mrb[0].mxu0
        %v7780 = vadd.f32 %v7235, %v7779
        %7781 = vmatprep.mubr.bf16.mxu0 %v7149
        %7782 = vmatmul.mubr.bf16.gmra.mrb[0].mxu0 %v7148
        %v7783 = vpop.f32.mrb[0].mxu0
        %v7784 = vadd.f32 %v7231, %v7783
        %v7785 = vpop.f32.mrb[0].mxu0
        %v7786 = vadd.f32 %v7235, %v7785
        %v7787 = vpop.f32.mrb[0].mxu0
        %v7788 = vadd.f32 %v7231, %v7787
        %v7789 = vpop.f32.mrb[0].mxu0
        %v7790 = vadd.f32 %v7235, %v7789
        %7791 = vmatprep.mubr.bf16.mxu0 %v7151
        %7792 = vmatmul.mubr.bf16.gmra.mrb[0].mxu0 %v7150
        %v7793 = vpop.f32.mrb[0].mxu0
        %v7794 = vadd.f32 %v7231, %v7793
        %v7795 = vpop.f32.mrb[0].mxu0
        %v7796 = vadd.f32 %v7235, %v7795
        %v7797 = vpop.f32.mrb[0].mxu0
        %v7798 = vadd.f32 %v7231, %v7797
        %v7799 = vpop.f32.mrb[0].mxu0
        %v7800 = vadd.f32 %v7235, %v7799
        %7801 = vmatprep.mubr.bf16.mxu0 %v7153
        %7802 = vmatmul.mubr.bf16.gmra.mrb[0].mxu0 %v7152
        %v7803 = vpop.f32.mrb[0].mxu0
        %v7804 = vadd.f32 %v7231, %v7803
        %v7805 = vpop.f32.mrb[0].mxu0
        %v7806 = vadd.f32 %v7235, %v7805
        %v7807 = vpop.f32.mrb[0].mxu0
        %v7808 = vadd.f32 %v7231, %v7807
        %v7809 = vpop.f32.mrb[0].mxu0
        %v7810 = vadd.f32 %v7235, %v7809
        %7811 = vmatprep.mubr.bf16.mxu0 %v7155
        %7812 = vmatmul.mubr.bf16.gmra.mrb[0].mxu0 %v7154
        %v7813 = vpop.f32.mrb[0].mxu0
        %v7814 = vadd.f32 %v7231, %v7813
        %v7815 = vpop.f32.mrb[0].mxu0
        %v7816 = vadd.f32 %v7235, %v7815
        %v7817 = vpop.f32.mrb[0].mxu0
        %v7818 = vadd.f32 %v7231, %v7817
        %v7819 = vpop.f32.mrb[0].mxu0
        %v7820 = vadd.f32 %v7235, %v7819
        %7821 = vmatprep.mubr.bf16.mxu0 %v7157
        %7822 = vmatmul.mubr.bf16.gmra.mrb[0].mxu0 %v7156
        %v7823 = vpop.f32.mrb[0].mxu0
        %v7824 = vadd.f32 %v7231, %v7823
        %v7825 = vpop.f32.mrb[0].mxu0
        %v7826 = vadd.f32 %v7235, %v7825
        %v7827 = vpop.f32.mrb[0].mxu0
        %v7828 = vadd.f32 %v7231, %v7827
        %v7829 = vpop.f32.mrb[0].mxu0
        %v7830 = vadd.f32 %v7235, %v7829
        %7831 = vmatprep.mubr.bf16.mxu0 %v7159
        %7832 = vmatmul.mubr.bf16.gmra.mrb[0].mxu0 %v7158
        %v7833 = vpop.f32.mrb[0].mxu0
        %v7834 = vadd.f32 %v7231, %v7833
        %v7835 = vpop.f32.mrb[0].mxu0
        %v7836 = vadd.f32 %v7235, %v7835
        %v7837 = vpop.f32.mrb[0].mxu0
        %v7838 = vadd.f32 %v7231, %v7837
        %v7839 = vpop.f32.mrb[0].mxu0
        %v7840 = vadd.f32 %v7235, %v7839
        %7841 = vmatprep.mubr.bf16.mxu0 %v7161
        %7842 = vmatmul.mubr.bf16.gmra.mrb[0].mxu0 %v7160
        %v7843 = vpop.f32.mrb[0].mxu0
        %v7844 = vadd.f32 %v7231, %v7843
        %v7845 = vpop.f32.mrb[0].mxu0
        %v7846 = vadd.f32 %v7235, %v7845
        %v7847 = vpop.f32.mrb[0].mxu0
        %v7848 = vadd.f32 %v7231, %v7847
        %v7849 = vpop.f32.mrb[0].mxu0
        %v7850 = vadd.f32 %v7235, %v7849
        %7851 = vdwg.mxu0
        %7852 = vmatprep.subr.bf16.mxu0 0
        %7853 = vmatpush1.bf16.msra.mxu0 %v7405
        %7854 = vmatprep.subr.bf16.mxu0 0
        %7855 = vmatpush1.bf16.msra.mxu0 %v7408
        %7856 = vmatprep.subr.bf16.mxu0 0
        %7857 = vmatpush1.bf16.msra.mxu0 %v7411
        %7858 = vmatprep.subr.bf16.mxu0 0
        %7859 = vmatpush1.bf16.msra.mxu0 %v7414
        %7860 = vmatprep.subr.bf16.mxu0 0
        %7861 = vmatpush1.bf16.msra.mxu0 %v7417
        %7862 = vmatprep.subr.bf16.mxu0 0
        %7863 = vmatpush1.bf16.msra.mxu0 %v7420
        %7864 = vmatprep.subr.bf16.mxu0 0
        %7865 = vmatpush1.bf16.msra.mxu0 %v7423
        %7866 = vmatprep.subr.bf16.mxu0 0
        %7867 = vmatpush1.bf16.msra.mxu0 %v7426
        %7868 = vmatprep.subr.bf16.mxu0 0
        %7869 = vmatpush1.bf16.msra.mxu0 %v7429
        %7870 = vmatprep.subr.bf16.mxu0 0
        %7871 = vmatpush1.bf16.msra.mxu0 %v7432
        %7872 = vmatprep.subr.bf16.mxu0 0
        %7873 = vmatpush1.bf16.msra.mxu0 %v7435
        %7874 = vmatprep.subr.bf16.mxu0 0
        %7875 = vmatpush1.bf16.msra.mxu0 %v7438
        %7876 = vmatprep.subr.bf16.mxu0 0
        %7877 = vmatpush1.bf16.msra.mxu0 %v7441
        %7878 = vmatprep.subr.bf16.mxu0 0
        %7879 = vmatpush1.bf16.msra.mxu0 %v7444
        %7880 = vmatprep.subr.bf16.mxu0 0
        %7881 = vmatpush1.bf16.msra.mxu0 %v7447
        %7882 = vmatprep.subr.bf16.mxu0 0
        %7883 = vmatpush1.bf16.msra.mxu0 %v7450
        %7884 = vmatprep.mubr.bf16.mxu0 %v7099
        %7885 = vmatmul.mubr.bf16.gmra.mrb[0].mxu0 %v7098
        %v7886 = vpop.f32.mrb[0].mxu0
        %v7887 = vadd.f32 %v7239, %v7886
        %v7888 = vpop.f32.mrb[0].mxu0
        %v7889 = vpop.f32.mrb[0].mxu0
        %v7890 = vadd.f32 %v7239, %v7889
        %v7891 = vpop.f32.mrb[0].mxu0
        %7892 = vmatprep.mubr.bf16.mxu0 %v7101
        %7893 = vmatmul.mubr.bf16.gmra.mrb[0].mxu0 %v7100
        %v7894 = vpop.f32.mrb[0].mxu0
        %v7895 = vadd.f32 %v7239, %v7894
        %v7896 = vpop.f32.mrb[0].mxu0
        %v7897 = vpop.f32.mrb[0].mxu0
        %v7898 = vadd.f32 %v7239, %v7897
        %v7899 = vpop.f32.mrb[0].mxu0
        %7900 = vmatprep.mubr.bf16.mxu0 %v7103
        %7901 = vmatmul.mubr.bf16.gmra.mrb[0].mxu0 %v7102
        %v7902 = vpop.f32.mrb[0].mxu0
        %v7903 = vadd.f32 %v7239, %v7902
        %v7904 = vpop.f32.mrb[0].mxu0
        %v7905 = vpop.f32.mrb[0].mxu0
        %v7906 = vadd.f32 %v7239, %v7905
        %v7907 = vpop.f32.mrb[0].mxu0
        %7908 = vmatprep.mubr.bf16.mxu0 %v7105
        %7909 = vmatmul.mubr.bf16.gmra.mrb[0].mxu0 %v7104
        %v7910 = vpop.f32.mrb[0].mxu0
        %v7911 = vadd.f32 %v7239, %v7910
        %v7912 = vpop.f32.mrb[0].mxu0
        %v7913 = vpop.f32.mrb[0].mxu0
        %v7914 = vadd.f32 %v7239, %v7913
        %v7915 = vpop.f32.mrb[0].mxu0
        %7916 = vmatprep.mubr.bf16.mxu0 %v7107
        %7917 = vmatmul.mubr.bf16.gmra.mrb[0].mxu0 %v7106
        %v7918 = vpop.f32.mrb[0].mxu0
        %v7919 = vadd.f32 %v7239, %v7918
        %v7920 = vpop.f32.mrb[0].mxu0
        %v7921 = vpop.f32.mrb[0].mxu0
        %v7922 = vadd.f32 %v7239, %v7921
        %v7923 = vpop.f32.mrb[0].mxu0
        %7924 = vmatprep.mubr.bf16.mxu0 %v7109
        %7925 = vmatmul.mubr.bf16.gmra.mrb[0].mxu0 %v7108
        %v7926 = vpop.f32.mrb[0].mxu0
        %v7927 = vadd.f32 %v7239, %v7926
        %v7928 = vpop.f32.mrb[0].mxu0
        %v7929 = vpop.f32.mrb[0].mxu0
        %v7930 = vadd.f32 %v7239, %v7929
        %v7931 = vpop.f32.mrb[0].mxu0
        %7932 = vmatprep.mubr.bf16.mxu0 %v7111
        %7933 = vmatmul.mubr.bf16.gmra.mrb[0].mxu0 %v7110
        %v7934 = vpop.f32.mrb[0].mxu0
        %v7935 = vadd.f32 %v7239, %v7934
        %v7936 = vpop.f32.mrb[0].mxu0
        %v7937 = vpop.f32.mrb[0].mxu0
        %v7938 = vadd.f32 %v7239, %v7937
        %v7939 = vpop.f32.mrb[0].mxu0
        %7940 = vmatprep.mubr.bf16.mxu0 %v7113
        %7941 = vmatmul.mubr.bf16.gmra.mrb[0].mxu0 %v7112
        %v7942 = vpop.f32.mrb[0].mxu0
        %v7943 = vadd.f32 %v7239, %v7942
        %v7944 = vpop.f32.mrb[0].mxu0
        %v7945 = vpop.f32.mrb[0].mxu0
        %v7946 = vadd.f32 %v7239, %v7945
        %v7947 = vpop.f32.mrb[0].mxu0
        %7948 = vmatprep.mubr.bf16.mxu0 %v7115
        %7949 = vmatmul.mubr.bf16.gmra.mrb[0].mxu0 %v7114
        %v7950 = vpop.f32.mrb[0].mxu0
        %v7951 = vadd.f32 %v7239, %v7950
        %v7952 = vpop.f32.mrb[0].mxu0
        %v7953 = vpop.f32.mrb[0].mxu0
        %v7954 = vadd.f32 %v7239, %v7953
        %v7955 = vpop.f32.mrb[0].mxu0
        %7956 = vmatprep.mubr.bf16.mxu0 %v7117
        %7957 = vmatmul.mubr.bf16.gmra.mrb[0].mxu0 %v7116
        %v7958 = vpop.f32.mrb[0].mxu0
        %v7959 = vadd.f32 %v7239, %v7958
        %v7960 = vpop.f32.mrb[0].mxu0
        %v7961 = vpop.f32.mrb[0].mxu0
        %v7962 = vadd.f32 %v7239, %v7961
        %v7963 = vpop.f32.mrb[0].mxu0
        %7964 = vmatprep.mubr.bf16.mxu0 %v7119
        %7965 = vmatmul.mubr.bf16.gmra.mrb[0].mxu0 %v7118
        %v7966 = vpop.f32.mrb[0].mxu0
        %v7967 = vadd.f32 %v7239, %v7966
        %v7968 = vpop.f32.mrb[0].mxu0
        %v7969 = vpop.f32.mrb[0].mxu0
        %v7970 = vadd.f32 %v7239, %v7969
        %v7971 = vpop.f32.mrb[0].mxu0
        %7972 = vmatprep.mubr.bf16.mxu0 %v7121
        %7973 = vmatmul.mubr.bf16.gmra.mrb[0].mxu0 %v7120
        %v7974 = vpop.f32.mrb[0].mxu0
        %v7975 = vadd.f32 %v7239, %v7974
        %v7976 = vpop.f32.mrb[0].mxu0
        %v7977 = vpop.f32.mrb[0].mxu0
        %v7978 = vadd.f32 %v7239, %v7977
        %v7979 = vpop.f32.mrb[0].mxu0
        %7980 = vmatprep.mubr.bf16.mxu0 %v7123
        %7981 = vmatmul.mubr.bf16.gmra.mrb[0].mxu0 %v7122
        %v7982 = vpop.f32.mrb[0].mxu0
        %v7983 = vadd.f32 %v7239, %v7982
        %v7984 = vpop.f32.mrb[0].mxu0
        %v7985 = vpop.f32.mrb[0].mxu0
        %v7986 = vadd.f32 %v7239, %v7985
        %v7987 = vpop.f32.mrb[0].mxu0
        %7988 = vmatprep.mubr.bf16.mxu0 %v7125
        %7989 = vmatmul.mubr.bf16.gmra.mrb[0].mxu0 %v7124
        %v7990 = vpop.f32.mrb[0].mxu0
        %v7991 = vadd.f32 %v7239, %v7990
        %v7992 = vpop.f32.mrb[0].mxu0
        %v7993 = vpop.f32.mrb[0].mxu0
        %v7994 = vadd.f32 %v7239, %v7993
        %v7995 = vpop.f32.mrb[0].mxu0
        %7996 = vmatprep.mubr.bf16.mxu0 %v7127
        %7997 = vmatmul.mubr.bf16.gmra.mrb[0].mxu0 %v7126
        %v7998 = vpop.f32.mrb[0].mxu0
        %v7999 = vadd.f32 %v7239, %v7998
        %v8000 = vpop.f32.mrb[0].mxu0
        %v8001 = vpop.f32.mrb[0].mxu0
        %v8002 = vadd.f32 %v7239, %v8001
        %v8003 = vpop.f32.mrb[0].mxu0
        %8004 = vmatprep.mubr.bf16.mxu0 %v7129
        %8005 = vmatmul.mubr.bf16.gmra.mrb[0].mxu0 %v7128
        %v8006 = vpop.f32.mrb[0].mxu0
        %v8007 = vadd.f32 %v7239, %v8006
        %v8008 = vpop.f32.mrb[0].mxu0
        %v8009 = vpop.f32.mrb[0].mxu0
        %v8010 = vadd.f32 %v7239, %v8009
        %v8011 = vpop.f32.mrb[0].mxu0
        %8012 = vmatprep.mubr.bf16.mxu0 %v7131
        %8013 = vmatmul.mubr.bf16.gmra.mrb[0].mxu0 %v7130
        %v8014 = vpop.f32.mrb[0].mxu0
        %v8015 = vadd.f32 %v7239, %v8014
        %v8016 = vpop.f32.mrb[0].mxu0
        %v8017 = vpop.f32.mrb[0].mxu0
        %v8018 = vadd.f32 %v7239, %v8017
        %v8019 = vpop.f32.mrb[0].mxu0
        %8020 = vmatprep.mubr.bf16.mxu0 %v7133
        %8021 = vmatmul.mubr.bf16.gmra.mrb[0].mxu0 %v7132
        %v8022 = vpop.f32.mrb[0].mxu0
        %v8023 = vadd.f32 %v7239, %v8022
        %v8024 = vpop.f32.mrb[0].mxu0
        %v8025 = vpop.f32.mrb[0].mxu0
        %v8026 = vadd.f32 %v7239, %v8025
        %v8027 = vpop.f32.mrb[0].mxu0
        %8028 = vmatprep.mubr.bf16.mxu0 %v7135
        %8029 = vmatmul.mubr.bf16.gmra.mrb[0].mxu0 %v7134
        %v8030 = vpop.f32.mrb[0].mxu0
        %v8031 = vadd.f32 %v7239, %v8030
        %v8032 = vpop.f32.mrb[0].mxu0
        %v8033 = vpop.f32.mrb[0].mxu0
        %v8034 = vadd.f32 %v7239, %v8033
        %v8035 = vpop.f32.mrb[0].mxu0
        %8036 = vmatprep.mubr.bf16.mxu0 %v7137
        %8037 = vmatmul.mubr.bf16.gmra.mrb[0].mxu0 %v7136
        %v8038 = vpop.f32.mrb[0].mxu0
        %v8039 = vadd.f32 %v7239, %v8038
        %v8040 = vpop.f32.mrb[0].mxu0
        %v8041 = vpop.f32.mrb[0].mxu0
        %v8042 = vadd.f32 %v7239, %v8041
        %v8043 = vpop.f32.mrb[0].mxu0
        %8044 = vmatprep.mubr.bf16.mxu0 %v7139
        %8045 = vmatmul.mubr.bf16.gmra.mrb[0].mxu0 %v7138
        %v8046 = vpop.f32.mrb[0].mxu0
        %v8047 = vadd.f32 %v7239, %v8046
        %v8048 = vpop.f32.mrb[0].mxu0
        %v8049 = vpop.f32.mrb[0].mxu0
        %v8050 = vadd.f32 %v7239, %v8049
        %v8051 = vpop.f32.mrb[0].mxu0
        %8052 = vmatprep.mubr.bf16.mxu0 %v7141
        %8053 = vmatmul.mubr.bf16.gmra.mrb[0].mxu0 %v7140
        %v8054 = vpop.f32.mrb[0].mxu0
        %v8055 = vadd.f32 %v7239, %v8054
        %v8056 = vpop.f32.mrb[0].mxu0
        %v8057 = vpop.f32.mrb[0].mxu0
        %v8058 = vadd.f32 %v7239, %v8057
        %v8059 = vpop.f32.mrb[0].mxu0
        %8060 = vmatprep.mubr.bf16.mxu0 %v7143
        %8061 = vmatmul.mubr.bf16.gmra.mrb[0].mxu0 %v7142
        %v8062 = vpop.f32.mrb[0].mxu0
        %v8063 = vadd.f32 %v7239, %v8062
        %v8064 = vpop.f32.mrb[0].mxu0
        %v8065 = vpop.f32.mrb[0].mxu0
        %v8066 = vadd.f32 %v7239, %v8065
        %v8067 = vpop.f32.mrb[0].mxu0
        %8068 = vmatprep.mubr.bf16.mxu0 %v7145
        %8069 = vmatmul.mubr.bf16.gmra.mrb[0].mxu0 %v7144
        %v8070 = vpop.f32.mrb[0].mxu0
        %v8071 = vadd.f32 %v7239, %v8070
        %v8072 = vpop.f32.mrb[0].mxu0
        %v8073 = vpop.f32.mrb[0].mxu0
        %v8074 = vadd.f32 %v7239, %v8073
        %v8075 = vpop.f32.mrb[0].mxu0
        %8076 = vmatprep.mubr.bf16.mxu0 %v7147
        %8077 = vmatmul.mubr.bf16.gmra.mrb[0].mxu0 %v7146
        %v8078 = vpop.f32.mrb[0].mxu0
        %v8079 = vadd.f32 %v7239, %v8078
        %v8080 = vpop.f32.mrb[0].mxu0
        %v8081 = vpop.f32.mrb[0].mxu0
        %v8082 = vadd.f32 %v7239, %v8081
        %v8083 = vpop.f32.mrb[0].mxu0
        %8084 = vmatprep.mubr.bf16.mxu0 %v7149
        %8085 = vmatmul.mubr.bf16.gmra.mrb[0].mxu0 %v7148
        %v8086 = vpop.f32.mrb[0].mxu0
        %v8087 = vadd.f32 %v7239, %v8086
        %v8088 = vpop.f32.mrb[0].mxu0
        %v8089 = vpop.f32.mrb[0].mxu0
        %v8090 = vadd.f32 %v7239, %v8089
        %v8091 = vpop.f32.mrb[0].mxu0
        %8092 = vmatprep.mubr.bf16.mxu0 %v7151
        %8093 = vmatmul.mubr.bf16.gmra.mrb[0].mxu0 %v7150
        %v8094 = vpop.f32.mrb[0].mxu0
        %v8095 = vadd.f32 %v7239, %v8094
        %v8096 = vpop.f32.mrb[0].mxu0
        %v8097 = vpop.f32.mrb[0].mxu0
        %v8098 = vadd.f32 %v7239, %v8097
        %v8099 = vpop.f32.mrb[0].mxu0
        %8100 = vmatprep.mubr.bf16.mxu0 %v7153
        %8101 = vmatmul.mubr.bf16.gmra.mrb[0].mxu0 %v7152
        %v8102 = vpop.f32.mrb[0].mxu0
        %v8103 = vadd.f32 %v7239, %v8102
        %v8104 = vpop.f32.mrb[0].mxu0
        %v8105 = vpop.f32.mrb[0].mxu0
        %v8106 = vadd.f32 %v7239, %v8105
        %v8107 = vpop.f32.mrb[0].mxu0
        %8108 = vmatprep.mubr.bf16.mxu0 %v7155
        %8109 = vmatmul.mubr.bf16.gmra.mrb[0].mxu0 %v7154
        %v8110 = vpop.f32.mrb[0].mxu0
        %v8111 = vadd.f32 %v7239, %v8110
        %v8112 = vpop.f32.mrb[0].mxu0
        %v8113 = vpop.f32.mrb[0].mxu0
        %v8114 = vadd.f32 %v7239, %v8113
        %v8115 = vpop.f32.mrb[0].mxu0
        %8116 = vmatprep.mubr.bf16.mxu0 %v7157
        %8117 = vmatmul.mubr.bf16.gmra.mrb[0].mxu0 %v7156
        %v8118 = vpop.f32.mrb[0].mxu0
        %v8119 = vadd.f32 %v7239, %v8118
        %v8120 = vpop.f32.mrb[0].mxu0
        %v8121 = vpop.f32.mrb[0].mxu0
        %v8122 = vadd.f32 %v7239, %v8121
        %v8123 = vpop.f32.mrb[0].mxu0
        %8124 = vmatprep.mubr.bf16.mxu0 %v7159
        %8125 = vmatmul.mubr.bf16.gmra.mrb[0].mxu0 %v7158
        %v8126 = vpop.f32.mrb[0].mxu0
        %v8127 = vadd.f32 %v7239, %v8126
        %v8128 = vpop.f32.mrb[0].mxu0
        %v8129 = vpop.f32.mrb[0].mxu0
        %v8130 = vadd.f32 %v7239, %v8129
        %v8131 = vpop.f32.mrb[0].mxu0
        %8132 = vmatprep.mubr.bf16.mxu0 %v7161
        %8133 = vmatmul.mubr.bf16.gmra.mrb[0].mxu0 %v7160
        %v8134 = vpop.f32.mrb[0].mxu0
        %v8135 = vadd.f32 %v7239, %v8134
        %v8136 = vpop.f32.mrb[0].mxu0
        %v8137 = vpop.f32.mrb[0].mxu0
        %v8138 = vadd.f32 %v7239, %v8137
        %v8139 = vpop.f32.mrb[0].mxu0
        %8140 = vdwg.mxu0
        %v8141 = vpack.c.bf16 %v7538, %v7534
        %v8142 = vpack.c.bf16 %v7540, %v7536
        %v8143 = vpack.c.bf16 %v7548, %v7544
        %v8144 = vpack.c.bf16 %v7550, %v7546
        %v8145 = vpack.c.bf16 %v7558, %v7554
        %v8146 = vpack.c.bf16 %v7560, %v7556
        %v8147 = vpack.c.bf16 %v7568, %v7564
        %v8148 = vpack.c.bf16 %v7570, %v7566
        %v8149 = vpack.c.bf16 %v7578, %v7574
        %v8150 = vpack.c.bf16 %v7580, %v7576
        %v8151 = vpack.c.bf16 %v7588, %v7584
        %v8152 = vpack.c.bf16 %v7590, %v7586
        %v8153 = vpack.c.bf16 %v7598, %v7594
        %v8154 = vpack.c.bf16 %v7600, %v7596
        %v8155 = vpack.c.bf16 %v7608, %v7604
        %v8156 = vpack.c.bf16 %v7610, %v7606
        %v8157 = vpack.c.bf16 %v7618, %v7614
        %v8158 = vpack.c.bf16 %v7620, %v7616
        %v8159 = vpack.c.bf16 %v7628, %v7624
        %v8160 = vpack.c.bf16 %v7630, %v7626
        %v8161 = vpack.c.bf16 %v7638, %v7634
        %v8162 = vpack.c.bf16 %v7640, %v7636
        %v8163 = vpack.c.bf16 %v7648, %v7644
        %v8164 = vpack.c.bf16 %v7650, %v7646
        %v8165 = vpack.c.bf16 %v7658, %v7654
        %v8166 = vpack.c.bf16 %v7660, %v7656
        %v8167 = vpack.c.bf16 %v7668, %v7664
        %v8168 = vpack.c.bf16 %v7670, %v7666
        %v8169 = vpack.c.bf16 %v7678, %v7674
        %v8170 = vpack.c.bf16 %v7680, %v7676
        %v8171 = vpack.c.bf16 %v7688, %v7684
        %v8172 = vpack.c.bf16 %v7690, %v7686
        %v8173 = vpack.c.bf16 %v7698, %v7694
        %v8174 = vpack.c.bf16 %v7700, %v7696
        %v8175 = vpack.c.bf16 %v7708, %v7704
        %v8176 = vpack.c.bf16 %v7710, %v7706
        %v8177 = vpack.c.bf16 %v7718, %v7714
        %v8178 = vpack.c.bf16 %v7720, %v7716
        %v8179 = vpack.c.bf16 %v7728, %v7724
        %v8180 = vpack.c.bf16 %v7730, %v7726
        %v8181 = vpack.c.bf16 %v7738, %v7734
        %v8182 = vpack.c.bf16 %v7740, %v7736
        %v8183 = vpack.c.bf16 %v7748, %v7744
        %v8184 = vpack.c.bf16 %v7750, %v7746
        %v8185 = vpack.c.bf16 %v7758, %v7754
        %v8186 = vpack.c.bf16 %v7760, %v7756
        %v8187 = vpack.c.bf16 %v7768, %v7764
        %v8188 = vpack.c.bf16 %v7770, %v7766
        %v8189 = vpack.c.bf16 %v7778, %v7774
        %v8190 = vpack.c.bf16 %v7780, %v7776
        %v8191 = vpack.c.bf16 %v7788, %v7784
        %v8192 = vpack.c.bf16 %v7790, %v7786
        %v8193 = vpack.c.bf16 %v7798, %v7794
        %v8194 = vpack.c.bf16 %v7800, %v7796
        %v8195 = vpack.c.bf16 %v7808, %v7804
        %v8196 = vpack.c.bf16 %v7810, %v7806
        %v8197 = vpack.c.bf16 %v7818, %v7814
        %v8198 = vpack.c.bf16 %v7820, %v7816
        %v8199 = vpack.c.bf16 %v7828, %v7824
        %v8200 = vpack.c.bf16 %v7830, %v7826
        %v8201 = vpack.c.bf16 %v7838, %v7834
        %v8202 = vpack.c.bf16 %v7840, %v7836
        %v8203 = vpack.c.bf16 %v7848, %v7844
        %v8204 = vpack.c.bf16 %v7850, %v7846
        %v8205 = vld [vmem:[%s11] sm:$0xf]
        %v8206 = vld [vmem:[%s11 + $0x4] sm:$0xf]
        %v8207 = vld [vmem:[%s11 + $0x8] sm:$0xf]
        %v8208 = vld [vmem:[%s11 + $0xc] sm:$0xf]
        %v8209 = vld [vmem:[%s11 + $0x10] sm:$0xf]
        %v8210 = vld [vmem:[%s11 + $0x14] sm:$0xf]
        %v8211 = vld [vmem:[%s11 + $0x18] sm:$0xf]
        %v8212 = vld [vmem:[%s11 + $0x1c] sm:$0xf]
        %v8213 = vld [vmem:[%s11 + $0x20] sm:$0xf]
        %v8214 = vld [vmem:[%s11 + $0x24] sm:$0xf]
        %v8215 = vld [vmem:[%s11 + $0x28] sm:$0xf]
        %v8216 = vld [vmem:[%s11 + $0x2c] sm:$0xf]
        %v8217 = vld [vmem:[%s11 + $0x30] sm:$0xf]
        %v8218 = vld [vmem:[%s11 + $0x34] sm:$0xf]
        %v8219 = vld [vmem:[%s11 + $0x38] sm:$0xf]
        %v8220 = vld [vmem:[%s11 + $0x3c] sm:$0xf]
        %v8221 = vld [vmem:[%s11 + $0x40] sm:$0xf]
        %v8222 = vld [vmem:[%s11 + $0x44] sm:$0xf]
        %v8223 = vld [vmem:[%s11 + $0x48] sm:$0xf]
        %v8224 = vld [vmem:[%s11 + $0x4c] sm:$0xf]
        %v8225 = vld [vmem:[%s11 + $0x50] sm:$0xf]
        %v8226 = vld [vmem:[%s11 + $0x54] sm:$0xf]
        %v8227 = vld [vmem:[%s11 + $0x58] sm:$0xf]
        %v8228 = vld [vmem:[%s11 + $0x5c] sm:$0xf]
        %v8229 = vld [vmem:[%s11 + $0x60] sm:$0xf]
        %v8230 = vld [vmem:[%s11 + $0x64] sm:$0xf]
        %v8231 = vld [vmem:[%s11 + $0x68] sm:$0xf]
        %v8232 = vld [vmem:[%s11 + $0x6c] sm:$0xf]
        %v8233 = vld [vmem:[%s11 + $0x70] sm:$0xf]
        %v8234 = vld [vmem:[%s11 + $0x74] sm:$0xf]
        %v8235 = vld [vmem:[%s11 + $0x78] sm:$0xf]
        %v8236 = vld [vmem:[%s11 + $0x7c] sm:$0xf]
        %v8237 = vld [vmem:[%s12] sm:$0x3]
        %v8239 = vsel %vm760, %v706, 0
        %v8242 = vsel %vm760, %v707, 0
        %v8245 = vsel %vm760, %v708, 0
        %v8248 = vsel %vm760, %v709, 0
        %v8251 = vsel %vm760, %v710, 0
        %v8254 = vsel %vm760, %v711, 0
        %v8257 = vsel %vm760, %v712, 0
        %v8260 = vsel %vm760, %v713, 0
        %v8263 = vsel %vm760, %v714, 0
        %v8266 = vsel %vm760, %v715, 0
        %v8269 = vsel %vm760, %v716, 0
        %v8272 = vsel %vm760, %v717, 0
        %v8275 = vsel %vm760, %v718, 0
        %v8278 = vsel %vm760, %v719, 0
        %v8281 = vsel %vm760, %v720, 0
        %v8284 = vsel %vm760, %v721, 0
        %v8287 = vsel %vm760, %v722, 0
        %v8290 = vsel %vm760, %v723, 0
        %v8293 = vsel %vm760, %v724, 0
        %v8296 = vsel %vm760, %v725, 0
        %v8299 = vsel %vm760, %v726, 0
        %v8302 = vsel %vm760, %v727, 0
        %v8305 = vsel %vm760, %v728, 0
        %v8308 = vsel %vm760, %v729, 0
        %v8311 = vsel %vm760, %v730, 0
        %v8314 = vsel %vm760, %v731, 0
        %v8317 = vsel %vm760, %v732, 0
        %v8320 = vsel %vm760, %v733, 0
        %v8323 = vsel %vm760, %v734, 0
        %v8326 = vsel %vm760, %v735, 0
        %v8329 = vsel %vm760, %v736, 0
        %v8332 = vsel %vm760, %v737, 0
        %v8335 = vand.u32 %v8237, %v860
        %8337 = vmatprep.subr.bf16.mxu0 0
        %8338 = vmatpush1.bf16.msra.mxu0 %v8335
        %8339 = vmatprep.subr.bf16.mxu0 0
        %8340 = vmatpush1.bf16.msra.mxu0 0
        %8341 = vmatprep.subr.bf16.mxu0 0
        %8342 = vmatpush1.bf16.msra.mxu0 0
        %8343 = vmatprep.subr.bf16.mxu0 0
        %8344 = vmatpush1.bf16.msra.mxu0 0
        %8345 = vmatprep.subr.bf16.mxu0 0
        %8346 = vmatpush1.bf16.msra.mxu0 0
        %8347 = vmatprep.subr.bf16.mxu0 0
        %8348 = vmatpush1.bf16.msra.mxu0 0
        %8349 = vmatprep.subr.bf16.mxu0 0
        %8350 = vmatpush1.bf16.msra.mxu0 0
        %8351 = vmatprep.subr.bf16.mxu0 0
        %8352 = vmatpush1.bf16.msra.mxu0 0
        %8353 = vmatprep.subr.bf16.mxu0 0
        %8354 = vmatpush1.bf16.msra.mxu0 0
        %8355 = vmatprep.subr.bf16.mxu0 0
        %8356 = vmatpush1.bf16.msra.mxu0 0
        %8357 = vmatprep.subr.bf16.mxu0 0
        %8358 = vmatpush1.bf16.msra.mxu0 0
        %8359 = vmatprep.subr.bf16.mxu0 0
        %8360 = vmatpush1.bf16.msra.mxu0 0
        %8361 = vmatprep.subr.bf16.mxu0 0
        %8362 = vmatpush1.bf16.msra.mxu0 0
        %8363 = vmatprep.subr.bf16.mxu0 0
        %8364 = vmatpush1.bf16.msra.mxu0 0
        %8365 = vmatprep.subr.bf16.mxu0 0
        %8366 = vmatpush1.bf16.msra.mxu0 0
        %8367 = vmatprep.subr.bf16.mxu0 0
        %8368 = vmatpush1.bf16.msra.mxu0 0
        %8369 = vmatprep.mubr.bf16.mxu0 0
        %8370 = vmatmul.mubr.bf16.gmra.mrb[0].mxu0 %v8239
        %v8371 = vpop.f32.mrb[0].mxu0
        %v8372 = vadd.f32 0.0, %v8371
        %v8373 = vpop.f32.mrb[0].mxu0
        %v8374 = vpop.f32.mrb[0].mxu0
        %v8375 = vadd.f32 0.0, %v8374
        %v8376 = vpop.f32.mrb[0].mxu0
        %8377 = vmatprep.mubr.bf16.mxu0 0
        %8378 = vmatmul.mubr.bf16.gmra.mrb[0].mxu0 %v8242
        %v8379 = vpop.f32.mrb[0].mxu0
        %v8380 = vadd.f32 0.0, %v8379
        %v8381 = vpop.f32.mrb[0].mxu0
        %v8382 = vpop.f32.mrb[0].mxu0
        %v8383 = vadd.f32 0.0, %v8382
        %v8384 = vpop.f32.mrb[0].mxu0
        %8385 = vmatprep.mubr.bf16.mxu0 0
        %8386 = vmatmul.mubr.bf16.gmra.mrb[0].mxu0 %v8245
        %v8387 = vpop.f32.mrb[0].mxu0
        %v8388 = vadd.f32 0.0, %v8387
        %v8389 = vpop.f32.mrb[0].mxu0
        %v8390 = vpop.f32.mrb[0].mxu0
        %v8391 = vadd.f32 0.0, %v8390
        %v8392 = vpop.f32.mrb[0].mxu0
        %8393 = vmatprep.mubr.bf16.mxu0 0
        %8394 = vmatmul.mubr.bf16.gmra.mrb[0].mxu0 %v8248
        %v8395 = vpop.f32.mrb[0].mxu0
        %v8396 = vadd.f32 0.0, %v8395
        %v8397 = vpop.f32.mrb[0].mxu0
        %v8398 = vpop.f32.mrb[0].mxu0
        %v8399 = vadd.f32 0.0, %v8398
        %v8400 = vpop.f32.mrb[0].mxu0
        %8401 = vmatprep.mubr.bf16.mxu0 0
        %8402 = vmatmul.mubr.bf16.gmra.mrb[0].mxu0 %v8251
        %v8403 = vpop.f32.mrb[0].mxu0
        %v8404 = vadd.f32 0.0, %v8403
        %v8405 = vpop.f32.mrb[0].mxu0
        %v8406 = vpop.f32.mrb[0].mxu0
        %v8407 = vadd.f32 0.0, %v8406
        %v8408 = vpop.f32.mrb[0].mxu0
        %8409 = vmatprep.mubr.bf16.mxu0 0
        %8410 = vmatmul.mubr.bf16.gmra.mrb[0].mxu0 %v8254
        %v8411 = vpop.f32.mrb[0].mxu0
        %v8412 = vadd.f32 0.0, %v8411
        %v8413 = vpop.f32.mrb[0].mxu0
        %v8414 = vpop.f32.mrb[0].mxu0
        %v8415 = vadd.f32 0.0, %v8414
        %v8416 = vpop.f32.mrb[0].mxu0
        %8417 = vmatprep.mubr.bf16.mxu0 0
        %8418 = vmatmul.mubr.bf16.gmra.mrb[0].mxu0 %v8257
        %v8419 = vpop.f32.mrb[0].mxu0
        %v8420 = vadd.f32 0.0, %v8419
        %v8421 = vpop.f32.mrb[0].mxu0
        %v8422 = vpop.f32.mrb[0].mxu0
        %v8423 = vadd.f32 0.0, %v8422
        %v8424 = vpop.f32.mrb[0].mxu0
        %8425 = vmatprep.mubr.bf16.mxu0 0
        %8426 = vmatmul.mubr.bf16.gmra.mrb[0].mxu0 %v8260
        %v8427 = vpop.f32.mrb[0].mxu0
        %v8428 = vadd.f32 0.0, %v8427
        %v8429 = vpop.f32.mrb[0].mxu0
        %v8430 = vpop.f32.mrb[0].mxu0
        %v8431 = vadd.f32 0.0, %v8430
        %v8432 = vpop.f32.mrb[0].mxu0
        %8433 = vmatprep.mubr.bf16.mxu0 0
        %8434 = vmatmul.mubr.bf16.gmra.mrb[0].mxu0 %v8263
        %v8435 = vpop.f32.mrb[0].mxu0
        %v8436 = vadd.f32 0.0, %v8435
        %v8437 = vpop.f32.mrb[0].mxu0
        %v8438 = vpop.f32.mrb[0].mxu0
        %v8439 = vadd.f32 0.0, %v8438
        %v8440 = vpop.f32.mrb[0].mxu0
        %8441 = vmatprep.mubr.bf16.mxu0 0
        %8442 = vmatmul.mubr.bf16.gmra.mrb[0].mxu0 %v8266
        %v8443 = vpop.f32.mrb[0].mxu0
        %v8444 = vadd.f32 0.0, %v8443
        %v8445 = vpop.f32.mrb[0].mxu0
        %v8446 = vpop.f32.mrb[0].mxu0
        %v8447 = vadd.f32 0.0, %v8446
        %v8448 = vpop.f32.mrb[0].mxu0
        %8449 = vmatprep.mubr.bf16.mxu0 0
        %8450 = vmatmul.mubr.bf16.gmra.mrb[0].mxu0 %v8269
        %v8451 = vpop.f32.mrb[0].mxu0
        %v8452 = vadd.f32 0.0, %v8451
        %v8453 = vpop.f32.mrb[0].mxu0
        %v8454 = vpop.f32.mrb[0].mxu0
        %v8455 = vadd.f32 0.0, %v8454
        %v8456 = vpop.f32.mrb[0].mxu0
        %8457 = vmatprep.mubr.bf16.mxu0 0
        %8458 = vmatmul.mubr.bf16.gmra.mrb[0].mxu0 %v8272
        %v8459 = vpop.f32.mrb[0].mxu0
        %v8460 = vadd.f32 0.0, %v8459
        %v8461 = vpop.f32.mrb[0].mxu0
        %v8462 = vpop.f32.mrb[0].mxu0
        %v8463 = vadd.f32 0.0, %v8462
        %v8464 = vpop.f32.mrb[0].mxu0
        %8465 = vmatprep.mubr.bf16.mxu0 0
        %8466 = vmatmul.mubr.bf16.gmra.mrb[0].mxu0 %v8275
        %v8467 = vpop.f32.mrb[0].mxu0
        %v8468 = vadd.f32 0.0, %v8467
        %v8469 = vpop.f32.mrb[0].mxu0
        %v8470 = vpop.f32.mrb[0].mxu0
        %v8471 = vadd.f32 0.0, %v8470
        %v8472 = vpop.f32.mrb[0].mxu0
        %8473 = vmatprep.mubr.bf16.mxu0 0
        %8474 = vmatmul.mubr.bf16.gmra.mrb[0].mxu0 %v8278
        %v8475 = vpop.f32.mrb[0].mxu0
        %v8476 = vadd.f32 0.0, %v8475
        %v8477 = vpop.f32.mrb[0].mxu0
        %v8478 = vpop.f32.mrb[0].mxu0
        %v8479 = vadd.f32 0.0, %v8478
        %v8480 = vpop.f32.mrb[0].mxu0
        %8481 = vmatprep.mubr.bf16.mxu0 0
        %8482 = vmatmul.mubr.bf16.gmra.mrb[0].mxu0 %v8281
        %v8483 = vpop.f32.mrb[0].mxu0
        %v8484 = vadd.f32 0.0, %v8483
        %v8485 = vpop.f32.mrb[0].mxu0
        %v8486 = vpop.f32.mrb[0].mxu0
        %v8487 = vadd.f32 0.0, %v8486
        %v8488 = vpop.f32.mrb[0].mxu0
        %8489 = vmatprep.mubr.bf16.mxu0 0
        %8490 = vmatmul.mubr.bf16.gmra.mrb[0].mxu0 %v8284
        %v8491 = vpop.f32.mrb[0].mxu0
        %v8492 = vadd.f32 0.0, %v8491
        %v8493 = vpop.f32.mrb[0].mxu0
        %v8494 = vpop.f32.mrb[0].mxu0
        %v8495 = vadd.f32 0.0, %v8494
        %v8496 = vpop.f32.mrb[0].mxu0
        %8497 = vmatprep.mubr.bf16.mxu0 0
        %8498 = vmatmul.mubr.bf16.gmra.mrb[0].mxu0 %v8287
        %v8499 = vpop.f32.mrb[0].mxu0
        %v8500 = vadd.f32 0.0, %v8499
        %v8501 = vpop.f32.mrb[0].mxu0
        %v8502 = vpop.f32.mrb[0].mxu0
        %v8503 = vadd.f32 0.0, %v8502
        %v8504 = vpop.f32.mrb[0].mxu0
        %8505 = vmatprep.mubr.bf16.mxu0 0
        %8506 = vmatmul.mubr.bf16.gmra.mrb[0].mxu0 %v8290
        %v8507 = vpop.f32.mrb[0].mxu0
        %v8508 = vadd.f32 0.0, %v8507
        %v8509 = vpop.f32.mrb[0].mxu0
        %v8510 = vpop.f32.mrb[0].mxu0
        %v8511 = vadd.f32 0.0, %v8510
        %v8512 = vpop.f32.mrb[0].mxu0
        %8513 = vmatprep.mubr.bf16.mxu0 0
        %8514 = vmatmul.mubr.bf16.gmra.mrb[0].mxu0 %v8293
        %v8515 = vpop.f32.mrb[0].mxu0
        %v8516 = vadd.f32 0.0, %v8515
        %v8517 = vpop.f32.mrb[0].mxu0
        %v8518 = vpop.f32.mrb[0].mxu0
        %v8519 = vadd.f32 0.0, %v8518
        %v8520 = vpop.f32.mrb[0].mxu0
        %8521 = vmatprep.mubr.bf16.mxu0 0
        %8522 = vmatmul.mubr.bf16.gmra.mrb[0].mxu0 %v8296
        %v8523 = vpop.f32.mrb[0].mxu0
        %v8524 = vadd.f32 0.0, %v8523
        %v8525 = vpop.f32.mrb[0].mxu0
        %v8526 = vpop.f32.mrb[0].mxu0
        %v8527 = vadd.f32 0.0, %v8526
        %v8528 = vpop.f32.mrb[0].mxu0
        %8529 = vmatprep.mubr.bf16.mxu0 0
        %8530 = vmatmul.mubr.bf16.gmra.mrb[0].mxu0 %v8299
        %v8531 = vpop.f32.mrb[0].mxu0
        %v8532 = vadd.f32 0.0, %v8531
        %v8533 = vpop.f32.mrb[0].mxu0
        %v8534 = vpop.f32.mrb[0].mxu0
        %v8535 = vadd.f32 0.0, %v8534
        %v8536 = vpop.f32.mrb[0].mxu0
        %8537 = vmatprep.mubr.bf16.mxu0 0
        %8538 = vmatmul.mubr.bf16.gmra.mrb[0].mxu0 %v8302
        %v8539 = vpop.f32.mrb[0].mxu0
        %v8540 = vadd.f32 0.0, %v8539
        %v8541 = vpop.f32.mrb[0].mxu0
        %v8542 = vpop.f32.mrb[0].mxu0
        %v8543 = vadd.f32 0.0, %v8542
        %v8544 = vpop.f32.mrb[0].mxu0
        %8545 = vmatprep.mubr.bf16.mxu0 0
        %8546 = vmatmul.mubr.bf16.gmra.mrb[0].mxu0 %v8305
        %v8547 = vpop.f32.mrb[0].mxu0
        %v8548 = vadd.f32 0.0, %v8547
        %v8549 = vpop.f32.mrb[0].mxu0
        %v8550 = vpop.f32.mrb[0].mxu0
        %v8551 = vadd.f32 0.0, %v8550
        %v8552 = vpop.f32.mrb[0].mxu0
        %8553 = vmatprep.mubr.bf16.mxu0 0
        %8554 = vmatmul.mubr.bf16.gmra.mrb[0].mxu0 %v8308
        %v8555 = vpop.f32.mrb[0].mxu0
        %v8556 = vadd.f32 0.0, %v8555
        %v8557 = vpop.f32.mrb[0].mxu0
        %v8558 = vpop.f32.mrb[0].mxu0
        %v8559 = vadd.f32 0.0, %v8558
        %v8560 = vpop.f32.mrb[0].mxu0
        %8561 = vmatprep.mubr.bf16.mxu0 0
        %8562 = vmatmul.mubr.bf16.gmra.mrb[0].mxu0 %v8311
        %v8563 = vpop.f32.mrb[0].mxu0
        %v8564 = vadd.f32 0.0, %v8563
        %v8565 = vpop.f32.mrb[0].mxu0
        %v8566 = vpop.f32.mrb[0].mxu0
        %v8567 = vadd.f32 0.0, %v8566
        %v8568 = vpop.f32.mrb[0].mxu0
        %8569 = vmatprep.mubr.bf16.mxu0 0
        %8570 = vmatmul.mubr.bf16.gmra.mrb[0].mxu0 %v8314
        %v8571 = vpop.f32.mrb[0].mxu0
        %v8572 = vadd.f32 0.0, %v8571
        %v8573 = vpop.f32.mrb[0].mxu0
        %v8574 = vpop.f32.mrb[0].mxu0
        %v8575 = vadd.f32 0.0, %v8574
        %v8576 = vpop.f32.mrb[0].mxu0
        %8577 = vmatprep.mubr.bf16.mxu0 0
        %8578 = vmatmul.mubr.bf16.gmra.mrb[0].mxu0 %v8317
        %v8579 = vpop.f32.mrb[0].mxu0
        %v8580 = vadd.f32 0.0, %v8579
        %v8581 = vpop.f32.mrb[0].mxu0
        %v8582 = vpop.f32.mrb[0].mxu0
        %v8583 = vadd.f32 0.0, %v8582
        %v8584 = vpop.f32.mrb[0].mxu0
        %8585 = vmatprep.mubr.bf16.mxu0 0
        %8586 = vmatmul.mubr.bf16.gmra.mrb[0].mxu0 %v8320
        %v8587 = vpop.f32.mrb[0].mxu0
        %v8588 = vadd.f32 0.0, %v8587
        %v8589 = vpop.f32.mrb[0].mxu0
        %v8590 = vpop.f32.mrb[0].mxu0
        %v8591 = vadd.f32 0.0, %v8590
        %v8592 = vpop.f32.mrb[0].mxu0
        %8593 = vmatprep.mubr.bf16.mxu0 0
        %8594 = vmatmul.mubr.bf16.gmra.mrb[0].mxu0 %v8323
        %v8595 = vpop.f32.mrb[0].mxu0
        %v8596 = vadd.f32 0.0, %v8595
        %v8597 = vpop.f32.mrb[0].mxu0
        %v8598 = vpop.f32.mrb[0].mxu0
        %v8599 = vadd.f32 0.0, %v8598
        %v8600 = vpop.f32.mrb[0].mxu0
        %8601 = vmatprep.mubr.bf16.mxu0 0
        %8602 = vmatmul.mubr.bf16.gmra.mrb[0].mxu0 %v8326
        %v8603 = vpop.f32.mrb[0].mxu0
        %v8604 = vadd.f32 0.0, %v8603
        %v8605 = vpop.f32.mrb[0].mxu0
        %v8606 = vpop.f32.mrb[0].mxu0
        %v8607 = vadd.f32 0.0, %v8606
        %v8608 = vpop.f32.mrb[0].mxu0
        %8609 = vmatprep.mubr.bf16.mxu0 0
        %8610 = vmatmul.mubr.bf16.gmra.mrb[0].mxu0 %v8329
        %v8611 = vpop.f32.mrb[0].mxu0
        %v8612 = vadd.f32 0.0, %v8611
        %v8613 = vpop.f32.mrb[0].mxu0
        %v8614 = vpop.f32.mrb[0].mxu0
        %v8615 = vadd.f32 0.0, %v8614
        %v8616 = vpop.f32.mrb[0].mxu0
        %8617 = vmatprep.mubr.bf16.mxu0 0
        %8618 = vmatmul.mubr.bf16.gmra.mrb[0].mxu0 %v8332
        %v8619 = vpop.f32.mrb[0].mxu0
        %v8620 = vadd.f32 0.0, %v8619
        %v8621 = vpop.f32.mrb[0].mxu0
        %v8622 = vpop.f32.mrb[0].mxu0
        %v8623 = vadd.f32 0.0, %v8622
        %v8624 = vpop.f32.mrb[0].mxu0
        %8625 = vdwg.mxu0
        %v8658 = vunpack.c.l.b16 %v8205
        %v8659 = vunpack.c.l.b16 %v8206
        %v8660 = vunpack.c.l.b16 %v8207
        %v8661 = vunpack.c.l.b16 %v8208
        %v8662 = vunpack.c.l.b16 %v8209
        %v8663 = vunpack.c.l.b16 %v8210
        %v8664 = vunpack.c.l.b16 %v8211
        %v8665 = vunpack.c.l.b16 %v8212
        %v8666 = vunpack.c.l.b16 %v8213
        %v8667 = vunpack.c.l.b16 %v8214
        %v8668 = vunpack.c.l.b16 %v8215
        %v8669 = vunpack.c.l.b16 %v8216
        %v8670 = vunpack.c.l.b16 %v8217
        %v8671 = vunpack.c.l.b16 %v8218
        %v8672 = vunpack.c.l.b16 %v8219
        %v8673 = vunpack.c.l.b16 %v8220
        %v8674 = vunpack.c.l.b16 %v8221
        %v8675 = vunpack.c.l.b16 %v8222
        %v8676 = vunpack.c.l.b16 %v8223
        %v8677 = vunpack.c.l.b16 %v8224
        %v8678 = vunpack.c.l.b16 %v8225
        %v8679 = vunpack.c.l.b16 %v8226
        %v8680 = vunpack.c.l.b16 %v8227
        %v8681 = vunpack.c.l.b16 %v8228
        %v8682 = vunpack.c.l.b16 %v8229
        %v8683 = vunpack.c.l.b16 %v8230
        %v8684 = vunpack.c.l.b16 %v8231
        %v8685 = vunpack.c.l.b16 %v8232
        %v8686 = vunpack.c.l.b16 %v8233
        %v8687 = vunpack.c.l.b16 %v8234
        %v8688 = vunpack.c.l.b16 %v8235
        %v8689 = vunpack.c.l.b16 %v8236
        %v8690 = vpack.c.b16 %v8659, %v8658
        %v8691 = vpack.c.b16 %v8661, %v8660
        %v8692 = vpack.c.b16 %v8663, %v8662
        %v8693 = vpack.c.b16 %v8665, %v8664
        %v8694 = vpack.c.b16 %v8667, %v8666
        %v8695 = vpack.c.b16 %v8669, %v8668
        %v8696 = vpack.c.b16 %v8671, %v8670
        %v8697 = vpack.c.b16 %v8673, %v8672
        %v8698 = vpack.c.b16 %v8675, %v8674
        %v8699 = vpack.c.b16 %v8677, %v8676
        %v8700 = vpack.c.b16 %v8679, %v8678
        %v8701 = vpack.c.b16 %v8681, %v8680
        %v8702 = vpack.c.b16 %v8683, %v8682
        %v8703 = vpack.c.b16 %v8685, %v8684
        %v8704 = vpack.c.b16 %v8687, %v8686
        %v8705 = vpack.c.b16 %v8689, %v8688
        %8722 = vmatprep.subr.bf16.mxu0 0
        %8723 = vmatpush1.bf16.msra.mxu0 %v8690
        %8724 = vmatprep.subr.bf16.mxu0 0
        %8725 = vmatpush1.bf16.msra.mxu0 %v8691
        %8726 = vmatprep.subr.bf16.mxu0 0
        %8727 = vmatpush1.bf16.msra.mxu0 %v8692
        %8728 = vmatprep.subr.bf16.mxu0 0
        %8729 = vmatpush1.bf16.msra.mxu0 %v8693
        %8730 = vmatprep.subr.bf16.mxu0 0
        %8731 = vmatpush1.bf16.msra.mxu0 %v8694
        %8732 = vmatprep.subr.bf16.mxu0 0
        %8733 = vmatpush1.bf16.msra.mxu0 %v8695
        %8734 = vmatprep.subr.bf16.mxu0 0
        %8735 = vmatpush1.bf16.msra.mxu0 %v8696
        %8736 = vmatprep.subr.bf16.mxu0 0
        %8737 = vmatpush1.bf16.msra.mxu0 %v8697
        %8738 = vmatprep.subr.bf16.mxu0 0
        %8739 = vmatpush1.bf16.msra.mxu0 %v8698
        %8740 = vmatprep.subr.bf16.mxu0 0
        %8741 = vmatpush1.bf16.msra.mxu0 %v8699
        %8742 = vmatprep.subr.bf16.mxu0 0
        %8743 = vmatpush1.bf16.msra.mxu0 %v8700
        %8744 = vmatprep.subr.bf16.mxu0 0
        %8745 = vmatpush1.bf16.msra.mxu0 %v8701
        %8746 = vmatprep.subr.bf16.mxu0 0
        %8747 = vmatpush1.bf16.msra.mxu0 %v8702
        %8748 = vmatprep.subr.bf16.mxu0 0
        %8749 = vmatpush1.bf16.msra.mxu0 %v8703
        %8750 = vmatprep.subr.bf16.mxu0 0
        %8751 = vmatpush1.bf16.msra.mxu0 %v8704
        %8752 = vmatprep.subr.bf16.mxu0 0
        %8753 = vmatpush1.bf16.msra.mxu0 %v8705
        %8754 = vmatprep.mubr.bf16.mxu0 %v8142
        %8755 = vmatmul.mubr.bf16.gmra.mrb[0].mxu0 %v8141
        %v8756 = vpop.f32.mrb[0].mxu0
        %v8757 = vadd.f32 %v8372, %v8756
        %v8758 = vpop.f32.mrb[0].mxu0
        %v8759 = vpop.f32.mrb[0].mxu0
        %v8760 = vadd.f32 %v8375, %v8759
        %v8761 = vpop.f32.mrb[0].mxu0
        %8762 = vmatprep.mubr.bf16.mxu0 %v8144
        %8763 = vmatmul.mubr.bf16.gmra.mrb[0].mxu0 %v8143
        %v8764 = vpop.f32.mrb[0].mxu0
        %v8765 = vadd.f32 %v8380, %v8764
        %v8766 = vpop.f32.mrb[0].mxu0
        %v8767 = vpop.f32.mrb[0].mxu0
        %v8768 = vadd.f32 %v8383, %v8767
        %v8769 = vpop.f32.mrb[0].mxu0
        %8770 = vmatprep.mubr.bf16.mxu0 %v8146
        %8771 = vmatmul.mubr.bf16.gmra.mrb[0].mxu0 %v8145
        %v8772 = vpop.f32.mrb[0].mxu0
        %v8773 = vadd.f32 %v8388, %v8772
        %v8774 = vpop.f32.mrb[0].mxu0
        %v8775 = vpop.f32.mrb[0].mxu0
        %v8776 = vadd.f32 %v8391, %v8775
        %v8777 = vpop.f32.mrb[0].mxu0
        %8778 = vmatprep.mubr.bf16.mxu0 %v8148
        %8779 = vmatmul.mubr.bf16.gmra.mrb[0].mxu0 %v8147
        %v8780 = vpop.f32.mrb[0].mxu0
        %v8781 = vadd.f32 %v8396, %v8780
        %v8782 = vpop.f32.mrb[0].mxu0
        %v8783 = vpop.f32.mrb[0].mxu0
        %v8784 = vadd.f32 %v8399, %v8783
        %v8785 = vpop.f32.mrb[0].mxu0
        %8786 = vmatprep.mubr.bf16.mxu0 %v8150
        %8787 = vmatmul.mubr.bf16.gmra.mrb[0].mxu0 %v8149
        %v8788 = vpop.f32.mrb[0].mxu0
        %v8789 = vadd.f32 %v8404, %v8788
        %v8790 = vpop.f32.mrb[0].mxu0
        %v8791 = vpop.f32.mrb[0].mxu0
        %v8792 = vadd.f32 %v8407, %v8791
        %v8793 = vpop.f32.mrb[0].mxu0
        %8794 = vmatprep.mubr.bf16.mxu0 %v8152
        %8795 = vmatmul.mubr.bf16.gmra.mrb[0].mxu0 %v8151
        %v8796 = vpop.f32.mrb[0].mxu0
        %v8797 = vadd.f32 %v8412, %v8796
        %v8798 = vpop.f32.mrb[0].mxu0
        %v8799 = vpop.f32.mrb[0].mxu0
        %v8800 = vadd.f32 %v8415, %v8799
        %v8801 = vpop.f32.mrb[0].mxu0
        %8802 = vmatprep.mubr.bf16.mxu0 %v8154
        %8803 = vmatmul.mubr.bf16.gmra.mrb[0].mxu0 %v8153
        %v8804 = vpop.f32.mrb[0].mxu0
        %v8805 = vadd.f32 %v8420, %v8804
        %v8806 = vpop.f32.mrb[0].mxu0
        %v8807 = vpop.f32.mrb[0].mxu0
        %v8808 = vadd.f32 %v8423, %v8807
        %v8809 = vpop.f32.mrb[0].mxu0
        %8810 = vmatprep.mubr.bf16.mxu0 %v8156
        %8811 = vmatmul.mubr.bf16.gmra.mrb[0].mxu0 %v8155
        %v8812 = vpop.f32.mrb[0].mxu0
        %v8813 = vadd.f32 %v8428, %v8812
        %v8814 = vpop.f32.mrb[0].mxu0
        %v8815 = vpop.f32.mrb[0].mxu0
        %v8816 = vadd.f32 %v8431, %v8815
        %v8817 = vpop.f32.mrb[0].mxu0
        %8818 = vmatprep.mubr.bf16.mxu0 %v8158
        %8819 = vmatmul.mubr.bf16.gmra.mrb[0].mxu0 %v8157
        %v8820 = vpop.f32.mrb[0].mxu0
        %v8821 = vadd.f32 %v8436, %v8820
        %v8822 = vpop.f32.mrb[0].mxu0
        %v8823 = vpop.f32.mrb[0].mxu0
        %v8824 = vadd.f32 %v8439, %v8823
        %v8825 = vpop.f32.mrb[0].mxu0
        %8826 = vmatprep.mubr.bf16.mxu0 %v8160
        %8827 = vmatmul.mubr.bf16.gmra.mrb[0].mxu0 %v8159
        %v8828 = vpop.f32.mrb[0].mxu0
        %v8829 = vadd.f32 %v8444, %v8828
        %v8830 = vpop.f32.mrb[0].mxu0
        %v8831 = vpop.f32.mrb[0].mxu0
        %v8832 = vadd.f32 %v8447, %v8831
        %v8833 = vpop.f32.mrb[0].mxu0
        %8834 = vmatprep.mubr.bf16.mxu0 %v8162
        %8835 = vmatmul.mubr.bf16.gmra.mrb[0].mxu0 %v8161
        %v8836 = vpop.f32.mrb[0].mxu0
        %v8837 = vadd.f32 %v8452, %v8836
        %v8838 = vpop.f32.mrb[0].mxu0
        %v8839 = vpop.f32.mrb[0].mxu0
        %v8840 = vadd.f32 %v8455, %v8839
        %v8841 = vpop.f32.mrb[0].mxu0
        %8842 = vmatprep.mubr.bf16.mxu0 %v8164
        %8843 = vmatmul.mubr.bf16.gmra.mrb[0].mxu0 %v8163
        %v8844 = vpop.f32.mrb[0].mxu0
        %v8845 = vadd.f32 %v8460, %v8844
        %v8846 = vpop.f32.mrb[0].mxu0
        %v8847 = vpop.f32.mrb[0].mxu0
        %v8848 = vadd.f32 %v8463, %v8847
        %v8849 = vpop.f32.mrb[0].mxu0
        %8850 = vmatprep.mubr.bf16.mxu0 %v8166
        %8851 = vmatmul.mubr.bf16.gmra.mrb[0].mxu0 %v8165
        %v8852 = vpop.f32.mrb[0].mxu0
        %v8853 = vadd.f32 %v8468, %v8852
        %v8854 = vpop.f32.mrb[0].mxu0
        %v8855 = vpop.f32.mrb[0].mxu0
        %v8856 = vadd.f32 %v8471, %v8855
        %v8857 = vpop.f32.mrb[0].mxu0
        %8858 = vmatprep.mubr.bf16.mxu0 %v8168
        %8859 = vmatmul.mubr.bf16.gmra.mrb[0].mxu0 %v8167
        %v8860 = vpop.f32.mrb[0].mxu0
        %v8861 = vadd.f32 %v8476, %v8860
        %v8862 = vpop.f32.mrb[0].mxu0
        %v8863 = vpop.f32.mrb[0].mxu0
        %v8864 = vadd.f32 %v8479, %v8863
        %v8865 = vpop.f32.mrb[0].mxu0
        %8866 = vmatprep.mubr.bf16.mxu0 %v8170
        %8867 = vmatmul.mubr.bf16.gmra.mrb[0].mxu0 %v8169
        %v8868 = vpop.f32.mrb[0].mxu0
        %v8869 = vadd.f32 %v8484, %v8868
        %v8870 = vpop.f32.mrb[0].mxu0
        %v8871 = vpop.f32.mrb[0].mxu0
        %v8872 = vadd.f32 %v8487, %v8871
        %v8873 = vpop.f32.mrb[0].mxu0
        %8874 = vmatprep.mubr.bf16.mxu0 %v8172
        %8875 = vmatmul.mubr.bf16.gmra.mrb[0].mxu0 %v8171
        %v8876 = vpop.f32.mrb[0].mxu0
        %v8877 = vadd.f32 %v8492, %v8876
        %v8878 = vpop.f32.mrb[0].mxu0
        %v8879 = vpop.f32.mrb[0].mxu0
        %v8880 = vadd.f32 %v8495, %v8879
        %v8881 = vpop.f32.mrb[0].mxu0
        %8882 = vmatprep.mubr.bf16.mxu0 %v8174
        %8883 = vmatmul.mubr.bf16.gmra.mrb[0].mxu0 %v8173
        %v8884 = vpop.f32.mrb[0].mxu0
        %v8885 = vadd.f32 %v8500, %v8884
        %v8886 = vpop.f32.mrb[0].mxu0
        %v8887 = vpop.f32.mrb[0].mxu0
        %v8888 = vadd.f32 %v8503, %v8887
        %v8889 = vpop.f32.mrb[0].mxu0
        %8890 = vmatprep.mubr.bf16.mxu0 %v8176
        %8891 = vmatmul.mubr.bf16.gmra.mrb[0].mxu0 %v8175
        %v8892 = vpop.f32.mrb[0].mxu0
        %v8893 = vadd.f32 %v8508, %v8892
        %v8894 = vpop.f32.mrb[0].mxu0
        %v8895 = vpop.f32.mrb[0].mxu0
        %v8896 = vadd.f32 %v8511, %v8895
        %v8897 = vpop.f32.mrb[0].mxu0
        %8898 = vmatprep.mubr.bf16.mxu0 %v8178
        %8899 = vmatmul.mubr.bf16.gmra.mrb[0].mxu0 %v8177
        %v8900 = vpop.f32.mrb[0].mxu0
        %v8901 = vadd.f32 %v8516, %v8900
        %v8902 = vpop.f32.mrb[0].mxu0
        %v8903 = vpop.f32.mrb[0].mxu0
        %v8904 = vadd.f32 %v8519, %v8903
        %v8905 = vpop.f32.mrb[0].mxu0
        %8906 = vmatprep.mubr.bf16.mxu0 %v8180
        %8907 = vmatmul.mubr.bf16.gmra.mrb[0].mxu0 %v8179
        %v8908 = vpop.f32.mrb[0].mxu0
        %v8909 = vadd.f32 %v8524, %v8908
        %v8910 = vpop.f32.mrb[0].mxu0
        %v8911 = vpop.f32.mrb[0].mxu0
        %v8912 = vadd.f32 %v8527, %v8911
        %v8913 = vpop.f32.mrb[0].mxu0
        %8914 = vmatprep.mubr.bf16.mxu0 %v8182
        %8915 = vmatmul.mubr.bf16.gmra.mrb[0].mxu0 %v8181
        %v8916 = vpop.f32.mrb[0].mxu0
        %v8917 = vadd.f32 %v8532, %v8916
        %v8918 = vpop.f32.mrb[0].mxu0
        %v8919 = vpop.f32.mrb[0].mxu0
        %v8920 = vadd.f32 %v8535, %v8919
        %v8921 = vpop.f32.mrb[0].mxu0
        %8922 = vmatprep.mubr.bf16.mxu0 %v8184
        %8923 = vmatmul.mubr.bf16.gmra.mrb[0].mxu0 %v8183
        %v8924 = vpop.f32.mrb[0].mxu0
        %v8925 = vadd.f32 %v8540, %v8924
        %v8926 = vpop.f32.mrb[0].mxu0
        %v8927 = vpop.f32.mrb[0].mxu0
        %v8928 = vadd.f32 %v8543, %v8927
        %v8929 = vpop.f32.mrb[0].mxu0
        %8930 = vmatprep.mubr.bf16.mxu0 %v8186
        %8931 = vmatmul.mubr.bf16.gmra.mrb[0].mxu0 %v8185
        %v8932 = vpop.f32.mrb[0].mxu0
        %v8933 = vadd.f32 %v8548, %v8932
        %v8934 = vpop.f32.mrb[0].mxu0
        %v8935 = vpop.f32.mrb[0].mxu0
        %v8936 = vadd.f32 %v8551, %v8935
        %v8937 = vpop.f32.mrb[0].mxu0
        %8938 = vmatprep.mubr.bf16.mxu0 %v8188
        %8939 = vmatmul.mubr.bf16.gmra.mrb[0].mxu0 %v8187
        %v8940 = vpop.f32.mrb[0].mxu0
        %v8941 = vadd.f32 %v8556, %v8940
        %v8942 = vpop.f32.mrb[0].mxu0
        %v8943 = vpop.f32.mrb[0].mxu0
        %v8944 = vadd.f32 %v8559, %v8943
        %v8945 = vpop.f32.mrb[0].mxu0
        %8946 = vmatprep.mubr.bf16.mxu0 %v8190
        %8947 = vmatmul.mubr.bf16.gmra.mrb[0].mxu0 %v8189
        %v8948 = vpop.f32.mrb[0].mxu0
        %v8949 = vadd.f32 %v8564, %v8948
        %v8950 = vpop.f32.mrb[0].mxu0
        %v8951 = vpop.f32.mrb[0].mxu0
        %v8952 = vadd.f32 %v8567, %v8951
        %v8953 = vpop.f32.mrb[0].mxu0
        %8954 = vmatprep.mubr.bf16.mxu0 %v8192
        %8955 = vmatmul.mubr.bf16.gmra.mrb[0].mxu0 %v8191
        %v8956 = vpop.f32.mrb[0].mxu0
        %v8957 = vadd.f32 %v8572, %v8956
        %v8958 = vpop.f32.mrb[0].mxu0
        %v8959 = vpop.f32.mrb[0].mxu0
        %v8960 = vadd.f32 %v8575, %v8959
        %v8961 = vpop.f32.mrb[0].mxu0
        %8962 = vmatprep.mubr.bf16.mxu0 %v8194
        %8963 = vmatmul.mubr.bf16.gmra.mrb[0].mxu0 %v8193
        %v8964 = vpop.f32.mrb[0].mxu0
        %v8965 = vadd.f32 %v8580, %v8964
        %v8966 = vpop.f32.mrb[0].mxu0
        %v8967 = vpop.f32.mrb[0].mxu0
        %v8968 = vadd.f32 %v8583, %v8967
        %v8969 = vpop.f32.mrb[0].mxu0
        %8970 = vmatprep.mubr.bf16.mxu0 %v8196
        %8971 = vmatmul.mubr.bf16.gmra.mrb[0].mxu0 %v8195
        %v8972 = vpop.f32.mrb[0].mxu0
        %v8973 = vadd.f32 %v8588, %v8972
        %v8974 = vpop.f32.mrb[0].mxu0
        %v8975 = vpop.f32.mrb[0].mxu0
        %v8976 = vadd.f32 %v8591, %v8975
        %v8977 = vpop.f32.mrb[0].mxu0
        %8978 = vmatprep.mubr.bf16.mxu0 %v8198
        %8979 = vmatmul.mubr.bf16.gmra.mrb[0].mxu0 %v8197
        %v8980 = vpop.f32.mrb[0].mxu0
        %v8981 = vadd.f32 %v8596, %v8980
        %v8982 = vpop.f32.mrb[0].mxu0
        %v8983 = vpop.f32.mrb[0].mxu0
        %v8984 = vadd.f32 %v8599, %v8983
        %v8985 = vpop.f32.mrb[0].mxu0
        %8986 = vmatprep.mubr.bf16.mxu0 %v8200
        %8987 = vmatmul.mubr.bf16.gmra.mrb[0].mxu0 %v8199
        %v8988 = vpop.f32.mrb[0].mxu0
        %v8989 = vadd.f32 %v8604, %v8988
        %v8990 = vpop.f32.mrb[0].mxu0
        %v8991 = vpop.f32.mrb[0].mxu0
        %v8992 = vadd.f32 %v8607, %v8991
        %v8993 = vpop.f32.mrb[0].mxu0
        %8994 = vmatprep.mubr.bf16.mxu0 %v8202
        %8995 = vmatmul.mubr.bf16.gmra.mrb[0].mxu0 %v8201
        %v8996 = vpop.f32.mrb[0].mxu0
        %v8997 = vadd.f32 %v8612, %v8996
        %v8998 = vpop.f32.mrb[0].mxu0
        %v8999 = vpop.f32.mrb[0].mxu0
        %v9000 = vadd.f32 %v8615, %v8999
        %v9001 = vpop.f32.mrb[0].mxu0
        %9002 = vmatprep.mubr.bf16.mxu0 %v8204
        %9003 = vmatmul.mubr.bf16.gmra.mrb[0].mxu0 %v8203
        %v9004 = vpop.f32.mrb[0].mxu0
        %v9005 = vadd.f32 %v8620, %v9004
        %v9006 = vpop.f32.mrb[0].mxu0
        %v9007 = vpop.f32.mrb[0].mxu0
        %v9008 = vadd.f32 %v8623, %v9007
        %v9009 = vpop.f32.mrb[0].mxu0
        %9010 = vdwg.mxu0
        %v9011 = vld [vmem:[%s13] sm:$0x1]
        %v9013 = vlaneseq
        %v9014 = vshrl.u32 %v9013, 7
        %v9015 = vsub.s32 0, %v9014
        %v9016 = vrot.slane %v9011, %v9015
        %v9018 = vadd.f32 %v8757, %v9016
        %v9019 = vadd.f32 %v8760, %v9016
        %v9020 = vadd.f32 %v8765, %v9016
        %v9021 = vadd.f32 %v8768, %v9016
        %v9022 = vadd.f32 %v8773, %v9016
        %v9023 = vadd.f32 %v8776, %v9016
        %v9024 = vadd.f32 %v8781, %v9016
        %v9025 = vadd.f32 %v8784, %v9016
        %v9026 = vadd.f32 %v8789, %v9016
        %v9027 = vadd.f32 %v8792, %v9016
        %v9028 = vadd.f32 %v8797, %v9016
        %v9029 = vadd.f32 %v8800, %v9016
        %v9030 = vadd.f32 %v8805, %v9016
        %v9031 = vadd.f32 %v8808, %v9016
        %v9032 = vadd.f32 %v8813, %v9016
        %v9033 = vadd.f32 %v8816, %v9016
        %v9034 = vadd.f32 %v8821, %v9016
        %v9035 = vadd.f32 %v8824, %v9016
        %v9036 = vadd.f32 %v8829, %v9016
        %v9037 = vadd.f32 %v8832, %v9016
        %v9038 = vadd.f32 %v8837, %v9016
        %v9039 = vadd.f32 %v8840, %v9016
        %v9040 = vadd.f32 %v8845, %v9016
        %v9041 = vadd.f32 %v8848, %v9016
        %v9042 = vadd.f32 %v8853, %v9016
        %v9043 = vadd.f32 %v8856, %v9016
        %v9044 = vadd.f32 %v8861, %v9016
        %v9045 = vadd.f32 %v8864, %v9016
        %v9046 = vadd.f32 %v8869, %v9016
        %v9047 = vadd.f32 %v8872, %v9016
        %v9048 = vadd.f32 %v8877, %v9016
        %v9049 = vadd.f32 %v8880, %v9016
        %v9050 = vadd.f32 %v8885, %v9016
        %v9051 = vadd.f32 %v8888, %v9016
        %v9052 = vadd.f32 %v8893, %v9016
        %v9053 = vadd.f32 %v8896, %v9016
        %v9054 = vadd.f32 %v8901, %v9016
        %v9055 = vadd.f32 %v8904, %v9016
        %v9056 = vadd.f32 %v8909, %v9016
        %v9057 = vadd.f32 %v8912, %v9016
        %v9058 = vadd.f32 %v8917, %v9016
        %v9059 = vadd.f32 %v8920, %v9016
        %v9060 = vadd.f32 %v8925, %v9016
        %v9061 = vadd.f32 %v8928, %v9016
        %v9062 = vadd.f32 %v8933, %v9016
        %v9063 = vadd.f32 %v8936, %v9016
        %v9064 = vadd.f32 %v8941, %v9016
        %v9065 = vadd.f32 %v8944, %v9016
        %v9066 = vadd.f32 %v8949, %v9016
        %v9067 = vadd.f32 %v8952, %v9016
        %v9068 = vadd.f32 %v8957, %v9016
        %v9069 = vadd.f32 %v8960, %v9016
        %v9070 = vadd.f32 %v8965, %v9016
        %v9071 = vadd.f32 %v8968, %v9016
        %v9072 = vadd.f32 %v8973, %v9016
        %v9073 = vadd.f32 %v8976, %v9016
        %v9074 = vadd.f32 %v8981, %v9016
        %v9075 = vadd.f32 %v8984, %v9016
        %v9076 = vadd.f32 %v8989, %v9016
        %v9077 = vadd.f32 %v8992, %v9016
        %v9078 = vadd.f32 %v8997, %v9016
        %v9079 = vadd.f32 %v9000, %v9016
        %v9080 = vadd.f32 %v9005, %v9016
        %v9081 = vadd.f32 %v9008, %v9016
        %v9082 = vmax.f32 %v9018, 0.0
        %v9083 = vmax.f32 %v9019, 0.0
        %v9084 = vmax.f32 %v9020, 0.0
        %v9085 = vmax.f32 %v9021, 0.0
        %v9086 = vmax.f32 %v9022, 0.0
        %v9087 = vmax.f32 %v9023, 0.0
        %v9088 = vmax.f32 %v9024, 0.0
        %v9089 = vmax.f32 %v9025, 0.0
        %v9090 = vmax.f32 %v9026, 0.0
        %v9091 = vmax.f32 %v9027, 0.0
        %v9092 = vmax.f32 %v9028, 0.0
        %v9093 = vmax.f32 %v9029, 0.0
        %v9094 = vmax.f32 %v9030, 0.0
        %v9095 = vmax.f32 %v9031, 0.0
        %v9096 = vmax.f32 %v9032, 0.0
        %v9097 = vmax.f32 %v9033, 0.0
        %v9098 = vmax.f32 %v9034, 0.0
        %v9099 = vmax.f32 %v9035, 0.0
        %v9100 = vmax.f32 %v9036, 0.0
        %v9101 = vmax.f32 %v9037, 0.0
        %v9102 = vmax.f32 %v9038, 0.0
        %v9103 = vmax.f32 %v9039, 0.0
        %v9104 = vmax.f32 %v9040, 0.0
        %v9105 = vmax.f32 %v9041, 0.0
        %v9106 = vmax.f32 %v9042, 0.0
        %v9107 = vmax.f32 %v9043, 0.0
        %v9108 = vmax.f32 %v9044, 0.0
        %v9109 = vmax.f32 %v9045, 0.0
        %v9110 = vmax.f32 %v9046, 0.0
        %v9111 = vmax.f32 %v9047, 0.0
        %v9112 = vmax.f32 %v9048, 0.0
        %v9113 = vmax.f32 %v9049, 0.0
        %v9114 = vmax.f32 %v9050, 0.0
        %v9115 = vmax.f32 %v9051, 0.0
        %v9116 = vmax.f32 %v9052, 0.0
        %v9117 = vmax.f32 %v9053, 0.0
        %v9118 = vmax.f32 %v9054, 0.0
        %v9119 = vmax.f32 %v9055, 0.0
        %v9120 = vmax.f32 %v9056, 0.0
        %v9121 = vmax.f32 %v9057, 0.0
        %v9122 = vmax.f32 %v9058, 0.0
        %v9123 = vmax.f32 %v9059, 0.0
        %v9124 = vmax.f32 %v9060, 0.0
        %v9125 = vmax.f32 %v9061, 0.0
        %v9126 = vmax.f32 %v9062, 0.0
        %v9127 = vmax.f32 %v9063, 0.0
        %v9128 = vmax.f32 %v9064, 0.0
        %v9129 = vmax.f32 %v9065, 0.0
        %v9130 = vmax.f32 %v9066, 0.0
        %v9131 = vmax.f32 %v9067, 0.0
        %v9132 = vmax.f32 %v9068, 0.0
        %v9133 = vmax.f32 %v9069, 0.0
        %v9134 = vmax.f32 %v9070, 0.0
        %v9135 = vmax.f32 %v9071, 0.0
        %v9136 = vmax.f32 %v9072, 0.0
        %v9137 = vmax.f32 %v9073, 0.0
        %v9138 = vmax.f32 %v9074, 0.0
        %v9139 = vmax.f32 %v9075, 0.0
        %v9140 = vmax.f32 %v9076, 0.0
        %v9141 = vmax.f32 %v9077, 0.0
        %v9142 = vmax.f32 %v9078, 0.0
        %v9143 = vmax.f32 %v9079, 0.0
        %v9144 = vmax.f32 %v9080, 0.0
        %v9145 = vmax.f32 %v9081, 0.0
        %v9146 = vpack.c.bf16 %v9083, %v9082
        %v9147 = vpack.c.bf16 %v9085, %v9084
        %v9148 = vpack.c.bf16 %v9087, %v9086
        %v9149 = vpack.c.bf16 %v9089, %v9088
        %v9150 = vpack.c.bf16 %v9091, %v9090
        %v9151 = vpack.c.bf16 %v9093, %v9092
        %v9152 = vpack.c.bf16 %v9095, %v9094
        %v9153 = vpack.c.bf16 %v9097, %v9096
        %v9154 = vpack.c.bf16 %v9099, %v9098
        %v9155 = vpack.c.bf16 %v9101, %v9100
        %v9156 = vpack.c.bf16 %v9103, %v9102
        %v9157 = vpack.c.bf16 %v9105, %v9104
        %v9158 = vpack.c.bf16 %v9107, %v9106
        %v9159 = vpack.c.bf16 %v9109, %v9108
        %v9160 = vpack.c.bf16 %v9111, %v9110
        %v9161 = vpack.c.bf16 %v9113, %v9112
        %v9162 = vpack.c.bf16 %v9115, %v9114
        %v9163 = vpack.c.bf16 %v9117, %v9116
        %v9164 = vpack.c.bf16 %v9119, %v9118
        %v9165 = vpack.c.bf16 %v9121, %v9120
        %v9166 = vpack.c.bf16 %v9123, %v9122
        %v9167 = vpack.c.bf16 %v9125, %v9124
        %v9168 = vpack.c.bf16 %v9127, %v9126
        %v9169 = vpack.c.bf16 %v9129, %v9128
        %v9170 = vpack.c.bf16 %v9131, %v9130
        %v9171 = vpack.c.bf16 %v9133, %v9132
        %v9172 = vpack.c.bf16 %v9135, %v9134
        %v9173 = vpack.c.bf16 %v9137, %v9136
        %v9174 = vpack.c.bf16 %v9139, %v9138
        %v9175 = vpack.c.bf16 %v9141, %v9140
        %v9176 = vpack.c.bf16 %v9143, %v9142
        %v9177 = vpack.c.bf16 %v9145, %v9144
        %v9178 = vld [vmem:[%s14] sm:$0xf]
        %v9179 = vld [vmem:[%s14 + $0x4] sm:$0xf]
        %v9180 = vld [vmem:[%s14 + $0x8] sm:$0xf]
        %v9181 = vld [vmem:[%s14 + $0xc] sm:$0xf]
        %v9182 = vld [vmem:[%s14 + $0x10] sm:$0xf]
        %v9183 = vld [vmem:[%s14 + $0x14] sm:$0xf]
        %v9184 = vld [vmem:[%s14 + $0x18] sm:$0xf]
        %v9185 = vld [vmem:[%s14 + $0x1c] sm:$0xf]
        %v9186 = vld [vmem:[%s14 + $0x20] sm:$0xf]
        %v9187 = vld [vmem:[%s14 + $0x24] sm:$0xf]
        %v9188 = vld [vmem:[%s14 + $0x28] sm:$0xf]
        %v9189 = vld [vmem:[%s14 + $0x2c] sm:$0xf]
        %v9190 = vld [vmem:[%s14 + $0x30] sm:$0xf]
        %v9191 = vld [vmem:[%s14 + $0x34] sm:$0xf]
        %v9192 = vld [vmem:[%s14 + $0x38] sm:$0xf]
        %v9193 = vld [vmem:[%s14 + $0x3c] sm:$0xf]
        %v9194 = vld [vmem:[%s15] sm:$0x1]
        %v9196 = vlaneseq
        %v9197 = vshrl.u32 %v9196, 7
        %v9198 = vsub.s32 0, %v9197
        %v9199 = vrot.slane %v9194, %v9198
        %v9217 = vunpack.c.l.b16 %v9178
        %v9218 = vunpack.c.l.b16 %v9179
        %v9219 = vunpack.c.l.b16 %v9180
        %v9220 = vunpack.c.l.b16 %v9181
        %v9221 = vunpack.c.l.b16 %v9182
        %v9222 = vunpack.c.l.b16 %v9183
        %v9223 = vunpack.c.l.b16 %v9184
        %v9224 = vunpack.c.l.b16 %v9185
        %v9225 = vunpack.c.l.b16 %v9186
        %v9226 = vunpack.c.l.b16 %v9187
        %v9227 = vunpack.c.l.b16 %v9188
        %v9228 = vunpack.c.l.b16 %v9189
        %v9229 = vunpack.c.l.b16 %v9190
        %v9230 = vunpack.c.l.b16 %v9191
        %v9231 = vunpack.c.l.b16 %v9192
        %v9232 = vunpack.c.l.b16 %v9193
        %v9233 = vpack.c.b16 %v9218, %v9217
        %v9234 = vpack.c.b16 %v9220, %v9219
        %v9235 = vpack.c.b16 %v9222, %v9221
        %v9236 = vpack.c.b16 %v9224, %v9223
        %v9237 = vpack.c.b16 %v9226, %v9225
        %v9238 = vpack.c.b16 %v9228, %v9227
        %v9239 = vpack.c.b16 %v9230, %v9229
        %v9240 = vpack.c.b16 %v9232, %v9231
        %9249 = vmatprep.subr.bf16.mxu0 0
        %9250 = vmatpush1.bf16.msra.mxu0 %v9233
        %9251 = vmatprep.subr.bf16.mxu0 0
        %9252 = vmatpush1.bf16.msra.mxu0 %v9234
        %9253 = vmatprep.subr.bf16.mxu0 0
        %9254 = vmatpush1.bf16.msra.mxu0 %v9235
        %9255 = vmatprep.subr.bf16.mxu0 0
        %9256 = vmatpush1.bf16.msra.mxu0 %v9236
        %9257 = vmatprep.subr.bf16.mxu0 0
        %9258 = vmatpush1.bf16.msra.mxu0 %v9237
        %9259 = vmatprep.subr.bf16.mxu0 0
        %9260 = vmatpush1.bf16.msra.mxu0 %v9238
        %9261 = vmatprep.subr.bf16.mxu0 0
        %9262 = vmatpush1.bf16.msra.mxu0 %v9239
        %9263 = vmatprep.subr.bf16.mxu0 0
        %9264 = vmatpush1.bf16.msra.mxu0 %v9240
        %9265 = vmatprep.subr.bf16.mxu0 0
        %9266 = vmatpush1.bf16.msra.mxu0 0
        %9267 = vmatprep.subr.bf16.mxu0 0
        %9268 = vmatpush1.bf16.msra.mxu0 0
        %9269 = vmatprep.subr.bf16.mxu0 0
        %9270 = vmatpush1.bf16.msra.mxu0 0
        %9271 = vmatprep.subr.bf16.mxu0 0
        %9272 = vmatpush1.bf16.msra.mxu0 0
        %9273 = vmatprep.subr.bf16.mxu0 0
        %9274 = vmatpush1.bf16.msra.mxu0 0
        %9275 = vmatprep.subr.bf16.mxu0 0
        %9276 = vmatpush1.bf16.msra.mxu0 0
        %9277 = vmatprep.subr.bf16.mxu0 0
        %9278 = vmatpush1.bf16.msra.mxu0 0
        %9279 = vmatprep.subr.bf16.mxu0 0
        %9280 = vmatpush1.bf16.msra.mxu0 0
        %9281 = vmatprep.mubr.bf16.mxu0 0
        %9282 = vmatmul.mubr.bf16.gmra.mrb[0].mxu0 %v9146
        %v9283 = vpop.f32.mrb[0].mxu0
        %v9284 = vadd.f32 %v9199, %v9283
        %v9285 = vpop.f32.mrb[0].mxu0
        %v9286 = vpop.f32.mrb[0].mxu0
        %v9287 = vadd.f32 %v9199, %v9286
        %v9288 = vpop.f32.mrb[0].mxu0
        %9289 = vmatprep.mubr.bf16.mxu0 0
        %9290 = vmatmul.mubr.bf16.gmra.mrb[0].mxu0 %v9147
        %v9291 = vpop.f32.mrb[0].mxu0
        %v9292 = vadd.f32 %v9199, %v9291
        %v9293 = vpop.f32.mrb[0].mxu0
        %v9294 = vpop.f32.mrb[0].mxu0
        %v9295 = vadd.f32 %v9199, %v9294
        %v9296 = vpop.f32.mrb[0].mxu0
        %9297 = vmatprep.mubr.bf16.mxu0 0
        %9298 = vmatmul.mubr.bf16.gmra.mrb[0].mxu0 %v9148
        %v9299 = vpop.f32.mrb[0].mxu0
        %v9300 = vadd.f32 %v9199, %v9299
        %v9301 = vpop.f32.mrb[0].mxu0
        %v9302 = vpop.f32.mrb[0].mxu0
        %v9303 = vadd.f32 %v9199, %v9302
        %v9304 = vpop.f32.mrb[0].mxu0
        %9305 = vmatprep.mubr.bf16.mxu0 0
        %9306 = vmatmul.mubr.bf16.gmra.mrb[0].mxu0 %v9149
        %v9307 = vpop.f32.mrb[0].mxu0
        %v9308 = vadd.f32 %v9199, %v9307
        %v9309 = vpop.f32.mrb[0].mxu0
        %v9310 = vpop.f32.mrb[0].mxu0
        %v9311 = vadd.f32 %v9199, %v9310
        %v9312 = vpop.f32.mrb[0].mxu0
        %9313 = vmatprep.mubr.bf16.mxu0 0
        %9314 = vmatmul.mubr.bf16.gmra.mrb[0].mxu0 %v9150
        %v9315 = vpop.f32.mrb[0].mxu0
        %v9316 = vadd.f32 %v9199, %v9315
        %v9317 = vpop.f32.mrb[0].mxu0
        %v9318 = vpop.f32.mrb[0].mxu0
        %v9319 = vadd.f32 %v9199, %v9318
        %v9320 = vpop.f32.mrb[0].mxu0
        %9321 = vmatprep.mubr.bf16.mxu0 0
        %9322 = vmatmul.mubr.bf16.gmra.mrb[0].mxu0 %v9151
        %v9323 = vpop.f32.mrb[0].mxu0
        %v9324 = vadd.f32 %v9199, %v9323
        %v9325 = vpop.f32.mrb[0].mxu0
        %v9326 = vpop.f32.mrb[0].mxu0
        %v9327 = vadd.f32 %v9199, %v9326
        %v9328 = vpop.f32.mrb[0].mxu0
        %9329 = vmatprep.mubr.bf16.mxu0 0
        %9330 = vmatmul.mubr.bf16.gmra.mrb[0].mxu0 %v9152
        %v9331 = vpop.f32.mrb[0].mxu0
        %v9332 = vadd.f32 %v9199, %v9331
        %v9333 = vpop.f32.mrb[0].mxu0
        %v9334 = vpop.f32.mrb[0].mxu0
        %v9335 = vadd.f32 %v9199, %v9334
        %v9336 = vpop.f32.mrb[0].mxu0
        %9337 = vmatprep.mubr.bf16.mxu0 0
        %9338 = vmatmul.mubr.bf16.gmra.mrb[0].mxu0 %v9153
        %v9339 = vpop.f32.mrb[0].mxu0
        %v9340 = vadd.f32 %v9199, %v9339
        %v9341 = vpop.f32.mrb[0].mxu0
        %v9342 = vpop.f32.mrb[0].mxu0
        %v9343 = vadd.f32 %v9199, %v9342
        %v9344 = vpop.f32.mrb[0].mxu0
        %9345 = vmatprep.mubr.bf16.mxu0 0
        %9346 = vmatmul.mubr.bf16.gmra.mrb[0].mxu0 %v9154
        %v9347 = vpop.f32.mrb[0].mxu0
        %v9348 = vadd.f32 %v9199, %v9347
        %v9349 = vpop.f32.mrb[0].mxu0
        %v9350 = vpop.f32.mrb[0].mxu0
        %v9351 = vadd.f32 %v9199, %v9350
        %v9352 = vpop.f32.mrb[0].mxu0
        %9353 = vmatprep.mubr.bf16.mxu0 0
        %9354 = vmatmul.mubr.bf16.gmra.mrb[0].mxu0 %v9155
        %v9355 = vpop.f32.mrb[0].mxu0
        %v9356 = vadd.f32 %v9199, %v9355
        %v9357 = vpop.f32.mrb[0].mxu0
        %v9358 = vpop.f32.mrb[0].mxu0
        %v9359 = vadd.f32 %v9199, %v9358
        %v9360 = vpop.f32.mrb[0].mxu0
        %9361 = vmatprep.mubr.bf16.mxu0 0
        %9362 = vmatmul.mubr.bf16.gmra.mrb[0].mxu0 %v9156
        %v9363 = vpop.f32.mrb[0].mxu0
        %v9364 = vadd.f32 %v9199, %v9363
        %v9365 = vpop.f32.mrb[0].mxu0
        %v9366 = vpop.f32.mrb[0].mxu0
        %v9367 = vadd.f32 %v9199, %v9366
        %v9368 = vpop.f32.mrb[0].mxu0
        %9369 = vmatprep.mubr.bf16.mxu0 0
        %9370 = vmatmul.mubr.bf16.gmra.mrb[0].mxu0 %v9157
        %v9371 = vpop.f32.mrb[0].mxu0
        %v9372 = vadd.f32 %v9199, %v9371
        %v9373 = vpop.f32.mrb[0].mxu0
        %v9374 = vpop.f32.mrb[0].mxu0
        %v9375 = vadd.f32 %v9199, %v9374
        %v9376 = vpop.f32.mrb[0].mxu0
        %9377 = vmatprep.mubr.bf16.mxu0 0
        %9378 = vmatmul.mubr.bf16.gmra.mrb[0].mxu0 %v9158
        %v9379 = vpop.f32.mrb[0].mxu0
        %v9380 = vadd.f32 %v9199, %v9379
        %v9381 = vpop.f32.mrb[0].mxu0
        %v9382 = vpop.f32.mrb[0].mxu0
        %v9383 = vadd.f32 %v9199, %v9382
        %v9384 = vpop.f32.mrb[0].mxu0
        %9385 = vmatprep.mubr.bf16.mxu0 0
        %9386 = vmatmul.mubr.bf16.gmra.mrb[0].mxu0 %v9159
        %v9387 = vpop.f32.mrb[0].mxu0
        %v9388 = vadd.f32 %v9199, %v9387
        %v9389 = vpop.f32.mrb[0].mxu0
        %v9390 = vpop.f32.mrb[0].mxu0
        %v9391 = vadd.f32 %v9199, %v9390
        %v9392 = vpop.f32.mrb[0].mxu0
        %9393 = vmatprep.mubr.bf16.mxu0 0
        %9394 = vmatmul.mubr.bf16.gmra.mrb[0].mxu0 %v9160
        %v9395 = vpop.f32.mrb[0].mxu0
        %v9396 = vadd.f32 %v9199, %v9395
        %v9397 = vpop.f32.mrb[0].mxu0
        %v9398 = vpop.f32.mrb[0].mxu0
        %v9399 = vadd.f32 %v9199, %v9398
        %v9400 = vpop.f32.mrb[0].mxu0
        %9401 = vmatprep.mubr.bf16.mxu0 0
        %9402 = vmatmul.mubr.bf16.gmra.mrb[0].mxu0 %v9161
        %v9403 = vpop.f32.mrb[0].mxu0
        %v9404 = vadd.f32 %v9199, %v9403
        %v9405 = vpop.f32.mrb[0].mxu0
        %v9406 = vpop.f32.mrb[0].mxu0
        %v9407 = vadd.f32 %v9199, %v9406
        %v9408 = vpop.f32.mrb[0].mxu0
        %9409 = vmatprep.mubr.bf16.mxu0 0
        %9410 = vmatmul.mubr.bf16.gmra.mrb[0].mxu0 %v9162
        %v9411 = vpop.f32.mrb[0].mxu0
        %v9412 = vadd.f32 %v9199, %v9411
        %v9413 = vpop.f32.mrb[0].mxu0
        %v9414 = vpop.f32.mrb[0].mxu0
        %v9415 = vadd.f32 %v9199, %v9414
        %v9416 = vpop.f32.mrb[0].mxu0
        %9417 = vmatprep.mubr.bf16.mxu0 0
        %9418 = vmatmul.mubr.bf16.gmra.mrb[0].mxu0 %v9163
        %v9419 = vpop.f32.mrb[0].mxu0
        %v9420 = vadd.f32 %v9199, %v9419
        %v9421 = vpop.f32.mrb[0].mxu0
        %v9422 = vpop.f32.mrb[0].mxu0
        %v9423 = vadd.f32 %v9199, %v9422
        %v9424 = vpop.f32.mrb[0].mxu0
        %9425 = vmatprep.mubr.bf16.mxu0 0
        %9426 = vmatmul.mubr.bf16.gmra.mrb[0].mxu0 %v9164
        %v9427 = vpop.f32.mrb[0].mxu0
        %v9428 = vadd.f32 %v9199, %v9427
        %v9429 = vpop.f32.mrb[0].mxu0
        %v9430 = vpop.f32.mrb[0].mxu0
        %v9431 = vadd.f32 %v9199, %v9430
        %v9432 = vpop.f32.mrb[0].mxu0
        %9433 = vmatprep.mubr.bf16.mxu0 0
        %9434 = vmatmul.mubr.bf16.gmra.mrb[0].mxu0 %v9165
        %v9435 = vpop.f32.mrb[0].mxu0
        %v9436 = vadd.f32 %v9199, %v9435
        %v9437 = vpop.f32.mrb[0].mxu0
        %v9438 = vpop.f32.mrb[0].mxu0
        %v9439 = vadd.f32 %v9199, %v9438
        %v9440 = vpop.f32.mrb[0].mxu0
        %9441 = vmatprep.mubr.bf16.mxu0 0
        %9442 = vmatmul.mubr.bf16.gmra.mrb[0].mxu0 %v9166
        %v9443 = vpop.f32.mrb[0].mxu0
        %v9444 = vadd.f32 %v9199, %v9443
        %v9445 = vpop.f32.mrb[0].mxu0
        %v9446 = vpop.f32.mrb[0].mxu0
        %v9447 = vadd.f32 %v9199, %v9446
        %v9448 = vpop.f32.mrb[0].mxu0
        %9449 = vmatprep.mubr.bf16.mxu0 0
        %9450 = vmatmul.mubr.bf16.gmra.mrb[0].mxu0 %v9167
        %v9451 = vpop.f32.mrb[0].mxu0
        %v9452 = vadd.f32 %v9199, %v9451
        %v9453 = vpop.f32.mrb[0].mxu0
        %v9454 = vpop.f32.mrb[0].mxu0
        %v9455 = vadd.f32 %v9199, %v9454
        %v9456 = vpop.f32.mrb[0].mxu0
        %9457 = vmatprep.mubr.bf16.mxu0 0
        %9458 = vmatmul.mubr.bf16.gmra.mrb[0].mxu0 %v9168
        %v9459 = vpop.f32.mrb[0].mxu0
        %v9460 = vadd.f32 %v9199, %v9459
        %v9461 = vpop.f32.mrb[0].mxu0
        %v9462 = vpop.f32.mrb[0].mxu0
        %v9463 = vadd.f32 %v9199, %v9462
        %v9464 = vpop.f32.mrb[0].mxu0
        %9465 = vmatprep.mubr.bf16.mxu0 0
        %9466 = vmatmul.mubr.bf16.gmra.mrb[0].mxu0 %v9169
        %v9467 = vpop.f32.mrb[0].mxu0
        %v9468 = vadd.f32 %v9199, %v9467
        %v9469 = vpop.f32.mrb[0].mxu0
        %v9470 = vpop.f32.mrb[0].mxu0
        %v9471 = vadd.f32 %v9199, %v9470
        %v9472 = vpop.f32.mrb[0].mxu0
        %9473 = vmatprep.mubr.bf16.mxu0 0
        %9474 = vmatmul.mubr.bf16.gmra.mrb[0].mxu0 %v9170
        %v9475 = vpop.f32.mrb[0].mxu0
        %v9476 = vadd.f32 %v9199, %v9475
        %v9477 = vpop.f32.mrb[0].mxu0
        %v9478 = vpop.f32.mrb[0].mxu0
        %v9479 = vadd.f32 %v9199, %v9478
        %v9480 = vpop.f32.mrb[0].mxu0
        %9481 = vmatprep.mubr.bf16.mxu0 0
        %9482 = vmatmul.mubr.bf16.gmra.mrb[0].mxu0 %v9171
        %v9483 = vpop.f32.mrb[0].mxu0
        %v9484 = vadd.f32 %v9199, %v9483
        %v9485 = vpop.f32.mrb[0].mxu0
        %v9486 = vpop.f32.mrb[0].mxu0
        %v9487 = vadd.f32 %v9199, %v9486
        %v9488 = vpop.f32.mrb[0].mxu0
        %9489 = vmatprep.mubr.bf16.mxu0 0
        %9490 = vmatmul.mubr.bf16.gmra.mrb[0].mxu0 %v9172
        %v9491 = vpop.f32.mrb[0].mxu0
        %v9492 = vadd.f32 %v9199, %v9491
        %v9493 = vpop.f32.mrb[0].mxu0
        %v9494 = vpop.f32.mrb[0].mxu0
        %v9495 = vadd.f32 %v9199, %v9494
        %v9496 = vpop.f32.mrb[0].mxu0
        %9497 = vmatprep.mubr.bf16.mxu0 0
        %9498 = vmatmul.mubr.bf16.gmra.mrb[0].mxu0 %v9173
        %v9499 = vpop.f32.mrb[0].mxu0
        %v9500 = vadd.f32 %v9199, %v9499
        %v9501 = vpop.f32.mrb[0].mxu0
        %v9502 = vpop.f32.mrb[0].mxu0
        %v9503 = vadd.f32 %v9199, %v9502
        %v9504 = vpop.f32.mrb[0].mxu0
        %9505 = vmatprep.mubr.bf16.mxu0 0
        %9506 = vmatmul.mubr.bf16.gmra.mrb[0].mxu0 %v9174
        %v9507 = vpop.f32.mrb[0].mxu0
        %v9508 = vadd.f32 %v9199, %v9507
        %v9509 = vpop.f32.mrb[0].mxu0
        %v9510 = vpop.f32.mrb[0].mxu0
        %v9511 = vadd.f32 %v9199, %v9510
        %v9512 = vpop.f32.mrb[0].mxu0
        %9513 = vmatprep.mubr.bf16.mxu0 0
        %9514 = vmatmul.mubr.bf16.gmra.mrb[0].mxu0 %v9175
        %v9515 = vpop.f32.mrb[0].mxu0
        %v9516 = vadd.f32 %v9199, %v9515
        %v9517 = vpop.f32.mrb[0].mxu0
        %v9518 = vpop.f32.mrb[0].mxu0
        %v9519 = vadd.f32 %v9199, %v9518
        %v9520 = vpop.f32.mrb[0].mxu0
        %9521 = vmatprep.mubr.bf16.mxu0 0
        %9522 = vmatmul.mubr.bf16.gmra.mrb[0].mxu0 %v9176
        %v9523 = vpop.f32.mrb[0].mxu0
        %v9524 = vadd.f32 %v9199, %v9523
        %v9525 = vpop.f32.mrb[0].mxu0
        %v9526 = vpop.f32.mrb[0].mxu0
        %v9527 = vadd.f32 %v9199, %v9526
        %v9528 = vpop.f32.mrb[0].mxu0
        %9529 = vmatprep.mubr.bf16.mxu0 0
        %9530 = vmatmul.mubr.bf16.gmra.mrb[0].mxu0 %v9177
        %v9531 = vpop.f32.mrb[0].mxu0
        %v9532 = vadd.f32 %v9199, %v9531
        %v9533 = vpop.f32.mrb[0].mxu0
        %v9534 = vpop.f32.mrb[0].mxu0
        %v9535 = vadd.f32 %v9199, %v9534
        %v9536 = vpop.f32.mrb[0].mxu0
        %9537 = vdwg.mxu0
        %v9538 = vadd.f32 %v7887, %v9284
        %v9539 = vadd.f32 %v7890, %v9287
        %v9540 = vadd.f32 %v7895, %v9292
        %v9541 = vadd.f32 %v7898, %v9295
        %v9542 = vadd.f32 %v7903, %v9300
        %v9543 = vadd.f32 %v7906, %v9303
        %v9544 = vadd.f32 %v7911, %v9308
        %v9545 = vadd.f32 %v7914, %v9311
        %v9546 = vadd.f32 %v7919, %v9316
        %v9547 = vadd.f32 %v7922, %v9319
        %v9548 = vadd.f32 %v7927, %v9324
        %v9549 = vadd.f32 %v7930, %v9327
        %v9550 = vadd.f32 %v7935, %v9332
        %v9551 = vadd.f32 %v7938, %v9335
        %v9552 = vadd.f32 %v7943, %v9340
        %v9553 = vadd.f32 %v7946, %v9343
        %v9554 = vadd.f32 %v7951, %v9348
        %v9555 = vadd.f32 %v7954, %v9351
        %v9556 = vadd.f32 %v7959, %v9356
        %v9557 = vadd.f32 %v7962, %v9359
        %v9558 = vadd.f32 %v7967, %v9364
        %v9559 = vadd.f32 %v7970, %v9367
        %v9560 = vadd.f32 %v7975, %v9372
        %v9561 = vadd.f32 %v7978, %v9375
        %v9562 = vadd.f32 %v7983, %v9380
        %v9563 = vadd.f32 %v7986, %v9383
        %v9564 = vadd.f32 %v7991, %v9388
        %v9565 = vadd.f32 %v7994, %v9391
        %v9566 = vadd.f32 %v7999, %v9396
        %v9567 = vadd.f32 %v8002, %v9399
        %v9568 = vadd.f32 %v8007, %v9404
        %v9569 = vadd.f32 %v8010, %v9407
        %v9570 = vadd.f32 %v8015, %v9412
        %v9571 = vadd.f32 %v8018, %v9415
        %v9572 = vadd.f32 %v8023, %v9420
        %v9573 = vadd.f32 %v8026, %v9423
        %v9574 = vadd.f32 %v8031, %v9428
        %v9575 = vadd.f32 %v8034, %v9431
        %v9576 = vadd.f32 %v8039, %v9436
        %v9577 = vadd.f32 %v8042, %v9439
        %v9578 = vadd.f32 %v8047, %v9444
        %v9579 = vadd.f32 %v8050, %v9447
        %v9580 = vadd.f32 %v8055, %v9452
        %v9581 = vadd.f32 %v8058, %v9455
        %v9582 = vadd.f32 %v8063, %v9460
        %v9583 = vadd.f32 %v8066, %v9463
        %v9584 = vadd.f32 %v8071, %v9468
        %v9585 = vadd.f32 %v8074, %v9471
        %v9586 = vadd.f32 %v8079, %v9476
        %v9587 = vadd.f32 %v8082, %v9479
        %v9588 = vadd.f32 %v8087, %v9484
        %v9589 = vadd.f32 %v8090, %v9487
        %v9590 = vadd.f32 %v8095, %v9492
        %v9591 = vadd.f32 %v8098, %v9495
        %v9592 = vadd.f32 %v8103, %v9500
        %v9593 = vadd.f32 %v8106, %v9503
        %v9594 = vadd.f32 %v8111, %v9508
        %v9595 = vadd.f32 %v8114, %v9511
        %v9596 = vadd.f32 %v8119, %v9516
        %v9597 = vadd.f32 %v8122, %v9519
        %v9598 = vadd.f32 %v8127, %v9524
        %v9599 = vadd.f32 %v8130, %v9527
        %v9600 = vadd.f32 %v8135, %v9532
        %v9601 = vadd.f32 %v8138, %v9535
        %9602 = vst [vmem:[%s531] sm:$0xff] %v9538
        %9603 = vst [vmem:[%s531 + $0x8] sm:$0xff] %v9539
        %9604 = vst [vmem:[%s531 + $0x10] sm:$0xff] %v9540
        %9605 = vst [vmem:[%s531 + $0x18] sm:$0xff] %v9541
        %9606 = vst [vmem:[%s531 + $0x20] sm:$0xff] %v9542
        %9607 = vst [vmem:[%s531 + $0x28] sm:$0xff] %v9543
        %9608 = vst [vmem:[%s531 + $0x30] sm:$0xff] %v9544
        %9609 = vst [vmem:[%s531 + $0x38] sm:$0xff] %v9545
        %9610 = vst [vmem:[%s531 + $0x40] sm:$0xff] %v9546
        %9611 = vst [vmem:[%s531 + $0x48] sm:$0xff] %v9547
        %9612 = vst [vmem:[%s531 + $0x50] sm:$0xff] %v9548
        %9613 = vst [vmem:[%s531 + $0x58] sm:$0xff] %v9549
        %9614 = vst [vmem:[%s531 + $0x60] sm:$0xff] %v9550
        %9615 = vst [vmem:[%s531 + $0x68] sm:$0xff] %v9551
        %9616 = vst [vmem:[%s531 + $0x70] sm:$0xff] %v9552
        %9617 = vst [vmem:[%s531 + $0x78] sm:$0xff] %v9553
        %9618 = vst [vmem:[%s531 + $0x80] sm:$0xff] %v9554
        %9619 = vst [vmem:[%s531 + $0x88] sm:$0xff] %v9555
        %9620 = vst [vmem:[%s531 + $0x90] sm:$0xff] %v9556
        %9621 = vst [vmem:[%s531 + $0x98] sm:$0xff] %v9557
        %9622 = vst [vmem:[%s531 + $0xa0] sm:$0xff] %v9558
        %9623 = vst [vmem:[%s531 + $0xa8] sm:$0xff] %v9559
        %9624 = vst [vmem:[%s531 + $0xb0] sm:$0xff] %v9560
        %9625 = vst [vmem:[%s531 + $0xb8] sm:$0xff] %v9561
        %9626 = vst [vmem:[%s531 + $0xc0] sm:$0xff] %v9562
        %9627 = vst [vmem:[%s531 + $0xc8] sm:$0xff] %v9563
        %9628 = vst [vmem:[%s531 + $0xd0] sm:$0xff] %v9564
        %9629 = vst [vmem:[%s531 + $0xd8] sm:$0xff] %v9565
        %9630 = vst [vmem:[%s531 + $0xe0] sm:$0xff] %v9566
        %9631 = vst [vmem:[%s531 + $0xe8] sm:$0xff] %v9567
        %9632 = vst [vmem:[%s531 + $0xf0] sm:$0xff] %v9568
        %9633 = vst [vmem:[%s531 + $0xf8] sm:$0xff] %v9569
        %9634 = vst [vmem:[%s531 + $0x100] sm:$0xff] %v9570
        %9635 = vst [vmem:[%s531 + $0x108] sm:$0xff] %v9571
        %9636 = vst [vmem:[%s531 + $0x110] sm:$0xff] %v9572
        %9637 = vst [vmem:[%s531 + $0x118] sm:$0xff] %v9573
        %9638 = vst [vmem:[%s531 + $0x120] sm:$0xff] %v9574
        %9639 = vst [vmem:[%s531 + $0x128] sm:$0xff] %v9575
        %9640 = vst [vmem:[%s531 + $0x130] sm:$0xff] %v9576
        %9641 = vst [vmem:[%s531 + $0x138] sm:$0xff] %v9577
        %9642 = vst [vmem:[%s531 + $0x140] sm:$0xff] %v9578
        %9643 = vst [vmem:[%s531 + $0x148] sm:$0xff] %v9579
        %9644 = vst [vmem:[%s531 + $0x150] sm:$0xff] %v9580
        %9645 = vst [vmem:[%s531 + $0x158] sm:$0xff] %v9581
        %9646 = vst [vmem:[%s531 + $0x160] sm:$0xff] %v9582
        %9647 = vst [vmem:[%s531 + $0x168] sm:$0xff] %v9583
        %9648 = vst [vmem:[%s531 + $0x170] sm:$0xff] %v9584
        %9649 = vst [vmem:[%s531 + $0x178] sm:$0xff] %v9585
        %9650 = vst [vmem:[%s531 + $0x180] sm:$0xff] %v9586
        %9651 = vst [vmem:[%s531 + $0x188] sm:$0xff] %v9587
        %9652 = vst [vmem:[%s531 + $0x190] sm:$0xff] %v9588
        %9653 = vst [vmem:[%s531 + $0x198] sm:$0xff] %v9589
        %9654 = vst [vmem:[%s531 + $0x1a0] sm:$0xff] %v9590
        %9655 = vst [vmem:[%s531 + $0x1a8] sm:$0xff] %v9591
        %9656 = vst [vmem:[%s531 + $0x1b0] sm:$0xff] %v9592
        %9657 = vst [vmem:[%s531 + $0x1b8] sm:$0xff] %v9593
        %9658 = vst [vmem:[%s531 + $0x1c0] sm:$0xff] %v9594
        %9659 = vst [vmem:[%s531 + $0x1c8] sm:$0xff] %v9595
        %9660 = vst [vmem:[%s531 + $0x1d0] sm:$0xff] %v9596
        %9661 = vst [vmem:[%s531 + $0x1d8] sm:$0xff] %v9597
        %9662 = vst [vmem:[%s531 + $0x1e0] sm:$0xff] %v9598
        %9663 = vst [vmem:[%s531 + $0x1e8] sm:$0xff] %v9599
        %9664 = vst [vmem:[%s531 + $0x1f0] sm:$0xff] %v9600
        %9665 = vst [vmem:[%s531 + $0x1f8] sm:$0xff] %v9601
        %s9666 = sand.u32 %s384, 1
        %s9667 = scalar_lea.sflag [#allocation3], %s9666
        %s9668 = sand.u32 %s384, 1
        %s9669 = smul.addr %s9668, 512
        %s9670 = scalar_lea.vmem [#allocation2], %s9669
        // Predicated region
        $region85: #{tpu_custom_call.1} parent=83 // pred_check
          %p9671 = pneg %p394
        $region86: #{tpu_custom_call.1} parent=83 // pred_check_branch
          %9673 = sbr.rel (%p9671) target = $region88
        $region87: #{tpu_custom_call.1} parent=83 // pred_region
          %s9674 = smul.u32 64, %s30
          %s9676 = ssub.s32 8192, 8192
          %9677 = vsyncadd %s9667, %s9676
          %s9678 = smul.addr %s9674, 128
          %s9679 = scalar_lea.hbm %s16, %s9678
          %s9680 = sshll.u32 %s9670, 4
          %s9681 = int_to_ptr.vmem [resolvable:$true] %s9680
          %9686 = dma.vmem_to_hbm [thread:$0]  %s9681, 8192, %s9679, %s9667, 128, 128, 8
        $region88: #{tpu_custom_call.1} parent=83 // pred_fallthru
          _
      $region84: #{tpu_custom_call.1} parent=5 // pred_fallthru
        _
      %p9687 = scmp.le.s32.totalorder 2, %s25
      // Predicated region
      $region89: #{tpu_custom_call.1} parent=5 // pred_check
        %p9688 = pneg %p9687
      $region90: #{tpu_custom_call.1} parent=5 // pred_check_branch
        %9690 = sbr.rel (%p9688) target = $region92
      $region91: #{tpu_custom_call.1} parent=5 // pred_region
        %s9691 = ssub.s32 %s25, 2
        // Predicated region
        $region93: #{tpu_custom_call.1} parent=91 // pred_check
          %p9692 = pneg %p400
        $region94: #{tpu_custom_call.1} parent=91 // pred_check_branch
          %9694 = sbr.rel (%p9692) target = $region96
        $region95: #{tpu_custom_call.1} parent=91 // pred_region
          %s9695 = sand.u32 %s385, 1
          %s9696 = scalar_lea.sflag [#allocation3], %s9695
          %s9697 = sand.u32 %s385, 1
          %s9698 = smul.addr %s9697, 512
          %s9699 = scalar_lea.vmem [#allocation2], %s9698
          %9700 = dma.done %s9696, 8192
        $region96: #{tpu_custom_call.1} parent=91 // pred_fallthru
          _
      $region92: #{tpu_custom_call.1} parent=5 // pred_fallthru
        _
    $region6: #{tpu_custom_call.1} parent=1 // loop_footer
      %s29 = sadd.s32 1, %s25
    $region7: #{tpu_custom_call.1} parent=1 // loop_footer_branch
      %24 = sbr.rel target = $region3
    $region8: #{tpu_custom_call.1} parent=1 // loop_exit
      _
    %9701 = vsyncpa [#allocation3], 1
    %s9702 = scalar_lea.sflag [#allocation3], 1
    %9703 = vsyncpa %s9702, 1

</llo_original>
